<compile_context>
chip_gen: v7x
topology: tpu7x:2x2x1
jax: 0.10.0
libtpu: 0.0.40
codegen_flags: <defaults>
</compile_context>

<pallas_src>
import numpy as np
import jax
import jax.numpy as jnp
from jax import lax
from jax.experimental import pallas as pl
from jax.experimental.pallas import tpu as pltpu


# Flattened / lane-padded feature sizes.
_IN_F    = 32 * 32         # 1024  (28x28 input, pre-padded by 2 -> 32x32)
_P1_F    = 14 * 14 * 6     # 1176
_P1_PAD  = 1280
_P2_F    = 5 * 5 * 16      # 400
_P2_PAD  = 512
_C3_F    = 120
_C3_PAD  = 128
_OUT_F   = 10
_OUT_PAD = 128
_NEG     = -1e30           # pad-lane logit bias (ignored by log-softmax)


def _sigmoid(x):
    # EUP exp + approximate EUP reciprocal: keeps the VALU slot free.
    return pl.reciprocal(1.0 + jnp.exp(-x), approx=True)


# ------------------------------ kernel body --------------------------------

def _lenet5_kernel(x_ref, w1_ref, b1_ref, w2_ref, b2_ref, w3_ref, b3_ref,
                   wf_ref, bf_ref, o_ref):
    f32, bf16 = jnp.float32, jnp.bfloat16

    x = x_ref[...]                                                  # (B, 1024) bf16
    # conv1(pad=2) + AvgPool(2) folded into one matmul; bias + sigmoid in f32.
    a1 = _sigmoid(jnp.dot(x, w1_ref[...], preferred_element_type=f32)
                  + b1_ref[...])                                    # (B, 1280)
    # conv2 + AvgPool(2) folded; bias + sigmoid.
    a2 = _sigmoid(jnp.dot(a1.astype(bf16), w2_ref[...],
                          preferred_element_type=f32) + b2_ref[...])  # (B, 512)
    # conv3 (5x5 -> 1x1); bias + sigmoid.
    a3 = _sigmoid(jnp.dot(a2.astype(bf16), w3_ref[...],
                          preferred_element_type=f32) + b3_ref[...])  # (B, 128)
    # fc1 @ fc2 folded (no nonlinearity between them in the reference module).
    y = jnp.dot(a3.astype(bf16), wf_ref[...],
                preferred_element_type=f32) + bf_ref[...]           # (B, 128)
    # log-softmax over lanes; pad lanes carry bias -1e30 -> exp underflows to 0.
    m = jnp.max(y, axis=-1, keepdims=True)
    lse = m + jnp.log(jnp.sum(jnp.exp(y - m), axis=-1, keepdims=True))
    o_ref[...] = y - lse


# ------------------------------ host wrapper --------------------------------

def _round_up(n, m):
    return ((n + m - 1) // m) * m


def _resident(shape):
    # Whole-array block, same block every grid step -> stays VMEM-resident.
    return pl.BlockSpec(shape, lambda g: (0, 0))


def lenet5_forward(x_nchw, kp, *, block_b=128):
    """x_nchw: (N, 1, 28, 28) f32; kp: prepared params (see prepare_params).

    Processes `block_b` samples per grid step (batch = M dim of every matmul).
    block_b=128 targets the v5e MXU; 256 fills v6e/v7x better.  Pick block_b so
    real batches give >=2 grid steps on v7x (two TensorCores, 'parallel' axis).
    """
    N = x_nchw.shape[0]
    B = _round_up(min(block_b, max(N, 1)), 16)   # multiple of 16 (bf16 sublanes)
    n_pad = _round_up(N, B)

    # Host-side glue only: conv1's padding=2, flatten to (h, w) order, pad the
    # batch to a multiple of B, cast the MXU operand to bf16.
    xp = jnp.pad(x_nchw, ((0, n_pad - N), (0, 0), (2, 2), (2, 2)))
    xp = xp.reshape(n_pad, _IN_F).astype(jnp.bfloat16)

    out = pl.pallas_call(
        _lenet5_kernel,
        out_shape=jax.ShapeDtypeStruct((n_pad, _OUT_PAD), jnp.float32),
        grid=(n_pad // B,),
        in_specs=[
            pl.BlockSpec((B, _IN_F), lambda g: (g, 0)),   # one batch block/step
            _resident((_IN_F, _P1_PAD)),     # w1 (conv1+pool1 folded)
            _resident((1, _P1_PAD)),         # b1
            _resident((_P1_PAD, _P2_PAD)),   # w2 (conv2+pool2 folded)
            _resident((1, _P2_PAD)),         # b2
            _resident((_P2_PAD, _C3_PAD)),   # w3 (conv3)
            _resident((1, _C3_PAD)),         # b3
            _resident((_C3_PAD, _OUT_PAD)),  # wf (fc1@fc2 folded)
            _resident((1, _OUT_PAD)),        # bf
        ],
        out_specs=pl.BlockSpec((B, _OUT_PAD), lambda g: (g, 0)),  # lane-dense
        compiler_params=pltpu.CompilerParams(
            dimension_semantics=("parallel",),
            vmem_limit_bytes=32 * 1024 * 1024),
    )(xp, kp["w1"], kp["b1"], kp["w2"], kp["b2"], kp["w3"], kp["b3"],
      kp["wf"], kp["bf"])
    return out[:N, :_OUT_F]


def prepare_params(p):
    """One-time host-side weight prep.

    Each Conv2d (+ the following AvgPool2d, which is linear) is folded into a
    dense [in_features, out_features] matrix acting on flattened (h, w, c)
    activations by pushing the identity basis through the exact f32 conv/pool;
    fc1 and fc2 are folded into one matrix.  Feature dims are zero-padded to
    multiples of 128 (pad lanes are killed by zero weight rows downstream; the
    fc pad lanes get a -1e30 bias so log-softmax ignores them).  MXU operands
    are cast to bf16; biases stay f32.
    """
    f32 = np.float32

    def fold_conv(w, h_in, w_in, pool):
        w = np.asarray(w, f32)
        oc, ic, kh, kw = w.shape
        n_in = h_in * w_in * ic
        basis = np.eye(n_in, dtype=f32).reshape(n_in, h_in, w_in, ic)
        basis = np.transpose(basis, (0, 3, 1, 2))               # (n_in, ic, h, w)
        y = lax.conv_general_dilated(
            jnp.asarray(basis), jnp.asarray(w), (1, 1), "VALID",
            dimension_numbers=("NCHW", "OIHW", "NCHW"))
        if pool:
            y = lax.reduce_window(y, 0.0, lax.add, (1, 1, 2, 2), (1, 1, 2, 2),
                                  "VALID") * 0.25
        y = jnp.transpose(y, (0, 2, 3, 1))                      # (n_in, ho, wo, oc)
        return np.asarray(y, f32).reshape(n_in, -1)

    def pad2(m, rows, cols, fill=0.0):
        out = np.full((rows, cols), fill, f32)
        out[:m.shape[0], :m.shape[1]] = m
        return out

    w1 = fold_conv(p["w1"], 32, 32, pool=True)                  # (1024, 1176)
    b1 = np.tile(np.asarray(p["b1"], f32), 14 * 14)             # (1176,)
    w2 = fold_conv(p["w2"], 14, 14, pool=True)                  # (1176, 400)
    b2 = np.tile(np.asarray(p["b2"], f32), 5 * 5)               # (400,)
    w3 = fold_conv(p["w3"], 5, 5, pool=False)                   # (400, 120)
    b3 = np.asarray(p["b3"], f32)                               # (120,)

    fw1, fb1 = np.asarray(p["fw1"], f32), np.asarray(p["fb1"], f32)
    fw2, fb2 = np.asarray(p["fw2"], f32), np.asarray(p["fb2"], f32)
    wf = fw1.T @ fw2.T                                          # (120, 10)
    bf = fb1 @ fw2.T + fb2                                      # (10,)
    bf_pad = np.full((1, _OUT_PAD), _NEG, f32)
    bf_pad[0, :_OUT_F] = bf

    return {
        "w1": jnp.asarray(pad2(w1, _IN_F, _P1_PAD), jnp.bfloat16),
        "b1": jnp.asarray(pad2(b1[None, :], 1, _P1_PAD)),
        "w2": jnp.asarray(pad2(w2, _P1_PAD, _P2_PAD), jnp.bfloat16),
        "b2": jnp.asarray(pad2(b2[None, :], 1, _P2_PAD)),
        "w3": jnp.asarray(pad2(w3, _P2_PAD, _C3_PAD), jnp.bfloat16),
        "b3": jnp.asarray(pad2(b3[None, :], 1, _C3_PAD)),
        "wf": jnp.asarray(pad2(wf, _C3_PAD, _OUT_PAD), jnp.bfloat16),
        "bf": jnp.asarray(bf_pad),
    }


def init_params(key):
    ks = jax.random.split(key, 10)

    def u(k, shape, fan_in):
        bound = 1.0 / np.sqrt(fan_in)
        return jax.random.uniform(k, shape, jnp.float32, -bound, bound)

    return {
        "w1": u(ks[0], (6, 1, 5, 5), 1 * 25),     "b1": u(ks[1], (6,), 1 * 25),
        "w2": u(ks[2], (16, 6, 5, 5), 6 * 25),    "b2": u(ks[3], (16,), 6 * 25),
        "w3": u(ks[4], (120, 16, 5, 5), 16 * 25), "b3": u(ks[5], (120,), 16 * 25),
        "fw1": u(ks[6], (84, 120), 120),          "fb1": u(ks[7], (84,), 120),
        "fw2": u(ks[8], (10, 84), 84),            "fb2": u(ks[9], (10,), 84),
    }


def reference_forward(x, p):
    """Pure-JAX f32 reference of the module's intended semantics."""
    def conv(a, w, b, padding):
        y = lax.conv_general_dilated(a, w, (1, 1), padding,
                                     dimension_numbers=("NCHW", "OIHW", "NCHW"))
        return y + b.reshape(1, -1, 1, 1)

    def avgpool2(a):
        return lax.reduce_window(a, 0.0, lax.add, (1, 1, 2, 2), (1, 1, 2, 2),
                                 "VALID") * 0.25

    a = jax.nn.sigmoid(avgpool2(conv(x, p["w1"], p["b1"], [(2, 2), (2, 2)])))
    a = jax.nn.sigmoid(avgpool2(conv(a, p["w2"], p["b2"], "VALID")))
    a = jax.nn.sigmoid(conv(a, p["w3"], p["b3"], "VALID"))
    a = a.reshape(x.shape[0], 120)
    h = a @ p["fw1"].T + p["fb1"]
    y = h @ p["fw2"].T + p["fb2"]
    return jax.nn.log_softmax(y, axis=-1)


if __name__ == "__main__":
    key = jax.random.PRNGKey(0)
    k_x, k_p = jax.random.split(key)
    # Small demo: 20 MNIST-sized samples, 16 samples per grid step -> 2 steps.
    N = 20
    x = jax.random.normal(k_x, (N, 1, 28, 28), dtype=jnp.float32)
    params = init_params(k_p)
    kparams = prepare_params(params)   # weight folding / padding / cast: once

    fwd = jax.jit(lenet5_forward, static_argnames=("block_b",))
    out = fwd(x, kparams, block_b=16)
    jax.block_until_ready(out)

    assert out.shape == (N, 10)
    assert bool(jnp.all(jnp.isfinite(out)))
    # log-softmax rows should (approximately) sum to 1 after exp
    assert bool(jnp.allclose(jnp.sum(jnp.exp(out), axis=-1), 1.0, atol=1e-4))
    # match the f32 reference (bf16 MXU operands + approx reciprocal -> loose tol)
    ref = reference_forward(x, params)
    assert bool(jnp.max(jnp.abs(out - ref)) < 5e-2)
    print("KERNEL_OK")
</pallas_src>

<mosaic_0001>
module attributes {stable_mosaic.version = 11 : i64} {
  func.func @_lenet5_kernel(%arg0: i32, %arg1: memref<16x1024xbf16, #tpu.memory_space<vmem>>, %arg2: memref<1024x1280xbf16, #tpu.memory_space<vmem>>, %arg3: memref<1x1280xf32, #tpu.memory_space<vmem>>, %arg4: memref<1280x512xbf16, #tpu.memory_space<vmem>>, %arg5: memref<1x512xf32, #tpu.memory_space<vmem>>, %arg6: memref<512x128xbf16, #tpu.memory_space<vmem>>, %arg7: memref<1x128xf32, #tpu.memory_space<vmem>>, %arg8: memref<128x128xbf16, #tpu.memory_space<vmem>>, %arg9: memref<1x128xf32, #tpu.memory_space<vmem>>, %arg10: memref<16x128xf32, #tpu.memory_space<vmem>>) attributes {dimension_semantics = [#tpu.dimension_semantics<parallel>], iteration_bounds = array<i64: 2>, scalar_prefetch = 0 : i64, scratch_operands = 0 : i64, tpu.core_type = #tpu.core_type<tc>, window_params = [{transform_indices = @transform_0, window_bounds = array<i64: 16, 1024>}, {pipeline_mode = #tpu.pipeline_mode<synchronous>, transform_indices = @transform_1, window_bounds = array<i64: 1024, 1280>}, {pipeline_mode = #tpu.pipeline_mode<synchronous>, transform_indices = @transform_2, window_bounds = array<i64: 1, 1280>}, {pipeline_mode = #tpu.pipeline_mode<synchronous>, transform_indices = @transform_3, window_bounds = array<i64: 1280, 512>}, {pipeline_mode = #tpu.pipeline_mode<synchronous>, transform_indices = @transform_4, window_bounds = array<i64: 1, 512>}, {pipeline_mode = #tpu.pipeline_mode<synchronous>, transform_indices = @transform_5, window_bounds = array<i64: 512, 128>}, {pipeline_mode = #tpu.pipeline_mode<synchronous>, transform_indices = @transform_6, window_bounds = array<i64: 1, 128>}, {pipeline_mode = #tpu.pipeline_mode<synchronous>, transform_indices = @transform_7, window_bounds = array<i64: 128, 128>}, {pipeline_mode = #tpu.pipeline_mode<synchronous>, transform_indices = @transform_8, window_bounds = array<i64: 1, 128>}, {transform_indices = @transform_9, window_bounds = array<i64: 16, 128>}]} {
    %c0 = arith.constant 0 : index
    %c0_0 = arith.constant 0 : index
    %0 = vector.load %arg1[%c0, %c0_0] : memref<16x1024xbf16, #tpu.memory_space<vmem>>, vector<16x1024xbf16>
    %c0_1 = arith.constant 0 : index
    %c0_2 = arith.constant 0 : index
    %1 = vector.load %arg2[%c0_1, %c0_2] : memref<1024x1280xbf16, #tpu.memory_space<vmem>>, vector<1024x1280xbf16>
    %cst = arith.constant dense<0.000000e+00> : vector<16x1280xf32>
    %2 = tpu.matmul %0, %1, %cst {dimension_numbers = #tpu.dot_dimension_numbers<[1], [0], [0], [1], [0, 0, 1, 1], [], []>} : vector<16x1024xbf16>, vector<1024x1280xbf16>, vector<16x1280xf32> -> vector<16x1280xf32>
    %c0_3 = arith.constant 0 : index
    %c0_4 = arith.constant 0 : index
    %3 = vector.load %arg3[%c0_3, %c0_4] : memref<1x1280xf32, #tpu.memory_space<vmem>>, vector<1x1280xf32>
    %4 = vector.broadcast %3 : vector<1x1280xf32> to vector<16x1280xf32>
    %5 = arith.addf %2, %4 : vector<16x1280xf32>
    %cst_5 = arith.constant 0.000000e+00 : f32
    %6 = vector.broadcast %cst_5 : f32 to vector<16x1280xf32>
    %7 = arith.subf %6, %5 : vector<16x1280xf32>
    %8 = math.exp %7 : vector<16x1280xf32>
    %cst_6 = arith.constant 1.000000e+00 : f32
    %9 = vector.broadcast %cst_6 : f32 to vector<16x1280xf32>
    %10 = arith.addf %9, %8 : vector<16x1280xf32>
    %11 = tpu.reciprocal %10 {approx = true} : vector<16x1280xf32> -> vector<16x1280xf32>
    %12 = arith.truncf %11 : vector<16x1280xf32> to vector<16x1280xbf16>
    %c0_7 = arith.constant 0 : index
    %c0_8 = arith.constant 0 : index
    %13 = vector.load %arg4[%c0_7, %c0_8] : memref<1280x512xbf16, #tpu.memory_space<vmem>>, vector<1280x512xbf16>
    %cst_9 = arith.constant dense<0.000000e+00> : vector<16x512xf32>
    %14 = tpu.matmul %12, %13, %cst_9 {dimension_numbers = #tpu.dot_dimension_numbers<[1], [0], [0], [1], [0, 0, 1, 1], [], []>} : vector<16x1280xbf16>, vector<1280x512xbf16>, vector<16x512xf32> -> vector<16x512xf32>
    %c0_10 = arith.constant 0 : index
    %c0_11 = arith.constant 0 : index
    %15 = vector.load %arg5[%c0_10, %c0_11] : memref<1x512xf32, #tpu.memory_space<vmem>>, vector<1x512xf32>
    %16 = vector.broadcast %15 : vector<1x512xf32> to vector<16x512xf32>
    %17 = arith.addf %14, %16 : vector<16x512xf32>
    %cst_12 = arith.constant 0.000000e+00 : f32
    %18 = vector.broadcast %cst_12 : f32 to vector<16x512xf32>
    %19 = arith.subf %18, %17 : vector<16x512xf32>
    %20 = math.exp %19 : vector<16x512xf32>
    %cst_13 = arith.constant 1.000000e+00 : f32
    %21 = vector.broadcast %cst_13 : f32 to vector<16x512xf32>
    %22 = arith.addf %21, %20 : vector<16x512xf32>
    %23 = tpu.reciprocal %22 {approx = true} : vector<16x512xf32> -> vector<16x512xf32>
    %24 = arith.truncf %23 : vector<16x512xf32> to vector<16x512xbf16>
    %c0_14 = arith.constant 0 : index
    %c0_15 = arith.constant 0 : index
    %25 = vector.load %arg6[%c0_14, %c0_15] : memref<512x128xbf16, #tpu.memory_space<vmem>>, vector<512x128xbf16>
    %cst_16 = arith.constant dense<0.000000e+00> : vector<16x128xf32>
    %26 = tpu.matmul %24, %25, %cst_16 {dimension_numbers = #tpu.dot_dimension_numbers<[1], [0], [0], [1], [0, 0, 1, 1], [], []>} : vector<16x512xbf16>, vector<512x128xbf16>, vector<16x128xf32> -> vector<16x128xf32>
    %c0_17 = arith.constant 0 : index
    %c0_18 = arith.constant 0 : index
    %27 = vector.load %arg7[%c0_17, %c0_18] : memref<1x128xf32, #tpu.memory_space<vmem>>, vector<1x128xf32>
    %28 = vector.broadcast %27 : vector<1x128xf32> to vector<16x128xf32>
    %29 = arith.addf %26, %28 : vector<16x128xf32>
    %cst_19 = arith.constant 0.000000e+00 : f32
    %30 = vector.broadcast %cst_19 : f32 to vector<16x128xf32>
    %31 = arith.subf %30, %29 : vector<16x128xf32>
    %32 = math.exp %31 : vector<16x128xf32>
    %cst_20 = arith.constant 1.000000e+00 : f32
    %33 = vector.broadcast %cst_20 : f32 to vector<16x128xf32>
    %34 = arith.addf %33, %32 : vector<16x128xf32>
    %35 = tpu.reciprocal %34 {approx = true} : vector<16x128xf32> -> vector<16x128xf32>
    %36 = arith.truncf %35 : vector<16x128xf32> to vector<16x128xbf16>
    %c0_21 = arith.constant 0 : index
    %c0_22 = arith.constant 0 : index
    %37 = vector.load %arg8[%c0_21, %c0_22] : memref<128x128xbf16, #tpu.memory_space<vmem>>, vector<128x128xbf16>
    %cst_23 = arith.constant dense<0.000000e+00> : vector<16x128xf32>
    %38 = tpu.matmul %36, %37, %cst_23 {dimension_numbers = #tpu.dot_dimension_numbers<[1], [0], [0], [1], [0, 0, 1, 1], [], []>} : vector<16x128xbf16>, vector<128x128xbf16>, vector<16x128xf32> -> vector<16x128xf32>
    %c0_24 = arith.constant 0 : index
    %c0_25 = arith.constant 0 : index
    %39 = vector.load %arg9[%c0_24, %c0_25] : memref<1x128xf32, #tpu.memory_space<vmem>>, vector<1x128xf32>
    %40 = vector.broadcast %39 : vector<1x128xf32> to vector<16x128xf32>
    %41 = arith.addf %38, %40 : vector<16x128xf32>
    %cst_26 = arith.constant dense<0xFF800000> : vector<16xf32>
    %42 = vector.multi_reduction <maximumf>, %41, %cst_26 [1] : vector<16x128xf32> to vector<16xf32>
    %43 = vector.shape_cast %42 : vector<16xf32> to vector<16x1xf32>
    %44 = vector.broadcast %43 : vector<16x1xf32> to vector<16x128xf32>
    %45 = arith.subf %41, %44 : vector<16x128xf32>
    %46 = math.exp %45 : vector<16x128xf32>
    %cst_27 = arith.constant dense<0.000000e+00> : vector<16xf32>
    %47 = vector.multi_reduction <add>, %46, %cst_27 [1] : vector<16x128xf32> to vector<16xf32>
    %48 = vector.shape_cast %47 : vector<16xf32> to vector<16x1xf32>
    %49 = math.log %48 : vector<16x1xf32>
    %50 = arith.addf %43, %49 : vector<16x1xf32>
    %51 = vector.broadcast %50 : vector<16x1xf32> to vector<16x128xf32>
    %52 = arith.subf %41, %51 : vector<16x128xf32>
    %c0_28 = arith.constant 0 : index
    %c0_29 = arith.constant 0 : index
    %53 = vector.load %arg10[%c0_28, %c0_29] : memref<16x128xf32, #tpu.memory_space<vmem>>, vector<16x128xf32>
    tpu.vector_store %arg10[%c0_28, %c0_29], %52 {strides = array<i32>} : memref<16x128xf32, #tpu.memory_space<vmem>>, vector<16x128xf32>,
    return
  }
  func.func @transform_0(%arg0: i32) -> (i32, i32) {
    %c0_i32 = arith.constant 0 : i32
    %c0_i32_0 = arith.constant 0 : i32
    return %arg0, %c0_i32 : i32, i32
  }
  func.func @transform_1(%arg0: i32) -> (i32, i32) {
    %c0_i32 = arith.constant 0 : i32
    %c0_i32_0 = arith.constant 0 : i32
    %c0_i32_1 = arith.constant 0 : i32
    return %c0_i32, %c0_i32_0 : i32, i32
  }
  func.func @transform_2(%arg0: i32) -> (i32, i32) {
    %c0_i32 = arith.constant 0 : i32
    %c0_i32_0 = arith.constant 0 : i32
    %c0_i32_1 = arith.constant 0 : i32
    return %c0_i32, %c0_i32_0 : i32, i32
  }
  func.func @transform_3(%arg0: i32) -> (i32, i32) {
    %c0_i32 = arith.constant 0 : i32
    %c0_i32_0 = arith.constant 0 : i32
    %c0_i32_1 = arith.constant 0 : i32
    return %c0_i32, %c0_i32_0 : i32, i32
  }
  func.func @transform_4(%arg0: i32) -> (i32, i32) {
    %c0_i32 = arith.constant 0 : i32
    %c0_i32_0 = arith.constant 0 : i32
    %c0_i32_1 = arith.constant 0 : i32
    return %c0_i32, %c0_i32_0 : i32, i32
  }
  func.func @transform_5(%arg0: i32) -> (i32, i32) {
    %c0_i32 = arith.constant 0 : i32
    %c0_i32_0 = arith.constant 0 : i32
    %c0_i32_1 = arith.constant 0 : i32
    return %c0_i32, %c0_i32_0 : i32, i32
  }
  func.func @transform_6(%arg0: i32) -> (i32, i32) {
    %c0_i32 = arith.constant 0 : i32
    %c0_i32_0 = arith.constant 0 : i32
    %c0_i32_1 = arith.constant 0 : i32
    return %c0_i32, %c0_i32_0 : i32, i32
  }
  func.func @transform_7(%arg0: i32) -> (i32, i32) {
    %c0_i32 = arith.constant 0 : i32
    %c0_i32_0 = arith.constant 0 : i32
    %c0_i32_1 = arith.constant 0 : i32
    return %c0_i32, %c0_i32_0 : i32, i32
  }
  func.func @transform_8(%arg0: i32) -> (i32, i32) {
    %c0_i32 = arith.constant 0 : i32
    %c0_i32_0 = arith.constant 0 : i32
    %c0_i32_1 = arith.constant 0 : i32
    return %c0_i32, %c0_i32_0 : i32, i32
  }
  func.func @transform_9(%arg0: i32) -> (i32, i32) {
    %c0_i32 = arith.constant 0 : i32
    %c0_i32_0 = arith.constant 0 : i32
    return %arg0, %c0_i32 : i32, i32
  }
}

</mosaic_0001>

<llo_original>
// kernel: lenet5_forward.1
$region0: #{lenet5_forward.1}
  #allocation0 [shape = 'u32[]', space=smem, size = 0x4, offset = 0x4, fixed_abs, tag = 'smem constant byte address 0x4 - core index']
  #allocation1 [shape = 'u32[144,128]{1,0:T(1,128)}', space=vmem, size = 0x12000, scoped, tag = 'internal scratch']
  %s0 = inlined_call_operand.vmem [shape: bf16[32,1024], index: 0, kind: input, shape index: {}]
  %s1 = inlined_call_operand.hbm [shape: bf16[1024,1280], index: 1, kind: input, shape index: {}]
  %s2 = inlined_call_operand.hbm [shape: f32[1,1280], index: 2, kind: input, shape index: {}]
  %s3 = inlined_call_operand.hbm [shape: bf16[1280,512], index: 3, kind: input, shape index: {}]
  %s4 = inlined_call_operand.hbm [shape: f32[1,512], index: 4, kind: input, shape index: {}]
  %s5 = inlined_call_operand.hbm [shape: bf16[512,128], index: 5, kind: input, shape index: {}]
  %s6 = inlined_call_operand.hbm [shape: f32[1,128], index: 6, kind: input, shape index: {}]
  %s7 = inlined_call_operand.hbm [shape: bf16[128,128], index: 7, kind: input, shape index: {}]
  %s8 = inlined_call_operand.hbm [shape: f32[1,128], index: 8, kind: input, shape index: {}]
  %s9 = inlined_call_operand.vmem [shape: f32[32,128], index: 9, kind: output, shape index: {}]
  %s10 = sld [smem:[#allocation0]]
  $region101: #{lenet5_forward.1} parent=0
    _
  %s12 = ssub.s32 1, %s10
  %s13 = scalar_select 0, %s12, %s10
  $region1: #{lenet5_forward.1} parent=0
    #allocation2 [shape = 'u8[2621440]{0}', space=vmem, size = 0x280000, scoped, tag = 'input window, operand 1, single buffered']
    #allocation3 [shape = 's32[2]{0}', space=sflag, size = 0x8, scoped, tag = 'scoped memory for lenet5_forward.1']
    #allocation4 [shape = 'u8[5120]{0}', space=vmem, size = 0x1400, scoped, tag = 'input window, operand 2, single buffered']
    #allocation5 [shape = 's32[1]{0}', space=sflag, size = 0x4, scoped, tag = 'scoped memory for lenet5_forward.1']
    #allocation6 [shape = 'u8[1310720]{0}', space=vmem, size = 0x140000, scoped, tag = 'input window, operand 3, single buffered']
    #allocation7 [shape = 'u8[2048]{0}', space=vmem, size = 0x800, scoped, tag = 'input window, operand 4, single buffered']
    #allocation8 [shape = 's32[1]{0}', space=sflag, size = 0x4, scoped, tag = 'scoped memory for lenet5_forward.1']
    #allocation9 [shape = 'u8[131072]{0}', space=vmem, size = 0x20000, scoped, tag = 'input window, operand 5, single buffered']
    #allocation10 [shape = 'u8[512]{0}', space=vmem, size = 0x400, scoped, tag = 'input window, operand 6, single buffered']
    #allocation11 [shape = 's32[1]{0}', space=sflag, size = 0x4, scoped, tag = 'scoped memory for lenet5_forward.1']
    #allocation12 [shape = 'u8[32768]{0}', space=vmem, size = 0x8000, scoped, tag = 'input window, operand 7, single buffered']
    #allocation13 [shape = 'u8[512]{0}', space=vmem, size = 0x400, scoped, tag = 'input window, operand 8, single buffered']
    #allocation14 [shape = 's32[1]{0}', space=sflag, size = 0x4, scoped, tag = 'scoped memory for lenet5_forward.1']
    %14 = vsyncpa [#allocation3], 0
    %15 = vsyncpa [#allocation5], 0
    %16 = vsyncpa [#allocation8], 0
    %17 = vsyncpa [#allocation11], 0
    %18 = vsyncpa [#allocation14], 0
    loop: start=0, step=1, limit=4
    $region2: #{lenet5_forward.1} parent=1 // loop_pre_header
      _
    $region3: #{lenet5_forward.1} parent=1 // loop_header
      %s20 = sphi 0, %s24
      %p21 = scmp.ge.s32.totalorder %s20, 4
      %s30 = sphi 0, %s32
      %s33 = sphi 0, %s30
      %s34 = sphi 0, %s33
      %s50 = sphi 0, %s34
      %s54 = sphi 0, %s54
      %s56 = sphi 0, %s54
      %s57 = sphi 0, %s56
      %s71 = sphi 0, %s57
      %s75 = sphi 0, %s75
      %s77 = sphi 0, %s75
      %s78 = sphi 0, %s77
      %s92 = sphi 0, %s78
      %s96 = sphi 0, %s96
      %s98 = sphi 0, %s96
      %s99 = sphi 0, %s98
      %s113 = sphi 0, %s99
      %s117 = sphi 0, %s117
      %s119 = sphi 0, %s117
      %s120 = sphi 0, %s119
      %s134 = sphi 0, %s120
      %s138 = sphi 0, %s138
      %s140 = sphi 0, %s138
      %s141 = sphi 0, %s140
      %s155 = sphi 0, %s141
      %s159 = sphi 0, %s159
      %s161 = sphi 0, %s159
      %s162 = sphi 0, %s161
      %s176 = sphi 0, %s162
      %s180 = sphi 0, %s180
      %s182 = sphi 0, %s180
      %s183 = sphi 0, %s182
      %s197 = sphi 0, %s183
      %s201 = sphi 0, %s201
      %s203 = sphi 0, %s201
      %s204 = sphi 0, %s203
      %s218 = sphi 0, %s204
      %s224 = sphi 0, %s226
      %s227 = sphi 0, %s224
      %s228 = sphi 0, %s227
      %s244 = sphi 0, %s228
    $region4: #{lenet5_forward.1} parent=1 // loop_header_branch
      %23 = sbr.rel (%p21) target = $region8
    $region5: #{lenet5_forward.1} parent=1 // loop_body
      %s25 = ssub.s32 %s20, 1
      %s26 = ssub.s32 %s20, 2
      %s27 = sadd.s32 %s20, 1
      %s28 = ssub.s32 %s20, %s27
      %p29 = scmp.eq.s32.totalorder %s28, 0
      %s31 = sadd.s32 %s30, 1
      %s32 = scalar_select %p29, %s30, %s31
      %p35 = pneg %p29
      %p36 = scmp.eq.s32.totalorder %s20, 1
      %p37 = por %p35, %p36
      %p38 = scmp.ne.s32.totalorder %s30, %s33
      %p39 = scmp.eq.s32.totalorder %s20, 0
      %p40 = por %p38, %p39
      %p41 = scmp.ne.s32.totalorder %s30, %s33
      %p42 = scmp.eq.s32.totalorder %s25, 1
      %p43 = por %p41, %p42
      %p44 = scmp.ne.s32.totalorder %s33, %s34
      %p45 = scmp.eq.s32.totalorder %s25, 0
      %p46 = por %p44, %p45
      %p47 = scmp.ne.s32.totalorder %s33, %s34
      %p48 = scmp.eq.s32.totalorder %s26, 1
      %p49 = por %p47, %p48
      %p51 = scmp.ne.s32.totalorder %s34, %s50
      %p52 = scmp.eq.s32.totalorder %s26, 0
      %p53 = por %p51, %p52
      %s55 = sadd.s32 %s54, 1
      %p58 = scmp.eq.s32.totalorder %s20, 1
      %p59 = scmp.ne.s32.totalorder %s54, %s56
      %p60 = scmp.eq.s32.totalorder %s20, 0
      %p61 = por %p59, %p60
      %p62 = scmp.ne.s32.totalorder %s54, %s56
      %p63 = scmp.eq.s32.totalorder %s25, 1
      %p64 = por %p62, %p63
      %p65 = scmp.ne.s32.totalorder %s56, %s57
      %p66 = scmp.eq.s32.totalorder %s25, 0
      %p67 = por %p65, %p66
      %p68 = scmp.ne.s32.totalorder %s56, %s57
      %p69 = scmp.eq.s32.totalorder %s26, 1
      %p70 = por %p68, %p69
      %p72 = scmp.ne.s32.totalorder %s57, %s71
      %p73 = scmp.eq.s32.totalorder %s26, 0
      %p74 = por %p72, %p73
      %s76 = sadd.s32 %s75, 1
      %p79 = scmp.eq.s32.totalorder %s20, 1
      %p80 = scmp.ne.s32.totalorder %s75, %s77
      %p81 = scmp.eq.s32.totalorder %s20, 0
      %p82 = por %p80, %p81
      %p83 = scmp.ne.s32.totalorder %s75, %s77
      %p84 = scmp.eq.s32.totalorder %s25, 1
      %p85 = por %p83, %p84
      %p86 = scmp.ne.s32.totalorder %s77, %s78
      %p87 = scmp.eq.s32.totalorder %s25, 0
      %p88 = por %p86, %p87
      %p89 = scmp.ne.s32.totalorder %s77, %s78
      %p90 = scmp.eq.s32.totalorder %s26, 1
      %p91 = por %p89, %p90
      %p93 = scmp.ne.s32.totalorder %s78, %s92
      %p94 = scmp.eq.s32.totalorder %s26, 0
      %p95 = por %p93, %p94
      %s97 = sadd.s32 %s96, 1
      %p100 = scmp.eq.s32.totalorder %s20, 1
      %p101 = scmp.ne.s32.totalorder %s96, %s98
      %p102 = scmp.eq.s32.totalorder %s20, 0
      %p103 = por %p101, %p102
      %p104 = scmp.ne.s32.totalorder %s96, %s98
      %p105 = scmp.eq.s32.totalorder %s25, 1
      %p106 = por %p104, %p105
      %p107 = scmp.ne.s32.totalorder %s98, %s99
      %p108 = scmp.eq.s32.totalorder %s25, 0
      %p109 = por %p107, %p108
      %p110 = scmp.ne.s32.totalorder %s98, %s99
      %p111 = scmp.eq.s32.totalorder %s26, 1
      %p112 = por %p110, %p111
      %p114 = scmp.ne.s32.totalorder %s99, %s113
      %p115 = scmp.eq.s32.totalorder %s26, 0
      %p116 = por %p114, %p115
      %s118 = sadd.s32 %s117, 1
      %p121 = scmp.eq.s32.totalorder %s20, 1
      %p122 = scmp.ne.s32.totalorder %s117, %s119
      %p123 = scmp.eq.s32.totalorder %s20, 0
      %p124 = por %p122, %p123
      %p125 = scmp.ne.s32.totalorder %s117, %s119
      %p126 = scmp.eq.s32.totalorder %s25, 1
      %p127 = por %p125, %p126
      %p128 = scmp.ne.s32.totalorder %s119, %s120
      %p129 = scmp.eq.s32.totalorder %s25, 0
      %p130 = por %p128, %p129
      %p131 = scmp.ne.s32.totalorder %s119, %s120
      %p132 = scmp.eq.s32.totalorder %s26, 1
      %p133 = por %p131, %p132
      %p135 = scmp.ne.s32.totalorder %s120, %s134
      %p136 = scmp.eq.s32.totalorder %s26, 0
      %p137 = por %p135, %p136
      %s139 = sadd.s32 %s138, 1
      %p142 = scmp.eq.s32.totalorder %s20, 1
      %p143 = scmp.ne.s32.totalorder %s138, %s140
      %p144 = scmp.eq.s32.totalorder %s20, 0
      %p145 = por %p143, %p144
      %p146 = scmp.ne.s32.totalorder %s138, %s140
      %p147 = scmp.eq.s32.totalorder %s25, 1
      %p148 = por %p146, %p147
      %p149 = scmp.ne.s32.totalorder %s140, %s141
      %p150 = scmp.eq.s32.totalorder %s25, 0
      %p151 = por %p149, %p150
      %p152 = scmp.ne.s32.totalorder %s140, %s141
      %p153 = scmp.eq.s32.totalorder %s26, 1
      %p154 = por %p152, %p153
      %p156 = scmp.ne.s32.totalorder %s141, %s155
      %p157 = scmp.eq.s32.totalorder %s26, 0
      %p158 = por %p156, %p157
      %s160 = sadd.s32 %s159, 1
      %p163 = scmp.eq.s32.totalorder %s20, 1
      %p164 = scmp.ne.s32.totalorder %s159, %s161
      %p165 = scmp.eq.s32.totalorder %s20, 0
      %p166 = por %p164, %p165
      %p167 = scmp.ne.s32.totalorder %s159, %s161
      %p168 = scmp.eq.s32.totalorder %s25, 1
      %p169 = por %p167, %p168
      %p170 = scmp.ne.s32.totalorder %s161, %s162
      %p171 = scmp.eq.s32.totalorder %s25, 0
      %p172 = por %p170, %p171
      %p173 = scmp.ne.s32.totalorder %s161, %s162
      %p174 = scmp.eq.s32.totalorder %s26, 1
      %p175 = por %p173, %p174
      %p177 = scmp.ne.s32.totalorder %s162, %s176
      %p178 = scmp.eq.s32.totalorder %s26, 0
      %p179 = por %p177, %p178
      %s181 = sadd.s32 %s180, 1
      %p184 = scmp.eq.s32.totalorder %s20, 1
      %p185 = scmp.ne.s32.totalorder %s180, %s182
      %p186 = scmp.eq.s32.totalorder %s20, 0
      %p187 = por %p185, %p186
      %p188 = scmp.ne.s32.totalorder %s180, %s182
      %p189 = scmp.eq.s32.totalorder %s25, 1
      %p190 = por %p188, %p189
      %p191 = scmp.ne.s32.totalorder %s182, %s183
      %p192 = scmp.eq.s32.totalorder %s25, 0
      %p193 = por %p191, %p192
      %p194 = scmp.ne.s32.totalorder %s182, %s183
      %p195 = scmp.eq.s32.totalorder %s26, 1
      %p196 = por %p194, %p195
      %p198 = scmp.ne.s32.totalorder %s183, %s197
      %p199 = scmp.eq.s32.totalorder %s26, 0
      %p200 = por %p198, %p199
      %s202 = sadd.s32 %s201, 1
      %p205 = scmp.eq.s32.totalorder %s20, 1
      %p206 = scmp.ne.s32.totalorder %s201, %s203
      %p207 = scmp.eq.s32.totalorder %s20, 0
      %p208 = por %p206, %p207
      %p209 = scmp.ne.s32.totalorder %s201, %s203
      %p210 = scmp.eq.s32.totalorder %s25, 1
      %p211 = por %p209, %p210
      %p212 = scmp.ne.s32.totalorder %s203, %s204
      %p213 = scmp.eq.s32.totalorder %s25, 0
      %p214 = por %p212, %p213
      %p215 = scmp.ne.s32.totalorder %s203, %s204
      %p216 = scmp.eq.s32.totalorder %s26, 1
      %p217 = por %p215, %p216
      %p219 = scmp.ne.s32.totalorder %s204, %s218
      %p220 = scmp.eq.s32.totalorder %s26, 0
      %p221 = por %p219, %p220
      %s222 = ssub.s32 %s20, %s27
      %p223 = scmp.eq.s32.totalorder %s222, 0
      %s225 = sadd.s32 %s224, 1
      %s226 = scalar_select %p223, %s224, %s225
      %p229 = pneg %p223
      %p230 = scmp.eq.s32.totalorder %s20, 1
      %p231 = por %p229, %p230
      %p232 = scmp.ne.s32.totalorder %s224, %s227
      %p233 = scmp.eq.s32.totalorder %s20, 0
      %p234 = por %p232, %p233
      %p235 = scmp.ne.s32.totalorder %s224, %s227
      %p236 = scmp.eq.s32.totalorder %s25, 1
      %p237 = por %p235, %p236
      %p238 = scmp.ne.s32.totalorder %s227, %s228
      %p239 = scmp.eq.s32.totalorder %s25, 0
      %p240 = por %p238, %p239
      %p241 = scmp.ne.s32.totalorder %s227, %s228
      %p242 = scmp.eq.s32.totalorder %s26, 1
      %p243 = por %p241, %p242
      %p245 = scmp.ne.s32.totalorder %s228, %s244
      %p246 = scmp.eq.s32.totalorder %s26, 0
      %p247 = por %p245, %p246
      %p248 = scmp.le.s32.totalorder 1, %s20
      %p249 = scmp.lt.s32.totalorder %s20, 3
      %p250 = pnand %p248, %p249
      %p251 = pneg %p250
      // Predicated region
      $region9: #{lenet5_forward.1} parent=5 // pred_check
        _
      $region10: #{lenet5_forward.1} parent=5 // pred_check_branch
        %253 = sbr.rel (%p250) target = $region12
      $region11: #{lenet5_forward.1} parent=5 // pred_region
        %s254 = ssub.s32 %s20, 1
        // Predicated region
        $region13: #{lenet5_forward.1} parent=11 // pred_check
          %p255 = pneg %p67
        $region14: #{lenet5_forward.1} parent=11 // pred_check_branch
          %257 = sbr.rel (%p255) target = $region16
        $region15: #{lenet5_forward.1} parent=11 // pred_region
          %s259 = ssub.s32 81920, 81920
          %260 = vsyncadd [#allocation3], %s259
          %s261 = sshll.u32 [#allocation2], 4
          %s262 = int_to_ptr.vmem [resolvable:$true] %s261
          %267 = dma.hbm_to_vmem [thread:$0]  %s1, 81920, %s262, [#allocation3], 640, 640, 40
        $region16: #{lenet5_forward.1} parent=11 // pred_fallthru
          _
        // Predicated region
        $region17: #{lenet5_forward.1} parent=11 // pred_check
          %p268 = pneg %p88
        $region18: #{lenet5_forward.1} parent=11 // pred_check_branch
          %270 = sbr.rel (%p268) target = $region20
        $region19: #{lenet5_forward.1} parent=11 // pred_region
          %s272 = ssub.s32 160, 160
          %273 = vsyncadd [#allocation5], %s272
          %s275 = sshll.u32 [#allocation4], 4
          %s276 = int_to_ptr.vmem [resolvable:$true] %s275
          %278 = dma.hbm_to_vmem [thread:$0]  %s2, 160, %s276, [#allocation5]
        $region20: #{lenet5_forward.1} parent=11 // pred_fallthru
          _
        // Predicated region
        $region21: #{lenet5_forward.1} parent=11 // pred_check
          %p279 = pneg %p109
        $region22: #{lenet5_forward.1} parent=11 // pred_check_branch
          %281 = sbr.rel (%p279) target = $region24
        $region23: #{lenet5_forward.1} parent=11 // pred_region
          %s283 = ssub.s32 40960, 40960
          %284 = vsyncadd [#allocation5], %s283
          %s285 = sshll.u32 [#allocation6], 4
          %s286 = int_to_ptr.vmem [resolvable:$true] %s285
          %291 = dma.hbm_to_vmem [thread:$0]  %s3, 40960, %s286, [#allocation5], 256, 256, 16
        $region24: #{lenet5_forward.1} parent=11 // pred_fallthru
          _
        // Predicated region
        $region25: #{lenet5_forward.1} parent=11 // pred_check
          %p292 = pneg %p130
        $region26: #{lenet5_forward.1} parent=11 // pred_check_branch
          %294 = sbr.rel (%p292) target = $region28
        $region27: #{lenet5_forward.1} parent=11 // pred_region
          %s296 = ssub.s32 64, 64
          %297 = vsyncadd [#allocation8], %s296
          %s299 = sshll.u32 [#allocation7], 4
          %s300 = int_to_ptr.vmem [resolvable:$true] %s299
          %302 = dma.hbm_to_vmem [thread:$0]  %s4, 64, %s300, [#allocation8]
        $region28: #{lenet5_forward.1} parent=11 // pred_fallthru
          _
        // Predicated region
        $region29: #{lenet5_forward.1} parent=11 // pred_check
          %p303 = pneg %p151
        $region30: #{lenet5_forward.1} parent=11 // pred_check_branch
          %305 = sbr.rel (%p303) target = $region32
        $region31: #{lenet5_forward.1} parent=11 // pred_region
          %s307 = ssub.s32 4096, 4096
          %308 = vsyncadd [#allocation8], %s307
          %s309 = sshll.u32 [#allocation9], 4
          %s310 = int_to_ptr.vmem [resolvable:$true] %s309
          %315 = dma.hbm_to_vmem [thread:$0]  %s5, 4096, %s310, [#allocation8], 64, 64, 4
        $region32: #{lenet5_forward.1} parent=11 // pred_fallthru
          _
        // Predicated region
        $region33: #{lenet5_forward.1} parent=11 // pred_check
          %p316 = pneg %p172
        $region34: #{lenet5_forward.1} parent=11 // pred_check_branch
          %318 = sbr.rel (%p316) target = $region36
        $region35: #{lenet5_forward.1} parent=11 // pred_region
          %s320 = ssub.s32 16, 16
          %321 = vsyncadd [#allocation11], %s320
          %s323 = sshll.u32 [#allocation10], 4
          %s324 = int_to_ptr.vmem [resolvable:$true] %s323
          %326 = dma.hbm_to_vmem [thread:$0]  %s6, 16, %s324, [#allocation11]
        $region36: #{lenet5_forward.1} parent=11 // pred_fallthru
          _
        // Predicated region
        $region37: #{lenet5_forward.1} parent=11 // pred_check
          %p327 = pneg %p193
        $region38: #{lenet5_forward.1} parent=11 // pred_check_branch
          %329 = sbr.rel (%p327) target = $region40
        $region39: #{lenet5_forward.1} parent=11 // pred_region
          %s331 = ssub.s32 1024, 1024
          %332 = vsyncadd [#allocation11], %s331
          %s333 = sshll.u32 [#allocation12], 4
          %s334 = int_to_ptr.vmem [resolvable:$true] %s333
          %339 = dma.hbm_to_vmem [thread:$0]  %s7, 1024, %s334, [#allocation11], 64, 64, 4
        $region40: #{lenet5_forward.1} parent=11 // pred_fallthru
          _
        // Predicated region
        $region41: #{lenet5_forward.1} parent=11 // pred_check
          %p340 = pneg %p214
        $region42: #{lenet5_forward.1} parent=11 // pred_check_branch
          %342 = sbr.rel (%p340) target = $region44
        $region43: #{lenet5_forward.1} parent=11 // pred_region
          %s344 = ssub.s32 16, 16
          %345 = vsyncadd [#allocation14], %s344
          %s347 = sshll.u32 [#allocation13], 4
          %s348 = int_to_ptr.vmem [resolvable:$true] %s347
          %350 = dma.hbm_to_vmem [thread:$0]  %s8, 16, %s348, [#allocation14]
        $region44: #{lenet5_forward.1} parent=11 // pred_fallthru
          _
      $region12: #{lenet5_forward.1} parent=5 // pred_fallthru
        _
      %p351 = scmp.lt.s32.totalorder %s20, 2
      // Predicated region
      $region45: #{lenet5_forward.1} parent=5 // pred_check
        %p352 = pneg %p351
      $region46: #{lenet5_forward.1} parent=5 // pred_check_branch
        %354 = sbr.rel (%p352) target = $region48
      $region47: #{lenet5_forward.1} parent=5 // pred_region
        // Predicated region
        $region49: #{lenet5_forward.1} parent=47 // pred_check
          %p355 = pneg %p40
        $region50: #{lenet5_forward.1} parent=47 // pred_check_branch
          %357 = sbr.rel (%p355) target = $region52
        $region51: #{lenet5_forward.1} parent=47 // pred_region
          %s358 = smul.u32 2, %s20
          %p359 = scmp.lt.s32.totalorder %s358, 3
          %s360 = scalar_select %p359, %s358, 3
          %s361 = smul.addr %s360, 8
          %s362 = smul.addr %s361, 4
          %s363 = scalar_lea.vmem %s0, %s362
          %s364 = smul.u32 2, %s20
        $region52: #{lenet5_forward.1} parent=47 // pred_fallthru
          _
      $region48: #{lenet5_forward.1} parent=5 // pred_fallthru
        _
      %p365 = scmp.le.s32.totalorder 1, %s20
      %p366 = scmp.lt.s32.totalorder %s20, 3
      %p367 = pnand %p365, %p366
      %p368 = pneg %p367
      // Predicated region
      $region53: #{lenet5_forward.1} parent=5 // pred_check
        _
      $region54: #{lenet5_forward.1} parent=5 // pred_check_branch
        %370 = sbr.rel (%p367) target = $region56
      $region55: #{lenet5_forward.1} parent=5 // pred_region
        %s371 = ssub.s32 %s20, 1
        // Predicated region
        $region57: #{lenet5_forward.1} parent=55 // pred_check
          %p372 = pneg %p67
        $region58: #{lenet5_forward.1} parent=55 // pred_check_branch
          %374 = sbr.rel (%p372) target = $region60
        $region59: #{lenet5_forward.1} parent=55 // pred_region
          %375 = dma.done [#allocation3], 81920
        $region60: #{lenet5_forward.1} parent=55 // pred_fallthru
          _
        // Predicated region
        $region61: #{lenet5_forward.1} parent=55 // pred_check
          %p376 = pneg %p88
        $region62: #{lenet5_forward.1} parent=55 // pred_check_branch
          %378 = sbr.rel (%p376) target = $region64
        $region63: #{lenet5_forward.1} parent=55 // pred_region
          %379 = dma.done [#allocation5], 160
        $region64: #{lenet5_forward.1} parent=55 // pred_fallthru
          _
        // Predicated region
        $region65: #{lenet5_forward.1} parent=55 // pred_check
          %p380 = pneg %p109
        $region66: #{lenet5_forward.1} parent=55 // pred_check_branch
          %382 = sbr.rel (%p380) target = $region68
        $region67: #{lenet5_forward.1} parent=55 // pred_region
          %383 = dma.done [#allocation5], 40960
        $region68: #{lenet5_forward.1} parent=55 // pred_fallthru
          _
        // Predicated region
        $region69: #{lenet5_forward.1} parent=55 // pred_check
          %p384 = pneg %p130
        $region70: #{lenet5_forward.1} parent=55 // pred_check_branch
          %386 = sbr.rel (%p384) target = $region72
        $region71: #{lenet5_forward.1} parent=55 // pred_region
          %387 = dma.done [#allocation8], 64
        $region72: #{lenet5_forward.1} parent=55 // pred_fallthru
          _
        // Predicated region
        $region73: #{lenet5_forward.1} parent=55 // pred_check
          %p388 = pneg %p151
        $region74: #{lenet5_forward.1} parent=55 // pred_check_branch
          %390 = sbr.rel (%p388) target = $region76
        $region75: #{lenet5_forward.1} parent=55 // pred_region
          %391 = dma.done [#allocation8], 4096
        $region76: #{lenet5_forward.1} parent=55 // pred_fallthru
          _
        // Predicated region
        $region77: #{lenet5_forward.1} parent=55 // pred_check
          %p392 = pneg %p172
        $region78: #{lenet5_forward.1} parent=55 // pred_check_branch
          %394 = sbr.rel (%p392) target = $region80
        $region79: #{lenet5_forward.1} parent=55 // pred_region
          %395 = dma.done [#allocation11], 16
        $region80: #{lenet5_forward.1} parent=55 // pred_fallthru
          _
        // Predicated region
        $region81: #{lenet5_forward.1} parent=55 // pred_check
          %p396 = pneg %p193
        $region82: #{lenet5_forward.1} parent=55 // pred_check_branch
          %398 = sbr.rel (%p396) target = $region84
        $region83: #{lenet5_forward.1} parent=55 // pred_region
          %399 = dma.done [#allocation11], 1024
        $region84: #{lenet5_forward.1} parent=55 // pred_fallthru
          _
        // Predicated region
        $region85: #{lenet5_forward.1} parent=55 // pred_check
          %p400 = pneg %p214
        $region86: #{lenet5_forward.1} parent=55 // pred_check_branch
          %402 = sbr.rel (%p400) target = $region88
        $region87: #{lenet5_forward.1} parent=55 // pred_region
          %403 = dma.done [#allocation14], 16
        $region88: #{lenet5_forward.1} parent=55 // pred_fallthru
          _
        %s404 = smul.u32 2, %s25
        %p405 = scmp.lt.s32.totalorder %s404, 3
        %s406 = scalar_select %p405, %s404, 3
        %s407 = smul.addr %s406, 8
        %s408 = smul.addr %s407, 4
        %s409 = scalar_lea.vmem %s0, %s408
        %p410 = pneg %p46
        %p411 = pneg %p43
        %p412 = pneg %p67
        %p413 = pneg %p64
        %p414 = pneg %p88
        %p415 = pneg %p85
        %p416 = pneg %p109
        %p417 = pneg %p106
        %p418 = pneg %p130
        %p419 = pneg %p127
        %p420 = pneg %p151
        %p421 = pneg %p148
        %p422 = pneg %p172
        %p423 = pneg %p169
        %p424 = pneg %p193
        %p425 = pneg %p190
        %p426 = pneg %p214
        %p427 = pneg %p211
        %p428 = pneg %p240
        %p429 = pneg %p237
        %s430 = smul.u32 2, %s25
        %p431 = scmp.lt.s32.totalorder %s430, 3
        %s432 = scalar_select %p431, %s430, 3
        %s433 = smul.addr %s432, 8
        %s434 = scalar_lea.vmem %s9, %s433
        %s435 = smul.u32 2, %s25
        %p436 = scmp.lt.s32.totalorder %s435, 3
        %s437 = scalar_select %p436, %s435, 3
        %s438 = smul.addr %s437, 8
        %s439 = smul.addr %s438, 4
        %s440 = scalar_lea.vmem %s0, %s439
        %s441 = smul.u32 2, %s25
        %s442 = smul.u32 2, %s25
        %p443 = scmp.lt.s32.totalorder %s442, 3
        %s444 = scalar_select %p443, %s442, 3
        %s445 = smul.addr %s444, 8
        %s446 = scalar_lea.vmem %s9, %s445
        %s447 = smul.u32 2, %s25
        %v449 = vld [vmem:[%s440] sm:$0xff]
        %v450 = vld [vmem:[%s440 + $0x8] sm:$0xff]
        %v451 = vld [vmem:[%s440 + $0x10] sm:$0xff]
        %v452 = vld [vmem:[%s440 + $0x18] sm:$0xff]
        %v453 = vld [vmem:[%s440 + $0x20] sm:$0xff]
        %v454 = vld [vmem:[%s440 + $0x28] sm:$0xff]
        %v455 = vld [vmem:[%s440 + $0x30] sm:$0xff]
        %v456 = vld [vmem:[%s440 + $0x38] sm:$0xff]
        %v457 = vld [vmem:[#allocation2] sm:$0xff]
        %v458 = vld [vmem:[#allocation2 + $0x8] sm:$0xff]
        %v459 = vld [vmem:[#allocation2 + $0x10] sm:$0xff]
        %v460 = vld [vmem:[#allocation2 + $0x18] sm:$0xff]
        %v461 = vld [vmem:[#allocation2 + $0x20] sm:$0xff]
        %v462 = vld [vmem:[#allocation2 + $0x28] sm:$0xff]
        %v463 = vld [vmem:[#allocation2 + $0x30] sm:$0xff]
        %v464 = vld [vmem:[#allocation2 + $0x38] sm:$0xff]
        %v465 = vld [vmem:[#allocation2 + $0x40] sm:$0xff]
        %v466 = vld [vmem:[#allocation2 + $0x48] sm:$0xff]
        %v467 = vld [vmem:[#allocation2 + $0x50] sm:$0xff]
        %v468 = vld [vmem:[#allocation2 + $0x58] sm:$0xff]
        %v469 = vld [vmem:[#allocation2 + $0x60] sm:$0xff]
        %v470 = vld [vmem:[#allocation2 + $0x68] sm:$0xff]
        %v471 = vld [vmem:[#allocation2 + $0x70] sm:$0xff]
        %v472 = vld [vmem:[#allocation2 + $0x78] sm:$0xff]
        %v473 = vld [vmem:[#allocation2 + $0x80] sm:$0xff]
        %v474 = vld [vmem:[#allocation2 + $0x88] sm:$0xff]
        %v475 = vld [vmem:[#allocation2 + $0x90] sm:$0xff]
        %v476 = vld [vmem:[#allocation2 + $0x98] sm:$0xff]
        %v477 = vld [vmem:[#allocation2 + $0xa0] sm:$0xff]
        %v478 = vld [vmem:[#allocation2 + $0xa8] sm:$0xff]
        %v479 = vld [vmem:[#allocation2 + $0xb0] sm:$0xff]
        %v480 = vld [vmem:[#allocation2 + $0xb8] sm:$0xff]
        %v481 = vld [vmem:[#allocation2 + $0xc0] sm:$0xff]
        %v482 = vld [vmem:[#allocation2 + $0xc8] sm:$0xff]
        %v483 = vld [vmem:[#allocation2 + $0xd0] sm:$0xff]
        %v484 = vld [vmem:[#allocation2 + $0xd8] sm:$0xff]
        %v485 = vld [vmem:[#allocation2 + $0xe0] sm:$0xff]
        %v486 = vld [vmem:[#allocation2 + $0xe8] sm:$0xff]
        %v487 = vld [vmem:[#allocation2 + $0xf0] sm:$0xff]
        %v488 = vld [vmem:[#allocation2 + $0xf8] sm:$0xff]
        %v489 = vld [vmem:[#allocation2 + $0x100] sm:$0xff]
        %v490 = vld [vmem:[#allocation2 + $0x108] sm:$0xff]
        %v491 = vld [vmem:[#allocation2 + $0x110] sm:$0xff]
        %v492 = vld [vmem:[#allocation2 + $0x118] sm:$0xff]
        %v493 = vld [vmem:[#allocation2 + $0x120] sm:$0xff]
        %v494 = vld [vmem:[#allocation2 + $0x128] sm:$0xff]
        %v495 = vld [vmem:[#allocation2 + $0x130] sm:$0xff]
        %v496 = vld [vmem:[#allocation2 + $0x138] sm:$0xff]
        %v497 = vld [vmem:[#allocation2 + $0x140] sm:$0xff]
        %v498 = vld [vmem:[#allocation2 + $0x148] sm:$0xff]
        %v499 = vld [vmem:[#allocation2 + $0x150] sm:$0xff]
        %v500 = vld [vmem:[#allocation2 + $0x158] sm:$0xff]
        %v501 = vld [vmem:[#allocation2 + $0x160] sm:$0xff]
        %v502 = vld [vmem:[#allocation2 + $0x168] sm:$0xff]
        %v503 = vld [vmem:[#allocation2 + $0x170] sm:$0xff]
        %v504 = vld [vmem:[#allocation2 + $0x178] sm:$0xff]
        %v505 = vld [vmem:[#allocation2 + $0x180] sm:$0xff]
        %v506 = vld [vmem:[#allocation2 + $0x188] sm:$0xff]
        %v507 = vld [vmem:[#allocation2 + $0x190] sm:$0xff]
        %v508 = vld [vmem:[#allocation2 + $0x198] sm:$0xff]
        %v509 = vld [vmem:[#allocation2 + $0x1a0] sm:$0xff]
        %v510 = vld [vmem:[#allocation2 + $0x1a8] sm:$0xff]
        %v511 = vld [vmem:[#allocation2 + $0x1b0] sm:$0xff]
        %v512 = vld [vmem:[#allocation2 + $0x1b8] sm:$0xff]
        %v513 = vld [vmem:[#allocation2 + $0x1c0] sm:$0xff]
        %v514 = vld [vmem:[#allocation2 + $0x1c8] sm:$0xff]
        %v515 = vld [vmem:[#allocation2 + $0x1d0] sm:$0xff]
        %v516 = vld [vmem:[#allocation2 + $0x1d8] sm:$0xff]
        %v517 = vld [vmem:[#allocation2 + $0x1e0] sm:$0xff]
        %v518 = vld [vmem:[#allocation2 + $0x1e8] sm:$0xff]
        %v519 = vld [vmem:[#allocation2 + $0x1f0] sm:$0xff]
        %v520 = vld [vmem:[#allocation2 + $0x1f8] sm:$0xff]
        %v521 = vld [vmem:[#allocation2 + $0x200] sm:$0xff]
        %v522 = vld [vmem:[#allocation2 + $0x208] sm:$0xff]
        %v523 = vld [vmem:[#allocation2 + $0x210] sm:$0xff]
        %v524 = vld [vmem:[#allocation2 + $0x218] sm:$0xff]
        %v525 = vld [vmem:[#allocation2 + $0x220] sm:$0xff]
        %v526 = vld [vmem:[#allocation2 + $0x228] sm:$0xff]
        %v527 = vld [vmem:[#allocation2 + $0x230] sm:$0xff]
        %v528 = vld [vmem:[#allocation2 + $0x238] sm:$0xff]
        %v529 = vld [vmem:[#allocation2 + $0x240] sm:$0xff]
        %v530 = vld [vmem:[#allocation2 + $0x248] sm:$0xff]
        %v531 = vld [vmem:[#allocation2 + $0x250] sm:$0xff]
        %v532 = vld [vmem:[#allocation2 + $0x258] sm:$0xff]
        %v533 = vld [vmem:[#allocation2 + $0x260] sm:$0xff]
        %v534 = vld [vmem:[#allocation2 + $0x268] sm:$0xff]
        %v535 = vld [vmem:[#allocation2 + $0x270] sm:$0xff]
        %v536 = vld [vmem:[#allocation2 + $0x278] sm:$0xff]
        %v537 = vld [vmem:[#allocation2 + $0x280] sm:$0xff]
        %v538 = vld [vmem:[#allocation2 + $0x288] sm:$0xff]
        %v539 = vld [vmem:[#allocation2 + $0x290] sm:$0xff]
        %v540 = vld [vmem:[#allocation2 + $0x298] sm:$0xff]
        %v541 = vld [vmem:[#allocation2 + $0x2a0] sm:$0xff]
        %v542 = vld [vmem:[#allocation2 + $0x2a8] sm:$0xff]
        %v543 = vld [vmem:[#allocation2 + $0x2b0] sm:$0xff]
        %v544 = vld [vmem:[#allocation2 + $0x2b8] sm:$0xff]
        %v545 = vld [vmem:[#allocation2 + $0x2c0] sm:$0xff]
        %v546 = vld [vmem:[#allocation2 + $0x2c8] sm:$0xff]
        %v547 = vld [vmem:[#allocation2 + $0x2d0] sm:$0xff]
        %v548 = vld [vmem:[#allocation2 + $0x2d8] sm:$0xff]
        %v549 = vld [vmem:[#allocation2 + $0x2e0] sm:$0xff]
        %v550 = vld [vmem:[#allocation2 + $0x2e8] sm:$0xff]
        %v551 = vld [vmem:[#allocation2 + $0x2f0] sm:$0xff]
        %v552 = vld [vmem:[#allocation2 + $0x2f8] sm:$0xff]
        %v553 = vld [vmem:[#allocation2 + $0x300] sm:$0xff]
        %v554 = vld [vmem:[#allocation2 + $0x308] sm:$0xff]
        %v555 = vld [vmem:[#allocation2 + $0x310] sm:$0xff]
        %v556 = vld [vmem:[#allocation2 + $0x318] sm:$0xff]
        %v557 = vld [vmem:[#allocation2 + $0x320] sm:$0xff]
        %v558 = vld [vmem:[#allocation2 + $0x328] sm:$0xff]
        %v559 = vld [vmem:[#allocation2 + $0x330] sm:$0xff]
        %v560 = vld [vmem:[#allocation2 + $0x338] sm:$0xff]
        %v561 = vld [vmem:[#allocation2 + $0x340] sm:$0xff]
        %v562 = vld [vmem:[#allocation2 + $0x348] sm:$0xff]
        %v563 = vld [vmem:[#allocation2 + $0x350] sm:$0xff]
        %v564 = vld [vmem:[#allocation2 + $0x358] sm:$0xff]
        %v565 = vld [vmem:[#allocation2 + $0x360] sm:$0xff]
        %v566 = vld [vmem:[#allocation2 + $0x368] sm:$0xff]
        %v567 = vld [vmem:[#allocation2 + $0x370] sm:$0xff]
        %v568 = vld [vmem:[#allocation2 + $0x378] sm:$0xff]
        %v569 = vld [vmem:[#allocation2 + $0x380] sm:$0xff]
        %v570 = vld [vmem:[#allocation2 + $0x388] sm:$0xff]
        %v571 = vld [vmem:[#allocation2 + $0x390] sm:$0xff]
        %v572 = vld [vmem:[#allocation2 + $0x398] sm:$0xff]
        %v573 = vld [vmem:[#allocation2 + $0x3a0] sm:$0xff]
        %v574 = vld [vmem:[#allocation2 + $0x3a8] sm:$0xff]
        %v575 = vld [vmem:[#allocation2 + $0x3b0] sm:$0xff]
        %v576 = vld [vmem:[#allocation2 + $0x3b8] sm:$0xff]
        %v577 = vld [vmem:[#allocation2 + $0x3c0] sm:$0xff]
        %v578 = vld [vmem:[#allocation2 + $0x3c8] sm:$0xff]
        %v579 = vld [vmem:[#allocation2 + $0x3d0] sm:$0xff]
        %v580 = vld [vmem:[#allocation2 + $0x3d8] sm:$0xff]
        %v581 = vld [vmem:[#allocation2 + $0x3e0] sm:$0xff]
        %v582 = vld [vmem:[#allocation2 + $0x3e8] sm:$0xff]
        %v583 = vld [vmem:[#allocation2 + $0x3f0] sm:$0xff]
        %v584 = vld [vmem:[#allocation2 + $0x3f8] sm:$0xff]
        %v585 = vld [vmem:[#allocation2 + $0x400] sm:$0xff]
        %v586 = vld [vmem:[#allocation2 + $0x408] sm:$0xff]
        %v587 = vld [vmem:[#allocation2 + $0x410] sm:$0xff]
        %v588 = vld [vmem:[#allocation2 + $0x418] sm:$0xff]
        %v589 = vld [vmem:[#allocation2 + $0x420] sm:$0xff]
        %v590 = vld [vmem:[#allocation2 + $0x428] sm:$0xff]
        %v591 = vld [vmem:[#allocation2 + $0x430] sm:$0xff]
        %v592 = vld [vmem:[#allocation2 + $0x438] sm:$0xff]
        %v593 = vld [vmem:[#allocation2 + $0x440] sm:$0xff]
        %v594 = vld [vmem:[#allocation2 + $0x448] sm:$0xff]
        %v595 = vld [vmem:[#allocation2 + $0x450] sm:$0xff]
        %v596 = vld [vmem:[#allocation2 + $0x458] sm:$0xff]
        %v597 = vld [vmem:[#allocation2 + $0x460] sm:$0xff]
        %v598 = vld [vmem:[#allocation2 + $0x468] sm:$0xff]
        %v599 = vld [vmem:[#allocation2 + $0x470] sm:$0xff]
        %v600 = vld [vmem:[#allocation2 + $0x478] sm:$0xff]
        %v601 = vld [vmem:[#allocation2 + $0x480] sm:$0xff]
        %v602 = vld [vmem:[#allocation2 + $0x488] sm:$0xff]
        %v603 = vld [vmem:[#allocation2 + $0x490] sm:$0xff]
        %v604 = vld [vmem:[#allocation2 + $0x498] sm:$0xff]
        %v605 = vld [vmem:[#allocation2 + $0x4a0] sm:$0xff]
        %v606 = vld [vmem:[#allocation2 + $0x4a8] sm:$0xff]
        %v607 = vld [vmem:[#allocation2 + $0x4b0] sm:$0xff]
        %v608 = vld [vmem:[#allocation2 + $0x4b8] sm:$0xff]
        %v609 = vld [vmem:[#allocation2 + $0x4c0] sm:$0xff]
        %v610 = vld [vmem:[#allocation2 + $0x4c8] sm:$0xff]
        %v611 = vld [vmem:[#allocation2 + $0x4d0] sm:$0xff]
        %v612 = vld [vmem:[#allocation2 + $0x4d8] sm:$0xff]
        %v613 = vld [vmem:[#allocation2 + $0x4e0] sm:$0xff]
        %v614 = vld [vmem:[#allocation2 + $0x4e8] sm:$0xff]
        %v615 = vld [vmem:[#allocation2 + $0x4f0] sm:$0xff]
        %v616 = vld [vmem:[#allocation2 + $0x4f8] sm:$0xff]
        %v617 = vld [vmem:[#allocation2 + $0x500] sm:$0xff]
        %v618 = vld [vmem:[#allocation2 + $0x508] sm:$0xff]
        %v619 = vld [vmem:[#allocation2 + $0x510] sm:$0xff]
        %v620 = vld [vmem:[#allocation2 + $0x518] sm:$0xff]
        %v621 = vld [vmem:[#allocation2 + $0x520] sm:$0xff]
        %v622 = vld [vmem:[#allocation2 + $0x528] sm:$0xff]
        %v623 = vld [vmem:[#allocation2 + $0x530] sm:$0xff]
        %v624 = vld [vmem:[#allocation2 + $0x538] sm:$0xff]
        %v625 = vld [vmem:[#allocation2 + $0x540] sm:$0xff]
        %v626 = vld [vmem:[#allocation2 + $0x548] sm:$0xff]
        %v627 = vld [vmem:[#allocation2 + $0x550] sm:$0xff]
        %v628 = vld [vmem:[#allocation2 + $0x558] sm:$0xff]
        %v629 = vld [vmem:[#allocation2 + $0x560] sm:$0xff]
        %v630 = vld [vmem:[#allocation2 + $0x568] sm:$0xff]
        %v631 = vld [vmem:[#allocation2 + $0x570] sm:$0xff]
        %v632 = vld [vmem:[#allocation2 + $0x578] sm:$0xff]
        %v633 = vld [vmem:[#allocation2 + $0x580] sm:$0xff]
        %v634 = vld [vmem:[#allocation2 + $0x588] sm:$0xff]
        %v635 = vld [vmem:[#allocation2 + $0x590] sm:$0xff]
        %v636 = vld [vmem:[#allocation2 + $0x598] sm:$0xff]
        %v637 = vld [vmem:[#allocation2 + $0x5a0] sm:$0xff]
        %v638 = vld [vmem:[#allocation2 + $0x5a8] sm:$0xff]
        %v639 = vld [vmem:[#allocation2 + $0x5b0] sm:$0xff]
        %v640 = vld [vmem:[#allocation2 + $0x5b8] sm:$0xff]
        %v641 = vld [vmem:[#allocation2 + $0x5c0] sm:$0xff]
        %v642 = vld [vmem:[#allocation2 + $0x5c8] sm:$0xff]
        %v643 = vld [vmem:[#allocation2 + $0x5d0] sm:$0xff]
        %v644 = vld [vmem:[#allocation2 + $0x5d8] sm:$0xff]
        %v645 = vld [vmem:[#allocation2 + $0x5e0] sm:$0xff]
        %v646 = vld [vmem:[#allocation2 + $0x5e8] sm:$0xff]
        %v647 = vld [vmem:[#allocation2 + $0x5f0] sm:$0xff]
        %v648 = vld [vmem:[#allocation2 + $0x5f8] sm:$0xff]
        %v649 = vld [vmem:[#allocation2 + $0x600] sm:$0xff]
        %v650 = vld [vmem:[#allocation2 + $0x608] sm:$0xff]
        %v651 = vld [vmem:[#allocation2 + $0x610] sm:$0xff]
        %v652 = vld [vmem:[#allocation2 + $0x618] sm:$0xff]
        %v653 = vld [vmem:[#allocation2 + $0x620] sm:$0xff]
        %v654 = vld [vmem:[#allocation2 + $0x628] sm:$0xff]
        %v655 = vld [vmem:[#allocation2 + $0x630] sm:$0xff]
        %v656 = vld [vmem:[#allocation2 + $0x638] sm:$0xff]
        %v657 = vld [vmem:[#allocation2 + $0x640] sm:$0xff]
        %v658 = vld [vmem:[#allocation2 + $0x648] sm:$0xff]
        %v659 = vld [vmem:[#allocation2 + $0x650] sm:$0xff]
        %v660 = vld [vmem:[#allocation2 + $0x658] sm:$0xff]
        %v661 = vld [vmem:[#allocation2 + $0x660] sm:$0xff]
        %v662 = vld [vmem:[#allocation2 + $0x668] sm:$0xff]
        %v663 = vld [vmem:[#allocation2 + $0x670] sm:$0xff]
        %v664 = vld [vmem:[#allocation2 + $0x678] sm:$0xff]
        %v665 = vld [vmem:[#allocation2 + $0x680] sm:$0xff]
        %v666 = vld [vmem:[#allocation2 + $0x688] sm:$0xff]
        %v667 = vld [vmem:[#allocation2 + $0x690] sm:$0xff]
        %v668 = vld [vmem:[#allocation2 + $0x698] sm:$0xff]
        %v669 = vld [vmem:[#allocation2 + $0x6a0] sm:$0xff]
        %v670 = vld [vmem:[#allocation2 + $0x6a8] sm:$0xff]
        %v671 = vld [vmem:[#allocation2 + $0x6b0] sm:$0xff]
        %v672 = vld [vmem:[#allocation2 + $0x6b8] sm:$0xff]
        %v673 = vld [vmem:[#allocation2 + $0x6c0] sm:$0xff]
        %v674 = vld [vmem:[#allocation2 + $0x6c8] sm:$0xff]
        %v675 = vld [vmem:[#allocation2 + $0x6d0] sm:$0xff]
        %v676 = vld [vmem:[#allocation2 + $0x6d8] sm:$0xff]
        %v677 = vld [vmem:[#allocation2 + $0x6e0] sm:$0xff]
        %v678 = vld [vmem:[#allocation2 + $0x6e8] sm:$0xff]
        %v679 = vld [vmem:[#allocation2 + $0x6f0] sm:$0xff]
        %v680 = vld [vmem:[#allocation2 + $0x6f8] sm:$0xff]
        %v681 = vld [vmem:[#allocation2 + $0x700] sm:$0xff]
        %v682 = vld [vmem:[#allocation2 + $0x708] sm:$0xff]
        %v683 = vld [vmem:[#allocation2 + $0x710] sm:$0xff]
        %v684 = vld [vmem:[#allocation2 + $0x718] sm:$0xff]
        %v685 = vld [vmem:[#allocation2 + $0x720] sm:$0xff]
        %v686 = vld [vmem:[#allocation2 + $0x728] sm:$0xff]
        %v687 = vld [vmem:[#allocation2 + $0x730] sm:$0xff]
        %v688 = vld [vmem:[#allocation2 + $0x738] sm:$0xff]
        %v689 = vld [vmem:[#allocation2 + $0x740] sm:$0xff]
        %v690 = vld [vmem:[#allocation2 + $0x748] sm:$0xff]
        %v691 = vld [vmem:[#allocation2 + $0x750] sm:$0xff]
        %v692 = vld [vmem:[#allocation2 + $0x758] sm:$0xff]
        %v693 = vld [vmem:[#allocation2 + $0x760] sm:$0xff]
        %v694 = vld [vmem:[#allocation2 + $0x768] sm:$0xff]
        %v695 = vld [vmem:[#allocation2 + $0x770] sm:$0xff]
        %v696 = vld [vmem:[#allocation2 + $0x778] sm:$0xff]
        %v697 = vld [vmem:[#allocation2 + $0x780] sm:$0xff]
        %v698 = vld [vmem:[#allocation2 + $0x788] sm:$0xff]
        %v699 = vld [vmem:[#allocation2 + $0x790] sm:$0xff]
        %v700 = vld [vmem:[#allocation2 + $0x798] sm:$0xff]
        %v701 = vld [vmem:[#allocation2 + $0x7a0] sm:$0xff]
        %v702 = vld [vmem:[#allocation2 + $0x7a8] sm:$0xff]
        %v703 = vld [vmem:[#allocation2 + $0x7b0] sm:$0xff]
        %v704 = vld [vmem:[#allocation2 + $0x7b8] sm:$0xff]
        %v705 = vld [vmem:[#allocation2 + $0x7c0] sm:$0xff]
        %v706 = vld [vmem:[#allocation2 + $0x7c8] sm:$0xff]
        %v707 = vld [vmem:[#allocation2 + $0x7d0] sm:$0xff]
        %v708 = vld [vmem:[#allocation2 + $0x7d8] sm:$0xff]
        %v709 = vld [vmem:[#allocation2 + $0x7e0] sm:$0xff]
        %v710 = vld [vmem:[#allocation2 + $0x7e8] sm:$0xff]
        %v711 = vld [vmem:[#allocation2 + $0x7f0] sm:$0xff]
        %v712 = vld [vmem:[#allocation2 + $0x7f8] sm:$0xff]
        %v713 = vld [vmem:[#allocation2 + $0x800] sm:$0xff]
        %v714 = vld [vmem:[#allocation2 + $0x808] sm:$0xff]
        %v715 = vld [vmem:[#allocation2 + $0x810] sm:$0xff]
        %v716 = vld [vmem:[#allocation2 + $0x818] sm:$0xff]
        %v717 = vld [vmem:[#allocation2 + $0x820] sm:$0xff]
        %v718 = vld [vmem:[#allocation2 + $0x828] sm:$0xff]
        %v719 = vld [vmem:[#allocation2 + $0x830] sm:$0xff]
        %v720 = vld [vmem:[#allocation2 + $0x838] sm:$0xff]
        %v721 = vld [vmem:[#allocation2 + $0x840] sm:$0xff]
        %v722 = vld [vmem:[#allocation2 + $0x848] sm:$0xff]
        %v723 = vld [vmem:[#allocation2 + $0x850] sm:$0xff]
        %v724 = vld [vmem:[#allocation2 + $0x858] sm:$0xff]
        %v725 = vld [vmem:[#allocation2 + $0x860] sm:$0xff]
        %v726 = vld [vmem:[#allocation2 + $0x868] sm:$0xff]
        %v727 = vld [vmem:[#allocation2 + $0x870] sm:$0xff]
        %v728 = vld [vmem:[#allocation2 + $0x878] sm:$0xff]
        %v729 = vld [vmem:[#allocation2 + $0x880] sm:$0xff]
        %v730 = vld [vmem:[#allocation2 + $0x888] sm:$0xff]
        %v731 = vld [vmem:[#allocation2 + $0x890] sm:$0xff]
        %v732 = vld [vmem:[#allocation2 + $0x898] sm:$0xff]
        %v733 = vld [vmem:[#allocation2 + $0x8a0] sm:$0xff]
        %v734 = vld [vmem:[#allocation2 + $0x8a8] sm:$0xff]
        %v735 = vld [vmem:[#allocation2 + $0x8b0] sm:$0xff]
        %v736 = vld [vmem:[#allocation2 + $0x8b8] sm:$0xff]
        %v737 = vld [vmem:[#allocation2 + $0x8c0] sm:$0xff]
        %v738 = vld [vmem:[#allocation2 + $0x8c8] sm:$0xff]
        %v739 = vld [vmem:[#allocation2 + $0x8d0] sm:$0xff]
        %v740 = vld [vmem:[#allocation2 + $0x8d8] sm:$0xff]
        %v741 = vld [vmem:[#allocation2 + $0x8e0] sm:$0xff]
        %v742 = vld [vmem:[#allocation2 + $0x8e8] sm:$0xff]
        %v743 = vld [vmem:[#allocation2 + $0x8f0] sm:$0xff]
        %v744 = vld [vmem:[#allocation2 + $0x8f8] sm:$0xff]
        %v745 = vld [vmem:[#allocation2 + $0x900] sm:$0xff]
        %v746 = vld [vmem:[#allocation2 + $0x908] sm:$0xff]
        %v747 = vld [vmem:[#allocation2 + $0x910] sm:$0xff]
        %v748 = vld [vmem:[#allocation2 + $0x918] sm:$0xff]
        %v749 = vld [vmem:[#allocation2 + $0x920] sm:$0xff]
        %v750 = vld [vmem:[#allocation2 + $0x928] sm:$0xff]
        %v751 = vld [vmem:[#allocation2 + $0x930] sm:$0xff]
        %v752 = vld [vmem:[#allocation2 + $0x938] sm:$0xff]
        %v753 = vld [vmem:[#allocation2 + $0x940] sm:$0xff]
        %v754 = vld [vmem:[#allocation2 + $0x948] sm:$0xff]
        %v755 = vld [vmem:[#allocation2 + $0x950] sm:$0xff]
        %v756 = vld [vmem:[#allocation2 + $0x958] sm:$0xff]
        %v757 = vld [vmem:[#allocation2 + $0x960] sm:$0xff]
        %v758 = vld [vmem:[#allocation2 + $0x968] sm:$0xff]
        %v759 = vld [vmem:[#allocation2 + $0x970] sm:$0xff]
        %v760 = vld [vmem:[#allocation2 + $0x978] sm:$0xff]
        %v761 = vld [vmem:[#allocation2 + $0x980] sm:$0xff]
        %v762 = vld [vmem:[#allocation2 + $0x988] sm:$0xff]
        %v763 = vld [vmem:[#allocation2 + $0x990] sm:$0xff]
        %v764 = vld [vmem:[#allocation2 + $0x998] sm:$0xff]
        %v765 = vld [vmem:[#allocation2 + $0x9a0] sm:$0xff]
        %v766 = vld [vmem:[#allocation2 + $0x9a8] sm:$0xff]
        %v767 = vld [vmem:[#allocation2 + $0x9b0] sm:$0xff]
        %v768 = vld [vmem:[#allocation2 + $0x9b8] sm:$0xff]
        %v769 = vld [vmem:[#allocation2 + $0x9c0] sm:$0xff]
        %v770 = vld [vmem:[#allocation2 + $0x9c8] sm:$0xff]
        %v771 = vld [vmem:[#allocation2 + $0x9d0] sm:$0xff]
        %v772 = vld [vmem:[#allocation2 + $0x9d8] sm:$0xff]
        %v773 = vld [vmem:[#allocation2 + $0x9e0] sm:$0xff]
        %v774 = vld [vmem:[#allocation2 + $0x9e8] sm:$0xff]
        %v775 = vld [vmem:[#allocation2 + $0x9f0] sm:$0xff]
        %v776 = vld [vmem:[#allocation2 + $0x9f8] sm:$0xff]
        %v777 = vld [vmem:[#allocation2 + $0xa00] sm:$0xff]
        %v778 = vld [vmem:[#allocation2 + $0xa08] sm:$0xff]
        %v779 = vld [vmem:[#allocation2 + $0xa10] sm:$0xff]
        %v780 = vld [vmem:[#allocation2 + $0xa18] sm:$0xff]
        %v781 = vld [vmem:[#allocation2 + $0xa20] sm:$0xff]
        %v782 = vld [vmem:[#allocation2 + $0xa28] sm:$0xff]
        %v783 = vld [vmem:[#allocation2 + $0xa30] sm:$0xff]
        %v784 = vld [vmem:[#allocation2 + $0xa38] sm:$0xff]
        %v785 = vld [vmem:[#allocation2 + $0xa40] sm:$0xff]
        %v786 = vld [vmem:[#allocation2 + $0xa48] sm:$0xff]
        %v787 = vld [vmem:[#allocation2 + $0xa50] sm:$0xff]
        %v788 = vld [vmem:[#allocation2 + $0xa58] sm:$0xff]
        %v789 = vld [vmem:[#allocation2 + $0xa60] sm:$0xff]
        %v790 = vld [vmem:[#allocation2 + $0xa68] sm:$0xff]
        %v791 = vld [vmem:[#allocation2 + $0xa70] sm:$0xff]
        %v792 = vld [vmem:[#allocation2 + $0xa78] sm:$0xff]
        %v793 = vld [vmem:[#allocation2 + $0xa80] sm:$0xff]
        %v794 = vld [vmem:[#allocation2 + $0xa88] sm:$0xff]
        %v795 = vld [vmem:[#allocation2 + $0xa90] sm:$0xff]
        %v796 = vld [vmem:[#allocation2 + $0xa98] sm:$0xff]
        %v797 = vld [vmem:[#allocation2 + $0xaa0] sm:$0xff]
        %v798 = vld [vmem:[#allocation2 + $0xaa8] sm:$0xff]
        %v799 = vld [vmem:[#allocation2 + $0xab0] sm:$0xff]
        %v800 = vld [vmem:[#allocation2 + $0xab8] sm:$0xff]
        %v801 = vld [vmem:[#allocation2 + $0xac0] sm:$0xff]
        %v802 = vld [vmem:[#allocation2 + $0xac8] sm:$0xff]
        %v803 = vld [vmem:[#allocation2 + $0xad0] sm:$0xff]
        %v804 = vld [vmem:[#allocation2 + $0xad8] sm:$0xff]
        %v805 = vld [vmem:[#allocation2 + $0xae0] sm:$0xff]
        %v806 = vld [vmem:[#allocation2 + $0xae8] sm:$0xff]
        %v807 = vld [vmem:[#allocation2 + $0xaf0] sm:$0xff]
        %v808 = vld [vmem:[#allocation2 + $0xaf8] sm:$0xff]
        %v809 = vld [vmem:[#allocation2 + $0xb00] sm:$0xff]
        %v810 = vld [vmem:[#allocation2 + $0xb08] sm:$0xff]
        %v811 = vld [vmem:[#allocation2 + $0xb10] sm:$0xff]
        %v812 = vld [vmem:[#allocation2 + $0xb18] sm:$0xff]
        %v813 = vld [vmem:[#allocation2 + $0xb20] sm:$0xff]
        %v814 = vld [vmem:[#allocation2 + $0xb28] sm:$0xff]
        %v815 = vld [vmem:[#allocation2 + $0xb30] sm:$0xff]
        %v816 = vld [vmem:[#allocation2 + $0xb38] sm:$0xff]
        %v817 = vld [vmem:[#allocation2 + $0xb40] sm:$0xff]
        %v818 = vld [vmem:[#allocation2 + $0xb48] sm:$0xff]
        %v819 = vld [vmem:[#allocation2 + $0xb50] sm:$0xff]
        %v820 = vld [vmem:[#allocation2 + $0xb58] sm:$0xff]
        %v821 = vld [vmem:[#allocation2 + $0xb60] sm:$0xff]
        %v822 = vld [vmem:[#allocation2 + $0xb68] sm:$0xff]
        %v823 = vld [vmem:[#allocation2 + $0xb70] sm:$0xff]
        %v824 = vld [vmem:[#allocation2 + $0xb78] sm:$0xff]
        %v825 = vld [vmem:[#allocation2 + $0xb80] sm:$0xff]
        %v826 = vld [vmem:[#allocation2 + $0xb88] sm:$0xff]
        %v827 = vld [vmem:[#allocation2 + $0xb90] sm:$0xff]
        %v828 = vld [vmem:[#allocation2 + $0xb98] sm:$0xff]
        %v829 = vld [vmem:[#allocation2 + $0xba0] sm:$0xff]
        %v830 = vld [vmem:[#allocation2 + $0xba8] sm:$0xff]
        %v831 = vld [vmem:[#allocation2 + $0xbb0] sm:$0xff]
        %v832 = vld [vmem:[#allocation2 + $0xbb8] sm:$0xff]
        %v833 = vld [vmem:[#allocation2 + $0xbc0] sm:$0xff]
        %v834 = vld [vmem:[#allocation2 + $0xbc8] sm:$0xff]
        %v835 = vld [vmem:[#allocation2 + $0xbd0] sm:$0xff]
        %v836 = vld [vmem:[#allocation2 + $0xbd8] sm:$0xff]
        %v837 = vld [vmem:[#allocation2 + $0xbe0] sm:$0xff]
        %v838 = vld [vmem:[#allocation2 + $0xbe8] sm:$0xff]
        %v839 = vld [vmem:[#allocation2 + $0xbf0] sm:$0xff]
        %v840 = vld [vmem:[#allocation2 + $0xbf8] sm:$0xff]
        %v841 = vld [vmem:[#allocation2 + $0xc00] sm:$0xff]
        %v842 = vld [vmem:[#allocation2 + $0xc08] sm:$0xff]
        %v843 = vld [vmem:[#allocation2 + $0xc10] sm:$0xff]
        %v844 = vld [vmem:[#allocation2 + $0xc18] sm:$0xff]
        %v845 = vld [vmem:[#allocation2 + $0xc20] sm:$0xff]
        %v846 = vld [vmem:[#allocation2 + $0xc28] sm:$0xff]
        %v847 = vld [vmem:[#allocation2 + $0xc30] sm:$0xff]
        %v848 = vld [vmem:[#allocation2 + $0xc38] sm:$0xff]
        %v849 = vld [vmem:[#allocation2 + $0xc40] sm:$0xff]
        %v850 = vld [vmem:[#allocation2 + $0xc48] sm:$0xff]
        %v851 = vld [vmem:[#allocation2 + $0xc50] sm:$0xff]
        %v852 = vld [vmem:[#allocation2 + $0xc58] sm:$0xff]
        %v853 = vld [vmem:[#allocation2 + $0xc60] sm:$0xff]
        %v854 = vld [vmem:[#allocation2 + $0xc68] sm:$0xff]
        %v855 = vld [vmem:[#allocation2 + $0xc70] sm:$0xff]
        %v856 = vld [vmem:[#allocation2 + $0xc78] sm:$0xff]
        %v857 = vld [vmem:[#allocation2 + $0xc80] sm:$0xff]
        %v858 = vld [vmem:[#allocation2 + $0xc88] sm:$0xff]
        %v859 = vld [vmem:[#allocation2 + $0xc90] sm:$0xff]
        %v860 = vld [vmem:[#allocation2 + $0xc98] sm:$0xff]
        %v861 = vld [vmem:[#allocation2 + $0xca0] sm:$0xff]
        %v862 = vld [vmem:[#allocation2 + $0xca8] sm:$0xff]
        %v863 = vld [vmem:[#allocation2 + $0xcb0] sm:$0xff]
        %v864 = vld [vmem:[#allocation2 + $0xcb8] sm:$0xff]
        %v865 = vld [vmem:[#allocation2 + $0xcc0] sm:$0xff]
        %v866 = vld [vmem:[#allocation2 + $0xcc8] sm:$0xff]
        %v867 = vld [vmem:[#allocation2 + $0xcd0] sm:$0xff]
        %v868 = vld [vmem:[#allocation2 + $0xcd8] sm:$0xff]
        %v869 = vld [vmem:[#allocation2 + $0xce0] sm:$0xff]
        %v870 = vld [vmem:[#allocation2 + $0xce8] sm:$0xff]
        %v871 = vld [vmem:[#allocation2 + $0xcf0] sm:$0xff]
        %v872 = vld [vmem:[#allocation2 + $0xcf8] sm:$0xff]
        %v873 = vld [vmem:[#allocation2 + $0xd00] sm:$0xff]
        %v874 = vld [vmem:[#allocation2 + $0xd08] sm:$0xff]
        %v875 = vld [vmem:[#allocation2 + $0xd10] sm:$0xff]
        %v876 = vld [vmem:[#allocation2 + $0xd18] sm:$0xff]
        %v877 = vld [vmem:[#allocation2 + $0xd20] sm:$0xff]
        %v878 = vld [vmem:[#allocation2 + $0xd28] sm:$0xff]
        %v879 = vld [vmem:[#allocation2 + $0xd30] sm:$0xff]
        %v880 = vld [vmem:[#allocation2 + $0xd38] sm:$0xff]
        %v881 = vld [vmem:[#allocation2 + $0xd40] sm:$0xff]
        %v882 = vld [vmem:[#allocation2 + $0xd48] sm:$0xff]
        %v883 = vld [vmem:[#allocation2 + $0xd50] sm:$0xff]
        %v884 = vld [vmem:[#allocation2 + $0xd58] sm:$0xff]
        %v885 = vld [vmem:[#allocation2 + $0xd60] sm:$0xff]
        %v886 = vld [vmem:[#allocation2 + $0xd68] sm:$0xff]
        %v887 = vld [vmem:[#allocation2 + $0xd70] sm:$0xff]
        %v888 = vld [vmem:[#allocation2 + $0xd78] sm:$0xff]
        %v889 = vld [vmem:[#allocation2 + $0xd80] sm:$0xff]
        %v890 = vld [vmem:[#allocation2 + $0xd88] sm:$0xff]
        %v891 = vld [vmem:[#allocation2 + $0xd90] sm:$0xff]
        %v892 = vld [vmem:[#allocation2 + $0xd98] sm:$0xff]
        %v893 = vld [vmem:[#allocation2 + $0xda0] sm:$0xff]
        %v894 = vld [vmem:[#allocation2 + $0xda8] sm:$0xff]
        %v895 = vld [vmem:[#allocation2 + $0xdb0] sm:$0xff]
        %v896 = vld [vmem:[#allocation2 + $0xdb8] sm:$0xff]
        %v897 = vld [vmem:[#allocation2 + $0xdc0] sm:$0xff]
        %v898 = vld [vmem:[#allocation2 + $0xdc8] sm:$0xff]
        %v899 = vld [vmem:[#allocation2 + $0xdd0] sm:$0xff]
        %v900 = vld [vmem:[#allocation2 + $0xdd8] sm:$0xff]
        %v901 = vld [vmem:[#allocation2 + $0xde0] sm:$0xff]
        %v902 = vld [vmem:[#allocation2 + $0xde8] sm:$0xff]
        %v903 = vld [vmem:[#allocation2 + $0xdf0] sm:$0xff]
        %v904 = vld [vmem:[#allocation2 + $0xdf8] sm:$0xff]
        %v905 = vld [vmem:[#allocation2 + $0xe00] sm:$0xff]
        %v906 = vld [vmem:[#allocation2 + $0xe08] sm:$0xff]
        %v907 = vld [vmem:[#allocation2 + $0xe10] sm:$0xff]
        %v908 = vld [vmem:[#allocation2 + $0xe18] sm:$0xff]
        %v909 = vld [vmem:[#allocation2 + $0xe20] sm:$0xff]
        %v910 = vld [vmem:[#allocation2 + $0xe28] sm:$0xff]
        %v911 = vld [vmem:[#allocation2 + $0xe30] sm:$0xff]
        %v912 = vld [vmem:[#allocation2 + $0xe38] sm:$0xff]
        %v913 = vld [vmem:[#allocation2 + $0xe40] sm:$0xff]
        %v914 = vld [vmem:[#allocation2 + $0xe48] sm:$0xff]
        %v915 = vld [vmem:[#allocation2 + $0xe50] sm:$0xff]
        %v916 = vld [vmem:[#allocation2 + $0xe58] sm:$0xff]
        %v917 = vld [vmem:[#allocation2 + $0xe60] sm:$0xff]
        %v918 = vld [vmem:[#allocation2 + $0xe68] sm:$0xff]
        %v919 = vld [vmem:[#allocation2 + $0xe70] sm:$0xff]
        %v920 = vld [vmem:[#allocation2 + $0xe78] sm:$0xff]
        %v921 = vld [vmem:[#allocation2 + $0xe80] sm:$0xff]
        %v922 = vld [vmem:[#allocation2 + $0xe88] sm:$0xff]
        %v923 = vld [vmem:[#allocation2 + $0xe90] sm:$0xff]
        %v924 = vld [vmem:[#allocation2 + $0xe98] sm:$0xff]
        %v925 = vld [vmem:[#allocation2 + $0xea0] sm:$0xff]
        %v926 = vld [vmem:[#allocation2 + $0xea8] sm:$0xff]
        %v927 = vld [vmem:[#allocation2 + $0xeb0] sm:$0xff]
        %v928 = vld [vmem:[#allocation2 + $0xeb8] sm:$0xff]
        %v929 = vld [vmem:[#allocation2 + $0xec0] sm:$0xff]
        %v930 = vld [vmem:[#allocation2 + $0xec8] sm:$0xff]
        %v931 = vld [vmem:[#allocation2 + $0xed0] sm:$0xff]
        %v932 = vld [vmem:[#allocation2 + $0xed8] sm:$0xff]
        %v933 = vld [vmem:[#allocation2 + $0xee0] sm:$0xff]
        %v934 = vld [vmem:[#allocation2 + $0xee8] sm:$0xff]
        %v935 = vld [vmem:[#allocation2 + $0xef0] sm:$0xff]
        %v936 = vld [vmem:[#allocation2 + $0xef8] sm:$0xff]
        %v937 = vld [vmem:[#allocation2 + $0xf00] sm:$0xff]
        %v938 = vld [vmem:[#allocation2 + $0xf08] sm:$0xff]
        %v939 = vld [vmem:[#allocation2 + $0xf10] sm:$0xff]
        %v940 = vld [vmem:[#allocation2 + $0xf18] sm:$0xff]
        %v941 = vld [vmem:[#allocation2 + $0xf20] sm:$0xff]
        %v942 = vld [vmem:[#allocation2 + $0xf28] sm:$0xff]
        %v943 = vld [vmem:[#allocation2 + $0xf30] sm:$0xff]
        %v944 = vld [vmem:[#allocation2 + $0xf38] sm:$0xff]
        %v945 = vld [vmem:[#allocation2 + $0xf40] sm:$0xff]
        %v946 = vld [vmem:[#allocation2 + $0xf48] sm:$0xff]
        %v947 = vld [vmem:[#allocation2 + $0xf50] sm:$0xff]
        %v948 = vld [vmem:[#allocation2 + $0xf58] sm:$0xff]
        %v949 = vld [vmem:[#allocation2 + $0xf60] sm:$0xff]
        %v950 = vld [vmem:[#allocation2 + $0xf68] sm:$0xff]
        %v951 = vld [vmem:[#allocation2 + $0xf70] sm:$0xff]
        %v952 = vld [vmem:[#allocation2 + $0xf78] sm:$0xff]
        %v953 = vld [vmem:[#allocation2 + $0xf80] sm:$0xff]
        %v954 = vld [vmem:[#allocation2 + $0xf88] sm:$0xff]
        %v955 = vld [vmem:[#allocation2 + $0xf90] sm:$0xff]
        %v956 = vld [vmem:[#allocation2 + $0xf98] sm:$0xff]
        %v957 = vld [vmem:[#allocation2 + $0xfa0] sm:$0xff]
        %v958 = vld [vmem:[#allocation2 + $0xfa8] sm:$0xff]
        %v959 = vld [vmem:[#allocation2 + $0xfb0] sm:$0xff]
        %v960 = vld [vmem:[#allocation2 + $0xfb8] sm:$0xff]
        %v961 = vld [vmem:[#allocation2 + $0xfc0] sm:$0xff]
        %v962 = vld [vmem:[#allocation2 + $0xfc8] sm:$0xff]
        %v963 = vld [vmem:[#allocation2 + $0xfd0] sm:$0xff]
        %v964 = vld [vmem:[#allocation2 + $0xfd8] sm:$0xff]
        %v965 = vld [vmem:[#allocation2 + $0xfe0] sm:$0xff]
        %v966 = vld [vmem:[#allocation2 + $0xfe8] sm:$0xff]
        %v967 = vld [vmem:[#allocation2 + $0xff0] sm:$0xff]
        %v968 = vld [vmem:[#allocation2 + $0xff8] sm:$0xff]
        %v969 = vld [vmem:[#allocation2 + $0x1000] sm:$0xff]
        %v970 = vld [vmem:[#allocation2 + $0x1008] sm:$0xff]
        %v971 = vld [vmem:[#allocation2 + $0x1010] sm:$0xff]
        %v972 = vld [vmem:[#allocation2 + $0x1018] sm:$0xff]
        %v973 = vld [vmem:[#allocation2 + $0x1020] sm:$0xff]
        %v974 = vld [vmem:[#allocation2 + $0x1028] sm:$0xff]
        %v975 = vld [vmem:[#allocation2 + $0x1030] sm:$0xff]
        %v976 = vld [vmem:[#allocation2 + $0x1038] sm:$0xff]
        %v977 = vld [vmem:[#allocation2 + $0x1040] sm:$0xff]
        %v978 = vld [vmem:[#allocation2 + $0x1048] sm:$0xff]
        %v979 = vld [vmem:[#allocation2 + $0x1050] sm:$0xff]
        %v980 = vld [vmem:[#allocation2 + $0x1058] sm:$0xff]
        %v981 = vld [vmem:[#allocation2 + $0x1060] sm:$0xff]
        %v982 = vld [vmem:[#allocation2 + $0x1068] sm:$0xff]
        %v983 = vld [vmem:[#allocation2 + $0x1070] sm:$0xff]
        %v984 = vld [vmem:[#allocation2 + $0x1078] sm:$0xff]
        %v985 = vld [vmem:[#allocation2 + $0x1080] sm:$0xff]
        %v986 = vld [vmem:[#allocation2 + $0x1088] sm:$0xff]
        %v987 = vld [vmem:[#allocation2 + $0x1090] sm:$0xff]
        %v988 = vld [vmem:[#allocation2 + $0x1098] sm:$0xff]
        %v989 = vld [vmem:[#allocation2 + $0x10a0] sm:$0xff]
        %v990 = vld [vmem:[#allocation2 + $0x10a8] sm:$0xff]
        %v991 = vld [vmem:[#allocation2 + $0x10b0] sm:$0xff]
        %v992 = vld [vmem:[#allocation2 + $0x10b8] sm:$0xff]
        %v993 = vld [vmem:[#allocation2 + $0x10c0] sm:$0xff]
        %v994 = vld [vmem:[#allocation2 + $0x10c8] sm:$0xff]
        %v995 = vld [vmem:[#allocation2 + $0x10d0] sm:$0xff]
        %v996 = vld [vmem:[#allocation2 + $0x10d8] sm:$0xff]
        %v997 = vld [vmem:[#allocation2 + $0x10e0] sm:$0xff]
        %v998 = vld [vmem:[#allocation2 + $0x10e8] sm:$0xff]
        %v999 = vld [vmem:[#allocation2 + $0x10f0] sm:$0xff]
        %v1000 = vld [vmem:[#allocation2 + $0x10f8] sm:$0xff]
        %v1001 = vld [vmem:[#allocation2 + $0x1100] sm:$0xff]
        %v1002 = vld [vmem:[#allocation2 + $0x1108] sm:$0xff]
        %v1003 = vld [vmem:[#allocation2 + $0x1110] sm:$0xff]
        %v1004 = vld [vmem:[#allocation2 + $0x1118] sm:$0xff]
        %v1005 = vld [vmem:[#allocation2 + $0x1120] sm:$0xff]
        %v1006 = vld [vmem:[#allocation2 + $0x1128] sm:$0xff]
        %v1007 = vld [vmem:[#allocation2 + $0x1130] sm:$0xff]
        %v1008 = vld [vmem:[#allocation2 + $0x1138] sm:$0xff]
        %v1009 = vld [vmem:[#allocation2 + $0x1140] sm:$0xff]
        %v1010 = vld [vmem:[#allocation2 + $0x1148] sm:$0xff]
        %v1011 = vld [vmem:[#allocation2 + $0x1150] sm:$0xff]
        %v1012 = vld [vmem:[#allocation2 + $0x1158] sm:$0xff]
        %v1013 = vld [vmem:[#allocation2 + $0x1160] sm:$0xff]
        %v1014 = vld [vmem:[#allocation2 + $0x1168] sm:$0xff]
        %v1015 = vld [vmem:[#allocation2 + $0x1170] sm:$0xff]
        %v1016 = vld [vmem:[#allocation2 + $0x1178] sm:$0xff]
        %v1017 = vld [vmem:[#allocation2 + $0x1180] sm:$0xff]
        %v1018 = vld [vmem:[#allocation2 + $0x1188] sm:$0xff]
        %v1019 = vld [vmem:[#allocation2 + $0x1190] sm:$0xff]
        %v1020 = vld [vmem:[#allocation2 + $0x1198] sm:$0xff]
        %v1021 = vld [vmem:[#allocation2 + $0x11a0] sm:$0xff]
        %v1022 = vld [vmem:[#allocation2 + $0x11a8] sm:$0xff]
        %v1023 = vld [vmem:[#allocation2 + $0x11b0] sm:$0xff]
        %v1024 = vld [vmem:[#allocation2 + $0x11b8] sm:$0xff]
        %v1025 = vld [vmem:[#allocation2 + $0x11c0] sm:$0xff]
        %v1026 = vld [vmem:[#allocation2 + $0x11c8] sm:$0xff]
        %v1027 = vld [vmem:[#allocation2 + $0x11d0] sm:$0xff]
        %v1028 = vld [vmem:[#allocation2 + $0x11d8] sm:$0xff]
        %v1029 = vld [vmem:[#allocation2 + $0x11e0] sm:$0xff]
        %v1030 = vld [vmem:[#allocation2 + $0x11e8] sm:$0xff]
        %v1031 = vld [vmem:[#allocation2 + $0x11f0] sm:$0xff]
        %v1032 = vld [vmem:[#allocation2 + $0x11f8] sm:$0xff]
        %v1033 = vld [vmem:[#allocation2 + $0x1200] sm:$0xff]
        %v1034 = vld [vmem:[#allocation2 + $0x1208] sm:$0xff]
        %v1035 = vld [vmem:[#allocation2 + $0x1210] sm:$0xff]
        %v1036 = vld [vmem:[#allocation2 + $0x1218] sm:$0xff]
        %v1037 = vld [vmem:[#allocation2 + $0x1220] sm:$0xff]
        %v1038 = vld [vmem:[#allocation2 + $0x1228] sm:$0xff]
        %v1039 = vld [vmem:[#allocation2 + $0x1230] sm:$0xff]
        %v1040 = vld [vmem:[#allocation2 + $0x1238] sm:$0xff]
        %v1041 = vld [vmem:[#allocation2 + $0x1240] sm:$0xff]
        %v1042 = vld [vmem:[#allocation2 + $0x1248] sm:$0xff]
        %v1043 = vld [vmem:[#allocation2 + $0x1250] sm:$0xff]
        %v1044 = vld [vmem:[#allocation2 + $0x1258] sm:$0xff]
        %v1045 = vld [vmem:[#allocation2 + $0x1260] sm:$0xff]
        %v1046 = vld [vmem:[#allocation2 + $0x1268] sm:$0xff]
        %v1047 = vld [vmem:[#allocation2 + $0x1270] sm:$0xff]
        %v1048 = vld [vmem:[#allocation2 + $0x1278] sm:$0xff]
        %v1049 = vld [vmem:[#allocation2 + $0x1280] sm:$0xff]
        %v1050 = vld [vmem:[#allocation2 + $0x1288] sm:$0xff]
        %v1051 = vld [vmem:[#allocation2 + $0x1290] sm:$0xff]
        %v1052 = vld [vmem:[#allocation2 + $0x1298] sm:$0xff]
        %v1053 = vld [vmem:[#allocation2 + $0x12a0] sm:$0xff]
        %v1054 = vld [vmem:[#allocation2 + $0x12a8] sm:$0xff]
        %v1055 = vld [vmem:[#allocation2 + $0x12b0] sm:$0xff]
        %v1056 = vld [vmem:[#allocation2 + $0x12b8] sm:$0xff]
        %v1057 = vld [vmem:[#allocation2 + $0x12c0] sm:$0xff]
        %v1058 = vld [vmem:[#allocation2 + $0x12c8] sm:$0xff]
        %v1059 = vld [vmem:[#allocation2 + $0x12d0] sm:$0xff]
        %v1060 = vld [vmem:[#allocation2 + $0x12d8] sm:$0xff]
        %v1061 = vld [vmem:[#allocation2 + $0x12e0] sm:$0xff]
        %v1062 = vld [vmem:[#allocation2 + $0x12e8] sm:$0xff]
        %v1063 = vld [vmem:[#allocation2 + $0x12f0] sm:$0xff]
        %v1064 = vld [vmem:[#allocation2 + $0x12f8] sm:$0xff]
        %v1065 = vld [vmem:[#allocation2 + $0x1300] sm:$0xff]
        %v1066 = vld [vmem:[#allocation2 + $0x1308] sm:$0xff]
        %v1067 = vld [vmem:[#allocation2 + $0x1310] sm:$0xff]
        %v1068 = vld [vmem:[#allocation2 + $0x1318] sm:$0xff]
        %v1069 = vld [vmem:[#allocation2 + $0x1320] sm:$0xff]
        %v1070 = vld [vmem:[#allocation2 + $0x1328] sm:$0xff]
        %v1071 = vld [vmem:[#allocation2 + $0x1330] sm:$0xff]
        %v1072 = vld [vmem:[#allocation2 + $0x1338] sm:$0xff]
        %v1073 = vld [vmem:[#allocation2 + $0x1340] sm:$0xff]
        %v1074 = vld [vmem:[#allocation2 + $0x1348] sm:$0xff]
        %v1075 = vld [vmem:[#allocation2 + $0x1350] sm:$0xff]
        %v1076 = vld [vmem:[#allocation2 + $0x1358] sm:$0xff]
        %v1077 = vld [vmem:[#allocation2 + $0x1360] sm:$0xff]
        %v1078 = vld [vmem:[#allocation2 + $0x1368] sm:$0xff]
        %v1079 = vld [vmem:[#allocation2 + $0x1370] sm:$0xff]
        %v1080 = vld [vmem:[#allocation2 + $0x1378] sm:$0xff]
        %v1081 = vld [vmem:[#allocation2 + $0x1380] sm:$0xff]
        %v1082 = vld [vmem:[#allocation2 + $0x1388] sm:$0xff]
        %v1083 = vld [vmem:[#allocation2 + $0x1390] sm:$0xff]
        %v1084 = vld [vmem:[#allocation2 + $0x1398] sm:$0xff]
        %v1085 = vld [vmem:[#allocation2 + $0x13a0] sm:$0xff]
        %v1086 = vld [vmem:[#allocation2 + $0x13a8] sm:$0xff]
        %v1087 = vld [vmem:[#allocation2 + $0x13b0] sm:$0xff]
        %v1088 = vld [vmem:[#allocation2 + $0x13b8] sm:$0xff]
        %v1089 = vld [vmem:[#allocation2 + $0x13c0] sm:$0xff]
        %v1090 = vld [vmem:[#allocation2 + $0x13c8] sm:$0xff]
        %v1091 = vld [vmem:[#allocation2 + $0x13d0] sm:$0xff]
        %v1092 = vld [vmem:[#allocation2 + $0x13d8] sm:$0xff]
        %v1093 = vld [vmem:[#allocation2 + $0x13e0] sm:$0xff]
        %v1094 = vld [vmem:[#allocation2 + $0x13e8] sm:$0xff]
        %v1095 = vld [vmem:[#allocation2 + $0x13f0] sm:$0xff]
        %v1096 = vld [vmem:[#allocation2 + $0x13f8] sm:$0xff]
        %v1097 = vld [vmem:[#allocation4] sm:$0xff]
        %v1098 = vld [vmem:[#allocation4 + $0x8] sm:$0x3]
        %v1101 = vlaneseq
        %v1102 = vshrl.u32 %v1101, 7
        %v1103 = vsub.s32 0, %v1102
        %v1104 = vrot.slane %v1097, %v1103
        %v1105 = vlaneseq
        %v1106 = vshrl.u32 %v1105, 7
        %v1107 = vsub.s32 1, %v1106
        %v1108 = vrot.slane %v1097, %v1107
        %v1109 = vlaneseq
        %v1110 = vshrl.u32 %v1109, 7
        %v1111 = vsub.s32 2, %v1110
        %v1112 = vrot.slane %v1097, %v1111
        %v1113 = vlaneseq
        %v1114 = vshrl.u32 %v1113, 7
        %v1115 = vsub.s32 3, %v1114
        %v1116 = vrot.slane %v1097, %v1115
        %v1117 = vlaneseq
        %v1118 = vshrl.u32 %v1117, 7
        %v1119 = vsub.s32 4, %v1118
        %v1120 = vrot.slane %v1097, %v1119
        %v1121 = vlaneseq
        %v1122 = vshrl.u32 %v1121, 7
        %v1123 = vsub.s32 5, %v1122
        %v1124 = vrot.slane %v1097, %v1123
        %v1125 = vlaneseq
        %v1126 = vshrl.u32 %v1125, 7
        %v1127 = vsub.s32 6, %v1126
        %v1128 = vrot.slane %v1097, %v1127
        %v1129 = vlaneseq
        %v1130 = vshrl.u32 %v1129, 7
        %v1131 = vsub.s32 7, %v1130
        %v1132 = vrot.slane %v1097, %v1131
        %v1133 = vlaneseq
        %v1134 = vshrl.u32 %v1133, 7
        %v1135 = vsub.s32 0, %v1134
        %v1136 = vrot.slane %v1098, %v1135
        %v1137 = vlaneseq
        %v1138 = vshrl.u32 %v1137, 7
        %v1139 = vsub.s32 1, %v1138
        %v1140 = vrot.slane %v1098, %v1139
        %v1159 = vunpack.c.l.b16 %v449
        %v1160 = vunpack.c.h.b16 %v449
        %v1161 = vunpack.c.l.b16 %v450
        %v1162 = vunpack.c.h.b16 %v450
        %v1163 = vunpack.c.l.b16 %v451
        %v1164 = vunpack.c.h.b16 %v451
        %v1165 = vunpack.c.l.b16 %v452
        %v1166 = vunpack.c.h.b16 %v452
        %v1167 = vunpack.c.l.b16 %v453
        %v1168 = vunpack.c.h.b16 %v453
        %v1169 = vunpack.c.l.b16 %v454
        %v1170 = vunpack.c.h.b16 %v454
        %v1171 = vunpack.c.l.b16 %v455
        %v1172 = vunpack.c.h.b16 %v455
        %v1173 = vunpack.c.l.b16 %v456
        %v1174 = vunpack.c.h.b16 %v456
        %v1175 = vpack.c.b16 %v1167, %v1159
        %v1176 = vpack.c.b16 %v1168, %v1160
        %v1177 = vpack.c.b16 %v1169, %v1161
        %v1178 = vpack.c.b16 %v1170, %v1162
        %v1179 = vpack.c.b16 %v1171, %v1163
        %v1180 = vpack.c.b16 %v1172, %v1164
        %v1181 = vpack.c.b16 %v1173, %v1165
        %v1182 = vpack.c.b16 %v1174, %v1166
        %v1831 = vunpack.c.l.b16 %v457
        %v1832 = vunpack.c.h.b16 %v457
        %v1833 = vunpack.c.l.b16 %v458
        %v1834 = vunpack.c.h.b16 %v458
        %v1835 = vunpack.c.l.b16 %v459
        %v1836 = vunpack.c.h.b16 %v459
        %v1837 = vunpack.c.l.b16 %v460
        %v1838 = vunpack.c.h.b16 %v460
        %v1839 = vunpack.c.l.b16 %v461
        %v1840 = vunpack.c.h.b16 %v461
        %v1841 = vunpack.c.l.b16 %v462
        %v1842 = vunpack.c.h.b16 %v462
        %v1843 = vunpack.c.l.b16 %v463
        %v1844 = vunpack.c.h.b16 %v463
        %v1845 = vunpack.c.l.b16 %v464
        %v1846 = vunpack.c.h.b16 %v464
        %v1847 = vunpack.c.l.b16 %v465
        %v1848 = vunpack.c.h.b16 %v465
        %v1849 = vunpack.c.l.b16 %v466
        %v1850 = vunpack.c.h.b16 %v466
        %v1851 = vunpack.c.l.b16 %v467
        %v1852 = vunpack.c.h.b16 %v467
        %v1853 = vunpack.c.l.b16 %v468
        %v1854 = vunpack.c.h.b16 %v468
        %v1855 = vunpack.c.l.b16 %v469
        %v1856 = vunpack.c.h.b16 %v469
        %v1857 = vunpack.c.l.b16 %v470
        %v1858 = vunpack.c.h.b16 %v470
        %v1859 = vunpack.c.l.b16 %v471
        %v1860 = vunpack.c.h.b16 %v471
        %v1861 = vunpack.c.l.b16 %v472
        %v1862 = vunpack.c.h.b16 %v472
        %v1863 = vunpack.c.l.b16 %v473
        %v1864 = vunpack.c.h.b16 %v473
        %v1865 = vunpack.c.l.b16 %v474
        %v1866 = vunpack.c.h.b16 %v474
        %v1867 = vunpack.c.l.b16 %v475
        %v1868 = vunpack.c.h.b16 %v475
        %v1869 = vunpack.c.l.b16 %v476
        %v1870 = vunpack.c.h.b16 %v476
        %v1871 = vunpack.c.l.b16 %v477
        %v1872 = vunpack.c.h.b16 %v477
        %v1873 = vunpack.c.l.b16 %v478
        %v1874 = vunpack.c.h.b16 %v478
        %v1875 = vunpack.c.l.b16 %v479
        %v1876 = vunpack.c.h.b16 %v479
        %v1877 = vunpack.c.l.b16 %v480
        %v1878 = vunpack.c.h.b16 %v480
        %v1879 = vunpack.c.l.b16 %v481
        %v1880 = vunpack.c.h.b16 %v481
        %v1881 = vunpack.c.l.b16 %v482
        %v1882 = vunpack.c.h.b16 %v482
        %v1883 = vunpack.c.l.b16 %v483
        %v1884 = vunpack.c.h.b16 %v483
        %v1885 = vunpack.c.l.b16 %v484
        %v1886 = vunpack.c.h.b16 %v484
        %v1887 = vunpack.c.l.b16 %v485
        %v1888 = vunpack.c.h.b16 %v485
        %v1889 = vunpack.c.l.b16 %v486
        %v1890 = vunpack.c.h.b16 %v486
        %v1891 = vunpack.c.l.b16 %v487
        %v1892 = vunpack.c.h.b16 %v487
        %v1893 = vunpack.c.l.b16 %v488
        %v1894 = vunpack.c.h.b16 %v488
        %v1895 = vunpack.c.l.b16 %v489
        %v1896 = vunpack.c.h.b16 %v489
        %v1897 = vunpack.c.l.b16 %v490
        %v1898 = vunpack.c.h.b16 %v490
        %v1899 = vunpack.c.l.b16 %v491
        %v1900 = vunpack.c.h.b16 %v491
        %v1901 = vunpack.c.l.b16 %v492
        %v1902 = vunpack.c.h.b16 %v492
        %v1903 = vunpack.c.l.b16 %v493
        %v1904 = vunpack.c.h.b16 %v493
        %v1905 = vunpack.c.l.b16 %v494
        %v1906 = vunpack.c.h.b16 %v494
        %v1907 = vunpack.c.l.b16 %v495
        %v1908 = vunpack.c.h.b16 %v495
        %v1909 = vunpack.c.l.b16 %v496
        %v1910 = vunpack.c.h.b16 %v496
        %v1911 = vunpack.c.l.b16 %v497
        %v1912 = vunpack.c.h.b16 %v497
        %v1913 = vunpack.c.l.b16 %v498
        %v1914 = vunpack.c.h.b16 %v498
        %v1915 = vunpack.c.l.b16 %v499
        %v1916 = vunpack.c.h.b16 %v499
        %v1917 = vunpack.c.l.b16 %v500
        %v1918 = vunpack.c.h.b16 %v500
        %v1919 = vunpack.c.l.b16 %v501
        %v1920 = vunpack.c.h.b16 %v501
        %v1921 = vunpack.c.l.b16 %v502
        %v1922 = vunpack.c.h.b16 %v502
        %v1923 = vunpack.c.l.b16 %v503
        %v1924 = vunpack.c.h.b16 %v503
        %v1925 = vunpack.c.l.b16 %v504
        %v1926 = vunpack.c.h.b16 %v504
        %v1927 = vunpack.c.l.b16 %v505
        %v1928 = vunpack.c.h.b16 %v505
        %v1929 = vunpack.c.l.b16 %v506
        %v1930 = vunpack.c.h.b16 %v506
        %v1931 = vunpack.c.l.b16 %v507
        %v1932 = vunpack.c.h.b16 %v507
        %v1933 = vunpack.c.l.b16 %v508
        %v1934 = vunpack.c.h.b16 %v508
        %v1935 = vunpack.c.l.b16 %v509
        %v1936 = vunpack.c.h.b16 %v509
        %v1937 = vunpack.c.l.b16 %v510
        %v1938 = vunpack.c.h.b16 %v510
        %v1939 = vunpack.c.l.b16 %v511
        %v1940 = vunpack.c.h.b16 %v511
        %v1941 = vunpack.c.l.b16 %v512
        %v1942 = vunpack.c.h.b16 %v512
        %v1943 = vunpack.c.l.b16 %v513
        %v1944 = vunpack.c.h.b16 %v513
        %v1945 = vunpack.c.l.b16 %v514
        %v1946 = vunpack.c.h.b16 %v514
        %v1947 = vunpack.c.l.b16 %v515
        %v1948 = vunpack.c.h.b16 %v515
        %v1949 = vunpack.c.l.b16 %v516
        %v1950 = vunpack.c.h.b16 %v516
        %v1951 = vunpack.c.l.b16 %v517
        %v1952 = vunpack.c.h.b16 %v517
        %v1953 = vunpack.c.l.b16 %v518
        %v1954 = vunpack.c.h.b16 %v518
        %v1955 = vunpack.c.l.b16 %v519
        %v1956 = vunpack.c.h.b16 %v519
        %v1957 = vunpack.c.l.b16 %v520
        %v1958 = vunpack.c.h.b16 %v520
        %v1959 = vunpack.c.l.b16 %v521
        %v1960 = vunpack.c.h.b16 %v521
        %v1961 = vunpack.c.l.b16 %v522
        %v1962 = vunpack.c.h.b16 %v522
        %v1963 = vunpack.c.l.b16 %v523
        %v1964 = vunpack.c.h.b16 %v523
        %v1965 = vunpack.c.l.b16 %v524
        %v1966 = vunpack.c.h.b16 %v524
        %v1967 = vunpack.c.l.b16 %v525
        %v1968 = vunpack.c.h.b16 %v525
        %v1969 = vunpack.c.l.b16 %v526
        %v1970 = vunpack.c.h.b16 %v526
        %v1971 = vunpack.c.l.b16 %v527
        %v1972 = vunpack.c.h.b16 %v527
        %v1973 = vunpack.c.l.b16 %v528
        %v1974 = vunpack.c.h.b16 %v528
        %v1975 = vunpack.c.l.b16 %v529
        %v1976 = vunpack.c.h.b16 %v529
        %v1977 = vunpack.c.l.b16 %v530
        %v1978 = vunpack.c.h.b16 %v530
        %v1979 = vunpack.c.l.b16 %v531
        %v1980 = vunpack.c.h.b16 %v531
        %v1981 = vunpack.c.l.b16 %v532
        %v1982 = vunpack.c.h.b16 %v532
        %v1983 = vunpack.c.l.b16 %v533
        %v1984 = vunpack.c.h.b16 %v533
        %v1985 = vunpack.c.l.b16 %v534
        %v1986 = vunpack.c.h.b16 %v534
        %v1987 = vunpack.c.l.b16 %v535
        %v1988 = vunpack.c.h.b16 %v535
        %v1989 = vunpack.c.l.b16 %v536
        %v1990 = vunpack.c.h.b16 %v536
        %v1991 = vunpack.c.l.b16 %v537
        %v1992 = vunpack.c.h.b16 %v537
        %v1993 = vunpack.c.l.b16 %v538
        %v1994 = vunpack.c.h.b16 %v538
        %v1995 = vunpack.c.l.b16 %v539
        %v1996 = vunpack.c.h.b16 %v539
        %v1997 = vunpack.c.l.b16 %v540
        %v1998 = vunpack.c.h.b16 %v540
        %v1999 = vunpack.c.l.b16 %v541
        %v2000 = vunpack.c.h.b16 %v541
        %v2001 = vunpack.c.l.b16 %v542
        %v2002 = vunpack.c.h.b16 %v542
        %v2003 = vunpack.c.l.b16 %v543
        %v2004 = vunpack.c.h.b16 %v543
        %v2005 = vunpack.c.l.b16 %v544
        %v2006 = vunpack.c.h.b16 %v544
        %v2007 = vunpack.c.l.b16 %v545
        %v2008 = vunpack.c.h.b16 %v545
        %v2009 = vunpack.c.l.b16 %v546
        %v2010 = vunpack.c.h.b16 %v546
        %v2011 = vunpack.c.l.b16 %v547
        %v2012 = vunpack.c.h.b16 %v547
        %v2013 = vunpack.c.l.b16 %v548
        %v2014 = vunpack.c.h.b16 %v548
        %v2015 = vunpack.c.l.b16 %v549
        %v2016 = vunpack.c.h.b16 %v549
        %v2017 = vunpack.c.l.b16 %v550
        %v2018 = vunpack.c.h.b16 %v550
        %v2019 = vunpack.c.l.b16 %v551
        %v2020 = vunpack.c.h.b16 %v551
        %v2021 = vunpack.c.l.b16 %v552
        %v2022 = vunpack.c.h.b16 %v552
        %v2023 = vunpack.c.l.b16 %v553
        %v2024 = vunpack.c.h.b16 %v553
        %v2025 = vunpack.c.l.b16 %v554
        %v2026 = vunpack.c.h.b16 %v554
        %v2027 = vunpack.c.l.b16 %v555
        %v2028 = vunpack.c.h.b16 %v555
        %v2029 = vunpack.c.l.b16 %v556
        %v2030 = vunpack.c.h.b16 %v556
        %v2031 = vunpack.c.l.b16 %v557
        %v2032 = vunpack.c.h.b16 %v557
        %v2033 = vunpack.c.l.b16 %v558
        %v2034 = vunpack.c.h.b16 %v558
        %v2035 = vunpack.c.l.b16 %v559
        %v2036 = vunpack.c.h.b16 %v559
        %v2037 = vunpack.c.l.b16 %v560
        %v2038 = vunpack.c.h.b16 %v560
        %v2039 = vunpack.c.l.b16 %v561
        %v2040 = vunpack.c.h.b16 %v561
        %v2041 = vunpack.c.l.b16 %v562
        %v2042 = vunpack.c.h.b16 %v562
        %v2043 = vunpack.c.l.b16 %v563
        %v2044 = vunpack.c.h.b16 %v563
        %v2045 = vunpack.c.l.b16 %v564
        %v2046 = vunpack.c.h.b16 %v564
        %v2047 = vunpack.c.l.b16 %v565
        %v2048 = vunpack.c.h.b16 %v565
        %v2049 = vunpack.c.l.b16 %v566
        %v2050 = vunpack.c.h.b16 %v566
        %v2051 = vunpack.c.l.b16 %v567
        %v2052 = vunpack.c.h.b16 %v567
        %v2053 = vunpack.c.l.b16 %v568
        %v2054 = vunpack.c.h.b16 %v568
        %v2055 = vunpack.c.l.b16 %v569
        %v2056 = vunpack.c.h.b16 %v569
        %v2057 = vunpack.c.l.b16 %v570
        %v2058 = vunpack.c.h.b16 %v570
        %v2059 = vunpack.c.l.b16 %v571
        %v2060 = vunpack.c.h.b16 %v571
        %v2061 = vunpack.c.l.b16 %v572
        %v2062 = vunpack.c.h.b16 %v572
        %v2063 = vunpack.c.l.b16 %v573
        %v2064 = vunpack.c.h.b16 %v573
        %v2065 = vunpack.c.l.b16 %v574
        %v2066 = vunpack.c.h.b16 %v574
        %v2067 = vunpack.c.l.b16 %v575
        %v2068 = vunpack.c.h.b16 %v575
        %v2069 = vunpack.c.l.b16 %v576
        %v2070 = vunpack.c.h.b16 %v576
        %v2071 = vunpack.c.l.b16 %v577
        %v2072 = vunpack.c.h.b16 %v577
        %v2073 = vunpack.c.l.b16 %v578
        %v2074 = vunpack.c.h.b16 %v578
        %v2075 = vunpack.c.l.b16 %v579
        %v2076 = vunpack.c.h.b16 %v579
        %v2077 = vunpack.c.l.b16 %v580
        %v2078 = vunpack.c.h.b16 %v580
        %v2079 = vunpack.c.l.b16 %v581
        %v2080 = vunpack.c.h.b16 %v581
        %v2081 = vunpack.c.l.b16 %v582
        %v2082 = vunpack.c.h.b16 %v582
        %v2083 = vunpack.c.l.b16 %v583
        %v2084 = vunpack.c.h.b16 %v583
        %v2085 = vunpack.c.l.b16 %v584
        %v2086 = vunpack.c.h.b16 %v584
        %v2087 = vunpack.c.l.b16 %v585
        %v2088 = vunpack.c.h.b16 %v585
        %v2089 = vunpack.c.l.b16 %v586
        %v2090 = vunpack.c.h.b16 %v586
        %v2091 = vunpack.c.l.b16 %v587
        %v2092 = vunpack.c.h.b16 %v587
        %v2093 = vunpack.c.l.b16 %v588
        %v2094 = vunpack.c.h.b16 %v588
        %v2095 = vunpack.c.l.b16 %v589
        %v2096 = vunpack.c.h.b16 %v589
        %v2097 = vunpack.c.l.b16 %v590
        %v2098 = vunpack.c.h.b16 %v590
        %v2099 = vunpack.c.l.b16 %v591
        %v2100 = vunpack.c.h.b16 %v591
        %v2101 = vunpack.c.l.b16 %v592
        %v2102 = vunpack.c.h.b16 %v592
        %v2103 = vunpack.c.l.b16 %v593
        %v2104 = vunpack.c.h.b16 %v593
        %v2105 = vunpack.c.l.b16 %v594
        %v2106 = vunpack.c.h.b16 %v594
        %v2107 = vunpack.c.l.b16 %v595
        %v2108 = vunpack.c.h.b16 %v595
        %v2109 = vunpack.c.l.b16 %v596
        %v2110 = vunpack.c.h.b16 %v596
        %v2111 = vunpack.c.l.b16 %v597
        %v2112 = vunpack.c.h.b16 %v597
        %v2113 = vunpack.c.l.b16 %v598
        %v2114 = vunpack.c.h.b16 %v598
        %v2115 = vunpack.c.l.b16 %v599
        %v2116 = vunpack.c.h.b16 %v599
        %v2117 = vunpack.c.l.b16 %v600
        %v2118 = vunpack.c.h.b16 %v600
        %v2119 = vunpack.c.l.b16 %v601
        %v2120 = vunpack.c.h.b16 %v601
        %v2121 = vunpack.c.l.b16 %v602
        %v2122 = vunpack.c.h.b16 %v602
        %v2123 = vunpack.c.l.b16 %v603
        %v2124 = vunpack.c.h.b16 %v603
        %v2125 = vunpack.c.l.b16 %v604
        %v2126 = vunpack.c.h.b16 %v604
        %v2127 = vunpack.c.l.b16 %v605
        %v2128 = vunpack.c.h.b16 %v605
        %v2129 = vunpack.c.l.b16 %v606
        %v2130 = vunpack.c.h.b16 %v606
        %v2131 = vunpack.c.l.b16 %v607
        %v2132 = vunpack.c.h.b16 %v607
        %v2133 = vunpack.c.l.b16 %v608
        %v2134 = vunpack.c.h.b16 %v608
        %v2135 = vunpack.c.l.b16 %v609
        %v2136 = vunpack.c.h.b16 %v609
        %v2137 = vunpack.c.l.b16 %v610
        %v2138 = vunpack.c.h.b16 %v610
        %v2139 = vunpack.c.l.b16 %v611
        %v2140 = vunpack.c.h.b16 %v611
        %v2141 = vunpack.c.l.b16 %v612
        %v2142 = vunpack.c.h.b16 %v612
        %v2143 = vunpack.c.l.b16 %v613
        %v2144 = vunpack.c.h.b16 %v613
        %v2145 = vunpack.c.l.b16 %v614
        %v2146 = vunpack.c.h.b16 %v614
        %v2147 = vunpack.c.l.b16 %v615
        %v2148 = vunpack.c.h.b16 %v615
        %v2149 = vunpack.c.l.b16 %v616
        %v2150 = vunpack.c.h.b16 %v616
        %v2151 = vunpack.c.l.b16 %v617
        %v2152 = vunpack.c.h.b16 %v617
        %v2153 = vunpack.c.l.b16 %v618
        %v2154 = vunpack.c.h.b16 %v618
        %v2155 = vunpack.c.l.b16 %v619
        %v2156 = vunpack.c.h.b16 %v619
        %v2157 = vunpack.c.l.b16 %v620
        %v2158 = vunpack.c.h.b16 %v620
        %v2159 = vunpack.c.l.b16 %v621
        %v2160 = vunpack.c.h.b16 %v621
        %v2161 = vunpack.c.l.b16 %v622
        %v2162 = vunpack.c.h.b16 %v622
        %v2163 = vunpack.c.l.b16 %v623
        %v2164 = vunpack.c.h.b16 %v623
        %v2165 = vunpack.c.l.b16 %v624
        %v2166 = vunpack.c.h.b16 %v624
        %v2167 = vunpack.c.l.b16 %v625
        %v2168 = vunpack.c.h.b16 %v625
        %v2169 = vunpack.c.l.b16 %v626
        %v2170 = vunpack.c.h.b16 %v626
        %v2171 = vunpack.c.l.b16 %v627
        %v2172 = vunpack.c.h.b16 %v627
        %v2173 = vunpack.c.l.b16 %v628
        %v2174 = vunpack.c.h.b16 %v628
        %v2175 = vunpack.c.l.b16 %v629
        %v2176 = vunpack.c.h.b16 %v629
        %v2177 = vunpack.c.l.b16 %v630
        %v2178 = vunpack.c.h.b16 %v630
        %v2179 = vunpack.c.l.b16 %v631
        %v2180 = vunpack.c.h.b16 %v631
        %v2181 = vunpack.c.l.b16 %v632
        %v2182 = vunpack.c.h.b16 %v632
        %v2183 = vunpack.c.l.b16 %v633
        %v2184 = vunpack.c.h.b16 %v633
        %v2185 = vunpack.c.l.b16 %v634
        %v2186 = vunpack.c.h.b16 %v634
        %v2187 = vunpack.c.l.b16 %v635
        %v2188 = vunpack.c.h.b16 %v635
        %v2189 = vunpack.c.l.b16 %v636
        %v2190 = vunpack.c.h.b16 %v636
        %v2191 = vunpack.c.l.b16 %v637
        %v2192 = vunpack.c.h.b16 %v637
        %v2193 = vunpack.c.l.b16 %v638
        %v2194 = vunpack.c.h.b16 %v638
        %v2195 = vunpack.c.l.b16 %v639
        %v2196 = vunpack.c.h.b16 %v639
        %v2197 = vunpack.c.l.b16 %v640
        %v2198 = vunpack.c.h.b16 %v640
        %v2199 = vunpack.c.l.b16 %v641
        %v2200 = vunpack.c.h.b16 %v641
        %v2201 = vunpack.c.l.b16 %v642
        %v2202 = vunpack.c.h.b16 %v642
        %v2203 = vunpack.c.l.b16 %v643
        %v2204 = vunpack.c.h.b16 %v643
        %v2205 = vunpack.c.l.b16 %v644
        %v2206 = vunpack.c.h.b16 %v644
        %v2207 = vunpack.c.l.b16 %v645
        %v2208 = vunpack.c.h.b16 %v645
        %v2209 = vunpack.c.l.b16 %v646
        %v2210 = vunpack.c.h.b16 %v646
        %v2211 = vunpack.c.l.b16 %v647
        %v2212 = vunpack.c.h.b16 %v647
        %v2213 = vunpack.c.l.b16 %v648
        %v2214 = vunpack.c.h.b16 %v648
        %v2215 = vunpack.c.l.b16 %v649
        %v2216 = vunpack.c.h.b16 %v649
        %v2217 = vunpack.c.l.b16 %v650
        %v2218 = vunpack.c.h.b16 %v650
        %v2219 = vunpack.c.l.b16 %v651
        %v2220 = vunpack.c.h.b16 %v651
        %v2221 = vunpack.c.l.b16 %v652
        %v2222 = vunpack.c.h.b16 %v652
        %v2223 = vunpack.c.l.b16 %v653
        %v2224 = vunpack.c.h.b16 %v653
        %v2225 = vunpack.c.l.b16 %v654
        %v2226 = vunpack.c.h.b16 %v654
        %v2227 = vunpack.c.l.b16 %v655
        %v2228 = vunpack.c.h.b16 %v655
        %v2229 = vunpack.c.l.b16 %v656
        %v2230 = vunpack.c.h.b16 %v656
        %v2231 = vunpack.c.l.b16 %v657
        %v2232 = vunpack.c.h.b16 %v657
        %v2233 = vunpack.c.l.b16 %v658
        %v2234 = vunpack.c.h.b16 %v658
        %v2235 = vunpack.c.l.b16 %v659
        %v2236 = vunpack.c.h.b16 %v659
        %v2237 = vunpack.c.l.b16 %v660
        %v2238 = vunpack.c.h.b16 %v660
        %v2239 = vunpack.c.l.b16 %v661
        %v2240 = vunpack.c.h.b16 %v661
        %v2241 = vunpack.c.l.b16 %v662
        %v2242 = vunpack.c.h.b16 %v662
        %v2243 = vunpack.c.l.b16 %v663
        %v2244 = vunpack.c.h.b16 %v663
        %v2245 = vunpack.c.l.b16 %v664
        %v2246 = vunpack.c.h.b16 %v664
        %v2247 = vunpack.c.l.b16 %v665
        %v2248 = vunpack.c.h.b16 %v665
        %v2249 = vunpack.c.l.b16 %v666
        %v2250 = vunpack.c.h.b16 %v666
        %v2251 = vunpack.c.l.b16 %v667
        %v2252 = vunpack.c.h.b16 %v667
        %v2253 = vunpack.c.l.b16 %v668
        %v2254 = vunpack.c.h.b16 %v668
        %v2255 = vunpack.c.l.b16 %v669
        %v2256 = vunpack.c.h.b16 %v669
        %v2257 = vunpack.c.l.b16 %v670
        %v2258 = vunpack.c.h.b16 %v670
        %v2259 = vunpack.c.l.b16 %v671
        %v2260 = vunpack.c.h.b16 %v671
        %v2261 = vunpack.c.l.b16 %v672
        %v2262 = vunpack.c.h.b16 %v672
        %v2263 = vunpack.c.l.b16 %v673
        %v2264 = vunpack.c.h.b16 %v673
        %v2265 = vunpack.c.l.b16 %v674
        %v2266 = vunpack.c.h.b16 %v674
        %v2267 = vunpack.c.l.b16 %v675
        %v2268 = vunpack.c.h.b16 %v675
        %v2269 = vunpack.c.l.b16 %v676
        %v2270 = vunpack.c.h.b16 %v676
        %v2271 = vunpack.c.l.b16 %v677
        %v2272 = vunpack.c.h.b16 %v677
        %v2273 = vunpack.c.l.b16 %v678
        %v2274 = vunpack.c.h.b16 %v678
        %v2275 = vunpack.c.l.b16 %v679
        %v2276 = vunpack.c.h.b16 %v679
        %v2277 = vunpack.c.l.b16 %v680
        %v2278 = vunpack.c.h.b16 %v680
        %v2279 = vunpack.c.l.b16 %v681
        %v2280 = vunpack.c.h.b16 %v681
        %v2281 = vunpack.c.l.b16 %v682
        %v2282 = vunpack.c.h.b16 %v682
        %v2283 = vunpack.c.l.b16 %v683
        %v2284 = vunpack.c.h.b16 %v683
        %v2285 = vunpack.c.l.b16 %v684
        %v2286 = vunpack.c.h.b16 %v684
        %v2287 = vunpack.c.l.b16 %v685
        %v2288 = vunpack.c.h.b16 %v685
        %v2289 = vunpack.c.l.b16 %v686
        %v2290 = vunpack.c.h.b16 %v686
        %v2291 = vunpack.c.l.b16 %v687
        %v2292 = vunpack.c.h.b16 %v687
        %v2293 = vunpack.c.l.b16 %v688
        %v2294 = vunpack.c.h.b16 %v688
        %v2295 = vunpack.c.l.b16 %v689
        %v2296 = vunpack.c.h.b16 %v689
        %v2297 = vunpack.c.l.b16 %v690
        %v2298 = vunpack.c.h.b16 %v690
        %v2299 = vunpack.c.l.b16 %v691
        %v2300 = vunpack.c.h.b16 %v691
        %v2301 = vunpack.c.l.b16 %v692
        %v2302 = vunpack.c.h.b16 %v692
        %v2303 = vunpack.c.l.b16 %v693
        %v2304 = vunpack.c.h.b16 %v693
        %v2305 = vunpack.c.l.b16 %v694
        %v2306 = vunpack.c.h.b16 %v694
        %v2307 = vunpack.c.l.b16 %v695
        %v2308 = vunpack.c.h.b16 %v695
        %v2309 = vunpack.c.l.b16 %v696
        %v2310 = vunpack.c.h.b16 %v696
        %v2311 = vunpack.c.l.b16 %v697
        %v2312 = vunpack.c.h.b16 %v697
        %v2313 = vunpack.c.l.b16 %v698
        %v2314 = vunpack.c.h.b16 %v698
        %v2315 = vunpack.c.l.b16 %v699
        %v2316 = vunpack.c.h.b16 %v699
        %v2317 = vunpack.c.l.b16 %v700
        %v2318 = vunpack.c.h.b16 %v700
        %v2319 = vunpack.c.l.b16 %v701
        %v2320 = vunpack.c.h.b16 %v701
        %v2321 = vunpack.c.l.b16 %v702
        %v2322 = vunpack.c.h.b16 %v702
        %v2323 = vunpack.c.l.b16 %v703
        %v2324 = vunpack.c.h.b16 %v703
        %v2325 = vunpack.c.l.b16 %v704
        %v2326 = vunpack.c.h.b16 %v704
        %v2327 = vunpack.c.l.b16 %v705
        %v2328 = vunpack.c.h.b16 %v705
        %v2329 = vunpack.c.l.b16 %v706
        %v2330 = vunpack.c.h.b16 %v706
        %v2331 = vunpack.c.l.b16 %v707
        %v2332 = vunpack.c.h.b16 %v707
        %v2333 = vunpack.c.l.b16 %v708
        %v2334 = vunpack.c.h.b16 %v708
        %v2335 = vunpack.c.l.b16 %v709
        %v2336 = vunpack.c.h.b16 %v709
        %v2337 = vunpack.c.l.b16 %v710
        %v2338 = vunpack.c.h.b16 %v710
        %v2339 = vunpack.c.l.b16 %v711
        %v2340 = vunpack.c.h.b16 %v711
        %v2341 = vunpack.c.l.b16 %v712
        %v2342 = vunpack.c.h.b16 %v712
        %v2343 = vunpack.c.l.b16 %v713
        %v2344 = vunpack.c.h.b16 %v713
        %v2345 = vunpack.c.l.b16 %v714
        %v2346 = vunpack.c.h.b16 %v714
        %v2347 = vunpack.c.l.b16 %v715
        %v2348 = vunpack.c.h.b16 %v715
        %v2349 = vunpack.c.l.b16 %v716
        %v2350 = vunpack.c.h.b16 %v716
        %v2351 = vunpack.c.l.b16 %v717
        %v2352 = vunpack.c.h.b16 %v717
        %v2353 = vunpack.c.l.b16 %v718
        %v2354 = vunpack.c.h.b16 %v718
        %v2355 = vunpack.c.l.b16 %v719
        %v2356 = vunpack.c.h.b16 %v719
        %v2357 = vunpack.c.l.b16 %v720
        %v2358 = vunpack.c.h.b16 %v720
        %v2359 = vunpack.c.l.b16 %v721
        %v2360 = vunpack.c.h.b16 %v721
        %v2361 = vunpack.c.l.b16 %v722
        %v2362 = vunpack.c.h.b16 %v722
        %v2363 = vunpack.c.l.b16 %v723
        %v2364 = vunpack.c.h.b16 %v723
        %v2365 = vunpack.c.l.b16 %v724
        %v2366 = vunpack.c.h.b16 %v724
        %v2367 = vunpack.c.l.b16 %v725
        %v2368 = vunpack.c.h.b16 %v725
        %v2369 = vunpack.c.l.b16 %v726
        %v2370 = vunpack.c.h.b16 %v726
        %v2371 = vunpack.c.l.b16 %v727
        %v2372 = vunpack.c.h.b16 %v727
        %v2373 = vunpack.c.l.b16 %v728
        %v2374 = vunpack.c.h.b16 %v728
        %v2375 = vunpack.c.l.b16 %v729
        %v2376 = vunpack.c.h.b16 %v729
        %v2377 = vunpack.c.l.b16 %v730
        %v2378 = vunpack.c.h.b16 %v730
        %v2379 = vunpack.c.l.b16 %v731
        %v2380 = vunpack.c.h.b16 %v731
        %v2381 = vunpack.c.l.b16 %v732
        %v2382 = vunpack.c.h.b16 %v732
        %v2383 = vunpack.c.l.b16 %v733
        %v2384 = vunpack.c.h.b16 %v733
        %v2385 = vunpack.c.l.b16 %v734
        %v2386 = vunpack.c.h.b16 %v734
        %v2387 = vunpack.c.l.b16 %v735
        %v2388 = vunpack.c.h.b16 %v735
        %v2389 = vunpack.c.l.b16 %v736
        %v2390 = vunpack.c.h.b16 %v736
        %v2391 = vunpack.c.l.b16 %v737
        %v2392 = vunpack.c.h.b16 %v737
        %v2393 = vunpack.c.l.b16 %v738
        %v2394 = vunpack.c.h.b16 %v738
        %v2395 = vunpack.c.l.b16 %v739
        %v2396 = vunpack.c.h.b16 %v739
        %v2397 = vunpack.c.l.b16 %v740
        %v2398 = vunpack.c.h.b16 %v740
        %v2399 = vunpack.c.l.b16 %v741
        %v2400 = vunpack.c.h.b16 %v741
        %v2401 = vunpack.c.l.b16 %v742
        %v2402 = vunpack.c.h.b16 %v742
        %v2403 = vunpack.c.l.b16 %v743
        %v2404 = vunpack.c.h.b16 %v743
        %v2405 = vunpack.c.l.b16 %v744
        %v2406 = vunpack.c.h.b16 %v744
        %v2407 = vunpack.c.l.b16 %v745
        %v2408 = vunpack.c.h.b16 %v745
        %v2409 = vunpack.c.l.b16 %v746
        %v2410 = vunpack.c.h.b16 %v746
        %v2411 = vunpack.c.l.b16 %v747
        %v2412 = vunpack.c.h.b16 %v747
        %v2413 = vunpack.c.l.b16 %v748
        %v2414 = vunpack.c.h.b16 %v748
        %v2415 = vunpack.c.l.b16 %v749
        %v2416 = vunpack.c.h.b16 %v749
        %v2417 = vunpack.c.l.b16 %v750
        %v2418 = vunpack.c.h.b16 %v750
        %v2419 = vunpack.c.l.b16 %v751
        %v2420 = vunpack.c.h.b16 %v751
        %v2421 = vunpack.c.l.b16 %v752
        %v2422 = vunpack.c.h.b16 %v752
        %v2423 = vunpack.c.l.b16 %v753
        %v2424 = vunpack.c.h.b16 %v753
        %v2425 = vunpack.c.l.b16 %v754
        %v2426 = vunpack.c.h.b16 %v754
        %v2427 = vunpack.c.l.b16 %v755
        %v2428 = vunpack.c.h.b16 %v755
        %v2429 = vunpack.c.l.b16 %v756
        %v2430 = vunpack.c.h.b16 %v756
        %v2431 = vunpack.c.l.b16 %v757
        %v2432 = vunpack.c.h.b16 %v757
        %v2433 = vunpack.c.l.b16 %v758
        %v2434 = vunpack.c.h.b16 %v758
        %v2435 = vunpack.c.l.b16 %v759
        %v2436 = vunpack.c.h.b16 %v759
        %v2437 = vunpack.c.l.b16 %v760
        %v2438 = vunpack.c.h.b16 %v760
        %v2439 = vunpack.c.l.b16 %v761
        %v2440 = vunpack.c.h.b16 %v761
        %v2441 = vunpack.c.l.b16 %v762
        %v2442 = vunpack.c.h.b16 %v762
        %v2443 = vunpack.c.l.b16 %v763
        %v2444 = vunpack.c.h.b16 %v763
        %v2445 = vunpack.c.l.b16 %v764
        %v2446 = vunpack.c.h.b16 %v764
        %v2447 = vunpack.c.l.b16 %v765
        %v2448 = vunpack.c.h.b16 %v765
        %v2449 = vunpack.c.l.b16 %v766
        %v2450 = vunpack.c.h.b16 %v766
        %v2451 = vunpack.c.l.b16 %v767
        %v2452 = vunpack.c.h.b16 %v767
        %v2453 = vunpack.c.l.b16 %v768
        %v2454 = vunpack.c.h.b16 %v768
        %v2455 = vunpack.c.l.b16 %v769
        %v2456 = vunpack.c.h.b16 %v769
        %v2457 = vunpack.c.l.b16 %v770
        %v2458 = vunpack.c.h.b16 %v770
        %v2459 = vunpack.c.l.b16 %v771
        %v2460 = vunpack.c.h.b16 %v771
        %v2461 = vunpack.c.l.b16 %v772
        %v2462 = vunpack.c.h.b16 %v772
        %v2463 = vunpack.c.l.b16 %v773
        %v2464 = vunpack.c.h.b16 %v773
        %v2465 = vunpack.c.l.b16 %v774
        %v2466 = vunpack.c.h.b16 %v774
        %v2467 = vunpack.c.l.b16 %v775
        %v2468 = vunpack.c.h.b16 %v775
        %v2469 = vunpack.c.l.b16 %v776
        %v2470 = vunpack.c.h.b16 %v776
        %v2471 = vunpack.c.l.b16 %v777
        %v2472 = vunpack.c.h.b16 %v777
        %v2473 = vunpack.c.l.b16 %v778
        %v2474 = vunpack.c.h.b16 %v778
        %v2475 = vunpack.c.l.b16 %v779
        %v2476 = vunpack.c.h.b16 %v779
        %v2477 = vunpack.c.l.b16 %v780
        %v2478 = vunpack.c.h.b16 %v780
        %v2479 = vunpack.c.l.b16 %v781
        %v2480 = vunpack.c.h.b16 %v781
        %v2481 = vunpack.c.l.b16 %v782
        %v2482 = vunpack.c.h.b16 %v782
        %v2483 = vunpack.c.l.b16 %v783
        %v2484 = vunpack.c.h.b16 %v783
        %v2485 = vunpack.c.l.b16 %v784
        %v2486 = vunpack.c.h.b16 %v784
        %v2487 = vunpack.c.l.b16 %v785
        %v2488 = vunpack.c.h.b16 %v785
        %v2489 = vunpack.c.l.b16 %v786
        %v2490 = vunpack.c.h.b16 %v786
        %v2491 = vunpack.c.l.b16 %v787
        %v2492 = vunpack.c.h.b16 %v787
        %v2493 = vunpack.c.l.b16 %v788
        %v2494 = vunpack.c.h.b16 %v788
        %v2495 = vunpack.c.l.b16 %v789
        %v2496 = vunpack.c.h.b16 %v789
        %v2497 = vunpack.c.l.b16 %v790
        %v2498 = vunpack.c.h.b16 %v790
        %v2499 = vunpack.c.l.b16 %v791
        %v2500 = vunpack.c.h.b16 %v791
        %v2501 = vunpack.c.l.b16 %v792
        %v2502 = vunpack.c.h.b16 %v792
        %v2503 = vunpack.c.l.b16 %v793
        %v2504 = vunpack.c.h.b16 %v793
        %v2505 = vunpack.c.l.b16 %v794
        %v2506 = vunpack.c.h.b16 %v794
        %v2507 = vunpack.c.l.b16 %v795
        %v2508 = vunpack.c.h.b16 %v795
        %v2509 = vunpack.c.l.b16 %v796
        %v2510 = vunpack.c.h.b16 %v796
        %v2511 = vunpack.c.l.b16 %v797
        %v2512 = vunpack.c.h.b16 %v797
        %v2513 = vunpack.c.l.b16 %v798
        %v2514 = vunpack.c.h.b16 %v798
        %v2515 = vunpack.c.l.b16 %v799
        %v2516 = vunpack.c.h.b16 %v799
        %v2517 = vunpack.c.l.b16 %v800
        %v2518 = vunpack.c.h.b16 %v800
        %v2519 = vunpack.c.l.b16 %v801
        %v2520 = vunpack.c.h.b16 %v801
        %v2521 = vunpack.c.l.b16 %v802
        %v2522 = vunpack.c.h.b16 %v802
        %v2523 = vunpack.c.l.b16 %v803
        %v2524 = vunpack.c.h.b16 %v803
        %v2525 = vunpack.c.l.b16 %v804
        %v2526 = vunpack.c.h.b16 %v804
        %v2527 = vunpack.c.l.b16 %v805
        %v2528 = vunpack.c.h.b16 %v805
        %v2529 = vunpack.c.l.b16 %v806
        %v2530 = vunpack.c.h.b16 %v806
        %v2531 = vunpack.c.l.b16 %v807
        %v2532 = vunpack.c.h.b16 %v807
        %v2533 = vunpack.c.l.b16 %v808
        %v2534 = vunpack.c.h.b16 %v808
        %v2535 = vunpack.c.l.b16 %v809
        %v2536 = vunpack.c.h.b16 %v809
        %v2537 = vunpack.c.l.b16 %v810
        %v2538 = vunpack.c.h.b16 %v810
        %v2539 = vunpack.c.l.b16 %v811
        %v2540 = vunpack.c.h.b16 %v811
        %v2541 = vunpack.c.l.b16 %v812
        %v2542 = vunpack.c.h.b16 %v812
        %v2543 = vunpack.c.l.b16 %v813
        %v2544 = vunpack.c.h.b16 %v813
        %v2545 = vunpack.c.l.b16 %v814
        %v2546 = vunpack.c.h.b16 %v814
        %v2547 = vunpack.c.l.b16 %v815
        %v2548 = vunpack.c.h.b16 %v815
        %v2549 = vunpack.c.l.b16 %v816
        %v2550 = vunpack.c.h.b16 %v816
        %v2551 = vunpack.c.l.b16 %v817
        %v2552 = vunpack.c.h.b16 %v817
        %v2553 = vunpack.c.l.b16 %v818
        %v2554 = vunpack.c.h.b16 %v818
        %v2555 = vunpack.c.l.b16 %v819
        %v2556 = vunpack.c.h.b16 %v819
        %v2557 = vunpack.c.l.b16 %v820
        %v2558 = vunpack.c.h.b16 %v820
        %v2559 = vunpack.c.l.b16 %v821
        %v2560 = vunpack.c.h.b16 %v821
        %v2561 = vunpack.c.l.b16 %v822
        %v2562 = vunpack.c.h.b16 %v822
        %v2563 = vunpack.c.l.b16 %v823
        %v2564 = vunpack.c.h.b16 %v823
        %v2565 = vunpack.c.l.b16 %v824
        %v2566 = vunpack.c.h.b16 %v824
        %v2567 = vunpack.c.l.b16 %v825
        %v2568 = vunpack.c.h.b16 %v825
        %v2569 = vunpack.c.l.b16 %v826
        %v2570 = vunpack.c.h.b16 %v826
        %v2571 = vunpack.c.l.b16 %v827
        %v2572 = vunpack.c.h.b16 %v827
        %v2573 = vunpack.c.l.b16 %v828
        %v2574 = vunpack.c.h.b16 %v828
        %v2575 = vunpack.c.l.b16 %v829
        %v2576 = vunpack.c.h.b16 %v829
        %v2577 = vunpack.c.l.b16 %v830
        %v2578 = vunpack.c.h.b16 %v830
        %v2579 = vunpack.c.l.b16 %v831
        %v2580 = vunpack.c.h.b16 %v831
        %v2581 = vunpack.c.l.b16 %v832
        %v2582 = vunpack.c.h.b16 %v832
        %v2583 = vunpack.c.l.b16 %v833
        %v2584 = vunpack.c.h.b16 %v833
        %v2585 = vunpack.c.l.b16 %v834
        %v2586 = vunpack.c.h.b16 %v834
        %v2587 = vunpack.c.l.b16 %v835
        %v2588 = vunpack.c.h.b16 %v835
        %v2589 = vunpack.c.l.b16 %v836
        %v2590 = vunpack.c.h.b16 %v836
        %v2591 = vunpack.c.l.b16 %v837
        %v2592 = vunpack.c.h.b16 %v837
        %v2593 = vunpack.c.l.b16 %v838
        %v2594 = vunpack.c.h.b16 %v838
        %v2595 = vunpack.c.l.b16 %v839
        %v2596 = vunpack.c.h.b16 %v839
        %v2597 = vunpack.c.l.b16 %v840
        %v2598 = vunpack.c.h.b16 %v840
        %v2599 = vunpack.c.l.b16 %v841
        %v2600 = vunpack.c.h.b16 %v841
        %v2601 = vunpack.c.l.b16 %v842
        %v2602 = vunpack.c.h.b16 %v842
        %v2603 = vunpack.c.l.b16 %v843
        %v2604 = vunpack.c.h.b16 %v843
        %v2605 = vunpack.c.l.b16 %v844
        %v2606 = vunpack.c.h.b16 %v844
        %v2607 = vunpack.c.l.b16 %v845
        %v2608 = vunpack.c.h.b16 %v845
        %v2609 = vunpack.c.l.b16 %v846
        %v2610 = vunpack.c.h.b16 %v846
        %v2611 = vunpack.c.l.b16 %v847
        %v2612 = vunpack.c.h.b16 %v847
        %v2613 = vunpack.c.l.b16 %v848
        %v2614 = vunpack.c.h.b16 %v848
        %v2615 = vunpack.c.l.b16 %v849
        %v2616 = vunpack.c.h.b16 %v849
        %v2617 = vunpack.c.l.b16 %v850
        %v2618 = vunpack.c.h.b16 %v850
        %v2619 = vunpack.c.l.b16 %v851
        %v2620 = vunpack.c.h.b16 %v851
        %v2621 = vunpack.c.l.b16 %v852
        %v2622 = vunpack.c.h.b16 %v852
        %v2623 = vunpack.c.l.b16 %v853
        %v2624 = vunpack.c.h.b16 %v853
        %v2625 = vunpack.c.l.b16 %v854
        %v2626 = vunpack.c.h.b16 %v854
        %v2627 = vunpack.c.l.b16 %v855
        %v2628 = vunpack.c.h.b16 %v855
        %v2629 = vunpack.c.l.b16 %v856
        %v2630 = vunpack.c.h.b16 %v856
        %v2631 = vunpack.c.l.b16 %v857
        %v2632 = vunpack.c.h.b16 %v857
        %v2633 = vunpack.c.l.b16 %v858
        %v2634 = vunpack.c.h.b16 %v858
        %v2635 = vunpack.c.l.b16 %v859
        %v2636 = vunpack.c.h.b16 %v859
        %v2637 = vunpack.c.l.b16 %v860
        %v2638 = vunpack.c.h.b16 %v860
        %v2639 = vunpack.c.l.b16 %v861
        %v2640 = vunpack.c.h.b16 %v861
        %v2641 = vunpack.c.l.b16 %v862
        %v2642 = vunpack.c.h.b16 %v862
        %v2643 = vunpack.c.l.b16 %v863
        %v2644 = vunpack.c.h.b16 %v863
        %v2645 = vunpack.c.l.b16 %v864
        %v2646 = vunpack.c.h.b16 %v864
        %v2647 = vunpack.c.l.b16 %v865
        %v2648 = vunpack.c.h.b16 %v865
        %v2649 = vunpack.c.l.b16 %v866
        %v2650 = vunpack.c.h.b16 %v866
        %v2651 = vunpack.c.l.b16 %v867
        %v2652 = vunpack.c.h.b16 %v867
        %v2653 = vunpack.c.l.b16 %v868
        %v2654 = vunpack.c.h.b16 %v868
        %v2655 = vunpack.c.l.b16 %v869
        %v2656 = vunpack.c.h.b16 %v869
        %v2657 = vunpack.c.l.b16 %v870
        %v2658 = vunpack.c.h.b16 %v870
        %v2659 = vunpack.c.l.b16 %v871
        %v2660 = vunpack.c.h.b16 %v871
        %v2661 = vunpack.c.l.b16 %v872
        %v2662 = vunpack.c.h.b16 %v872
        %v2663 = vunpack.c.l.b16 %v873
        %v2664 = vunpack.c.h.b16 %v873
        %v2665 = vunpack.c.l.b16 %v874
        %v2666 = vunpack.c.h.b16 %v874
        %v2667 = vunpack.c.l.b16 %v875
        %v2668 = vunpack.c.h.b16 %v875
        %v2669 = vunpack.c.l.b16 %v876
        %v2670 = vunpack.c.h.b16 %v876
        %v2671 = vunpack.c.l.b16 %v877
        %v2672 = vunpack.c.h.b16 %v877
        %v2673 = vunpack.c.l.b16 %v878
        %v2674 = vunpack.c.h.b16 %v878
        %v2675 = vunpack.c.l.b16 %v879
        %v2676 = vunpack.c.h.b16 %v879
        %v2677 = vunpack.c.l.b16 %v880
        %v2678 = vunpack.c.h.b16 %v880
        %v2679 = vunpack.c.l.b16 %v881
        %v2680 = vunpack.c.h.b16 %v881
        %v2681 = vunpack.c.l.b16 %v882
        %v2682 = vunpack.c.h.b16 %v882
        %v2683 = vunpack.c.l.b16 %v883
        %v2684 = vunpack.c.h.b16 %v883
        %v2685 = vunpack.c.l.b16 %v884
        %v2686 = vunpack.c.h.b16 %v884
        %v2687 = vunpack.c.l.b16 %v885
        %v2688 = vunpack.c.h.b16 %v885
        %v2689 = vunpack.c.l.b16 %v886
        %v2690 = vunpack.c.h.b16 %v886
        %v2691 = vunpack.c.l.b16 %v887
        %v2692 = vunpack.c.h.b16 %v887
        %v2693 = vunpack.c.l.b16 %v888
        %v2694 = vunpack.c.h.b16 %v888
        %v2695 = vunpack.c.l.b16 %v889
        %v2696 = vunpack.c.h.b16 %v889
        %v2697 = vunpack.c.l.b16 %v890
        %v2698 = vunpack.c.h.b16 %v890
        %v2699 = vunpack.c.l.b16 %v891
        %v2700 = vunpack.c.h.b16 %v891
        %v2701 = vunpack.c.l.b16 %v892
        %v2702 = vunpack.c.h.b16 %v892
        %v2703 = vunpack.c.l.b16 %v893
        %v2704 = vunpack.c.h.b16 %v893
        %v2705 = vunpack.c.l.b16 %v894
        %v2706 = vunpack.c.h.b16 %v894
        %v2707 = vunpack.c.l.b16 %v895
        %v2708 = vunpack.c.h.b16 %v895
        %v2709 = vunpack.c.l.b16 %v896
        %v2710 = vunpack.c.h.b16 %v896
        %v2711 = vunpack.c.l.b16 %v897
        %v2712 = vunpack.c.h.b16 %v897
        %v2713 = vunpack.c.l.b16 %v898
        %v2714 = vunpack.c.h.b16 %v898
        %v2715 = vunpack.c.l.b16 %v899
        %v2716 = vunpack.c.h.b16 %v899
        %v2717 = vunpack.c.l.b16 %v900
        %v2718 = vunpack.c.h.b16 %v900
        %v2719 = vunpack.c.l.b16 %v901
        %v2720 = vunpack.c.h.b16 %v901
        %v2721 = vunpack.c.l.b16 %v902
        %v2722 = vunpack.c.h.b16 %v902
        %v2723 = vunpack.c.l.b16 %v903
        %v2724 = vunpack.c.h.b16 %v903
        %v2725 = vunpack.c.l.b16 %v904
        %v2726 = vunpack.c.h.b16 %v904
        %v2727 = vunpack.c.l.b16 %v905
        %v2728 = vunpack.c.h.b16 %v905
        %v2729 = vunpack.c.l.b16 %v906
        %v2730 = vunpack.c.h.b16 %v906
        %v2731 = vunpack.c.l.b16 %v907
        %v2732 = vunpack.c.h.b16 %v907
        %v2733 = vunpack.c.l.b16 %v908
        %v2734 = vunpack.c.h.b16 %v908
        %v2735 = vunpack.c.l.b16 %v909
        %v2736 = vunpack.c.h.b16 %v909
        %v2737 = vunpack.c.l.b16 %v910
        %v2738 = vunpack.c.h.b16 %v910
        %v2739 = vunpack.c.l.b16 %v911
        %v2740 = vunpack.c.h.b16 %v911
        %v2741 = vunpack.c.l.b16 %v912
        %v2742 = vunpack.c.h.b16 %v912
        %v2743 = vunpack.c.l.b16 %v913
        %v2744 = vunpack.c.h.b16 %v913
        %v2745 = vunpack.c.l.b16 %v914
        %v2746 = vunpack.c.h.b16 %v914
        %v2747 = vunpack.c.l.b16 %v915
        %v2748 = vunpack.c.h.b16 %v915
        %v2749 = vunpack.c.l.b16 %v916
        %v2750 = vunpack.c.h.b16 %v916
        %v2751 = vunpack.c.l.b16 %v917
        %v2752 = vunpack.c.h.b16 %v917
        %v2753 = vunpack.c.l.b16 %v918
        %v2754 = vunpack.c.h.b16 %v918
        %v2755 = vunpack.c.l.b16 %v919
        %v2756 = vunpack.c.h.b16 %v919
        %v2757 = vunpack.c.l.b16 %v920
        %v2758 = vunpack.c.h.b16 %v920
        %v2759 = vunpack.c.l.b16 %v921
        %v2760 = vunpack.c.h.b16 %v921
        %v2761 = vunpack.c.l.b16 %v922
        %v2762 = vunpack.c.h.b16 %v922
        %v2763 = vunpack.c.l.b16 %v923
        %v2764 = vunpack.c.h.b16 %v923
        %v2765 = vunpack.c.l.b16 %v924
        %v2766 = vunpack.c.h.b16 %v924
        %v2767 = vunpack.c.l.b16 %v925
        %v2768 = vunpack.c.h.b16 %v925
        %v2769 = vunpack.c.l.b16 %v926
        %v2770 = vunpack.c.h.b16 %v926
        %v2771 = vunpack.c.l.b16 %v927
        %v2772 = vunpack.c.h.b16 %v927
        %v2773 = vunpack.c.l.b16 %v928
        %v2774 = vunpack.c.h.b16 %v928
        %v2775 = vunpack.c.l.b16 %v929
        %v2776 = vunpack.c.h.b16 %v929
        %v2777 = vunpack.c.l.b16 %v930
        %v2778 = vunpack.c.h.b16 %v930
        %v2779 = vunpack.c.l.b16 %v931
        %v2780 = vunpack.c.h.b16 %v931
        %v2781 = vunpack.c.l.b16 %v932
        %v2782 = vunpack.c.h.b16 %v932
        %v2783 = vunpack.c.l.b16 %v933
        %v2784 = vunpack.c.h.b16 %v933
        %v2785 = vunpack.c.l.b16 %v934
        %v2786 = vunpack.c.h.b16 %v934
        %v2787 = vunpack.c.l.b16 %v935
        %v2788 = vunpack.c.h.b16 %v935
        %v2789 = vunpack.c.l.b16 %v936
        %v2790 = vunpack.c.h.b16 %v936
        %v2791 = vunpack.c.l.b16 %v937
        %v2792 = vunpack.c.h.b16 %v937
        %v2793 = vunpack.c.l.b16 %v938
        %v2794 = vunpack.c.h.b16 %v938
        %v2795 = vunpack.c.l.b16 %v939
        %v2796 = vunpack.c.h.b16 %v939
        %v2797 = vunpack.c.l.b16 %v940
        %v2798 = vunpack.c.h.b16 %v940
        %v2799 = vunpack.c.l.b16 %v941
        %v2800 = vunpack.c.h.b16 %v941
        %v2801 = vunpack.c.l.b16 %v942
        %v2802 = vunpack.c.h.b16 %v942
        %v2803 = vunpack.c.l.b16 %v943
        %v2804 = vunpack.c.h.b16 %v943
        %v2805 = vunpack.c.l.b16 %v944
        %v2806 = vunpack.c.h.b16 %v944
        %v2807 = vunpack.c.l.b16 %v945
        %v2808 = vunpack.c.h.b16 %v945
        %v2809 = vunpack.c.l.b16 %v946
        %v2810 = vunpack.c.h.b16 %v946
        %v2811 = vunpack.c.l.b16 %v947
        %v2812 = vunpack.c.h.b16 %v947
        %v2813 = vunpack.c.l.b16 %v948
        %v2814 = vunpack.c.h.b16 %v948
        %v2815 = vunpack.c.l.b16 %v949
        %v2816 = vunpack.c.h.b16 %v949
        %v2817 = vunpack.c.l.b16 %v950
        %v2818 = vunpack.c.h.b16 %v950
        %v2819 = vunpack.c.l.b16 %v951
        %v2820 = vunpack.c.h.b16 %v951
        %v2821 = vunpack.c.l.b16 %v952
        %v2822 = vunpack.c.h.b16 %v952
        %v2823 = vunpack.c.l.b16 %v953
        %v2824 = vunpack.c.h.b16 %v953
        %v2825 = vunpack.c.l.b16 %v954
        %v2826 = vunpack.c.h.b16 %v954
        %v2827 = vunpack.c.l.b16 %v955
        %v2828 = vunpack.c.h.b16 %v955
        %v2829 = vunpack.c.l.b16 %v956
        %v2830 = vunpack.c.h.b16 %v956
        %v2831 = vunpack.c.l.b16 %v957
        %v2832 = vunpack.c.h.b16 %v957
        %v2833 = vunpack.c.l.b16 %v958
        %v2834 = vunpack.c.h.b16 %v958
        %v2835 = vunpack.c.l.b16 %v959
        %v2836 = vunpack.c.h.b16 %v959
        %v2837 = vunpack.c.l.b16 %v960
        %v2838 = vunpack.c.h.b16 %v960
        %v2839 = vunpack.c.l.b16 %v961
        %v2840 = vunpack.c.h.b16 %v961
        %v2841 = vunpack.c.l.b16 %v962
        %v2842 = vunpack.c.h.b16 %v962
        %v2843 = vunpack.c.l.b16 %v963
        %v2844 = vunpack.c.h.b16 %v963
        %v2845 = vunpack.c.l.b16 %v964
        %v2846 = vunpack.c.h.b16 %v964
        %v2847 = vunpack.c.l.b16 %v965
        %v2848 = vunpack.c.h.b16 %v965
        %v2849 = vunpack.c.l.b16 %v966
        %v2850 = vunpack.c.h.b16 %v966
        %v2851 = vunpack.c.l.b16 %v967
        %v2852 = vunpack.c.h.b16 %v967
        %v2853 = vunpack.c.l.b16 %v968
        %v2854 = vunpack.c.h.b16 %v968
        %v2855 = vunpack.c.l.b16 %v969
        %v2856 = vunpack.c.h.b16 %v969
        %v2857 = vunpack.c.l.b16 %v970
        %v2858 = vunpack.c.h.b16 %v970
        %v2859 = vunpack.c.l.b16 %v971
        %v2860 = vunpack.c.h.b16 %v971
        %v2861 = vunpack.c.l.b16 %v972
        %v2862 = vunpack.c.h.b16 %v972
        %v2863 = vunpack.c.l.b16 %v973
        %v2864 = vunpack.c.h.b16 %v973
        %v2865 = vunpack.c.l.b16 %v974
        %v2866 = vunpack.c.h.b16 %v974
        %v2867 = vunpack.c.l.b16 %v975
        %v2868 = vunpack.c.h.b16 %v975
        %v2869 = vunpack.c.l.b16 %v976
        %v2870 = vunpack.c.h.b16 %v976
        %v2871 = vunpack.c.l.b16 %v977
        %v2872 = vunpack.c.h.b16 %v977
        %v2873 = vunpack.c.l.b16 %v978
        %v2874 = vunpack.c.h.b16 %v978
        %v2875 = vunpack.c.l.b16 %v979
        %v2876 = vunpack.c.h.b16 %v979
        %v2877 = vunpack.c.l.b16 %v980
        %v2878 = vunpack.c.h.b16 %v980
        %v2879 = vunpack.c.l.b16 %v981
        %v2880 = vunpack.c.h.b16 %v981
        %v2881 = vunpack.c.l.b16 %v982
        %v2882 = vunpack.c.h.b16 %v982
        %v2883 = vunpack.c.l.b16 %v983
        %v2884 = vunpack.c.h.b16 %v983
        %v2885 = vunpack.c.l.b16 %v984
        %v2886 = vunpack.c.h.b16 %v984
        %v2887 = vunpack.c.l.b16 %v985
        %v2888 = vunpack.c.h.b16 %v985
        %v2889 = vunpack.c.l.b16 %v986
        %v2890 = vunpack.c.h.b16 %v986
        %v2891 = vunpack.c.l.b16 %v987
        %v2892 = vunpack.c.h.b16 %v987
        %v2893 = vunpack.c.l.b16 %v988
        %v2894 = vunpack.c.h.b16 %v988
        %v2895 = vunpack.c.l.b16 %v989
        %v2896 = vunpack.c.h.b16 %v989
        %v2897 = vunpack.c.l.b16 %v990
        %v2898 = vunpack.c.h.b16 %v990
        %v2899 = vunpack.c.l.b16 %v991
        %v2900 = vunpack.c.h.b16 %v991
        %v2901 = vunpack.c.l.b16 %v992
        %v2902 = vunpack.c.h.b16 %v992
        %v2903 = vunpack.c.l.b16 %v993
        %v2904 = vunpack.c.h.b16 %v993
        %v2905 = vunpack.c.l.b16 %v994
        %v2906 = vunpack.c.h.b16 %v994
        %v2907 = vunpack.c.l.b16 %v995
        %v2908 = vunpack.c.h.b16 %v995
        %v2909 = vunpack.c.l.b16 %v996
        %v2910 = vunpack.c.h.b16 %v996
        %v2911 = vunpack.c.l.b16 %v997
        %v2912 = vunpack.c.h.b16 %v997
        %v2913 = vunpack.c.l.b16 %v998
        %v2914 = vunpack.c.h.b16 %v998
        %v2915 = vunpack.c.l.b16 %v999
        %v2916 = vunpack.c.h.b16 %v999
        %v2917 = vunpack.c.l.b16 %v1000
        %v2918 = vunpack.c.h.b16 %v1000
        %v2919 = vunpack.c.l.b16 %v1001
        %v2920 = vunpack.c.h.b16 %v1001
        %v2921 = vunpack.c.l.b16 %v1002
        %v2922 = vunpack.c.h.b16 %v1002
        %v2923 = vunpack.c.l.b16 %v1003
        %v2924 = vunpack.c.h.b16 %v1003
        %v2925 = vunpack.c.l.b16 %v1004
        %v2926 = vunpack.c.h.b16 %v1004
        %v2927 = vunpack.c.l.b16 %v1005
        %v2928 = vunpack.c.h.b16 %v1005
        %v2929 = vunpack.c.l.b16 %v1006
        %v2930 = vunpack.c.h.b16 %v1006
        %v2931 = vunpack.c.l.b16 %v1007
        %v2932 = vunpack.c.h.b16 %v1007
        %v2933 = vunpack.c.l.b16 %v1008
        %v2934 = vunpack.c.h.b16 %v1008
        %v2935 = vunpack.c.l.b16 %v1009
        %v2936 = vunpack.c.h.b16 %v1009
        %v2937 = vunpack.c.l.b16 %v1010
        %v2938 = vunpack.c.h.b16 %v1010
        %v2939 = vunpack.c.l.b16 %v1011
        %v2940 = vunpack.c.h.b16 %v1011
        %v2941 = vunpack.c.l.b16 %v1012
        %v2942 = vunpack.c.h.b16 %v1012
        %v2943 = vunpack.c.l.b16 %v1013
        %v2944 = vunpack.c.h.b16 %v1013
        %v2945 = vunpack.c.l.b16 %v1014
        %v2946 = vunpack.c.h.b16 %v1014
        %v2947 = vunpack.c.l.b16 %v1015
        %v2948 = vunpack.c.h.b16 %v1015
        %v2949 = vunpack.c.l.b16 %v1016
        %v2950 = vunpack.c.h.b16 %v1016
        %v2951 = vunpack.c.l.b16 %v1017
        %v2952 = vunpack.c.h.b16 %v1017
        %v2953 = vunpack.c.l.b16 %v1018
        %v2954 = vunpack.c.h.b16 %v1018
        %v2955 = vunpack.c.l.b16 %v1019
        %v2956 = vunpack.c.h.b16 %v1019
        %v2957 = vunpack.c.l.b16 %v1020
        %v2958 = vunpack.c.h.b16 %v1020
        %v2959 = vunpack.c.l.b16 %v1021
        %v2960 = vunpack.c.h.b16 %v1021
        %v2961 = vunpack.c.l.b16 %v1022
        %v2962 = vunpack.c.h.b16 %v1022
        %v2963 = vunpack.c.l.b16 %v1023
        %v2964 = vunpack.c.h.b16 %v1023
        %v2965 = vunpack.c.l.b16 %v1024
        %v2966 = vunpack.c.h.b16 %v1024
        %v2967 = vunpack.c.l.b16 %v1025
        %v2968 = vunpack.c.h.b16 %v1025
        %v2969 = vunpack.c.l.b16 %v1026
        %v2970 = vunpack.c.h.b16 %v1026
        %v2971 = vunpack.c.l.b16 %v1027
        %v2972 = vunpack.c.h.b16 %v1027
        %v2973 = vunpack.c.l.b16 %v1028
        %v2974 = vunpack.c.h.b16 %v1028
        %v2975 = vunpack.c.l.b16 %v1029
        %v2976 = vunpack.c.h.b16 %v1029
        %v2977 = vunpack.c.l.b16 %v1030
        %v2978 = vunpack.c.h.b16 %v1030
        %v2979 = vunpack.c.l.b16 %v1031
        %v2980 = vunpack.c.h.b16 %v1031
        %v2981 = vunpack.c.l.b16 %v1032
        %v2982 = vunpack.c.h.b16 %v1032
        %v2983 = vunpack.c.l.b16 %v1033
        %v2984 = vunpack.c.h.b16 %v1033
        %v2985 = vunpack.c.l.b16 %v1034
        %v2986 = vunpack.c.h.b16 %v1034
        %v2987 = vunpack.c.l.b16 %v1035
        %v2988 = vunpack.c.h.b16 %v1035
        %v2989 = vunpack.c.l.b16 %v1036
        %v2990 = vunpack.c.h.b16 %v1036
        %v2991 = vunpack.c.l.b16 %v1037
        %v2992 = vunpack.c.h.b16 %v1037
        %v2993 = vunpack.c.l.b16 %v1038
        %v2994 = vunpack.c.h.b16 %v1038
        %v2995 = vunpack.c.l.b16 %v1039
        %v2996 = vunpack.c.h.b16 %v1039
        %v2997 = vunpack.c.l.b16 %v1040
        %v2998 = vunpack.c.h.b16 %v1040
        %v2999 = vunpack.c.l.b16 %v1041
        %v3000 = vunpack.c.h.b16 %v1041
        %v3001 = vunpack.c.l.b16 %v1042
        %v3002 = vunpack.c.h.b16 %v1042
        %v3003 = vunpack.c.l.b16 %v1043
        %v3004 = vunpack.c.h.b16 %v1043
        %v3005 = vunpack.c.l.b16 %v1044
        %v3006 = vunpack.c.h.b16 %v1044
        %v3007 = vunpack.c.l.b16 %v1045
        %v3008 = vunpack.c.h.b16 %v1045
        %v3009 = vunpack.c.l.b16 %v1046
        %v3010 = vunpack.c.h.b16 %v1046
        %v3011 = vunpack.c.l.b16 %v1047
        %v3012 = vunpack.c.h.b16 %v1047
        %v3013 = vunpack.c.l.b16 %v1048
        %v3014 = vunpack.c.h.b16 %v1048
        %v3015 = vunpack.c.l.b16 %v1049
        %v3016 = vunpack.c.h.b16 %v1049
        %v3017 = vunpack.c.l.b16 %v1050
        %v3018 = vunpack.c.h.b16 %v1050
        %v3019 = vunpack.c.l.b16 %v1051
        %v3020 = vunpack.c.h.b16 %v1051
        %v3021 = vunpack.c.l.b16 %v1052
        %v3022 = vunpack.c.h.b16 %v1052
        %v3023 = vunpack.c.l.b16 %v1053
        %v3024 = vunpack.c.h.b16 %v1053
        %v3025 = vunpack.c.l.b16 %v1054
        %v3026 = vunpack.c.h.b16 %v1054
        %v3027 = vunpack.c.l.b16 %v1055
        %v3028 = vunpack.c.h.b16 %v1055
        %v3029 = vunpack.c.l.b16 %v1056
        %v3030 = vunpack.c.h.b16 %v1056
        %v3031 = vunpack.c.l.b16 %v1057
        %v3032 = vunpack.c.h.b16 %v1057
        %v3033 = vunpack.c.l.b16 %v1058
        %v3034 = vunpack.c.h.b16 %v1058
        %v3035 = vunpack.c.l.b16 %v1059
        %v3036 = vunpack.c.h.b16 %v1059
        %v3037 = vunpack.c.l.b16 %v1060
        %v3038 = vunpack.c.h.b16 %v1060
        %v3039 = vunpack.c.l.b16 %v1061
        %v3040 = vunpack.c.h.b16 %v1061
        %v3041 = vunpack.c.l.b16 %v1062
        %v3042 = vunpack.c.h.b16 %v1062
        %v3043 = vunpack.c.l.b16 %v1063
        %v3044 = vunpack.c.h.b16 %v1063
        %v3045 = vunpack.c.l.b16 %v1064
        %v3046 = vunpack.c.h.b16 %v1064
        %v3047 = vunpack.c.l.b16 %v1065
        %v3048 = vunpack.c.h.b16 %v1065
        %v3049 = vunpack.c.l.b16 %v1066
        %v3050 = vunpack.c.h.b16 %v1066
        %v3051 = vunpack.c.l.b16 %v1067
        %v3052 = vunpack.c.h.b16 %v1067
        %v3053 = vunpack.c.l.b16 %v1068
        %v3054 = vunpack.c.h.b16 %v1068
        %v3055 = vunpack.c.l.b16 %v1069
        %v3056 = vunpack.c.h.b16 %v1069
        %v3057 = vunpack.c.l.b16 %v1070
        %v3058 = vunpack.c.h.b16 %v1070
        %v3059 = vunpack.c.l.b16 %v1071
        %v3060 = vunpack.c.h.b16 %v1071
        %v3061 = vunpack.c.l.b16 %v1072
        %v3062 = vunpack.c.h.b16 %v1072
        %v3063 = vunpack.c.l.b16 %v1073
        %v3064 = vunpack.c.h.b16 %v1073
        %v3065 = vunpack.c.l.b16 %v1074
        %v3066 = vunpack.c.h.b16 %v1074
        %v3067 = vunpack.c.l.b16 %v1075
        %v3068 = vunpack.c.h.b16 %v1075
        %v3069 = vunpack.c.l.b16 %v1076
        %v3070 = vunpack.c.h.b16 %v1076
        %v3071 = vunpack.c.l.b16 %v1077
        %v3072 = vunpack.c.h.b16 %v1077
        %v3073 = vunpack.c.l.b16 %v1078
        %v3074 = vunpack.c.h.b16 %v1078
        %v3075 = vunpack.c.l.b16 %v1079
        %v3076 = vunpack.c.h.b16 %v1079
        %v3077 = vunpack.c.l.b16 %v1080
        %v3078 = vunpack.c.h.b16 %v1080
        %v3079 = vunpack.c.l.b16 %v1081
        %v3080 = vunpack.c.h.b16 %v1081
        %v3081 = vunpack.c.l.b16 %v1082
        %v3082 = vunpack.c.h.b16 %v1082
        %v3083 = vunpack.c.l.b16 %v1083
        %v3084 = vunpack.c.h.b16 %v1083
        %v3085 = vunpack.c.l.b16 %v1084
        %v3086 = vunpack.c.h.b16 %v1084
        %v3087 = vunpack.c.l.b16 %v1085
        %v3088 = vunpack.c.h.b16 %v1085
        %v3089 = vunpack.c.l.b16 %v1086
        %v3090 = vunpack.c.h.b16 %v1086
        %v3091 = vunpack.c.l.b16 %v1087
        %v3092 = vunpack.c.h.b16 %v1087
        %v3093 = vunpack.c.l.b16 %v1088
        %v3094 = vunpack.c.h.b16 %v1088
        %v3095 = vunpack.c.l.b16 %v1089
        %v3096 = vunpack.c.h.b16 %v1089
        %v3097 = vunpack.c.l.b16 %v1090
        %v3098 = vunpack.c.h.b16 %v1090
        %v3099 = vunpack.c.l.b16 %v1091
        %v3100 = vunpack.c.h.b16 %v1091
        %v3101 = vunpack.c.l.b16 %v1092
        %v3102 = vunpack.c.h.b16 %v1092
        %v3103 = vunpack.c.l.b16 %v1093
        %v3104 = vunpack.c.h.b16 %v1093
        %v3105 = vunpack.c.l.b16 %v1094
        %v3106 = vunpack.c.h.b16 %v1094
        %v3107 = vunpack.c.l.b16 %v1095
        %v3108 = vunpack.c.h.b16 %v1095
        %v3109 = vunpack.c.l.b16 %v1096
        %v3110 = vunpack.c.h.b16 %v1096
        %v3111 = vpack.c.b16 %v1841, %v1831
        %v3112 = vpack.c.b16 %v1842, %v1832
        %v3113 = vpack.c.b16 %v1843, %v1833
        %v3114 = vpack.c.b16 %v1844, %v1834
        %v3115 = vpack.c.b16 %v1845, %v1835
        %v3116 = vpack.c.b16 %v1846, %v1836
        %v3117 = vpack.c.b16 %v1847, %v1837
        %v3118 = vpack.c.b16 %v1848, %v1838
        %v3119 = vpack.c.b16 %v1849, %v1839
        %v3120 = vpack.c.b16 %v1850, %v1840
        %v3121 = vpack.c.b16 %v1861, %v1851
        %v3122 = vpack.c.b16 %v1862, %v1852
        %v3123 = vpack.c.b16 %v1863, %v1853
        %v3124 = vpack.c.b16 %v1864, %v1854
        %v3125 = vpack.c.b16 %v1865, %v1855
        %v3126 = vpack.c.b16 %v1866, %v1856
        %v3127 = vpack.c.b16 %v1867, %v1857
        %v3128 = vpack.c.b16 %v1868, %v1858
        %v3129 = vpack.c.b16 %v1869, %v1859
        %v3130 = vpack.c.b16 %v1870, %v1860
        %v3131 = vpack.c.b16 %v1881, %v1871
        %v3132 = vpack.c.b16 %v1882, %v1872
        %v3133 = vpack.c.b16 %v1883, %v1873
        %v3134 = vpack.c.b16 %v1884, %v1874
        %v3135 = vpack.c.b16 %v1885, %v1875
        %v3136 = vpack.c.b16 %v1886, %v1876
        %v3137 = vpack.c.b16 %v1887, %v1877
        %v3138 = vpack.c.b16 %v1888, %v1878
        %v3139 = vpack.c.b16 %v1889, %v1879
        %v3140 = vpack.c.b16 %v1890, %v1880
        %v3141 = vpack.c.b16 %v1901, %v1891
        %v3142 = vpack.c.b16 %v1902, %v1892
        %v3143 = vpack.c.b16 %v1903, %v1893
        %v3144 = vpack.c.b16 %v1904, %v1894
        %v3145 = vpack.c.b16 %v1905, %v1895
        %v3146 = vpack.c.b16 %v1906, %v1896
        %v3147 = vpack.c.b16 %v1907, %v1897
        %v3148 = vpack.c.b16 %v1908, %v1898
        %v3149 = vpack.c.b16 %v1909, %v1899
        %v3150 = vpack.c.b16 %v1910, %v1900
        %v3151 = vpack.c.b16 %v1921, %v1911
        %v3152 = vpack.c.b16 %v1922, %v1912
        %v3153 = vpack.c.b16 %v1923, %v1913
        %v3154 = vpack.c.b16 %v1924, %v1914
        %v3155 = vpack.c.b16 %v1925, %v1915
        %v3156 = vpack.c.b16 %v1926, %v1916
        %v3157 = vpack.c.b16 %v1927, %v1917
        %v3158 = vpack.c.b16 %v1928, %v1918
        %v3159 = vpack.c.b16 %v1929, %v1919
        %v3160 = vpack.c.b16 %v1930, %v1920
        %v3161 = vpack.c.b16 %v1941, %v1931
        %v3162 = vpack.c.b16 %v1942, %v1932
        %v3163 = vpack.c.b16 %v1943, %v1933
        %v3164 = vpack.c.b16 %v1944, %v1934
        %v3165 = vpack.c.b16 %v1945, %v1935
        %v3166 = vpack.c.b16 %v1946, %v1936
        %v3167 = vpack.c.b16 %v1947, %v1937
        %v3168 = vpack.c.b16 %v1948, %v1938
        %v3169 = vpack.c.b16 %v1949, %v1939
        %v3170 = vpack.c.b16 %v1950, %v1940
        %v3171 = vpack.c.b16 %v1961, %v1951
        %v3172 = vpack.c.b16 %v1962, %v1952
        %v3173 = vpack.c.b16 %v1963, %v1953
        %v3174 = vpack.c.b16 %v1964, %v1954
        %v3175 = vpack.c.b16 %v1965, %v1955
        %v3176 = vpack.c.b16 %v1966, %v1956
        %v3177 = vpack.c.b16 %v1967, %v1957
        %v3178 = vpack.c.b16 %v1968, %v1958
        %v3179 = vpack.c.b16 %v1969, %v1959
        %v3180 = vpack.c.b16 %v1970, %v1960
        %v3181 = vpack.c.b16 %v1981, %v1971
        %v3182 = vpack.c.b16 %v1982, %v1972
        %v3183 = vpack.c.b16 %v1983, %v1973
        %v3184 = vpack.c.b16 %v1984, %v1974
        %v3185 = vpack.c.b16 %v1985, %v1975
        %v3186 = vpack.c.b16 %v1986, %v1976
        %v3187 = vpack.c.b16 %v1987, %v1977
        %v3188 = vpack.c.b16 %v1988, %v1978
        %v3189 = vpack.c.b16 %v1989, %v1979
        %v3190 = vpack.c.b16 %v1990, %v1980
        %v3191 = vpack.c.b16 %v2001, %v1991
        %v3192 = vpack.c.b16 %v2002, %v1992
        %v3193 = vpack.c.b16 %v2003, %v1993
        %v3194 = vpack.c.b16 %v2004, %v1994
        %v3195 = vpack.c.b16 %v2005, %v1995
        %v3196 = vpack.c.b16 %v2006, %v1996
        %v3197 = vpack.c.b16 %v2007, %v1997
        %v3198 = vpack.c.b16 %v2008, %v1998
        %v3199 = vpack.c.b16 %v2009, %v1999
        %v3200 = vpack.c.b16 %v2010, %v2000
        %v3201 = vpack.c.b16 %v2021, %v2011
        %v3202 = vpack.c.b16 %v2022, %v2012
        %v3203 = vpack.c.b16 %v2023, %v2013
        %v3204 = vpack.c.b16 %v2024, %v2014
        %v3205 = vpack.c.b16 %v2025, %v2015
        %v3206 = vpack.c.b16 %v2026, %v2016
        %v3207 = vpack.c.b16 %v2027, %v2017
        %v3208 = vpack.c.b16 %v2028, %v2018
        %v3209 = vpack.c.b16 %v2029, %v2019
        %v3210 = vpack.c.b16 %v2030, %v2020
        %v3211 = vpack.c.b16 %v2041, %v2031
        %v3212 = vpack.c.b16 %v2042, %v2032
        %v3213 = vpack.c.b16 %v2043, %v2033
        %v3214 = vpack.c.b16 %v2044, %v2034
        %v3215 = vpack.c.b16 %v2045, %v2035
        %v3216 = vpack.c.b16 %v2046, %v2036
        %v3217 = vpack.c.b16 %v2047, %v2037
        %v3218 = vpack.c.b16 %v2048, %v2038
        %v3219 = vpack.c.b16 %v2049, %v2039
        %v3220 = vpack.c.b16 %v2050, %v2040
        %v3221 = vpack.c.b16 %v2061, %v2051
        %v3222 = vpack.c.b16 %v2062, %v2052
        %v3223 = vpack.c.b16 %v2063, %v2053
        %v3224 = vpack.c.b16 %v2064, %v2054
        %v3225 = vpack.c.b16 %v2065, %v2055
        %v3226 = vpack.c.b16 %v2066, %v2056
        %v3227 = vpack.c.b16 %v2067, %v2057
        %v3228 = vpack.c.b16 %v2068, %v2058
        %v3229 = vpack.c.b16 %v2069, %v2059
        %v3230 = vpack.c.b16 %v2070, %v2060
        %v3231 = vpack.c.b16 %v2081, %v2071
        %v3232 = vpack.c.b16 %v2082, %v2072
        %v3233 = vpack.c.b16 %v2083, %v2073
        %v3234 = vpack.c.b16 %v2084, %v2074
        %v3235 = vpack.c.b16 %v2085, %v2075
        %v3236 = vpack.c.b16 %v2086, %v2076
        %v3237 = vpack.c.b16 %v2087, %v2077
        %v3238 = vpack.c.b16 %v2088, %v2078
        %v3239 = vpack.c.b16 %v2089, %v2079
        %v3240 = vpack.c.b16 %v2090, %v2080
        %v3241 = vpack.c.b16 %v2101, %v2091
        %v3242 = vpack.c.b16 %v2102, %v2092
        %v3243 = vpack.c.b16 %v2103, %v2093
        %v3244 = vpack.c.b16 %v2104, %v2094
        %v3245 = vpack.c.b16 %v2105, %v2095
        %v3246 = vpack.c.b16 %v2106, %v2096
        %v3247 = vpack.c.b16 %v2107, %v2097
        %v3248 = vpack.c.b16 %v2108, %v2098
        %v3249 = vpack.c.b16 %v2109, %v2099
        %v3250 = vpack.c.b16 %v2110, %v2100
        %v3251 = vpack.c.b16 %v2121, %v2111
        %v3252 = vpack.c.b16 %v2122, %v2112
        %v3253 = vpack.c.b16 %v2123, %v2113
        %v3254 = vpack.c.b16 %v2124, %v2114
        %v3255 = vpack.c.b16 %v2125, %v2115
        %v3256 = vpack.c.b16 %v2126, %v2116
        %v3257 = vpack.c.b16 %v2127, %v2117
        %v3258 = vpack.c.b16 %v2128, %v2118
        %v3259 = vpack.c.b16 %v2129, %v2119
        %v3260 = vpack.c.b16 %v2130, %v2120
        %v3261 = vpack.c.b16 %v2141, %v2131
        %v3262 = vpack.c.b16 %v2142, %v2132
        %v3263 = vpack.c.b16 %v2143, %v2133
        %v3264 = vpack.c.b16 %v2144, %v2134
        %v3265 = vpack.c.b16 %v2145, %v2135
        %v3266 = vpack.c.b16 %v2146, %v2136
        %v3267 = vpack.c.b16 %v2147, %v2137
        %v3268 = vpack.c.b16 %v2148, %v2138
        %v3269 = vpack.c.b16 %v2149, %v2139
        %v3270 = vpack.c.b16 %v2150, %v2140
        %v3271 = vpack.c.b16 %v2161, %v2151
        %v3272 = vpack.c.b16 %v2162, %v2152
        %v3273 = vpack.c.b16 %v2163, %v2153
        %v3274 = vpack.c.b16 %v2164, %v2154
        %v3275 = vpack.c.b16 %v2165, %v2155
        %v3276 = vpack.c.b16 %v2166, %v2156
        %v3277 = vpack.c.b16 %v2167, %v2157
        %v3278 = vpack.c.b16 %v2168, %v2158
        %v3279 = vpack.c.b16 %v2169, %v2159
        %v3280 = vpack.c.b16 %v2170, %v2160
        %v3281 = vpack.c.b16 %v2181, %v2171
        %v3282 = vpack.c.b16 %v2182, %v2172
        %v3283 = vpack.c.b16 %v2183, %v2173
        %v3284 = vpack.c.b16 %v2184, %v2174
        %v3285 = vpack.c.b16 %v2185, %v2175
        %v3286 = vpack.c.b16 %v2186, %v2176
        %v3287 = vpack.c.b16 %v2187, %v2177
        %v3288 = vpack.c.b16 %v2188, %v2178
        %v3289 = vpack.c.b16 %v2189, %v2179
        %v3290 = vpack.c.b16 %v2190, %v2180
        %v3291 = vpack.c.b16 %v2201, %v2191
        %v3292 = vpack.c.b16 %v2202, %v2192
        %v3293 = vpack.c.b16 %v2203, %v2193
        %v3294 = vpack.c.b16 %v2204, %v2194
        %v3295 = vpack.c.b16 %v2205, %v2195
        %v3296 = vpack.c.b16 %v2206, %v2196
        %v3297 = vpack.c.b16 %v2207, %v2197
        %v3298 = vpack.c.b16 %v2208, %v2198
        %v3299 = vpack.c.b16 %v2209, %v2199
        %v3300 = vpack.c.b16 %v2210, %v2200
        %v3301 = vpack.c.b16 %v2221, %v2211
        %v3302 = vpack.c.b16 %v2222, %v2212
        %v3303 = vpack.c.b16 %v2223, %v2213
        %v3304 = vpack.c.b16 %v2224, %v2214
        %v3305 = vpack.c.b16 %v2225, %v2215
        %v3306 = vpack.c.b16 %v2226, %v2216
        %v3307 = vpack.c.b16 %v2227, %v2217
        %v3308 = vpack.c.b16 %v2228, %v2218
        %v3309 = vpack.c.b16 %v2229, %v2219
        %v3310 = vpack.c.b16 %v2230, %v2220
        %v3311 = vpack.c.b16 %v2241, %v2231
        %v3312 = vpack.c.b16 %v2242, %v2232
        %v3313 = vpack.c.b16 %v2243, %v2233
        %v3314 = vpack.c.b16 %v2244, %v2234
        %v3315 = vpack.c.b16 %v2245, %v2235
        %v3316 = vpack.c.b16 %v2246, %v2236
        %v3317 = vpack.c.b16 %v2247, %v2237
        %v3318 = vpack.c.b16 %v2248, %v2238
        %v3319 = vpack.c.b16 %v2249, %v2239
        %v3320 = vpack.c.b16 %v2250, %v2240
        %v3321 = vpack.c.b16 %v2261, %v2251
        %v3322 = vpack.c.b16 %v2262, %v2252
        %v3323 = vpack.c.b16 %v2263, %v2253
        %v3324 = vpack.c.b16 %v2264, %v2254
        %v3325 = vpack.c.b16 %v2265, %v2255
        %v3326 = vpack.c.b16 %v2266, %v2256
        %v3327 = vpack.c.b16 %v2267, %v2257
        %v3328 = vpack.c.b16 %v2268, %v2258
        %v3329 = vpack.c.b16 %v2269, %v2259
        %v3330 = vpack.c.b16 %v2270, %v2260
        %v3331 = vpack.c.b16 %v2281, %v2271
        %v3332 = vpack.c.b16 %v2282, %v2272
        %v3333 = vpack.c.b16 %v2283, %v2273
        %v3334 = vpack.c.b16 %v2284, %v2274
        %v3335 = vpack.c.b16 %v2285, %v2275
        %v3336 = vpack.c.b16 %v2286, %v2276
        %v3337 = vpack.c.b16 %v2287, %v2277
        %v3338 = vpack.c.b16 %v2288, %v2278
        %v3339 = vpack.c.b16 %v2289, %v2279
        %v3340 = vpack.c.b16 %v2290, %v2280
        %v3341 = vpack.c.b16 %v2301, %v2291
        %v3342 = vpack.c.b16 %v2302, %v2292
        %v3343 = vpack.c.b16 %v2303, %v2293
        %v3344 = vpack.c.b16 %v2304, %v2294
        %v3345 = vpack.c.b16 %v2305, %v2295
        %v3346 = vpack.c.b16 %v2306, %v2296
        %v3347 = vpack.c.b16 %v2307, %v2297
        %v3348 = vpack.c.b16 %v2308, %v2298
        %v3349 = vpack.c.b16 %v2309, %v2299
        %v3350 = vpack.c.b16 %v2310, %v2300
        %v3351 = vpack.c.b16 %v2321, %v2311
        %v3352 = vpack.c.b16 %v2322, %v2312
        %v3353 = vpack.c.b16 %v2323, %v2313
        %v3354 = vpack.c.b16 %v2324, %v2314
        %v3355 = vpack.c.b16 %v2325, %v2315
        %v3356 = vpack.c.b16 %v2326, %v2316
        %v3357 = vpack.c.b16 %v2327, %v2317
        %v3358 = vpack.c.b16 %v2328, %v2318
        %v3359 = vpack.c.b16 %v2329, %v2319
        %v3360 = vpack.c.b16 %v2330, %v2320
        %v3361 = vpack.c.b16 %v2341, %v2331
        %v3362 = vpack.c.b16 %v2342, %v2332
        %v3363 = vpack.c.b16 %v2343, %v2333
        %v3364 = vpack.c.b16 %v2344, %v2334
        %v3365 = vpack.c.b16 %v2345, %v2335
        %v3366 = vpack.c.b16 %v2346, %v2336
        %v3367 = vpack.c.b16 %v2347, %v2337
        %v3368 = vpack.c.b16 %v2348, %v2338
        %v3369 = vpack.c.b16 %v2349, %v2339
        %v3370 = vpack.c.b16 %v2350, %v2340
        %v3371 = vpack.c.b16 %v2361, %v2351
        %v3372 = vpack.c.b16 %v2362, %v2352
        %v3373 = vpack.c.b16 %v2363, %v2353
        %v3374 = vpack.c.b16 %v2364, %v2354
        %v3375 = vpack.c.b16 %v2365, %v2355
        %v3376 = vpack.c.b16 %v2366, %v2356
        %v3377 = vpack.c.b16 %v2367, %v2357
        %v3378 = vpack.c.b16 %v2368, %v2358
        %v3379 = vpack.c.b16 %v2369, %v2359
        %v3380 = vpack.c.b16 %v2370, %v2360
        %v3381 = vpack.c.b16 %v2381, %v2371
        %v3382 = vpack.c.b16 %v2382, %v2372
        %v3383 = vpack.c.b16 %v2383, %v2373
        %v3384 = vpack.c.b16 %v2384, %v2374
        %v3385 = vpack.c.b16 %v2385, %v2375
        %v3386 = vpack.c.b16 %v2386, %v2376
        %v3387 = vpack.c.b16 %v2387, %v2377
        %v3388 = vpack.c.b16 %v2388, %v2378
        %v3389 = vpack.c.b16 %v2389, %v2379
        %v3390 = vpack.c.b16 %v2390, %v2380
        %v3391 = vpack.c.b16 %v2401, %v2391
        %v3392 = vpack.c.b16 %v2402, %v2392
        %v3393 = vpack.c.b16 %v2403, %v2393
        %v3394 = vpack.c.b16 %v2404, %v2394
        %v3395 = vpack.c.b16 %v2405, %v2395
        %v3396 = vpack.c.b16 %v2406, %v2396
        %v3397 = vpack.c.b16 %v2407, %v2397
        %v3398 = vpack.c.b16 %v2408, %v2398
        %v3399 = vpack.c.b16 %v2409, %v2399
        %v3400 = vpack.c.b16 %v2410, %v2400
        %v3401 = vpack.c.b16 %v2421, %v2411
        %v3402 = vpack.c.b16 %v2422, %v2412
        %v3403 = vpack.c.b16 %v2423, %v2413
        %v3404 = vpack.c.b16 %v2424, %v2414
        %v3405 = vpack.c.b16 %v2425, %v2415
        %v3406 = vpack.c.b16 %v2426, %v2416
        %v3407 = vpack.c.b16 %v2427, %v2417
        %v3408 = vpack.c.b16 %v2428, %v2418
        %v3409 = vpack.c.b16 %v2429, %v2419
        %v3410 = vpack.c.b16 %v2430, %v2420
        %v3411 = vpack.c.b16 %v2441, %v2431
        %v3412 = vpack.c.b16 %v2442, %v2432
        %v3413 = vpack.c.b16 %v2443, %v2433
        %v3414 = vpack.c.b16 %v2444, %v2434
        %v3415 = vpack.c.b16 %v2445, %v2435
        %v3416 = vpack.c.b16 %v2446, %v2436
        %v3417 = vpack.c.b16 %v2447, %v2437
        %v3418 = vpack.c.b16 %v2448, %v2438
        %v3419 = vpack.c.b16 %v2449, %v2439
        %v3420 = vpack.c.b16 %v2450, %v2440
        %v3421 = vpack.c.b16 %v2461, %v2451
        %v3422 = vpack.c.b16 %v2462, %v2452
        %v3423 = vpack.c.b16 %v2463, %v2453
        %v3424 = vpack.c.b16 %v2464, %v2454
        %v3425 = vpack.c.b16 %v2465, %v2455
        %v3426 = vpack.c.b16 %v2466, %v2456
        %v3427 = vpack.c.b16 %v2467, %v2457
        %v3428 = vpack.c.b16 %v2468, %v2458
        %v3429 = vpack.c.b16 %v2469, %v2459
        %v3430 = vpack.c.b16 %v2470, %v2460
        %v3431 = vpack.c.b16 %v2481, %v2471
        %v3432 = vpack.c.b16 %v2482, %v2472
        %v3433 = vpack.c.b16 %v2483, %v2473
        %v3434 = vpack.c.b16 %v2484, %v2474
        %v3435 = vpack.c.b16 %v2485, %v2475
        %v3436 = vpack.c.b16 %v2486, %v2476
        %v3437 = vpack.c.b16 %v2487, %v2477
        %v3438 = vpack.c.b16 %v2488, %v2478
        %v3439 = vpack.c.b16 %v2489, %v2479
        %v3440 = vpack.c.b16 %v2490, %v2480
        %v3441 = vpack.c.b16 %v2501, %v2491
        %v3442 = vpack.c.b16 %v2502, %v2492
        %v3443 = vpack.c.b16 %v2503, %v2493
        %v3444 = vpack.c.b16 %v2504, %v2494
        %v3445 = vpack.c.b16 %v2505, %v2495
        %v3446 = vpack.c.b16 %v2506, %v2496
        %v3447 = vpack.c.b16 %v2507, %v2497
        %v3448 = vpack.c.b16 %v2508, %v2498
        %v3449 = vpack.c.b16 %v2509, %v2499
        %v3450 = vpack.c.b16 %v2510, %v2500
        %v3451 = vpack.c.b16 %v2521, %v2511
        %v3452 = vpack.c.b16 %v2522, %v2512
        %v3453 = vpack.c.b16 %v2523, %v2513
        %v3454 = vpack.c.b16 %v2524, %v2514
        %v3455 = vpack.c.b16 %v2525, %v2515
        %v3456 = vpack.c.b16 %v2526, %v2516
        %v3457 = vpack.c.b16 %v2527, %v2517
        %v3458 = vpack.c.b16 %v2528, %v2518
        %v3459 = vpack.c.b16 %v2529, %v2519
        %v3460 = vpack.c.b16 %v2530, %v2520
        %v3461 = vpack.c.b16 %v2541, %v2531
        %v3462 = vpack.c.b16 %v2542, %v2532
        %v3463 = vpack.c.b16 %v2543, %v2533
        %v3464 = vpack.c.b16 %v2544, %v2534
        %v3465 = vpack.c.b16 %v2545, %v2535
        %v3466 = vpack.c.b16 %v2546, %v2536
        %v3467 = vpack.c.b16 %v2547, %v2537
        %v3468 = vpack.c.b16 %v2548, %v2538
        %v3469 = vpack.c.b16 %v2549, %v2539
        %v3470 = vpack.c.b16 %v2550, %v2540
        %v3471 = vpack.c.b16 %v2561, %v2551
        %v3472 = vpack.c.b16 %v2562, %v2552
        %v3473 = vpack.c.b16 %v2563, %v2553
        %v3474 = vpack.c.b16 %v2564, %v2554
        %v3475 = vpack.c.b16 %v2565, %v2555
        %v3476 = vpack.c.b16 %v2566, %v2556
        %v3477 = vpack.c.b16 %v2567, %v2557
        %v3478 = vpack.c.b16 %v2568, %v2558
        %v3479 = vpack.c.b16 %v2569, %v2559
        %v3480 = vpack.c.b16 %v2570, %v2560
        %v3481 = vpack.c.b16 %v2581, %v2571
        %v3482 = vpack.c.b16 %v2582, %v2572
        %v3483 = vpack.c.b16 %v2583, %v2573
        %v3484 = vpack.c.b16 %v2584, %v2574
        %v3485 = vpack.c.b16 %v2585, %v2575
        %v3486 = vpack.c.b16 %v2586, %v2576
        %v3487 = vpack.c.b16 %v2587, %v2577
        %v3488 = vpack.c.b16 %v2588, %v2578
        %v3489 = vpack.c.b16 %v2589, %v2579
        %v3490 = vpack.c.b16 %v2590, %v2580
        %v3491 = vpack.c.b16 %v2601, %v2591
        %v3492 = vpack.c.b16 %v2602, %v2592
        %v3493 = vpack.c.b16 %v2603, %v2593
        %v3494 = vpack.c.b16 %v2604, %v2594
        %v3495 = vpack.c.b16 %v2605, %v2595
        %v3496 = vpack.c.b16 %v2606, %v2596
        %v3497 = vpack.c.b16 %v2607, %v2597
        %v3498 = vpack.c.b16 %v2608, %v2598
        %v3499 = vpack.c.b16 %v2609, %v2599
        %v3500 = vpack.c.b16 %v2610, %v2600
        %v3501 = vpack.c.b16 %v2621, %v2611
        %v3502 = vpack.c.b16 %v2622, %v2612
        %v3503 = vpack.c.b16 %v2623, %v2613
        %v3504 = vpack.c.b16 %v2624, %v2614
        %v3505 = vpack.c.b16 %v2625, %v2615
        %v3506 = vpack.c.b16 %v2626, %v2616
        %v3507 = vpack.c.b16 %v2627, %v2617
        %v3508 = vpack.c.b16 %v2628, %v2618
        %v3509 = vpack.c.b16 %v2629, %v2619
        %v3510 = vpack.c.b16 %v2630, %v2620
        %v3511 = vpack.c.b16 %v2641, %v2631
        %v3512 = vpack.c.b16 %v2642, %v2632
        %v3513 = vpack.c.b16 %v2643, %v2633
        %v3514 = vpack.c.b16 %v2644, %v2634
        %v3515 = vpack.c.b16 %v2645, %v2635
        %v3516 = vpack.c.b16 %v2646, %v2636
        %v3517 = vpack.c.b16 %v2647, %v2637
        %v3518 = vpack.c.b16 %v2648, %v2638
        %v3519 = vpack.c.b16 %v2649, %v2639
        %v3520 = vpack.c.b16 %v2650, %v2640
        %v3521 = vpack.c.b16 %v2661, %v2651
        %v3522 = vpack.c.b16 %v2662, %v2652
        %v3523 = vpack.c.b16 %v2663, %v2653
        %v3524 = vpack.c.b16 %v2664, %v2654
        %v3525 = vpack.c.b16 %v2665, %v2655
        %v3526 = vpack.c.b16 %v2666, %v2656
        %v3527 = vpack.c.b16 %v2667, %v2657
        %v3528 = vpack.c.b16 %v2668, %v2658
        %v3529 = vpack.c.b16 %v2669, %v2659
        %v3530 = vpack.c.b16 %v2670, %v2660
        %v3531 = vpack.c.b16 %v2681, %v2671
        %v3532 = vpack.c.b16 %v2682, %v2672
        %v3533 = vpack.c.b16 %v2683, %v2673
        %v3534 = vpack.c.b16 %v2684, %v2674
        %v3535 = vpack.c.b16 %v2685, %v2675
        %v3536 = vpack.c.b16 %v2686, %v2676
        %v3537 = vpack.c.b16 %v2687, %v2677
        %v3538 = vpack.c.b16 %v2688, %v2678
        %v3539 = vpack.c.b16 %v2689, %v2679
        %v3540 = vpack.c.b16 %v2690, %v2680
        %v3541 = vpack.c.b16 %v2701, %v2691
        %v3542 = vpack.c.b16 %v2702, %v2692
        %v3543 = vpack.c.b16 %v2703, %v2693
        %v3544 = vpack.c.b16 %v2704, %v2694
        %v3545 = vpack.c.b16 %v2705, %v2695
        %v3546 = vpack.c.b16 %v2706, %v2696
        %v3547 = vpack.c.b16 %v2707, %v2697
        %v3548 = vpack.c.b16 %v2708, %v2698
        %v3549 = vpack.c.b16 %v2709, %v2699
        %v3550 = vpack.c.b16 %v2710, %v2700
        %v3551 = vpack.c.b16 %v2721, %v2711
        %v3552 = vpack.c.b16 %v2722, %v2712
        %v3553 = vpack.c.b16 %v2723, %v2713
        %v3554 = vpack.c.b16 %v2724, %v2714
        %v3555 = vpack.c.b16 %v2725, %v2715
        %v3556 = vpack.c.b16 %v2726, %v2716
        %v3557 = vpack.c.b16 %v2727, %v2717
        %v3558 = vpack.c.b16 %v2728, %v2718
        %v3559 = vpack.c.b16 %v2729, %v2719
        %v3560 = vpack.c.b16 %v2730, %v2720
        %v3561 = vpack.c.b16 %v2741, %v2731
        %v3562 = vpack.c.b16 %v2742, %v2732
        %v3563 = vpack.c.b16 %v2743, %v2733
        %v3564 = vpack.c.b16 %v2744, %v2734
        %v3565 = vpack.c.b16 %v2745, %v2735
        %v3566 = vpack.c.b16 %v2746, %v2736
        %v3567 = vpack.c.b16 %v2747, %v2737
        %v3568 = vpack.c.b16 %v2748, %v2738
        %v3569 = vpack.c.b16 %v2749, %v2739
        %v3570 = vpack.c.b16 %v2750, %v2740
        %v3571 = vpack.c.b16 %v2761, %v2751
        %v3572 = vpack.c.b16 %v2762, %v2752
        %v3573 = vpack.c.b16 %v2763, %v2753
        %v3574 = vpack.c.b16 %v2764, %v2754
        %v3575 = vpack.c.b16 %v2765, %v2755
        %v3576 = vpack.c.b16 %v2766, %v2756
        %v3577 = vpack.c.b16 %v2767, %v2757
        %v3578 = vpack.c.b16 %v2768, %v2758
        %v3579 = vpack.c.b16 %v2769, %v2759
        %v3580 = vpack.c.b16 %v2770, %v2760
        %v3581 = vpack.c.b16 %v2781, %v2771
        %v3582 = vpack.c.b16 %v2782, %v2772
        %v3583 = vpack.c.b16 %v2783, %v2773
        %v3584 = vpack.c.b16 %v2784, %v2774
        %v3585 = vpack.c.b16 %v2785, %v2775
        %v3586 = vpack.c.b16 %v2786, %v2776
        %v3587 = vpack.c.b16 %v2787, %v2777
        %v3588 = vpack.c.b16 %v2788, %v2778
        %v3589 = vpack.c.b16 %v2789, %v2779
        %v3590 = vpack.c.b16 %v2790, %v2780
        %v3591 = vpack.c.b16 %v2801, %v2791
        %v3592 = vpack.c.b16 %v2802, %v2792
        %v3593 = vpack.c.b16 %v2803, %v2793
        %v3594 = vpack.c.b16 %v2804, %v2794
        %v3595 = vpack.c.b16 %v2805, %v2795
        %v3596 = vpack.c.b16 %v2806, %v2796
        %v3597 = vpack.c.b16 %v2807, %v2797
        %v3598 = vpack.c.b16 %v2808, %v2798
        %v3599 = vpack.c.b16 %v2809, %v2799
        %v3600 = vpack.c.b16 %v2810, %v2800
        %v3601 = vpack.c.b16 %v2821, %v2811
        %v3602 = vpack.c.b16 %v2822, %v2812
        %v3603 = vpack.c.b16 %v2823, %v2813
        %v3604 = vpack.c.b16 %v2824, %v2814
        %v3605 = vpack.c.b16 %v2825, %v2815
        %v3606 = vpack.c.b16 %v2826, %v2816
        %v3607 = vpack.c.b16 %v2827, %v2817
        %v3608 = vpack.c.b16 %v2828, %v2818
        %v3609 = vpack.c.b16 %v2829, %v2819
        %v3610 = vpack.c.b16 %v2830, %v2820
        %v3611 = vpack.c.b16 %v2841, %v2831
        %v3612 = vpack.c.b16 %v2842, %v2832
        %v3613 = vpack.c.b16 %v2843, %v2833
        %v3614 = vpack.c.b16 %v2844, %v2834
        %v3615 = vpack.c.b16 %v2845, %v2835
        %v3616 = vpack.c.b16 %v2846, %v2836
        %v3617 = vpack.c.b16 %v2847, %v2837
        %v3618 = vpack.c.b16 %v2848, %v2838
        %v3619 = vpack.c.b16 %v2849, %v2839
        %v3620 = vpack.c.b16 %v2850, %v2840
        %v3621 = vpack.c.b16 %v2861, %v2851
        %v3622 = vpack.c.b16 %v2862, %v2852
        %v3623 = vpack.c.b16 %v2863, %v2853
        %v3624 = vpack.c.b16 %v2864, %v2854
        %v3625 = vpack.c.b16 %v2865, %v2855
        %v3626 = vpack.c.b16 %v2866, %v2856
        %v3627 = vpack.c.b16 %v2867, %v2857
        %v3628 = vpack.c.b16 %v2868, %v2858
        %v3629 = vpack.c.b16 %v2869, %v2859
        %v3630 = vpack.c.b16 %v2870, %v2860
        %v3631 = vpack.c.b16 %v2881, %v2871
        %v3632 = vpack.c.b16 %v2882, %v2872
        %v3633 = vpack.c.b16 %v2883, %v2873
        %v3634 = vpack.c.b16 %v2884, %v2874
        %v3635 = vpack.c.b16 %v2885, %v2875
        %v3636 = vpack.c.b16 %v2886, %v2876
        %v3637 = vpack.c.b16 %v2887, %v2877
        %v3638 = vpack.c.b16 %v2888, %v2878
        %v3639 = vpack.c.b16 %v2889, %v2879
        %v3640 = vpack.c.b16 %v2890, %v2880
        %v3641 = vpack.c.b16 %v2901, %v2891
        %v3642 = vpack.c.b16 %v2902, %v2892
        %v3643 = vpack.c.b16 %v2903, %v2893
        %v3644 = vpack.c.b16 %v2904, %v2894
        %v3645 = vpack.c.b16 %v2905, %v2895
        %v3646 = vpack.c.b16 %v2906, %v2896
        %v3647 = vpack.c.b16 %v2907, %v2897
        %v3648 = vpack.c.b16 %v2908, %v2898
        %v3649 = vpack.c.b16 %v2909, %v2899
        %v3650 = vpack.c.b16 %v2910, %v2900
        %v3651 = vpack.c.b16 %v2921, %v2911
        %v3652 = vpack.c.b16 %v2922, %v2912
        %v3653 = vpack.c.b16 %v2923, %v2913
        %v3654 = vpack.c.b16 %v2924, %v2914
        %v3655 = vpack.c.b16 %v2925, %v2915
        %v3656 = vpack.c.b16 %v2926, %v2916
        %v3657 = vpack.c.b16 %v2927, %v2917
        %v3658 = vpack.c.b16 %v2928, %v2918
        %v3659 = vpack.c.b16 %v2929, %v2919
        %v3660 = vpack.c.b16 %v2930, %v2920
        %v3661 = vpack.c.b16 %v2941, %v2931
        %v3662 = vpack.c.b16 %v2942, %v2932
        %v3663 = vpack.c.b16 %v2943, %v2933
        %v3664 = vpack.c.b16 %v2944, %v2934
        %v3665 = vpack.c.b16 %v2945, %v2935
        %v3666 = vpack.c.b16 %v2946, %v2936
        %v3667 = vpack.c.b16 %v2947, %v2937
        %v3668 = vpack.c.b16 %v2948, %v2938
        %v3669 = vpack.c.b16 %v2949, %v2939
        %v3670 = vpack.c.b16 %v2950, %v2940
        %v3671 = vpack.c.b16 %v2961, %v2951
        %v3672 = vpack.c.b16 %v2962, %v2952
        %v3673 = vpack.c.b16 %v2963, %v2953
        %v3674 = vpack.c.b16 %v2964, %v2954
        %v3675 = vpack.c.b16 %v2965, %v2955
        %v3676 = vpack.c.b16 %v2966, %v2956
        %v3677 = vpack.c.b16 %v2967, %v2957
        %v3678 = vpack.c.b16 %v2968, %v2958
        %v3679 = vpack.c.b16 %v2969, %v2959
        %v3680 = vpack.c.b16 %v2970, %v2960
        %v3681 = vpack.c.b16 %v2981, %v2971
        %v3682 = vpack.c.b16 %v2982, %v2972
        %v3683 = vpack.c.b16 %v2983, %v2973
        %v3684 = vpack.c.b16 %v2984, %v2974
        %v3685 = vpack.c.b16 %v2985, %v2975
        %v3686 = vpack.c.b16 %v2986, %v2976
        %v3687 = vpack.c.b16 %v2987, %v2977
        %v3688 = vpack.c.b16 %v2988, %v2978
        %v3689 = vpack.c.b16 %v2989, %v2979
        %v3690 = vpack.c.b16 %v2990, %v2980
        %v3691 = vpack.c.b16 %v3001, %v2991
        %v3692 = vpack.c.b16 %v3002, %v2992
        %v3693 = vpack.c.b16 %v3003, %v2993
        %v3694 = vpack.c.b16 %v3004, %v2994
        %v3695 = vpack.c.b16 %v3005, %v2995
        %v3696 = vpack.c.b16 %v3006, %v2996
        %v3697 = vpack.c.b16 %v3007, %v2997
        %v3698 = vpack.c.b16 %v3008, %v2998
        %v3699 = vpack.c.b16 %v3009, %v2999
        %v3700 = vpack.c.b16 %v3010, %v3000
        %v3701 = vpack.c.b16 %v3021, %v3011
        %v3702 = vpack.c.b16 %v3022, %v3012
        %v3703 = vpack.c.b16 %v3023, %v3013
        %v3704 = vpack.c.b16 %v3024, %v3014
        %v3705 = vpack.c.b16 %v3025, %v3015
        %v3706 = vpack.c.b16 %v3026, %v3016
        %v3707 = vpack.c.b16 %v3027, %v3017
        %v3708 = vpack.c.b16 %v3028, %v3018
        %v3709 = vpack.c.b16 %v3029, %v3019
        %v3710 = vpack.c.b16 %v3030, %v3020
        %v3711 = vpack.c.b16 %v3041, %v3031
        %v3712 = vpack.c.b16 %v3042, %v3032
        %v3713 = vpack.c.b16 %v3043, %v3033
        %v3714 = vpack.c.b16 %v3044, %v3034
        %v3715 = vpack.c.b16 %v3045, %v3035
        %v3716 = vpack.c.b16 %v3046, %v3036
        %v3717 = vpack.c.b16 %v3047, %v3037
        %v3718 = vpack.c.b16 %v3048, %v3038
        %v3719 = vpack.c.b16 %v3049, %v3039
        %v3720 = vpack.c.b16 %v3050, %v3040
        %v3721 = vpack.c.b16 %v3061, %v3051
        %v3722 = vpack.c.b16 %v3062, %v3052
        %v3723 = vpack.c.b16 %v3063, %v3053
        %v3724 = vpack.c.b16 %v3064, %v3054
        %v3725 = vpack.c.b16 %v3065, %v3055
        %v3726 = vpack.c.b16 %v3066, %v3056
        %v3727 = vpack.c.b16 %v3067, %v3057
        %v3728 = vpack.c.b16 %v3068, %v3058
        %v3729 = vpack.c.b16 %v3069, %v3059
        %v3730 = vpack.c.b16 %v3070, %v3060
        %v3731 = vpack.c.b16 %v3081, %v3071
        %v3732 = vpack.c.b16 %v3082, %v3072
        %v3733 = vpack.c.b16 %v3083, %v3073
        %v3734 = vpack.c.b16 %v3084, %v3074
        %v3735 = vpack.c.b16 %v3085, %v3075
        %v3736 = vpack.c.b16 %v3086, %v3076
        %v3737 = vpack.c.b16 %v3087, %v3077
        %v3738 = vpack.c.b16 %v3088, %v3078
        %v3739 = vpack.c.b16 %v3089, %v3079
        %v3740 = vpack.c.b16 %v3090, %v3080
        %v3741 = vpack.c.b16 %v3101, %v3091
        %v3742 = vpack.c.b16 %v3102, %v3092
        %v3743 = vpack.c.b16 %v3103, %v3093
        %v3744 = vpack.c.b16 %v3104, %v3094
        %v3745 = vpack.c.b16 %v3105, %v3095
        %v3746 = vpack.c.b16 %v3106, %v3096
        %v3747 = vpack.c.b16 %v3107, %v3097
        %v3748 = vpack.c.b16 %v3108, %v3098
        %v3749 = vpack.c.b16 %v3109, %v3099
        %v3750 = vpack.c.b16 %v3110, %v3100
        %4391 = vmatprep.subr.bf16.mxu0 %v3112
        %4392 = vmatpush1.bf16.msra.mxu0 %v3111
        %4393 = vmatprep.subr.bf16.mxu0 %v3122
        %4394 = vmatpush1.bf16.msra.mxu0 %v3121
        %4395 = vmatprep.subr.bf16.mxu0 %v3132
        %4396 = vmatpush1.bf16.msra.mxu0 %v3131
        %4397 = vmatprep.subr.bf16.mxu0 %v3142
        %4398 = vmatpush1.bf16.msra.mxu0 %v3141
        %4399 = vmatprep.subr.bf16.mxu0 %v3152
        %4400 = vmatpush1.bf16.msra.mxu0 %v3151
        %4401 = vmatprep.subr.bf16.mxu0 %v3162
        %4402 = vmatpush1.bf16.msra.mxu0 %v3161
        %4403 = vmatprep.subr.bf16.mxu0 %v3172
        %4404 = vmatpush1.bf16.msra.mxu0 %v3171
        %4405 = vmatprep.subr.bf16.mxu0 %v3182
        %4406 = vmatpush1.bf16.msra.mxu0 %v3181
        %4407 = vmatprep.subr.bf16.mxu0 %v3192
        %4408 = vmatpush1.bf16.msra.mxu0 %v3191
        %4409 = vmatprep.subr.bf16.mxu0 %v3202
        %4410 = vmatpush1.bf16.msra.mxu0 %v3201
        %4411 = vmatprep.subr.bf16.mxu0 %v3212
        %4412 = vmatpush1.bf16.msra.mxu0 %v3211
        %4413 = vmatprep.subr.bf16.mxu0 %v3222
        %4414 = vmatpush1.bf16.msra.mxu0 %v3221
        %4415 = vmatprep.subr.bf16.mxu0 %v3232
        %4416 = vmatpush1.bf16.msra.mxu0 %v3231
        %4417 = vmatprep.subr.bf16.mxu0 %v3242
        %4418 = vmatpush1.bf16.msra.mxu0 %v3241
        %4419 = vmatprep.subr.bf16.mxu0 %v3252
        %4420 = vmatpush1.bf16.msra.mxu0 %v3251
        %4421 = vmatprep.subr.bf16.mxu0 %v3262
        %4422 = vmatpush1.bf16.msra.mxu0 %v3261
        %4423 = vmatprep.mubr.bf16.mxu0 %v1176
        %4424 = vmatmul.mubr.bf16.gmra.mrb[0].mxu0 %v1175
        %v4425 = vpop.f32.mrb[0].mxu0
        %v4426 = vadd.f32 %v1104, %v4425
        %v4427 = vpop.f32.mrb[0].mxu0
        %v4428 = vadd.f32 %v1108, %v4427
        %v4429 = vpop.f32.mrb[0].mxu0
        %v4430 = vadd.f32 %v1104, %v4429
        %v4431 = vpop.f32.mrb[0].mxu0
        %v4432 = vadd.f32 %v1108, %v4431
        %4433 = vdwg.mxu0
        %4434 = vmatprep.subr.bf16.mxu0 %v3272
        %4435 = vmatpush1.bf16.msra.mxu0 %v3271
        %4436 = vmatprep.subr.bf16.mxu0 %v3282
        %4437 = vmatpush1.bf16.msra.mxu0 %v3281
        %4438 = vmatprep.subr.bf16.mxu0 %v3292
        %4439 = vmatpush1.bf16.msra.mxu0 %v3291
        %4440 = vmatprep.subr.bf16.mxu0 %v3302
        %4441 = vmatpush1.bf16.msra.mxu0 %v3301
        %4442 = vmatprep.subr.bf16.mxu0 %v3312
        %4443 = vmatpush1.bf16.msra.mxu0 %v3311
        %4444 = vmatprep.subr.bf16.mxu0 %v3322
        %4445 = vmatpush1.bf16.msra.mxu0 %v3321
        %4446 = vmatprep.subr.bf16.mxu0 %v3332
        %4447 = vmatpush1.bf16.msra.mxu0 %v3331
        %4448 = vmatprep.subr.bf16.mxu0 %v3342
        %4449 = vmatpush1.bf16.msra.mxu0 %v3341
        %4450 = vmatprep.subr.bf16.mxu0 %v3352
        %4451 = vmatpush1.bf16.msra.mxu0 %v3351
        %4452 = vmatprep.subr.bf16.mxu0 %v3362
        %4453 = vmatpush1.bf16.msra.mxu0 %v3361
        %4454 = vmatprep.subr.bf16.mxu0 %v3372
        %4455 = vmatpush1.bf16.msra.mxu0 %v3371
        %4456 = vmatprep.subr.bf16.mxu0 %v3382
        %4457 = vmatpush1.bf16.msra.mxu0 %v3381
        %4458 = vmatprep.subr.bf16.mxu0 %v3392
        %4459 = vmatpush1.bf16.msra.mxu0 %v3391
        %4460 = vmatprep.subr.bf16.mxu0 %v3402
        %4461 = vmatpush1.bf16.msra.mxu0 %v3401
        %4462 = vmatprep.subr.bf16.mxu0 %v3412
        %4463 = vmatpush1.bf16.msra.mxu0 %v3411
        %4464 = vmatprep.subr.bf16.mxu0 %v3422
        %4465 = vmatpush1.bf16.msra.mxu0 %v3421
        %4466 = vmatprep.mubr.bf16.mxu0 %v1178
        %4467 = vmatmul.mubr.bf16.gmra.mrb[0].mxu0 %v1177
        %v4468 = vpop.f32.mrb[0].mxu0
        %v4469 = vadd.f32 %v4426, %v4468
        %v4470 = vpop.f32.mrb[0].mxu0
        %v4471 = vadd.f32 %v4428, %v4470
        %v4472 = vpop.f32.mrb[0].mxu0
        %v4473 = vadd.f32 %v4430, %v4472
        %v4474 = vpop.f32.mrb[0].mxu0
        %v4475 = vadd.f32 %v4432, %v4474
        %4476 = vdwg.mxu0
        %4477 = vmatprep.subr.bf16.mxu0 %v3432
        %4478 = vmatpush1.bf16.msra.mxu0 %v3431
        %4479 = vmatprep.subr.bf16.mxu0 %v3442
        %4480 = vmatpush1.bf16.msra.mxu0 %v3441
        %4481 = vmatprep.subr.bf16.mxu0 %v3452
        %4482 = vmatpush1.bf16.msra.mxu0 %v3451
        %4483 = vmatprep.subr.bf16.mxu0 %v3462
        %4484 = vmatpush1.bf16.msra.mxu0 %v3461
        %4485 = vmatprep.subr.bf16.mxu0 %v3472
        %4486 = vmatpush1.bf16.msra.mxu0 %v3471
        %4487 = vmatprep.subr.bf16.mxu0 %v3482
        %4488 = vmatpush1.bf16.msra.mxu0 %v3481
        %4489 = vmatprep.subr.bf16.mxu0 %v3492
        %4490 = vmatpush1.bf16.msra.mxu0 %v3491
        %4491 = vmatprep.subr.bf16.mxu0 %v3502
        %4492 = vmatpush1.bf16.msra.mxu0 %v3501
        %4493 = vmatprep.subr.bf16.mxu0 %v3512
        %4494 = vmatpush1.bf16.msra.mxu0 %v3511
        %4495 = vmatprep.subr.bf16.mxu0 %v3522
        %4496 = vmatpush1.bf16.msra.mxu0 %v3521
        %4497 = vmatprep.subr.bf16.mxu0 %v3532
        %4498 = vmatpush1.bf16.msra.mxu0 %v3531
        %4499 = vmatprep.subr.bf16.mxu0 %v3542
        %4500 = vmatpush1.bf16.msra.mxu0 %v3541
        %4501 = vmatprep.subr.bf16.mxu0 %v3552
        %4502 = vmatpush1.bf16.msra.mxu0 %v3551
        %4503 = vmatprep.subr.bf16.mxu0 %v3562
        %4504 = vmatpush1.bf16.msra.mxu0 %v3561
        %4505 = vmatprep.subr.bf16.mxu0 %v3572
        %4506 = vmatpush1.bf16.msra.mxu0 %v3571
        %4507 = vmatprep.subr.bf16.mxu0 %v3582
        %4508 = vmatpush1.bf16.msra.mxu0 %v3581
        %4509 = vmatprep.mubr.bf16.mxu0 %v1180
        %4510 = vmatmul.mubr.bf16.gmra.mrb[0].mxu0 %v1179
        %v4511 = vpop.f32.mrb[0].mxu0
        %v4512 = vadd.f32 %v4469, %v4511
        %v4513 = vpop.f32.mrb[0].mxu0
        %v4514 = vadd.f32 %v4471, %v4513
        %v4515 = vpop.f32.mrb[0].mxu0
        %v4516 = vadd.f32 %v4473, %v4515
        %v4517 = vpop.f32.mrb[0].mxu0
        %v4518 = vadd.f32 %v4475, %v4517
        %4519 = vdwg.mxu0
        %4520 = vmatprep.subr.bf16.mxu0 %v3592
        %4521 = vmatpush1.bf16.msra.mxu0 %v3591
        %4522 = vmatprep.subr.bf16.mxu0 %v3602
        %4523 = vmatpush1.bf16.msra.mxu0 %v3601
        %4524 = vmatprep.subr.bf16.mxu0 %v3612
        %4525 = vmatpush1.bf16.msra.mxu0 %v3611
        %4526 = vmatprep.subr.bf16.mxu0 %v3622
        %4527 = vmatpush1.bf16.msra.mxu0 %v3621
        %4528 = vmatprep.subr.bf16.mxu0 %v3632
        %4529 = vmatpush1.bf16.msra.mxu0 %v3631
        %4530 = vmatprep.subr.bf16.mxu0 %v3642
        %4531 = vmatpush1.bf16.msra.mxu0 %v3641
        %4532 = vmatprep.subr.bf16.mxu0 %v3652
        %4533 = vmatpush1.bf16.msra.mxu0 %v3651
        %4534 = vmatprep.subr.bf16.mxu0 %v3662
        %4535 = vmatpush1.bf16.msra.mxu0 %v3661
        %4536 = vmatprep.subr.bf16.mxu0 %v3672
        %4537 = vmatpush1.bf16.msra.mxu0 %v3671
        %4538 = vmatprep.subr.bf16.mxu0 %v3682
        %4539 = vmatpush1.bf16.msra.mxu0 %v3681
        %4540 = vmatprep.subr.bf16.mxu0 %v3692
        %4541 = vmatpush1.bf16.msra.mxu0 %v3691
        %4542 = vmatprep.subr.bf16.mxu0 %v3702
        %4543 = vmatpush1.bf16.msra.mxu0 %v3701
        %4544 = vmatprep.subr.bf16.mxu0 %v3712
        %4545 = vmatpush1.bf16.msra.mxu0 %v3711
        %4546 = vmatprep.subr.bf16.mxu0 %v3722
        %4547 = vmatpush1.bf16.msra.mxu0 %v3721
        %4548 = vmatprep.subr.bf16.mxu0 %v3732
        %4549 = vmatpush1.bf16.msra.mxu0 %v3731
        %4550 = vmatprep.subr.bf16.mxu0 %v3742
        %4551 = vmatpush1.bf16.msra.mxu0 %v3741
        %4552 = vmatprep.mubr.bf16.mxu0 %v1182
        %4553 = vmatmul.mubr.bf16.gmra.mrb[0].mxu0 %v1181
        %v4554 = vpop.f32.mrb[0].mxu0
        %v4555 = vadd.f32 %v4512, %v4554
        %v4556 = vpop.f32.mrb[0].mxu0
        %v4557 = vadd.f32 %v4514, %v4556
        %v4558 = vpop.f32.mrb[0].mxu0
        %v4559 = vadd.f32 %v4516, %v4558
        %v4560 = vpop.f32.mrb[0].mxu0
        %v4561 = vadd.f32 %v4518, %v4560
        %4562 = vdwg.mxu0
        %4563 = vmatprep.subr.bf16.mxu0 %v3114
        %4564 = vmatpush1.bf16.msra.mxu0 %v3113
        %4565 = vmatprep.subr.bf16.mxu0 %v3124
        %4566 = vmatpush1.bf16.msra.mxu0 %v3123
        %4567 = vmatprep.subr.bf16.mxu0 %v3134
        %4568 = vmatpush1.bf16.msra.mxu0 %v3133
        %4569 = vmatprep.subr.bf16.mxu0 %v3144
        %4570 = vmatpush1.bf16.msra.mxu0 %v3143
        %4571 = vmatprep.subr.bf16.mxu0 %v3154
        %4572 = vmatpush1.bf16.msra.mxu0 %v3153
        %4573 = vmatprep.subr.bf16.mxu0 %v3164
        %4574 = vmatpush1.bf16.msra.mxu0 %v3163
        %4575 = vmatprep.subr.bf16.mxu0 %v3174
        %4576 = vmatpush1.bf16.msra.mxu0 %v3173
        %4577 = vmatprep.subr.bf16.mxu0 %v3184
        %4578 = vmatpush1.bf16.msra.mxu0 %v3183
        %4579 = vmatprep.subr.bf16.mxu0 %v3194
        %4580 = vmatpush1.bf16.msra.mxu0 %v3193
        %4581 = vmatprep.subr.bf16.mxu0 %v3204
        %4582 = vmatpush1.bf16.msra.mxu0 %v3203
        %4583 = vmatprep.subr.bf16.mxu0 %v3214
        %4584 = vmatpush1.bf16.msra.mxu0 %v3213
        %4585 = vmatprep.subr.bf16.mxu0 %v3224
        %4586 = vmatpush1.bf16.msra.mxu0 %v3223
        %4587 = vmatprep.subr.bf16.mxu0 %v3234
        %4588 = vmatpush1.bf16.msra.mxu0 %v3233
        %4589 = vmatprep.subr.bf16.mxu0 %v3244
        %4590 = vmatpush1.bf16.msra.mxu0 %v3243
        %4591 = vmatprep.subr.bf16.mxu0 %v3254
        %4592 = vmatpush1.bf16.msra.mxu0 %v3253
        %4593 = vmatprep.subr.bf16.mxu0 %v3264
        %4594 = vmatpush1.bf16.msra.mxu0 %v3263
        %4595 = vmatprep.mubr.bf16.mxu0 %v1176
        %4596 = vmatmul.mubr.bf16.gmra.mrb[0].mxu0 %v1175
        %v4597 = vpop.f32.mrb[0].mxu0
        %v4598 = vadd.f32 %v1112, %v4597
        %v4599 = vpop.f32.mrb[0].mxu0
        %v4600 = vadd.f32 %v1116, %v4599
        %v4601 = vpop.f32.mrb[0].mxu0
        %v4602 = vadd.f32 %v1112, %v4601
        %v4603 = vpop.f32.mrb[0].mxu0
        %v4604 = vadd.f32 %v1116, %v4603
        %4605 = vdwg.mxu0
        %4606 = vmatprep.subr.bf16.mxu0 %v3274
        %4607 = vmatpush1.bf16.msra.mxu0 %v3273
        %4608 = vmatprep.subr.bf16.mxu0 %v3284
        %4609 = vmatpush1.bf16.msra.mxu0 %v3283
        %4610 = vmatprep.subr.bf16.mxu0 %v3294
        %4611 = vmatpush1.bf16.msra.mxu0 %v3293
        %4612 = vmatprep.subr.bf16.mxu0 %v3304
        %4613 = vmatpush1.bf16.msra.mxu0 %v3303
        %4614 = vmatprep.subr.bf16.mxu0 %v3314
        %4615 = vmatpush1.bf16.msra.mxu0 %v3313
        %4616 = vmatprep.subr.bf16.mxu0 %v3324
        %4617 = vmatpush1.bf16.msra.mxu0 %v3323
        %4618 = vmatprep.subr.bf16.mxu0 %v3334
        %4619 = vmatpush1.bf16.msra.mxu0 %v3333
        %4620 = vmatprep.subr.bf16.mxu0 %v3344
        %4621 = vmatpush1.bf16.msra.mxu0 %v3343
        %4622 = vmatprep.subr.bf16.mxu0 %v3354
        %4623 = vmatpush1.bf16.msra.mxu0 %v3353
        %4624 = vmatprep.subr.bf16.mxu0 %v3364
        %4625 = vmatpush1.bf16.msra.mxu0 %v3363
        %4626 = vmatprep.subr.bf16.mxu0 %v3374
        %4627 = vmatpush1.bf16.msra.mxu0 %v3373
        %4628 = vmatprep.subr.bf16.mxu0 %v3384
        %4629 = vmatpush1.bf16.msra.mxu0 %v3383
        %4630 = vmatprep.subr.bf16.mxu0 %v3394
        %4631 = vmatpush1.bf16.msra.mxu0 %v3393
        %4632 = vmatprep.subr.bf16.mxu0 %v3404
        %4633 = vmatpush1.bf16.msra.mxu0 %v3403
        %4634 = vmatprep.subr.bf16.mxu0 %v3414
        %4635 = vmatpush1.bf16.msra.mxu0 %v3413
        %4636 = vmatprep.subr.bf16.mxu0 %v3424
        %4637 = vmatpush1.bf16.msra.mxu0 %v3423
        %4638 = vmatprep.mubr.bf16.mxu0 %v1178
        %4639 = vmatmul.mubr.bf16.gmra.mrb[0].mxu0 %v1177
        %v4640 = vpop.f32.mrb[0].mxu0
        %v4641 = vadd.f32 %v4598, %v4640
        %v4642 = vpop.f32.mrb[0].mxu0
        %v4643 = vadd.f32 %v4600, %v4642
        %v4644 = vpop.f32.mrb[0].mxu0
        %v4645 = vadd.f32 %v4602, %v4644
        %v4646 = vpop.f32.mrb[0].mxu0
        %v4647 = vadd.f32 %v4604, %v4646
        %4648 = vdwg.mxu0
        %4649 = vmatprep.subr.bf16.mxu0 %v3434
        %4650 = vmatpush1.bf16.msra.mxu0 %v3433
        %4651 = vmatprep.subr.bf16.mxu0 %v3444
        %4652 = vmatpush1.bf16.msra.mxu0 %v3443
        %4653 = vmatprep.subr.bf16.mxu0 %v3454
        %4654 = vmatpush1.bf16.msra.mxu0 %v3453
        %4655 = vmatprep.subr.bf16.mxu0 %v3464
        %4656 = vmatpush1.bf16.msra.mxu0 %v3463
        %4657 = vmatprep.subr.bf16.mxu0 %v3474
        %4658 = vmatpush1.bf16.msra.mxu0 %v3473
        %4659 = vmatprep.subr.bf16.mxu0 %v3484
        %4660 = vmatpush1.bf16.msra.mxu0 %v3483
        %4661 = vmatprep.subr.bf16.mxu0 %v3494
        %4662 = vmatpush1.bf16.msra.mxu0 %v3493
        %4663 = vmatprep.subr.bf16.mxu0 %v3504
        %4664 = vmatpush1.bf16.msra.mxu0 %v3503
        %4665 = vmatprep.subr.bf16.mxu0 %v3514
        %4666 = vmatpush1.bf16.msra.mxu0 %v3513
        %4667 = vmatprep.subr.bf16.mxu0 %v3524
        %4668 = vmatpush1.bf16.msra.mxu0 %v3523
        %4669 = vmatprep.subr.bf16.mxu0 %v3534
        %4670 = vmatpush1.bf16.msra.mxu0 %v3533
        %4671 = vmatprep.subr.bf16.mxu0 %v3544
        %4672 = vmatpush1.bf16.msra.mxu0 %v3543
        %4673 = vmatprep.subr.bf16.mxu0 %v3554
        %4674 = vmatpush1.bf16.msra.mxu0 %v3553
        %4675 = vmatprep.subr.bf16.mxu0 %v3564
        %4676 = vmatpush1.bf16.msra.mxu0 %v3563
        %4677 = vmatprep.subr.bf16.mxu0 %v3574
        %4678 = vmatpush1.bf16.msra.mxu0 %v3573
        %4679 = vmatprep.subr.bf16.mxu0 %v3584
        %4680 = vmatpush1.bf16.msra.mxu0 %v3583
        %4681 = vmatprep.mubr.bf16.mxu0 %v1180
        %4682 = vmatmul.mubr.bf16.gmra.mrb[0].mxu0 %v1179
        %v4683 = vpop.f32.mrb[0].mxu0
        %v4684 = vadd.f32 %v4641, %v4683
        %v4685 = vpop.f32.mrb[0].mxu0
        %v4686 = vadd.f32 %v4643, %v4685
        %v4687 = vpop.f32.mrb[0].mxu0
        %v4688 = vadd.f32 %v4645, %v4687
        %v4689 = vpop.f32.mrb[0].mxu0
        %v4690 = vadd.f32 %v4647, %v4689
        %4691 = vdwg.mxu0
        %4692 = vmatprep.subr.bf16.mxu0 %v3594
        %4693 = vmatpush1.bf16.msra.mxu0 %v3593
        %4694 = vmatprep.subr.bf16.mxu0 %v3604
        %4695 = vmatpush1.bf16.msra.mxu0 %v3603
        %4696 = vmatprep.subr.bf16.mxu0 %v3614
        %4697 = vmatpush1.bf16.msra.mxu0 %v3613
        %4698 = vmatprep.subr.bf16.mxu0 %v3624
        %4699 = vmatpush1.bf16.msra.mxu0 %v3623
        %4700 = vmatprep.subr.bf16.mxu0 %v3634
        %4701 = vmatpush1.bf16.msra.mxu0 %v3633
        %4702 = vmatprep.subr.bf16.mxu0 %v3644
        %4703 = vmatpush1.bf16.msra.mxu0 %v3643
        %4704 = vmatprep.subr.bf16.mxu0 %v3654
        %4705 = vmatpush1.bf16.msra.mxu0 %v3653
        %4706 = vmatprep.subr.bf16.mxu0 %v3664
        %4707 = vmatpush1.bf16.msra.mxu0 %v3663
        %4708 = vmatprep.subr.bf16.mxu0 %v3674
        %4709 = vmatpush1.bf16.msra.mxu0 %v3673
        %4710 = vmatprep.subr.bf16.mxu0 %v3684
        %4711 = vmatpush1.bf16.msra.mxu0 %v3683
        %4712 = vmatprep.subr.bf16.mxu0 %v3694
        %4713 = vmatpush1.bf16.msra.mxu0 %v3693
        %4714 = vmatprep.subr.bf16.mxu0 %v3704
        %4715 = vmatpush1.bf16.msra.mxu0 %v3703
        %4716 = vmatprep.subr.bf16.mxu0 %v3714
        %4717 = vmatpush1.bf16.msra.mxu0 %v3713
        %4718 = vmatprep.subr.bf16.mxu0 %v3724
        %4719 = vmatpush1.bf16.msra.mxu0 %v3723
        %4720 = vmatprep.subr.bf16.mxu0 %v3734
        %4721 = vmatpush1.bf16.msra.mxu0 %v3733
        %4722 = vmatprep.subr.bf16.mxu0 %v3744
        %4723 = vmatpush1.bf16.msra.mxu0 %v3743
        %4724 = vmatprep.mubr.bf16.mxu0 %v1182
        %4725 = vmatmul.mubr.bf16.gmra.mrb[0].mxu0 %v1181
        %v4726 = vpop.f32.mrb[0].mxu0
        %v4727 = vadd.f32 %v4684, %v4726
        %v4728 = vpop.f32.mrb[0].mxu0
        %v4729 = vadd.f32 %v4686, %v4728
        %v4730 = vpop.f32.mrb[0].mxu0
        %v4731 = vadd.f32 %v4688, %v4730
        %v4732 = vpop.f32.mrb[0].mxu0
        %v4733 = vadd.f32 %v4690, %v4732
        %4734 = vdwg.mxu0
        %4735 = vmatprep.subr.bf16.mxu0 %v3116
        %4736 = vmatpush1.bf16.msra.mxu0 %v3115
        %4737 = vmatprep.subr.bf16.mxu0 %v3126
        %4738 = vmatpush1.bf16.msra.mxu0 %v3125
        %4739 = vmatprep.subr.bf16.mxu0 %v3136
        %4740 = vmatpush1.bf16.msra.mxu0 %v3135
        %4741 = vmatprep.subr.bf16.mxu0 %v3146
        %4742 = vmatpush1.bf16.msra.mxu0 %v3145
        %4743 = vmatprep.subr.bf16.mxu0 %v3156
        %4744 = vmatpush1.bf16.msra.mxu0 %v3155
        %4745 = vmatprep.subr.bf16.mxu0 %v3166
        %4746 = vmatpush1.bf16.msra.mxu0 %v3165
        %4747 = vmatprep.subr.bf16.mxu0 %v3176
        %4748 = vmatpush1.bf16.msra.mxu0 %v3175
        %4749 = vmatprep.subr.bf16.mxu0 %v3186
        %4750 = vmatpush1.bf16.msra.mxu0 %v3185
        %4751 = vmatprep.subr.bf16.mxu0 %v3196
        %4752 = vmatpush1.bf16.msra.mxu0 %v3195
        %4753 = vmatprep.subr.bf16.mxu0 %v3206
        %4754 = vmatpush1.bf16.msra.mxu0 %v3205
        %4755 = vmatprep.subr.bf16.mxu0 %v3216
        %4756 = vmatpush1.bf16.msra.mxu0 %v3215
        %4757 = vmatprep.subr.bf16.mxu0 %v3226
        %4758 = vmatpush1.bf16.msra.mxu0 %v3225
        %4759 = vmatprep.subr.bf16.mxu0 %v3236
        %4760 = vmatpush1.bf16.msra.mxu0 %v3235
        %4761 = vmatprep.subr.bf16.mxu0 %v3246
        %4762 = vmatpush1.bf16.msra.mxu0 %v3245
        %4763 = vmatprep.subr.bf16.mxu0 %v3256
        %4764 = vmatpush1.bf16.msra.mxu0 %v3255
        %4765 = vmatprep.subr.bf16.mxu0 %v3266
        %4766 = vmatpush1.bf16.msra.mxu0 %v3265
        %4767 = vmatprep.mubr.bf16.mxu0 %v1176
        %4768 = vmatmul.mubr.bf16.gmra.mrb[0].mxu0 %v1175
        %v4769 = vpop.f32.mrb[0].mxu0
        %v4770 = vadd.f32 %v1120, %v4769
        %v4771 = vpop.f32.mrb[0].mxu0
        %v4772 = vadd.f32 %v1124, %v4771
        %v4773 = vpop.f32.mrb[0].mxu0
        %v4774 = vadd.f32 %v1120, %v4773
        %v4775 = vpop.f32.mrb[0].mxu0
        %v4776 = vadd.f32 %v1124, %v4775
        %4777 = vdwg.mxu0
        %4778 = vmatprep.subr.bf16.mxu0 %v3276
        %4779 = vmatpush1.bf16.msra.mxu0 %v3275
        %4780 = vmatprep.subr.bf16.mxu0 %v3286
        %4781 = vmatpush1.bf16.msra.mxu0 %v3285
        %4782 = vmatprep.subr.bf16.mxu0 %v3296
        %4783 = vmatpush1.bf16.msra.mxu0 %v3295
        %4784 = vmatprep.subr.bf16.mxu0 %v3306
        %4785 = vmatpush1.bf16.msra.mxu0 %v3305
        %4786 = vmatprep.subr.bf16.mxu0 %v3316
        %4787 = vmatpush1.bf16.msra.mxu0 %v3315
        %4788 = vmatprep.subr.bf16.mxu0 %v3326
        %4789 = vmatpush1.bf16.msra.mxu0 %v3325
        %4790 = vmatprep.subr.bf16.mxu0 %v3336
        %4791 = vmatpush1.bf16.msra.mxu0 %v3335
        %4792 = vmatprep.subr.bf16.mxu0 %v3346
        %4793 = vmatpush1.bf16.msra.mxu0 %v3345
        %4794 = vmatprep.subr.bf16.mxu0 %v3356
        %4795 = vmatpush1.bf16.msra.mxu0 %v3355
        %4796 = vmatprep.subr.bf16.mxu0 %v3366
        %4797 = vmatpush1.bf16.msra.mxu0 %v3365
        %4798 = vmatprep.subr.bf16.mxu0 %v3376
        %4799 = vmatpush1.bf16.msra.mxu0 %v3375
        %4800 = vmatprep.subr.bf16.mxu0 %v3386
        %4801 = vmatpush1.bf16.msra.mxu0 %v3385
        %4802 = vmatprep.subr.bf16.mxu0 %v3396
        %4803 = vmatpush1.bf16.msra.mxu0 %v3395
        %4804 = vmatprep.subr.bf16.mxu0 %v3406
        %4805 = vmatpush1.bf16.msra.mxu0 %v3405
        %4806 = vmatprep.subr.bf16.mxu0 %v3416
        %4807 = vmatpush1.bf16.msra.mxu0 %v3415
        %4808 = vmatprep.subr.bf16.mxu0 %v3426
        %4809 = vmatpush1.bf16.msra.mxu0 %v3425
        %4810 = vmatprep.mubr.bf16.mxu0 %v1178
        %4811 = vmatmul.mubr.bf16.gmra.mrb[0].mxu0 %v1177
        %v4812 = vpop.f32.mrb[0].mxu0
        %v4813 = vadd.f32 %v4770, %v4812
        %v4814 = vpop.f32.mrb[0].mxu0
        %v4815 = vadd.f32 %v4772, %v4814
        %v4816 = vpop.f32.mrb[0].mxu0
        %v4817 = vadd.f32 %v4774, %v4816
        %v4818 = vpop.f32.mrb[0].mxu0
        %v4819 = vadd.f32 %v4776, %v4818
        %4820 = vdwg.mxu0
        %4821 = vmatprep.subr.bf16.mxu0 %v3436
        %4822 = vmatpush1.bf16.msra.mxu0 %v3435
        %4823 = vmatprep.subr.bf16.mxu0 %v3446
        %4824 = vmatpush1.bf16.msra.mxu0 %v3445
        %4825 = vmatprep.subr.bf16.mxu0 %v3456
        %4826 = vmatpush1.bf16.msra.mxu0 %v3455
        %4827 = vmatprep.subr.bf16.mxu0 %v3466
        %4828 = vmatpush1.bf16.msra.mxu0 %v3465
        %4829 = vmatprep.subr.bf16.mxu0 %v3476
        %4830 = vmatpush1.bf16.msra.mxu0 %v3475
        %4831 = vmatprep.subr.bf16.mxu0 %v3486
        %4832 = vmatpush1.bf16.msra.mxu0 %v3485
        %4833 = vmatprep.subr.bf16.mxu0 %v3496
        %4834 = vmatpush1.bf16.msra.mxu0 %v3495
        %4835 = vmatprep.subr.bf16.mxu0 %v3506
        %4836 = vmatpush1.bf16.msra.mxu0 %v3505
        %4837 = vmatprep.subr.bf16.mxu0 %v3516
        %4838 = vmatpush1.bf16.msra.mxu0 %v3515
        %4839 = vmatprep.subr.bf16.mxu0 %v3526
        %4840 = vmatpush1.bf16.msra.mxu0 %v3525
        %4841 = vmatprep.subr.bf16.mxu0 %v3536
        %4842 = vmatpush1.bf16.msra.mxu0 %v3535
        %4843 = vmatprep.subr.bf16.mxu0 %v3546
        %4844 = vmatpush1.bf16.msra.mxu0 %v3545
        %4845 = vmatprep.subr.bf16.mxu0 %v3556
        %4846 = vmatpush1.bf16.msra.mxu0 %v3555
        %4847 = vmatprep.subr.bf16.mxu0 %v3566
        %4848 = vmatpush1.bf16.msra.mxu0 %v3565
        %4849 = vmatprep.subr.bf16.mxu0 %v3576
        %4850 = vmatpush1.bf16.msra.mxu0 %v3575
        %4851 = vmatprep.subr.bf16.mxu0 %v3586
        %4852 = vmatpush1.bf16.msra.mxu0 %v3585
        %4853 = vmatprep.mubr.bf16.mxu0 %v1180
        %4854 = vmatmul.mubr.bf16.gmra.mrb[0].mxu0 %v1179
        %v4855 = vpop.f32.mrb[0].mxu0
        %v4856 = vadd.f32 %v4813, %v4855
        %v4857 = vpop.f32.mrb[0].mxu0
        %v4858 = vadd.f32 %v4815, %v4857
        %v4859 = vpop.f32.mrb[0].mxu0
        %v4860 = vadd.f32 %v4817, %v4859
        %v4861 = vpop.f32.mrb[0].mxu0
        %v4862 = vadd.f32 %v4819, %v4861
        %4863 = vdwg.mxu0
        %4864 = vmatprep.subr.bf16.mxu0 %v3596
        %4865 = vmatpush1.bf16.msra.mxu0 %v3595
        %4866 = vmatprep.subr.bf16.mxu0 %v3606
        %4867 = vmatpush1.bf16.msra.mxu0 %v3605
        %4868 = vmatprep.subr.bf16.mxu0 %v3616
        %4869 = vmatpush1.bf16.msra.mxu0 %v3615
        %4870 = vmatprep.subr.bf16.mxu0 %v3626
        %4871 = vmatpush1.bf16.msra.mxu0 %v3625
        %4872 = vmatprep.subr.bf16.mxu0 %v3636
        %4873 = vmatpush1.bf16.msra.mxu0 %v3635
        %4874 = vmatprep.subr.bf16.mxu0 %v3646
        %4875 = vmatpush1.bf16.msra.mxu0 %v3645
        %4876 = vmatprep.subr.bf16.mxu0 %v3656
        %4877 = vmatpush1.bf16.msra.mxu0 %v3655
        %4878 = vmatprep.subr.bf16.mxu0 %v3666
        %4879 = vmatpush1.bf16.msra.mxu0 %v3665
        %4880 = vmatprep.subr.bf16.mxu0 %v3676
        %4881 = vmatpush1.bf16.msra.mxu0 %v3675
        %4882 = vmatprep.subr.bf16.mxu0 %v3686
        %4883 = vmatpush1.bf16.msra.mxu0 %v3685
        %4884 = vmatprep.subr.bf16.mxu0 %v3696
        %4885 = vmatpush1.bf16.msra.mxu0 %v3695
        %4886 = vmatprep.subr.bf16.mxu0 %v3706
        %4887 = vmatpush1.bf16.msra.mxu0 %v3705
        %4888 = vmatprep.subr.bf16.mxu0 %v3716
        %4889 = vmatpush1.bf16.msra.mxu0 %v3715
        %4890 = vmatprep.subr.bf16.mxu0 %v3726
        %4891 = vmatpush1.bf16.msra.mxu0 %v3725
        %4892 = vmatprep.subr.bf16.mxu0 %v3736
        %4893 = vmatpush1.bf16.msra.mxu0 %v3735
        %4894 = vmatprep.subr.bf16.mxu0 %v3746
        %4895 = vmatpush1.bf16.msra.mxu0 %v3745
        %4896 = vmatprep.mubr.bf16.mxu0 %v1182
        %4897 = vmatmul.mubr.bf16.gmra.mrb[0].mxu0 %v1181
        %v4898 = vpop.f32.mrb[0].mxu0
        %v4899 = vadd.f32 %v4856, %v4898
        %v4900 = vpop.f32.mrb[0].mxu0
        %v4901 = vadd.f32 %v4858, %v4900
        %v4902 = vpop.f32.mrb[0].mxu0
        %v4903 = vadd.f32 %v4860, %v4902
        %v4904 = vpop.f32.mrb[0].mxu0
        %v4905 = vadd.f32 %v4862, %v4904
        %4906 = vdwg.mxu0
        %4907 = vmatprep.subr.bf16.mxu0 %v3118
        %4908 = vmatpush1.bf16.msra.mxu0 %v3117
        %4909 = vmatprep.subr.bf16.mxu0 %v3128
        %4910 = vmatpush1.bf16.msra.mxu0 %v3127
        %4911 = vmatprep.subr.bf16.mxu0 %v3138
        %4912 = vmatpush1.bf16.msra.mxu0 %v3137
        %4913 = vmatprep.subr.bf16.mxu0 %v3148
        %4914 = vmatpush1.bf16.msra.mxu0 %v3147
        %4915 = vmatprep.subr.bf16.mxu0 %v3158
        %4916 = vmatpush1.bf16.msra.mxu0 %v3157
        %4917 = vmatprep.subr.bf16.mxu0 %v3168
        %4918 = vmatpush1.bf16.msra.mxu0 %v3167
        %4919 = vmatprep.subr.bf16.mxu0 %v3178
        %4920 = vmatpush1.bf16.msra.mxu0 %v3177
        %4921 = vmatprep.subr.bf16.mxu0 %v3188
        %4922 = vmatpush1.bf16.msra.mxu0 %v3187
        %4923 = vmatprep.subr.bf16.mxu0 %v3198
        %4924 = vmatpush1.bf16.msra.mxu0 %v3197
        %4925 = vmatprep.subr.bf16.mxu0 %v3208
        %4926 = vmatpush1.bf16.msra.mxu0 %v3207
        %4927 = vmatprep.subr.bf16.mxu0 %v3218
        %4928 = vmatpush1.bf16.msra.mxu0 %v3217
        %4929 = vmatprep.subr.bf16.mxu0 %v3228
        %4930 = vmatpush1.bf16.msra.mxu0 %v3227
        %4931 = vmatprep.subr.bf16.mxu0 %v3238
        %4932 = vmatpush1.bf16.msra.mxu0 %v3237
        %4933 = vmatprep.subr.bf16.mxu0 %v3248
        %4934 = vmatpush1.bf16.msra.mxu0 %v3247
        %4935 = vmatprep.subr.bf16.mxu0 %v3258
        %4936 = vmatpush1.bf16.msra.mxu0 %v3257
        %4937 = vmatprep.subr.bf16.mxu0 %v3268
        %4938 = vmatpush1.bf16.msra.mxu0 %v3267
        %4939 = vmatprep.mubr.bf16.mxu0 %v1176
        %4940 = vmatmul.mubr.bf16.gmra.mrb[0].mxu0 %v1175
        %v4941 = vpop.f32.mrb[0].mxu0
        %v4942 = vadd.f32 %v1128, %v4941
        %v4943 = vpop.f32.mrb[0].mxu0
        %v4944 = vadd.f32 %v1132, %v4943
        %v4945 = vpop.f32.mrb[0].mxu0
        %v4946 = vadd.f32 %v1128, %v4945
        %v4947 = vpop.f32.mrb[0].mxu0
        %v4948 = vadd.f32 %v1132, %v4947
        %4949 = vdwg.mxu0
        %4950 = vmatprep.subr.bf16.mxu0 %v3278
        %4951 = vmatpush1.bf16.msra.mxu0 %v3277
        %4952 = vmatprep.subr.bf16.mxu0 %v3288
        %4953 = vmatpush1.bf16.msra.mxu0 %v3287
        %4954 = vmatprep.subr.bf16.mxu0 %v3298
        %4955 = vmatpush1.bf16.msra.mxu0 %v3297
        %4956 = vmatprep.subr.bf16.mxu0 %v3308
        %4957 = vmatpush1.bf16.msra.mxu0 %v3307
        %4958 = vmatprep.subr.bf16.mxu0 %v3318
        %4959 = vmatpush1.bf16.msra.mxu0 %v3317
        %4960 = vmatprep.subr.bf16.mxu0 %v3328
        %4961 = vmatpush1.bf16.msra.mxu0 %v3327
        %4962 = vmatprep.subr.bf16.mxu0 %v3338
        %4963 = vmatpush1.bf16.msra.mxu0 %v3337
        %4964 = vmatprep.subr.bf16.mxu0 %v3348
        %4965 = vmatpush1.bf16.msra.mxu0 %v3347
        %4966 = vmatprep.subr.bf16.mxu0 %v3358
        %4967 = vmatpush1.bf16.msra.mxu0 %v3357
        %4968 = vmatprep.subr.bf16.mxu0 %v3368
        %4969 = vmatpush1.bf16.msra.mxu0 %v3367
        %4970 = vmatprep.subr.bf16.mxu0 %v3378
        %4971 = vmatpush1.bf16.msra.mxu0 %v3377
        %4972 = vmatprep.subr.bf16.mxu0 %v3388
        %4973 = vmatpush1.bf16.msra.mxu0 %v3387
        %4974 = vmatprep.subr.bf16.mxu0 %v3398
        %4975 = vmatpush1.bf16.msra.mxu0 %v3397
        %4976 = vmatprep.subr.bf16.mxu0 %v3408
        %4977 = vmatpush1.bf16.msra.mxu0 %v3407
        %4978 = vmatprep.subr.bf16.mxu0 %v3418
        %4979 = vmatpush1.bf16.msra.mxu0 %v3417
        %4980 = vmatprep.subr.bf16.mxu0 %v3428
        %4981 = vmatpush1.bf16.msra.mxu0 %v3427
        %4982 = vmatprep.mubr.bf16.mxu0 %v1178
        %4983 = vmatmul.mubr.bf16.gmra.mrb[0].mxu0 %v1177
        %v4984 = vpop.f32.mrb[0].mxu0
        %v4985 = vadd.f32 %v4942, %v4984
        %v4986 = vpop.f32.mrb[0].mxu0
        %v4987 = vadd.f32 %v4944, %v4986
        %v4988 = vpop.f32.mrb[0].mxu0
        %v4989 = vadd.f32 %v4946, %v4988
        %v4990 = vpop.f32.mrb[0].mxu0
        %v4991 = vadd.f32 %v4948, %v4990
        %4992 = vdwg.mxu0
        %4993 = vmatprep.subr.bf16.mxu0 %v3438
        %4994 = vmatpush1.bf16.msra.mxu0 %v3437
        %4995 = vmatprep.subr.bf16.mxu0 %v3448
        %4996 = vmatpush1.bf16.msra.mxu0 %v3447
        %4997 = vmatprep.subr.bf16.mxu0 %v3458
        %4998 = vmatpush1.bf16.msra.mxu0 %v3457
        %4999 = vmatprep.subr.bf16.mxu0 %v3468
        %5000 = vmatpush1.bf16.msra.mxu0 %v3467
        %5001 = vmatprep.subr.bf16.mxu0 %v3478
        %5002 = vmatpush1.bf16.msra.mxu0 %v3477
        %5003 = vmatprep.subr.bf16.mxu0 %v3488
        %5004 = vmatpush1.bf16.msra.mxu0 %v3487
        %5005 = vmatprep.subr.bf16.mxu0 %v3498
        %5006 = vmatpush1.bf16.msra.mxu0 %v3497
        %5007 = vmatprep.subr.bf16.mxu0 %v3508
        %5008 = vmatpush1.bf16.msra.mxu0 %v3507
        %5009 = vmatprep.subr.bf16.mxu0 %v3518
        %5010 = vmatpush1.bf16.msra.mxu0 %v3517
        %5011 = vmatprep.subr.bf16.mxu0 %v3528
        %5012 = vmatpush1.bf16.msra.mxu0 %v3527
        %5013 = vmatprep.subr.bf16.mxu0 %v3538
        %5014 = vmatpush1.bf16.msra.mxu0 %v3537
        %5015 = vmatprep.subr.bf16.mxu0 %v3548
        %5016 = vmatpush1.bf16.msra.mxu0 %v3547
        %5017 = vmatprep.subr.bf16.mxu0 %v3558
        %5018 = vmatpush1.bf16.msra.mxu0 %v3557
        %5019 = vmatprep.subr.bf16.mxu0 %v3568
        %5020 = vmatpush1.bf16.msra.mxu0 %v3567
        %5021 = vmatprep.subr.bf16.mxu0 %v3578
        %5022 = vmatpush1.bf16.msra.mxu0 %v3577
        %5023 = vmatprep.subr.bf16.mxu0 %v3588
        %5024 = vmatpush1.bf16.msra.mxu0 %v3587
        %5025 = vmatprep.mubr.bf16.mxu0 %v1180
        %5026 = vmatmul.mubr.bf16.gmra.mrb[0].mxu0 %v1179
        %v5027 = vpop.f32.mrb[0].mxu0
        %v5028 = vadd.f32 %v4985, %v5027
        %v5029 = vpop.f32.mrb[0].mxu0
        %v5030 = vadd.f32 %v4987, %v5029
        %v5031 = vpop.f32.mrb[0].mxu0
        %v5032 = vadd.f32 %v4989, %v5031
        %v5033 = vpop.f32.mrb[0].mxu0
        %v5034 = vadd.f32 %v4991, %v5033
        %5035 = vdwg.mxu0
        %5036 = vmatprep.subr.bf16.mxu0 %v3598
        %5037 = vmatpush1.bf16.msra.mxu0 %v3597
        %5038 = vmatprep.subr.bf16.mxu0 %v3608
        %5039 = vmatpush1.bf16.msra.mxu0 %v3607
        %5040 = vmatprep.subr.bf16.mxu0 %v3618
        %5041 = vmatpush1.bf16.msra.mxu0 %v3617
        %5042 = vmatprep.subr.bf16.mxu0 %v3628
        %5043 = vmatpush1.bf16.msra.mxu0 %v3627
        %5044 = vmatprep.subr.bf16.mxu0 %v3638
        %5045 = vmatpush1.bf16.msra.mxu0 %v3637
        %5046 = vmatprep.subr.bf16.mxu0 %v3648
        %5047 = vmatpush1.bf16.msra.mxu0 %v3647
        %5048 = vmatprep.subr.bf16.mxu0 %v3658
        %5049 = vmatpush1.bf16.msra.mxu0 %v3657
        %5050 = vmatprep.subr.bf16.mxu0 %v3668
        %5051 = vmatpush1.bf16.msra.mxu0 %v3667
        %5052 = vmatprep.subr.bf16.mxu0 %v3678
        %5053 = vmatpush1.bf16.msra.mxu0 %v3677
        %5054 = vmatprep.subr.bf16.mxu0 %v3688
        %5055 = vmatpush1.bf16.msra.mxu0 %v3687
        %5056 = vmatprep.subr.bf16.mxu0 %v3698
        %5057 = vmatpush1.bf16.msra.mxu0 %v3697
        %5058 = vmatprep.subr.bf16.mxu0 %v3708
        %5059 = vmatpush1.bf16.msra.mxu0 %v3707
        %5060 = vmatprep.subr.bf16.mxu0 %v3718
        %5061 = vmatpush1.bf16.msra.mxu0 %v3717
        %5062 = vmatprep.subr.bf16.mxu0 %v3728
        %5063 = vmatpush1.bf16.msra.mxu0 %v3727
        %5064 = vmatprep.subr.bf16.mxu0 %v3738
        %5065 = vmatpush1.bf16.msra.mxu0 %v3737
        %5066 = vmatprep.subr.bf16.mxu0 %v3748
        %5067 = vmatpush1.bf16.msra.mxu0 %v3747
        %5068 = vmatprep.mubr.bf16.mxu0 %v1182
        %5069 = vmatmul.mubr.bf16.gmra.mrb[0].mxu0 %v1181
        %v5070 = vpop.f32.mrb[0].mxu0
        %v5071 = vadd.f32 %v5028, %v5070
        %v5072 = vpop.f32.mrb[0].mxu0
        %v5073 = vadd.f32 %v5030, %v5072
        %v5074 = vpop.f32.mrb[0].mxu0
        %v5075 = vadd.f32 %v5032, %v5074
        %v5076 = vpop.f32.mrb[0].mxu0
        %v5077 = vadd.f32 %v5034, %v5076
        %5078 = vdwg.mxu0
        %5079 = vmatprep.subr.bf16.mxu0 %v3120
        %5080 = vmatpush1.bf16.msra.mxu0 %v3119
        %5081 = vmatprep.subr.bf16.mxu0 %v3130
        %5082 = vmatpush1.bf16.msra.mxu0 %v3129
        %5083 = vmatprep.subr.bf16.mxu0 %v3140
        %5084 = vmatpush1.bf16.msra.mxu0 %v3139
        %5085 = vmatprep.subr.bf16.mxu0 %v3150
        %5086 = vmatpush1.bf16.msra.mxu0 %v3149
        %5087 = vmatprep.subr.bf16.mxu0 %v3160
        %5088 = vmatpush1.bf16.msra.mxu0 %v3159
        %5089 = vmatprep.subr.bf16.mxu0 %v3170
        %5090 = vmatpush1.bf16.msra.mxu0 %v3169
        %5091 = vmatprep.subr.bf16.mxu0 %v3180
        %5092 = vmatpush1.bf16.msra.mxu0 %v3179
        %5093 = vmatprep.subr.bf16.mxu0 %v3190
        %5094 = vmatpush1.bf16.msra.mxu0 %v3189
        %5095 = vmatprep.subr.bf16.mxu0 %v3200
        %5096 = vmatpush1.bf16.msra.mxu0 %v3199
        %5097 = vmatprep.subr.bf16.mxu0 %v3210
        %5098 = vmatpush1.bf16.msra.mxu0 %v3209
        %5099 = vmatprep.subr.bf16.mxu0 %v3220
        %5100 = vmatpush1.bf16.msra.mxu0 %v3219
        %5101 = vmatprep.subr.bf16.mxu0 %v3230
        %5102 = vmatpush1.bf16.msra.mxu0 %v3229
        %5103 = vmatprep.subr.bf16.mxu0 %v3240
        %5104 = vmatpush1.bf16.msra.mxu0 %v3239
        %5105 = vmatprep.subr.bf16.mxu0 %v3250
        %5106 = vmatpush1.bf16.msra.mxu0 %v3249
        %5107 = vmatprep.subr.bf16.mxu0 %v3260
        %5108 = vmatpush1.bf16.msra.mxu0 %v3259
        %5109 = vmatprep.subr.bf16.mxu0 %v3270
        %5110 = vmatpush1.bf16.msra.mxu0 %v3269
        %5111 = vmatprep.mubr.bf16.mxu0 %v1176
        %5112 = vmatmul.mubr.bf16.gmra.mrb[0].mxu0 %v1175
        %v5113 = vpop.f32.mrb[0].mxu0
        %v5114 = vadd.f32 %v1136, %v5113
        %v5115 = vpop.f32.mrb[0].mxu0
        %v5116 = vadd.f32 %v1140, %v5115
        %v5117 = vpop.f32.mrb[0].mxu0
        %v5118 = vadd.f32 %v1136, %v5117
        %v5119 = vpop.f32.mrb[0].mxu0
        %v5120 = vadd.f32 %v1140, %v5119
        %5121 = vdwg.mxu0
        %5122 = vmatprep.subr.bf16.mxu0 %v3280
        %5123 = vmatpush1.bf16.msra.mxu0 %v3279
        %5124 = vmatprep.subr.bf16.mxu0 %v3290
        %5125 = vmatpush1.bf16.msra.mxu0 %v3289
        %5126 = vmatprep.subr.bf16.mxu0 %v3300
        %5127 = vmatpush1.bf16.msra.mxu0 %v3299
        %5128 = vmatprep.subr.bf16.mxu0 %v3310
        %5129 = vmatpush1.bf16.msra.mxu0 %v3309
        %5130 = vmatprep.subr.bf16.mxu0 %v3320
        %5131 = vmatpush1.bf16.msra.mxu0 %v3319
        %5132 = vmatprep.subr.bf16.mxu0 %v3330
        %5133 = vmatpush1.bf16.msra.mxu0 %v3329
        %5134 = vmatprep.subr.bf16.mxu0 %v3340
        %5135 = vmatpush1.bf16.msra.mxu0 %v3339
        %5136 = vmatprep.subr.bf16.mxu0 %v3350
        %5137 = vmatpush1.bf16.msra.mxu0 %v3349
        %5138 = vmatprep.subr.bf16.mxu0 %v3360
        %5139 = vmatpush1.bf16.msra.mxu0 %v3359
        %5140 = vmatprep.subr.bf16.mxu0 %v3370
        %5141 = vmatpush1.bf16.msra.mxu0 %v3369
        %5142 = vmatprep.subr.bf16.mxu0 %v3380
        %5143 = vmatpush1.bf16.msra.mxu0 %v3379
        %5144 = vmatprep.subr.bf16.mxu0 %v3390
        %5145 = vmatpush1.bf16.msra.mxu0 %v3389
        %5146 = vmatprep.subr.bf16.mxu0 %v3400
        %5147 = vmatpush1.bf16.msra.mxu0 %v3399
        %5148 = vmatprep.subr.bf16.mxu0 %v3410
        %5149 = vmatpush1.bf16.msra.mxu0 %v3409
        %5150 = vmatprep.subr.bf16.mxu0 %v3420
        %5151 = vmatpush1.bf16.msra.mxu0 %v3419
        %5152 = vmatprep.subr.bf16.mxu0 %v3430
        %5153 = vmatpush1.bf16.msra.mxu0 %v3429
        %5154 = vmatprep.mubr.bf16.mxu0 %v1178
        %5155 = vmatmul.mubr.bf16.gmra.mrb[0].mxu0 %v1177
        %v5156 = vpop.f32.mrb[0].mxu0
        %v5157 = vadd.f32 %v5114, %v5156
        %v5158 = vpop.f32.mrb[0].mxu0
        %v5159 = vadd.f32 %v5116, %v5158
        %v5160 = vpop.f32.mrb[0].mxu0
        %v5161 = vadd.f32 %v5118, %v5160
        %v5162 = vpop.f32.mrb[0].mxu0
        %v5163 = vadd.f32 %v5120, %v5162
        %5164 = vdwg.mxu0
        %5165 = vmatprep.subr.bf16.mxu0 %v3440
        %5166 = vmatpush1.bf16.msra.mxu0 %v3439
        %5167 = vmatprep.subr.bf16.mxu0 %v3450
        %5168 = vmatpush1.bf16.msra.mxu0 %v3449
        %5169 = vmatprep.subr.bf16.mxu0 %v3460
        %5170 = vmatpush1.bf16.msra.mxu0 %v3459
        %5171 = vmatprep.subr.bf16.mxu0 %v3470
        %5172 = vmatpush1.bf16.msra.mxu0 %v3469
        %5173 = vmatprep.subr.bf16.mxu0 %v3480
        %5174 = vmatpush1.bf16.msra.mxu0 %v3479
        %5175 = vmatprep.subr.bf16.mxu0 %v3490
        %5176 = vmatpush1.bf16.msra.mxu0 %v3489
        %5177 = vmatprep.subr.bf16.mxu0 %v3500
        %5178 = vmatpush1.bf16.msra.mxu0 %v3499
        %5179 = vmatprep.subr.bf16.mxu0 %v3510
        %5180 = vmatpush1.bf16.msra.mxu0 %v3509
        %5181 = vmatprep.subr.bf16.mxu0 %v3520
        %5182 = vmatpush1.bf16.msra.mxu0 %v3519
        %5183 = vmatprep.subr.bf16.mxu0 %v3530
        %5184 = vmatpush1.bf16.msra.mxu0 %v3529
        %5185 = vmatprep.subr.bf16.mxu0 %v3540
        %5186 = vmatpush1.bf16.msra.mxu0 %v3539
        %5187 = vmatprep.subr.bf16.mxu0 %v3550
        %5188 = vmatpush1.bf16.msra.mxu0 %v3549
        %5189 = vmatprep.subr.bf16.mxu0 %v3560
        %5190 = vmatpush1.bf16.msra.mxu0 %v3559
        %5191 = vmatprep.subr.bf16.mxu0 %v3570
        %5192 = vmatpush1.bf16.msra.mxu0 %v3569
        %5193 = vmatprep.subr.bf16.mxu0 %v3580
        %5194 = vmatpush1.bf16.msra.mxu0 %v3579
        %5195 = vmatprep.subr.bf16.mxu0 %v3590
        %5196 = vmatpush1.bf16.msra.mxu0 %v3589
        %5197 = vmatprep.mubr.bf16.mxu0 %v1180
        %5198 = vmatmul.mubr.bf16.gmra.mrb[0].mxu0 %v1179
        %v5199 = vpop.f32.mrb[0].mxu0
        %v5200 = vadd.f32 %v5157, %v5199
        %v5201 = vpop.f32.mrb[0].mxu0
        %v5202 = vadd.f32 %v5159, %v5201
        %v5203 = vpop.f32.mrb[0].mxu0
        %v5204 = vadd.f32 %v5161, %v5203
        %v5205 = vpop.f32.mrb[0].mxu0
        %v5206 = vadd.f32 %v5163, %v5205
        %5207 = vdwg.mxu0
        %5208 = vmatprep.subr.bf16.mxu0 %v3600
        %5209 = vmatpush1.bf16.msra.mxu0 %v3599
        %5210 = vmatprep.subr.bf16.mxu0 %v3610
        %5211 = vmatpush1.bf16.msra.mxu0 %v3609
        %5212 = vmatprep.subr.bf16.mxu0 %v3620
        %5213 = vmatpush1.bf16.msra.mxu0 %v3619
        %5214 = vmatprep.subr.bf16.mxu0 %v3630
        %5215 = vmatpush1.bf16.msra.mxu0 %v3629
        %5216 = vmatprep.subr.bf16.mxu0 %v3640
        %5217 = vmatpush1.bf16.msra.mxu0 %v3639
        %5218 = vmatprep.subr.bf16.mxu0 %v3650
        %5219 = vmatpush1.bf16.msra.mxu0 %v3649
        %5220 = vmatprep.subr.bf16.mxu0 %v3660
        %5221 = vmatpush1.bf16.msra.mxu0 %v3659
        %5222 = vmatprep.subr.bf16.mxu0 %v3670
        %5223 = vmatpush1.bf16.msra.mxu0 %v3669
        %5224 = vmatprep.subr.bf16.mxu0 %v3680
        %5225 = vmatpush1.bf16.msra.mxu0 %v3679
        %5226 = vmatprep.subr.bf16.mxu0 %v3690
        %5227 = vmatpush1.bf16.msra.mxu0 %v3689
        %5228 = vmatprep.subr.bf16.mxu0 %v3700
        %5229 = vmatpush1.bf16.msra.mxu0 %v3699
        %5230 = vmatprep.subr.bf16.mxu0 %v3710
        %5231 = vmatpush1.bf16.msra.mxu0 %v3709
        %5232 = vmatprep.subr.bf16.mxu0 %v3720
        %5233 = vmatpush1.bf16.msra.mxu0 %v3719
        %5234 = vmatprep.subr.bf16.mxu0 %v3730
        %5235 = vmatpush1.bf16.msra.mxu0 %v3729
        %5236 = vmatprep.subr.bf16.mxu0 %v3740
        %5237 = vmatpush1.bf16.msra.mxu0 %v3739
        %5238 = vmatprep.subr.bf16.mxu0 %v3750
        %5239 = vmatpush1.bf16.msra.mxu0 %v3749
        %5240 = vmatprep.mubr.bf16.mxu0 %v1182
        %5241 = vmatmul.mubr.bf16.gmra.mrb[0].mxu0 %v1181
        %v5242 = vpop.f32.mrb[0].mxu0
        %v5243 = vadd.f32 %v5200, %v5242
        %v5244 = vpop.f32.mrb[0].mxu0
        %v5245 = vadd.f32 %v5202, %v5244
        %v5246 = vpop.f32.mrb[0].mxu0
        %v5247 = vadd.f32 %v5204, %v5246
        %v5248 = vpop.f32.mrb[0].mxu0
        %v5249 = vadd.f32 %v5206, %v5248
        %5250 = vdwg.mxu0
        %v5251 = vsub.f32 0.0, %v4555
        %v5252 = vsub.f32 0.0, %v4557
        %v5253 = vsub.f32 0.0, %v4727
        %v5254 = vsub.f32 0.0, %v4729
        %v5255 = vsub.f32 0.0, %v4899
        %v5256 = vsub.f32 0.0, %v4901
        %v5257 = vsub.f32 0.0, %v5071
        %v5258 = vsub.f32 0.0, %v5073
        %v5259 = vsub.f32 0.0, %v5243
        %v5260 = vsub.f32 0.0, %v5245
        %v5261 = vsub.f32 0.0, %v4559
        %v5262 = vsub.f32 0.0, %v4561
        %v5263 = vsub.f32 0.0, %v4731
        %v5264 = vsub.f32 0.0, %v4733
        %v5265 = vsub.f32 0.0, %v4903
        %v5266 = vsub.f32 0.0, %v4905
        %v5267 = vsub.f32 0.0, %v5075
        %v5268 = vsub.f32 0.0, %v5077
        %v5269 = vsub.f32 0.0, %v5247
        %v5270 = vsub.f32 0.0, %v5249
        %v5271 = vmul.f32 %v5251, 1.442695
        %v5272 = vpow.pop %v5271
        %v5273 = vmul.f32 %v5252, 1.442695
        %v5274 = vpow.pop %v5273
        %v5275 = vmul.f32 %v5253, 1.442695
        %v5276 = vpow.pop %v5275
        %v5277 = vmul.f32 %v5254, 1.442695
        %v5278 = vpow.pop %v5277
        %v5279 = vmul.f32 %v5255, 1.442695
        %v5280 = vpow.pop %v5279
        %v5281 = vmul.f32 %v5256, 1.442695
        %v5282 = vpow.pop %v5281
        %v5283 = vmul.f32 %v5257, 1.442695
        %v5284 = vpow.pop %v5283
        %v5285 = vmul.f32 %v5258, 1.442695
        %v5286 = vpow.pop %v5285
        %v5287 = vmul.f32 %v5259, 1.442695
        %v5288 = vpow.pop %v5287
        %v5289 = vmul.f32 %v5260, 1.442695
        %v5290 = vpow.pop %v5289
        %v5291 = vmul.f32 %v5261, 1.442695
        %v5292 = vpow.pop %v5291
        %v5293 = vmul.f32 %v5262, 1.442695
        %v5294 = vpow.pop %v5293
        %v5295 = vmul.f32 %v5263, 1.442695
        %v5296 = vpow.pop %v5295
        %v5297 = vmul.f32 %v5264, 1.442695
        %v5298 = vpow.pop %v5297
        %v5299 = vmul.f32 %v5265, 1.442695
        %v5300 = vpow.pop %v5299
        %v5301 = vmul.f32 %v5266, 1.442695
        %v5302 = vpow.pop %v5301
        %v5303 = vmul.f32 %v5267, 1.442695
        %v5304 = vpow.pop %v5303
        %v5305 = vmul.f32 %v5268, 1.442695
        %v5306 = vpow.pop %v5305
        %v5307 = vmul.f32 %v5269, 1.442695
        %v5308 = vpow.pop %v5307
        %v5309 = vmul.f32 %v5270, 1.442695
        %v5310 = vpow.pop %v5309
        %v5311 = vadd.f32 %v5272, 1.0
        %v5312 = vadd.f32 %v5274, 1.0
        %v5313 = vadd.f32 %v5276, 1.0
        %v5314 = vadd.f32 %v5278, 1.0
        %v5315 = vadd.f32 %v5280, 1.0
        %v5316 = vadd.f32 %v5282, 1.0
        %v5317 = vadd.f32 %v5284, 1.0
        %v5318 = vadd.f32 %v5286, 1.0
        %v5319 = vadd.f32 %v5288, 1.0
        %v5320 = vadd.f32 %v5290, 1.0
        %v5321 = vadd.f32 %v5292, 1.0
        %v5322 = vadd.f32 %v5294, 1.0
        %v5323 = vadd.f32 %v5296, 1.0
        %v5324 = vadd.f32 %v5298, 1.0
        %v5325 = vadd.f32 %v5300, 1.0
        %v5326 = vadd.f32 %v5302, 1.0
        %v5327 = vadd.f32 %v5304, 1.0
        %v5328 = vadd.f32 %v5306, 1.0
        %v5329 = vadd.f32 %v5308, 1.0
        %v5330 = vadd.f32 %v5310, 1.0
        %v5331 = vrcp.pop %v5311
        %v5332 = vrcp.pop %v5312
        %v5333 = vrcp.pop %v5313
        %v5334 = vrcp.pop %v5314
        %v5335 = vrcp.pop %v5315
        %v5336 = vrcp.pop %v5316
        %v5337 = vrcp.pop %v5317
        %v5338 = vrcp.pop %v5318
        %v5339 = vrcp.pop %v5319
        %v5340 = vrcp.pop %v5320
        %v5341 = vrcp.pop %v5321
        %v5342 = vrcp.pop %v5322
        %v5343 = vrcp.pop %v5323
        %v5344 = vrcp.pop %v5324
        %v5345 = vrcp.pop %v5325
        %v5346 = vrcp.pop %v5326
        %v5347 = vrcp.pop %v5327
        %v5348 = vrcp.pop %v5328
        %v5349 = vrcp.pop %v5329
        %v5350 = vrcp.pop %v5330
        %v5351 = vpack.c.bf16 %v5341, %v5331
        %v5352 = vpack.c.bf16 %v5342, %v5332
        %v5353 = vpack.c.bf16 %v5343, %v5333
        %v5354 = vpack.c.bf16 %v5344, %v5334
        %v5355 = vpack.c.bf16 %v5345, %v5335
        %v5356 = vpack.c.bf16 %v5346, %v5336
        %v5357 = vpack.c.bf16 %v5347, %v5337
        %v5358 = vpack.c.bf16 %v5348, %v5338
        %v5359 = vpack.c.bf16 %v5349, %v5339
        %v5360 = vpack.c.bf16 %v5350, %v5340
        %v5361 = vld [vmem:[#allocation6] sm:$0xff]
        %v5362 = vld [vmem:[#allocation6 + $0x8] sm:$0xff]
        %v5363 = vld [vmem:[#allocation6 + $0x10] sm:$0xff]
        %v5364 = vld [vmem:[#allocation6 + $0x18] sm:$0xff]
        %v5365 = vld [vmem:[#allocation6 + $0x20] sm:$0xff]
        %v5366 = vld [vmem:[#allocation6 + $0x28] sm:$0xff]
        %v5367 = vld [vmem:[#allocation6 + $0x30] sm:$0xff]
        %v5368 = vld [vmem:[#allocation6 + $0x38] sm:$0xff]
        %v5369 = vld [vmem:[#allocation6 + $0x40] sm:$0xff]
        %v5370 = vld [vmem:[#allocation6 + $0x48] sm:$0xff]
        %v5371 = vld [vmem:[#allocation6 + $0x50] sm:$0xff]
        %v5372 = vld [vmem:[#allocation6 + $0x58] sm:$0xff]
        %v5373 = vld [vmem:[#allocation6 + $0x60] sm:$0xff]
        %v5374 = vld [vmem:[#allocation6 + $0x68] sm:$0xff]
        %v5375 = vld [vmem:[#allocation6 + $0x70] sm:$0xff]
        %v5376 = vld [vmem:[#allocation6 + $0x78] sm:$0xff]
        %v5377 = vld [vmem:[#allocation6 + $0x80] sm:$0xff]
        %v5378 = vld [vmem:[#allocation6 + $0x88] sm:$0xff]
        %v5379 = vld [vmem:[#allocation6 + $0x90] sm:$0xff]
        %v5380 = vld [vmem:[#allocation6 + $0x98] sm:$0xff]
        %v5381 = vld [vmem:[#allocation6 + $0xa0] sm:$0xff]
        %v5382 = vld [vmem:[#allocation6 + $0xa8] sm:$0xff]
        %v5383 = vld [vmem:[#allocation6 + $0xb0] sm:$0xff]
        %v5384 = vld [vmem:[#allocation6 + $0xb8] sm:$0xff]
        %v5385 = vld [vmem:[#allocation6 + $0xc0] sm:$0xff]
        %v5386 = vld [vmem:[#allocation6 + $0xc8] sm:$0xff]
        %v5387 = vld [vmem:[#allocation6 + $0xd0] sm:$0xff]
        %v5388 = vld [vmem:[#allocation6 + $0xd8] sm:$0xff]
        %v5389 = vld [vmem:[#allocation6 + $0xe0] sm:$0xff]
        %v5390 = vld [vmem:[#allocation6 + $0xe8] sm:$0xff]
        %v5391 = vld [vmem:[#allocation6 + $0xf0] sm:$0xff]
        %v5392 = vld [vmem:[#allocation6 + $0xf8] sm:$0xff]
        %v5393 = vld [vmem:[#allocation6 + $0x100] sm:$0xff]
        %v5394 = vld [vmem:[#allocation6 + $0x108] sm:$0xff]
        %v5395 = vld [vmem:[#allocation6 + $0x110] sm:$0xff]
        %v5396 = vld [vmem:[#allocation6 + $0x118] sm:$0xff]
        %v5397 = vld [vmem:[#allocation6 + $0x120] sm:$0xff]
        %v5398 = vld [vmem:[#allocation6 + $0x128] sm:$0xff]
        %v5399 = vld [vmem:[#allocation6 + $0x130] sm:$0xff]
        %v5400 = vld [vmem:[#allocation6 + $0x138] sm:$0xff]
        %v5401 = vld [vmem:[#allocation6 + $0x140] sm:$0xff]
        %v5402 = vld [vmem:[#allocation6 + $0x148] sm:$0xff]
        %v5403 = vld [vmem:[#allocation6 + $0x150] sm:$0xff]
        %v5404 = vld [vmem:[#allocation6 + $0x158] sm:$0xff]
        %v5405 = vld [vmem:[#allocation6 + $0x160] sm:$0xff]
        %v5406 = vld [vmem:[#allocation6 + $0x168] sm:$0xff]
        %v5407 = vld [vmem:[#allocation6 + $0x170] sm:$0xff]
        %v5408 = vld [vmem:[#allocation6 + $0x178] sm:$0xff]
        %v5409 = vld [vmem:[#allocation6 + $0x180] sm:$0xff]
        %v5410 = vld [vmem:[#allocation6 + $0x188] sm:$0xff]
        %v5411 = vld [vmem:[#allocation6 + $0x190] sm:$0xff]
        %v5412 = vld [vmem:[#allocation6 + $0x198] sm:$0xff]
        %v5413 = vld [vmem:[#allocation6 + $0x1a0] sm:$0xff]
        %v5414 = vld [vmem:[#allocation6 + $0x1a8] sm:$0xff]
        %v5415 = vld [vmem:[#allocation6 + $0x1b0] sm:$0xff]
        %v5416 = vld [vmem:[#allocation6 + $0x1b8] sm:$0xff]
        %v5417 = vld [vmem:[#allocation6 + $0x1c0] sm:$0xff]
        %v5418 = vld [vmem:[#allocation6 + $0x1c8] sm:$0xff]
        %v5419 = vld [vmem:[#allocation6 + $0x1d0] sm:$0xff]
        %v5420 = vld [vmem:[#allocation6 + $0x1d8] sm:$0xff]
        %v5421 = vld [vmem:[#allocation6 + $0x1e0] sm:$0xff]
        %v5422 = vld [vmem:[#allocation6 + $0x1e8] sm:$0xff]
        %v5423 = vld [vmem:[#allocation6 + $0x1f0] sm:$0xff]
        %v5424 = vld [vmem:[#allocation6 + $0x1f8] sm:$0xff]
        %v5425 = vld [vmem:[#allocation6 + $0x200] sm:$0xff]
        %v5426 = vld [vmem:[#allocation6 + $0x208] sm:$0xff]
        %v5427 = vld [vmem:[#allocation6 + $0x210] sm:$0xff]
        %v5428 = vld [vmem:[#allocation6 + $0x218] sm:$0xff]
        %v5429 = vld [vmem:[#allocation6 + $0x220] sm:$0xff]
        %v5430 = vld [vmem:[#allocation6 + $0x228] sm:$0xff]
        %v5431 = vld [vmem:[#allocation6 + $0x230] sm:$0xff]
        %v5432 = vld [vmem:[#allocation6 + $0x238] sm:$0xff]
        %v5433 = vld [vmem:[#allocation6 + $0x240] sm:$0xff]
        %v5434 = vld [vmem:[#allocation6 + $0x248] sm:$0xff]
        %v5435 = vld [vmem:[#allocation6 + $0x250] sm:$0xff]
        %v5436 = vld [vmem:[#allocation6 + $0x258] sm:$0xff]
        %v5437 = vld [vmem:[#allocation6 + $0x260] sm:$0xff]
        %v5438 = vld [vmem:[#allocation6 + $0x268] sm:$0xff]
        %v5439 = vld [vmem:[#allocation6 + $0x270] sm:$0xff]
        %v5440 = vld [vmem:[#allocation6 + $0x278] sm:$0xff]
        %v5441 = vld [vmem:[#allocation6 + $0x280] sm:$0xff]
        %v5442 = vld [vmem:[#allocation6 + $0x288] sm:$0xff]
        %v5443 = vld [vmem:[#allocation6 + $0x290] sm:$0xff]
        %v5444 = vld [vmem:[#allocation6 + $0x298] sm:$0xff]
        %v5445 = vld [vmem:[#allocation6 + $0x2a0] sm:$0xff]
        %v5446 = vld [vmem:[#allocation6 + $0x2a8] sm:$0xff]
        %v5447 = vld [vmem:[#allocation6 + $0x2b0] sm:$0xff]
        %v5448 = vld [vmem:[#allocation6 + $0x2b8] sm:$0xff]
        %v5449 = vld [vmem:[#allocation6 + $0x2c0] sm:$0xff]
        %v5450 = vld [vmem:[#allocation6 + $0x2c8] sm:$0xff]
        %v5451 = vld [vmem:[#allocation6 + $0x2d0] sm:$0xff]
        %v5452 = vld [vmem:[#allocation6 + $0x2d8] sm:$0xff]
        %v5453 = vld [vmem:[#allocation6 + $0x2e0] sm:$0xff]
        %v5454 = vld [vmem:[#allocation6 + $0x2e8] sm:$0xff]
        %v5455 = vld [vmem:[#allocation6 + $0x2f0] sm:$0xff]
        %v5456 = vld [vmem:[#allocation6 + $0x2f8] sm:$0xff]
        %v5457 = vld [vmem:[#allocation6 + $0x300] sm:$0xff]
        %v5458 = vld [vmem:[#allocation6 + $0x308] sm:$0xff]
        %v5459 = vld [vmem:[#allocation6 + $0x310] sm:$0xff]
        %v5460 = vld [vmem:[#allocation6 + $0x318] sm:$0xff]
        %v5461 = vld [vmem:[#allocation6 + $0x320] sm:$0xff]
        %v5462 = vld [vmem:[#allocation6 + $0x328] sm:$0xff]
        %v5463 = vld [vmem:[#allocation6 + $0x330] sm:$0xff]
        %v5464 = vld [vmem:[#allocation6 + $0x338] sm:$0xff]
        %v5465 = vld [vmem:[#allocation6 + $0x340] sm:$0xff]
        %v5466 = vld [vmem:[#allocation6 + $0x348] sm:$0xff]
        %v5467 = vld [vmem:[#allocation6 + $0x350] sm:$0xff]
        %v5468 = vld [vmem:[#allocation6 + $0x358] sm:$0xff]
        %v5469 = vld [vmem:[#allocation6 + $0x360] sm:$0xff]
        %v5470 = vld [vmem:[#allocation6 + $0x368] sm:$0xff]
        %v5471 = vld [vmem:[#allocation6 + $0x370] sm:$0xff]
        %v5472 = vld [vmem:[#allocation6 + $0x378] sm:$0xff]
        %v5473 = vld [vmem:[#allocation6 + $0x380] sm:$0xff]
        %v5474 = vld [vmem:[#allocation6 + $0x388] sm:$0xff]
        %v5475 = vld [vmem:[#allocation6 + $0x390] sm:$0xff]
        %v5476 = vld [vmem:[#allocation6 + $0x398] sm:$0xff]
        %v5477 = vld [vmem:[#allocation6 + $0x3a0] sm:$0xff]
        %v5478 = vld [vmem:[#allocation6 + $0x3a8] sm:$0xff]
        %v5479 = vld [vmem:[#allocation6 + $0x3b0] sm:$0xff]
        %v5480 = vld [vmem:[#allocation6 + $0x3b8] sm:$0xff]
        %v5481 = vld [vmem:[#allocation6 + $0x3c0] sm:$0xff]
        %v5482 = vld [vmem:[#allocation6 + $0x3c8] sm:$0xff]
        %v5483 = vld [vmem:[#allocation6 + $0x3d0] sm:$0xff]
        %v5484 = vld [vmem:[#allocation6 + $0x3d8] sm:$0xff]
        %v5485 = vld [vmem:[#allocation6 + $0x3e0] sm:$0xff]
        %v5486 = vld [vmem:[#allocation6 + $0x3e8] sm:$0xff]
        %v5487 = vld [vmem:[#allocation6 + $0x3f0] sm:$0xff]
        %v5488 = vld [vmem:[#allocation6 + $0x3f8] sm:$0xff]
        %v5489 = vld [vmem:[#allocation6 + $0x400] sm:$0xff]
        %v5490 = vld [vmem:[#allocation6 + $0x408] sm:$0xff]
        %v5491 = vld [vmem:[#allocation6 + $0x410] sm:$0xff]
        %v5492 = vld [vmem:[#allocation6 + $0x418] sm:$0xff]
        %v5493 = vld [vmem:[#allocation6 + $0x420] sm:$0xff]
        %v5494 = vld [vmem:[#allocation6 + $0x428] sm:$0xff]
        %v5495 = vld [vmem:[#allocation6 + $0x430] sm:$0xff]
        %v5496 = vld [vmem:[#allocation6 + $0x438] sm:$0xff]
        %v5497 = vld [vmem:[#allocation6 + $0x440] sm:$0xff]
        %v5498 = vld [vmem:[#allocation6 + $0x448] sm:$0xff]
        %v5499 = vld [vmem:[#allocation6 + $0x450] sm:$0xff]
        %v5500 = vld [vmem:[#allocation6 + $0x458] sm:$0xff]
        %v5501 = vld [vmem:[#allocation6 + $0x460] sm:$0xff]
        %v5502 = vld [vmem:[#allocation6 + $0x468] sm:$0xff]
        %v5503 = vld [vmem:[#allocation6 + $0x470] sm:$0xff]
        %v5504 = vld [vmem:[#allocation6 + $0x478] sm:$0xff]
        %v5505 = vld [vmem:[#allocation6 + $0x480] sm:$0xff]
        %v5506 = vld [vmem:[#allocation6 + $0x488] sm:$0xff]
        %v5507 = vld [vmem:[#allocation6 + $0x490] sm:$0xff]
        %v5508 = vld [vmem:[#allocation6 + $0x498] sm:$0xff]
        %v5509 = vld [vmem:[#allocation6 + $0x4a0] sm:$0xff]
        %v5510 = vld [vmem:[#allocation6 + $0x4a8] sm:$0xff]
        %v5511 = vld [vmem:[#allocation6 + $0x4b0] sm:$0xff]
        %v5512 = vld [vmem:[#allocation6 + $0x4b8] sm:$0xff]
        %v5513 = vld [vmem:[#allocation6 + $0x4c0] sm:$0xff]
        %v5514 = vld [vmem:[#allocation6 + $0x4c8] sm:$0xff]
        %v5515 = vld [vmem:[#allocation6 + $0x4d0] sm:$0xff]
        %v5516 = vld [vmem:[#allocation6 + $0x4d8] sm:$0xff]
        %v5517 = vld [vmem:[#allocation6 + $0x4e0] sm:$0xff]
        %v5518 = vld [vmem:[#allocation6 + $0x4e8] sm:$0xff]
        %v5519 = vld [vmem:[#allocation6 + $0x4f0] sm:$0xff]
        %v5520 = vld [vmem:[#allocation6 + $0x4f8] sm:$0xff]
        %v5521 = vld [vmem:[#allocation6 + $0x500] sm:$0xff]
        %v5522 = vld [vmem:[#allocation6 + $0x508] sm:$0xff]
        %v5523 = vld [vmem:[#allocation6 + $0x510] sm:$0xff]
        %v5524 = vld [vmem:[#allocation6 + $0x518] sm:$0xff]
        %v5525 = vld [vmem:[#allocation6 + $0x520] sm:$0xff]
        %v5526 = vld [vmem:[#allocation6 + $0x528] sm:$0xff]
        %v5527 = vld [vmem:[#allocation6 + $0x530] sm:$0xff]
        %v5528 = vld [vmem:[#allocation6 + $0x538] sm:$0xff]
        %v5529 = vld [vmem:[#allocation6 + $0x540] sm:$0xff]
        %v5530 = vld [vmem:[#allocation6 + $0x548] sm:$0xff]
        %v5531 = vld [vmem:[#allocation6 + $0x550] sm:$0xff]
        %v5532 = vld [vmem:[#allocation6 + $0x558] sm:$0xff]
        %v5533 = vld [vmem:[#allocation6 + $0x560] sm:$0xff]
        %v5534 = vld [vmem:[#allocation6 + $0x568] sm:$0xff]
        %v5535 = vld [vmem:[#allocation6 + $0x570] sm:$0xff]
        %v5536 = vld [vmem:[#allocation6 + $0x578] sm:$0xff]
        %v5537 = vld [vmem:[#allocation6 + $0x580] sm:$0xff]
        %v5538 = vld [vmem:[#allocation6 + $0x588] sm:$0xff]
        %v5539 = vld [vmem:[#allocation6 + $0x590] sm:$0xff]
        %v5540 = vld [vmem:[#allocation6 + $0x598] sm:$0xff]
        %v5541 = vld [vmem:[#allocation6 + $0x5a0] sm:$0xff]
        %v5542 = vld [vmem:[#allocation6 + $0x5a8] sm:$0xff]
        %v5543 = vld [vmem:[#allocation6 + $0x5b0] sm:$0xff]
        %v5544 = vld [vmem:[#allocation6 + $0x5b8] sm:$0xff]
        %v5545 = vld [vmem:[#allocation6 + $0x5c0] sm:$0xff]
        %v5546 = vld [vmem:[#allocation6 + $0x5c8] sm:$0xff]
        %v5547 = vld [vmem:[#allocation6 + $0x5d0] sm:$0xff]
        %v5548 = vld [vmem:[#allocation6 + $0x5d8] sm:$0xff]
        %v5549 = vld [vmem:[#allocation6 + $0x5e0] sm:$0xff]
        %v5550 = vld [vmem:[#allocation6 + $0x5e8] sm:$0xff]
        %v5551 = vld [vmem:[#allocation6 + $0x5f0] sm:$0xff]
        %v5552 = vld [vmem:[#allocation6 + $0x5f8] sm:$0xff]
        %v5553 = vld [vmem:[#allocation6 + $0x600] sm:$0xff]
        %v5554 = vld [vmem:[#allocation6 + $0x608] sm:$0xff]
        %v5555 = vld [vmem:[#allocation6 + $0x610] sm:$0xff]
        %v5556 = vld [vmem:[#allocation6 + $0x618] sm:$0xff]
        %v5557 = vld [vmem:[#allocation6 + $0x620] sm:$0xff]
        %v5558 = vld [vmem:[#allocation6 + $0x628] sm:$0xff]
        %v5559 = vld [vmem:[#allocation6 + $0x630] sm:$0xff]
        %v5560 = vld [vmem:[#allocation6 + $0x638] sm:$0xff]
        %v5561 = vld [vmem:[#allocation6 + $0x640] sm:$0xff]
        %v5562 = vld [vmem:[#allocation6 + $0x648] sm:$0xff]
        %v5563 = vld [vmem:[#allocation6 + $0x650] sm:$0xff]
        %v5564 = vld [vmem:[#allocation6 + $0x658] sm:$0xff]
        %v5565 = vld [vmem:[#allocation6 + $0x660] sm:$0xff]
        %v5566 = vld [vmem:[#allocation6 + $0x668] sm:$0xff]
        %v5567 = vld [vmem:[#allocation6 + $0x670] sm:$0xff]
        %v5568 = vld [vmem:[#allocation6 + $0x678] sm:$0xff]
        %v5569 = vld [vmem:[#allocation6 + $0x680] sm:$0xff]
        %v5570 = vld [vmem:[#allocation6 + $0x688] sm:$0xff]
        %v5571 = vld [vmem:[#allocation6 + $0x690] sm:$0xff]
        %v5572 = vld [vmem:[#allocation6 + $0x698] sm:$0xff]
        %v5573 = vld [vmem:[#allocation6 + $0x6a0] sm:$0xff]
        %v5574 = vld [vmem:[#allocation6 + $0x6a8] sm:$0xff]
        %v5575 = vld [vmem:[#allocation6 + $0x6b0] sm:$0xff]
        %v5576 = vld [vmem:[#allocation6 + $0x6b8] sm:$0xff]
        %v5577 = vld [vmem:[#allocation6 + $0x6c0] sm:$0xff]
        %v5578 = vld [vmem:[#allocation6 + $0x6c8] sm:$0xff]
        %v5579 = vld [vmem:[#allocation6 + $0x6d0] sm:$0xff]
        %v5580 = vld [vmem:[#allocation6 + $0x6d8] sm:$0xff]
        %v5581 = vld [vmem:[#allocation6 + $0x6e0] sm:$0xff]
        %v5582 = vld [vmem:[#allocation6 + $0x6e8] sm:$0xff]
        %v5583 = vld [vmem:[#allocation6 + $0x6f0] sm:$0xff]
        %v5584 = vld [vmem:[#allocation6 + $0x6f8] sm:$0xff]
        %v5585 = vld [vmem:[#allocation6 + $0x700] sm:$0xff]
        %v5586 = vld [vmem:[#allocation6 + $0x708] sm:$0xff]
        %v5587 = vld [vmem:[#allocation6 + $0x710] sm:$0xff]
        %v5588 = vld [vmem:[#allocation6 + $0x718] sm:$0xff]
        %v5589 = vld [vmem:[#allocation6 + $0x720] sm:$0xff]
        %v5590 = vld [vmem:[#allocation6 + $0x728] sm:$0xff]
        %v5591 = vld [vmem:[#allocation6 + $0x730] sm:$0xff]
        %v5592 = vld [vmem:[#allocation6 + $0x738] sm:$0xff]
        %v5593 = vld [vmem:[#allocation6 + $0x740] sm:$0xff]
        %v5594 = vld [vmem:[#allocation6 + $0x748] sm:$0xff]
        %v5595 = vld [vmem:[#allocation6 + $0x750] sm:$0xff]
        %v5596 = vld [vmem:[#allocation6 + $0x758] sm:$0xff]
        %v5597 = vld [vmem:[#allocation6 + $0x760] sm:$0xff]
        %v5598 = vld [vmem:[#allocation6 + $0x768] sm:$0xff]
        %v5599 = vld [vmem:[#allocation6 + $0x770] sm:$0xff]
        %v5600 = vld [vmem:[#allocation6 + $0x778] sm:$0xff]
        %v5601 = vld [vmem:[#allocation6 + $0x780] sm:$0xff]
        %v5602 = vld [vmem:[#allocation6 + $0x788] sm:$0xff]
        %v5603 = vld [vmem:[#allocation6 + $0x790] sm:$0xff]
        %v5604 = vld [vmem:[#allocation6 + $0x798] sm:$0xff]
        %v5605 = vld [vmem:[#allocation6 + $0x7a0] sm:$0xff]
        %v5606 = vld [vmem:[#allocation6 + $0x7a8] sm:$0xff]
        %v5607 = vld [vmem:[#allocation6 + $0x7b0] sm:$0xff]
        %v5608 = vld [vmem:[#allocation6 + $0x7b8] sm:$0xff]
        %v5609 = vld [vmem:[#allocation6 + $0x7c0] sm:$0xff]
        %v5610 = vld [vmem:[#allocation6 + $0x7c8] sm:$0xff]
        %v5611 = vld [vmem:[#allocation6 + $0x7d0] sm:$0xff]
        %v5612 = vld [vmem:[#allocation6 + $0x7d8] sm:$0xff]
        %v5613 = vld [vmem:[#allocation6 + $0x7e0] sm:$0xff]
        %v5614 = vld [vmem:[#allocation6 + $0x7e8] sm:$0xff]
        %v5615 = vld [vmem:[#allocation6 + $0x7f0] sm:$0xff]
        %v5616 = vld [vmem:[#allocation6 + $0x7f8] sm:$0xff]
        %v5617 = vld [vmem:[#allocation6 + $0x800] sm:$0xff]
        %v5618 = vld [vmem:[#allocation6 + $0x808] sm:$0xff]
        %v5619 = vld [vmem:[#allocation6 + $0x810] sm:$0xff]
        %v5620 = vld [vmem:[#allocation6 + $0x818] sm:$0xff]
        %v5621 = vld [vmem:[#allocation6 + $0x820] sm:$0xff]
        %v5622 = vld [vmem:[#allocation6 + $0x828] sm:$0xff]
        %v5623 = vld [vmem:[#allocation6 + $0x830] sm:$0xff]
        %v5624 = vld [vmem:[#allocation6 + $0x838] sm:$0xff]
        %v5625 = vld [vmem:[#allocation6 + $0x840] sm:$0xff]
        %v5626 = vld [vmem:[#allocation6 + $0x848] sm:$0xff]
        %v5627 = vld [vmem:[#allocation6 + $0x850] sm:$0xff]
        %v5628 = vld [vmem:[#allocation6 + $0x858] sm:$0xff]
        %v5629 = vld [vmem:[#allocation6 + $0x860] sm:$0xff]
        %v5630 = vld [vmem:[#allocation6 + $0x868] sm:$0xff]
        %v5631 = vld [vmem:[#allocation6 + $0x870] sm:$0xff]
        %v5632 = vld [vmem:[#allocation6 + $0x878] sm:$0xff]
        %v5633 = vld [vmem:[#allocation6 + $0x880] sm:$0xff]
        %v5634 = vld [vmem:[#allocation6 + $0x888] sm:$0xff]
        %v5635 = vld [vmem:[#allocation6 + $0x890] sm:$0xff]
        %v5636 = vld [vmem:[#allocation6 + $0x898] sm:$0xff]
        %v5637 = vld [vmem:[#allocation6 + $0x8a0] sm:$0xff]
        %v5638 = vld [vmem:[#allocation6 + $0x8a8] sm:$0xff]
        %v5639 = vld [vmem:[#allocation6 + $0x8b0] sm:$0xff]
        %v5640 = vld [vmem:[#allocation6 + $0x8b8] sm:$0xff]
        %v5641 = vld [vmem:[#allocation6 + $0x8c0] sm:$0xff]
        %v5642 = vld [vmem:[#allocation6 + $0x8c8] sm:$0xff]
        %v5643 = vld [vmem:[#allocation6 + $0x8d0] sm:$0xff]
        %v5644 = vld [vmem:[#allocation6 + $0x8d8] sm:$0xff]
        %v5645 = vld [vmem:[#allocation6 + $0x8e0] sm:$0xff]
        %v5646 = vld [vmem:[#allocation6 + $0x8e8] sm:$0xff]
        %v5647 = vld [vmem:[#allocation6 + $0x8f0] sm:$0xff]
        %v5648 = vld [vmem:[#allocation6 + $0x8f8] sm:$0xff]
        %v5649 = vld [vmem:[#allocation6 + $0x900] sm:$0xff]
        %v5650 = vld [vmem:[#allocation6 + $0x908] sm:$0xff]
        %v5651 = vld [vmem:[#allocation6 + $0x910] sm:$0xff]
        %v5652 = vld [vmem:[#allocation6 + $0x918] sm:$0xff]
        %v5653 = vld [vmem:[#allocation6 + $0x920] sm:$0xff]
        %v5654 = vld [vmem:[#allocation6 + $0x928] sm:$0xff]
        %v5655 = vld [vmem:[#allocation6 + $0x930] sm:$0xff]
        %v5656 = vld [vmem:[#allocation6 + $0x938] sm:$0xff]
        %v5657 = vld [vmem:[#allocation6 + $0x940] sm:$0xff]
        %v5658 = vld [vmem:[#allocation6 + $0x948] sm:$0xff]
        %v5659 = vld [vmem:[#allocation6 + $0x950] sm:$0xff]
        %v5660 = vld [vmem:[#allocation6 + $0x958] sm:$0xff]
        %v5661 = vld [vmem:[#allocation6 + $0x960] sm:$0xff]
        %v5662 = vld [vmem:[#allocation6 + $0x968] sm:$0xff]
        %v5663 = vld [vmem:[#allocation6 + $0x970] sm:$0xff]
        %v5664 = vld [vmem:[#allocation6 + $0x978] sm:$0xff]
        %v5665 = vld [vmem:[#allocation6 + $0x980] sm:$0xff]
        %v5666 = vld [vmem:[#allocation6 + $0x988] sm:$0xff]
        %v5667 = vld [vmem:[#allocation6 + $0x990] sm:$0xff]
        %v5668 = vld [vmem:[#allocation6 + $0x998] sm:$0xff]
        %v5669 = vld [vmem:[#allocation6 + $0x9a0] sm:$0xff]
        %v5670 = vld [vmem:[#allocation6 + $0x9a8] sm:$0xff]
        %v5671 = vld [vmem:[#allocation6 + $0x9b0] sm:$0xff]
        %v5672 = vld [vmem:[#allocation6 + $0x9b8] sm:$0xff]
        %v5673 = vld [vmem:[#allocation6 + $0x9c0] sm:$0xff]
        %v5674 = vld [vmem:[#allocation6 + $0x9c8] sm:$0xff]
        %v5675 = vld [vmem:[#allocation6 + $0x9d0] sm:$0xff]
        %v5676 = vld [vmem:[#allocation6 + $0x9d8] sm:$0xff]
        %v5677 = vld [vmem:[#allocation6 + $0x9e0] sm:$0xff]
        %v5678 = vld [vmem:[#allocation6 + $0x9e8] sm:$0xff]
        %v5679 = vld [vmem:[#allocation6 + $0x9f0] sm:$0xff]
        %v5680 = vld [vmem:[#allocation6 + $0x9f8] sm:$0xff]
        %v5681 = vld [vmem:[#allocation7] sm:$0xf]
        %v5683 = vlaneseq
        %v5684 = vshrl.u32 %v5683, 7
        %v5685 = vsub.s32 0, %v5684
        %v5686 = vrot.slane %v5681, %v5685
        %v5687 = vlaneseq
        %v5688 = vshrl.u32 %v5687, 7
        %v5689 = vsub.s32 1, %v5688
        %v5690 = vrot.slane %v5681, %v5689
        %v5691 = vlaneseq
        %v5692 = vshrl.u32 %v5691, 7
        %v5693 = vsub.s32 2, %v5692
        %v5694 = vrot.slane %v5681, %v5693
        %v5695 = vlaneseq
        %v5696 = vshrl.u32 %v5695, 7
        %v5697 = vsub.s32 3, %v5696
        %v5698 = vrot.slane %v5681, %v5697
        %v6023 = vunpack.c.l.b16 %v5361
        %v6024 = vunpack.c.h.b16 %v5361
        %v6025 = vunpack.c.l.b16 %v5362
        %v6026 = vunpack.c.h.b16 %v5362
        %v6027 = vunpack.c.l.b16 %v5363
        %v6028 = vunpack.c.h.b16 %v5363
        %v6029 = vunpack.c.l.b16 %v5364
        %v6030 = vunpack.c.h.b16 %v5364
        %v6031 = vunpack.c.l.b16 %v5365
        %v6032 = vunpack.c.h.b16 %v5365
        %v6033 = vunpack.c.l.b16 %v5366
        %v6034 = vunpack.c.h.b16 %v5366
        %v6035 = vunpack.c.l.b16 %v5367
        %v6036 = vunpack.c.h.b16 %v5367
        %v6037 = vunpack.c.l.b16 %v5368
        %v6038 = vunpack.c.h.b16 %v5368
        %v6039 = vunpack.c.l.b16 %v5369
        %v6040 = vunpack.c.h.b16 %v5369
        %v6041 = vunpack.c.l.b16 %v5370
        %v6042 = vunpack.c.h.b16 %v5370
        %v6043 = vunpack.c.l.b16 %v5371
        %v6044 = vunpack.c.h.b16 %v5371
        %v6045 = vunpack.c.l.b16 %v5372
        %v6046 = vunpack.c.h.b16 %v5372
        %v6047 = vunpack.c.l.b16 %v5373
        %v6048 = vunpack.c.h.b16 %v5373
        %v6049 = vunpack.c.l.b16 %v5374
        %v6050 = vunpack.c.h.b16 %v5374
        %v6051 = vunpack.c.l.b16 %v5375
        %v6052 = vunpack.c.h.b16 %v5375
        %v6053 = vunpack.c.l.b16 %v5376
        %v6054 = vunpack.c.h.b16 %v5376
        %v6055 = vunpack.c.l.b16 %v5377
        %v6056 = vunpack.c.h.b16 %v5377
        %v6057 = vunpack.c.l.b16 %v5378
        %v6058 = vunpack.c.h.b16 %v5378
        %v6059 = vunpack.c.l.b16 %v5379
        %v6060 = vunpack.c.h.b16 %v5379
        %v6061 = vunpack.c.l.b16 %v5380
        %v6062 = vunpack.c.h.b16 %v5380
        %v6063 = vunpack.c.l.b16 %v5381
        %v6064 = vunpack.c.h.b16 %v5381
        %v6065 = vunpack.c.l.b16 %v5382
        %v6066 = vunpack.c.h.b16 %v5382
        %v6067 = vunpack.c.l.b16 %v5383
        %v6068 = vunpack.c.h.b16 %v5383
        %v6069 = vunpack.c.l.b16 %v5384
        %v6070 = vunpack.c.h.b16 %v5384
        %v6071 = vunpack.c.l.b16 %v5385
        %v6072 = vunpack.c.h.b16 %v5385
        %v6073 = vunpack.c.l.b16 %v5386
        %v6074 = vunpack.c.h.b16 %v5386
        %v6075 = vunpack.c.l.b16 %v5387
        %v6076 = vunpack.c.h.b16 %v5387
        %v6077 = vunpack.c.l.b16 %v5388
        %v6078 = vunpack.c.h.b16 %v5388
        %v6079 = vunpack.c.l.b16 %v5389
        %v6080 = vunpack.c.h.b16 %v5389
        %v6081 = vunpack.c.l.b16 %v5390
        %v6082 = vunpack.c.h.b16 %v5390
        %v6083 = vunpack.c.l.b16 %v5391
        %v6084 = vunpack.c.h.b16 %v5391
        %v6085 = vunpack.c.l.b16 %v5392
        %v6086 = vunpack.c.h.b16 %v5392
        %v6087 = vunpack.c.l.b16 %v5393
        %v6088 = vunpack.c.h.b16 %v5393
        %v6089 = vunpack.c.l.b16 %v5394
        %v6090 = vunpack.c.h.b16 %v5394
        %v6091 = vunpack.c.l.b16 %v5395
        %v6092 = vunpack.c.h.b16 %v5395
        %v6093 = vunpack.c.l.b16 %v5396
        %v6094 = vunpack.c.h.b16 %v5396
        %v6095 = vunpack.c.l.b16 %v5397
        %v6096 = vunpack.c.h.b16 %v5397
        %v6097 = vunpack.c.l.b16 %v5398
        %v6098 = vunpack.c.h.b16 %v5398
        %v6099 = vunpack.c.l.b16 %v5399
        %v6100 = vunpack.c.h.b16 %v5399
        %v6101 = vunpack.c.l.b16 %v5400
        %v6102 = vunpack.c.h.b16 %v5400
        %v6103 = vunpack.c.l.b16 %v5401
        %v6104 = vunpack.c.h.b16 %v5401
        %v6105 = vunpack.c.l.b16 %v5402
        %v6106 = vunpack.c.h.b16 %v5402
        %v6107 = vunpack.c.l.b16 %v5403
        %v6108 = vunpack.c.h.b16 %v5403
        %v6109 = vunpack.c.l.b16 %v5404
        %v6110 = vunpack.c.h.b16 %v5404
        %v6111 = vunpack.c.l.b16 %v5405
        %v6112 = vunpack.c.h.b16 %v5405
        %v6113 = vunpack.c.l.b16 %v5406
        %v6114 = vunpack.c.h.b16 %v5406
        %v6115 = vunpack.c.l.b16 %v5407
        %v6116 = vunpack.c.h.b16 %v5407
        %v6117 = vunpack.c.l.b16 %v5408
        %v6118 = vunpack.c.h.b16 %v5408
        %v6119 = vunpack.c.l.b16 %v5409
        %v6120 = vunpack.c.h.b16 %v5409
        %v6121 = vunpack.c.l.b16 %v5410
        %v6122 = vunpack.c.h.b16 %v5410
        %v6123 = vunpack.c.l.b16 %v5411
        %v6124 = vunpack.c.h.b16 %v5411
        %v6125 = vunpack.c.l.b16 %v5412
        %v6126 = vunpack.c.h.b16 %v5412
        %v6127 = vunpack.c.l.b16 %v5413
        %v6128 = vunpack.c.h.b16 %v5413
        %v6129 = vunpack.c.l.b16 %v5414
        %v6130 = vunpack.c.h.b16 %v5414
        %v6131 = vunpack.c.l.b16 %v5415
        %v6132 = vunpack.c.h.b16 %v5415
        %v6133 = vunpack.c.l.b16 %v5416
        %v6134 = vunpack.c.h.b16 %v5416
        %v6135 = vunpack.c.l.b16 %v5417
        %v6136 = vunpack.c.h.b16 %v5417
        %v6137 = vunpack.c.l.b16 %v5418
        %v6138 = vunpack.c.h.b16 %v5418
        %v6139 = vunpack.c.l.b16 %v5419
        %v6140 = vunpack.c.h.b16 %v5419
        %v6141 = vunpack.c.l.b16 %v5420
        %v6142 = vunpack.c.h.b16 %v5420
        %v6143 = vunpack.c.l.b16 %v5421
        %v6144 = vunpack.c.h.b16 %v5421
        %v6145 = vunpack.c.l.b16 %v5422
        %v6146 = vunpack.c.h.b16 %v5422
        %v6147 = vunpack.c.l.b16 %v5423
        %v6148 = vunpack.c.h.b16 %v5423
        %v6149 = vunpack.c.l.b16 %v5424
        %v6150 = vunpack.c.h.b16 %v5424
        %v6151 = vunpack.c.l.b16 %v5425
        %v6152 = vunpack.c.h.b16 %v5425
        %v6153 = vunpack.c.l.b16 %v5426
        %v6154 = vunpack.c.h.b16 %v5426
        %v6155 = vunpack.c.l.b16 %v5427
        %v6156 = vunpack.c.h.b16 %v5427
        %v6157 = vunpack.c.l.b16 %v5428
        %v6158 = vunpack.c.h.b16 %v5428
        %v6159 = vunpack.c.l.b16 %v5429
        %v6160 = vunpack.c.h.b16 %v5429
        %v6161 = vunpack.c.l.b16 %v5430
        %v6162 = vunpack.c.h.b16 %v5430
        %v6163 = vunpack.c.l.b16 %v5431
        %v6164 = vunpack.c.h.b16 %v5431
        %v6165 = vunpack.c.l.b16 %v5432
        %v6166 = vunpack.c.h.b16 %v5432
        %v6167 = vunpack.c.l.b16 %v5433
        %v6168 = vunpack.c.h.b16 %v5433
        %v6169 = vunpack.c.l.b16 %v5434
        %v6170 = vunpack.c.h.b16 %v5434
        %v6171 = vunpack.c.l.b16 %v5435
        %v6172 = vunpack.c.h.b16 %v5435
        %v6173 = vunpack.c.l.b16 %v5436
        %v6174 = vunpack.c.h.b16 %v5436
        %v6175 = vunpack.c.l.b16 %v5437
        %v6176 = vunpack.c.h.b16 %v5437
        %v6177 = vunpack.c.l.b16 %v5438
        %v6178 = vunpack.c.h.b16 %v5438
        %v6179 = vunpack.c.l.b16 %v5439
        %v6180 = vunpack.c.h.b16 %v5439
        %v6181 = vunpack.c.l.b16 %v5440
        %v6182 = vunpack.c.h.b16 %v5440
        %v6183 = vunpack.c.l.b16 %v5441
        %v6184 = vunpack.c.h.b16 %v5441
        %v6185 = vunpack.c.l.b16 %v5442
        %v6186 = vunpack.c.h.b16 %v5442
        %v6187 = vunpack.c.l.b16 %v5443
        %v6188 = vunpack.c.h.b16 %v5443
        %v6189 = vunpack.c.l.b16 %v5444
        %v6190 = vunpack.c.h.b16 %v5444
        %v6191 = vunpack.c.l.b16 %v5445
        %v6192 = vunpack.c.h.b16 %v5445
        %v6193 = vunpack.c.l.b16 %v5446
        %v6194 = vunpack.c.h.b16 %v5446
        %v6195 = vunpack.c.l.b16 %v5447
        %v6196 = vunpack.c.h.b16 %v5447
        %v6197 = vunpack.c.l.b16 %v5448
        %v6198 = vunpack.c.h.b16 %v5448
        %v6199 = vunpack.c.l.b16 %v5449
        %v6200 = vunpack.c.h.b16 %v5449
        %v6201 = vunpack.c.l.b16 %v5450
        %v6202 = vunpack.c.h.b16 %v5450
        %v6203 = vunpack.c.l.b16 %v5451
        %v6204 = vunpack.c.h.b16 %v5451
        %v6205 = vunpack.c.l.b16 %v5452
        %v6206 = vunpack.c.h.b16 %v5452
        %v6207 = vunpack.c.l.b16 %v5453
        %v6208 = vunpack.c.h.b16 %v5453
        %v6209 = vunpack.c.l.b16 %v5454
        %v6210 = vunpack.c.h.b16 %v5454
        %v6211 = vunpack.c.l.b16 %v5455
        %v6212 = vunpack.c.h.b16 %v5455
        %v6213 = vunpack.c.l.b16 %v5456
        %v6214 = vunpack.c.h.b16 %v5456
        %v6215 = vunpack.c.l.b16 %v5457
        %v6216 = vunpack.c.h.b16 %v5457
        %v6217 = vunpack.c.l.b16 %v5458
        %v6218 = vunpack.c.h.b16 %v5458
        %v6219 = vunpack.c.l.b16 %v5459
        %v6220 = vunpack.c.h.b16 %v5459
        %v6221 = vunpack.c.l.b16 %v5460
        %v6222 = vunpack.c.h.b16 %v5460
        %v6223 = vunpack.c.l.b16 %v5461
        %v6224 = vunpack.c.h.b16 %v5461
        %v6225 = vunpack.c.l.b16 %v5462
        %v6226 = vunpack.c.h.b16 %v5462
        %v6227 = vunpack.c.l.b16 %v5463
        %v6228 = vunpack.c.h.b16 %v5463
        %v6229 = vunpack.c.l.b16 %v5464
        %v6230 = vunpack.c.h.b16 %v5464
        %v6231 = vunpack.c.l.b16 %v5465
        %v6232 = vunpack.c.h.b16 %v5465
        %v6233 = vunpack.c.l.b16 %v5466
        %v6234 = vunpack.c.h.b16 %v5466
        %v6235 = vunpack.c.l.b16 %v5467
        %v6236 = vunpack.c.h.b16 %v5467
        %v6237 = vunpack.c.l.b16 %v5468
        %v6238 = vunpack.c.h.b16 %v5468
        %v6239 = vunpack.c.l.b16 %v5469
        %v6240 = vunpack.c.h.b16 %v5469
        %v6241 = vunpack.c.l.b16 %v5470
        %v6242 = vunpack.c.h.b16 %v5470
        %v6243 = vunpack.c.l.b16 %v5471
        %v6244 = vunpack.c.h.b16 %v5471
        %v6245 = vunpack.c.l.b16 %v5472
        %v6246 = vunpack.c.h.b16 %v5472
        %v6247 = vunpack.c.l.b16 %v5473
        %v6248 = vunpack.c.h.b16 %v5473
        %v6249 = vunpack.c.l.b16 %v5474
        %v6250 = vunpack.c.h.b16 %v5474
        %v6251 = vunpack.c.l.b16 %v5475
        %v6252 = vunpack.c.h.b16 %v5475
        %v6253 = vunpack.c.l.b16 %v5476
        %v6254 = vunpack.c.h.b16 %v5476
        %v6255 = vunpack.c.l.b16 %v5477
        %v6256 = vunpack.c.h.b16 %v5477
        %v6257 = vunpack.c.l.b16 %v5478
        %v6258 = vunpack.c.h.b16 %v5478
        %v6259 = vunpack.c.l.b16 %v5479
        %v6260 = vunpack.c.h.b16 %v5479
        %v6261 = vunpack.c.l.b16 %v5480
        %v6262 = vunpack.c.h.b16 %v5480
        %v6263 = vunpack.c.l.b16 %v5481
        %v6264 = vunpack.c.h.b16 %v5481
        %v6265 = vunpack.c.l.b16 %v5482
        %v6266 = vunpack.c.h.b16 %v5482
        %v6267 = vunpack.c.l.b16 %v5483
        %v6268 = vunpack.c.h.b16 %v5483
        %v6269 = vunpack.c.l.b16 %v5484
        %v6270 = vunpack.c.h.b16 %v5484
        %v6271 = vunpack.c.l.b16 %v5485
        %v6272 = vunpack.c.h.b16 %v5485
        %v6273 = vunpack.c.l.b16 %v5486
        %v6274 = vunpack.c.h.b16 %v5486
        %v6275 = vunpack.c.l.b16 %v5487
        %v6276 = vunpack.c.h.b16 %v5487
        %v6277 = vunpack.c.l.b16 %v5488
        %v6278 = vunpack.c.h.b16 %v5488
        %v6279 = vunpack.c.l.b16 %v5489
        %v6280 = vunpack.c.h.b16 %v5489
        %v6281 = vunpack.c.l.b16 %v5490
        %v6282 = vunpack.c.h.b16 %v5490
        %v6283 = vunpack.c.l.b16 %v5491
        %v6284 = vunpack.c.h.b16 %v5491
        %v6285 = vunpack.c.l.b16 %v5492
        %v6286 = vunpack.c.h.b16 %v5492
        %v6287 = vunpack.c.l.b16 %v5493
        %v6288 = vunpack.c.h.b16 %v5493
        %v6289 = vunpack.c.l.b16 %v5494
        %v6290 = vunpack.c.h.b16 %v5494
        %v6291 = vunpack.c.l.b16 %v5495
        %v6292 = vunpack.c.h.b16 %v5495
        %v6293 = vunpack.c.l.b16 %v5496
        %v6294 = vunpack.c.h.b16 %v5496
        %v6295 = vunpack.c.l.b16 %v5497
        %v6296 = vunpack.c.h.b16 %v5497
        %v6297 = vunpack.c.l.b16 %v5498
        %v6298 = vunpack.c.h.b16 %v5498
        %v6299 = vunpack.c.l.b16 %v5499
        %v6300 = vunpack.c.h.b16 %v5499
        %v6301 = vunpack.c.l.b16 %v5500
        %v6302 = vunpack.c.h.b16 %v5500
        %v6303 = vunpack.c.l.b16 %v5501
        %v6304 = vunpack.c.h.b16 %v5501
        %v6305 = vunpack.c.l.b16 %v5502
        %v6306 = vunpack.c.h.b16 %v5502
        %v6307 = vunpack.c.l.b16 %v5503
        %v6308 = vunpack.c.h.b16 %v5503
        %v6309 = vunpack.c.l.b16 %v5504
        %v6310 = vunpack.c.h.b16 %v5504
        %v6311 = vunpack.c.l.b16 %v5505
        %v6312 = vunpack.c.h.b16 %v5505
        %v6313 = vunpack.c.l.b16 %v5506
        %v6314 = vunpack.c.h.b16 %v5506
        %v6315 = vunpack.c.l.b16 %v5507
        %v6316 = vunpack.c.h.b16 %v5507
        %v6317 = vunpack.c.l.b16 %v5508
        %v6318 = vunpack.c.h.b16 %v5508
        %v6319 = vunpack.c.l.b16 %v5509
        %v6320 = vunpack.c.h.b16 %v5509
        %v6321 = vunpack.c.l.b16 %v5510
        %v6322 = vunpack.c.h.b16 %v5510
        %v6323 = vunpack.c.l.b16 %v5511
        %v6324 = vunpack.c.h.b16 %v5511
        %v6325 = vunpack.c.l.b16 %v5512
        %v6326 = vunpack.c.h.b16 %v5512
        %v6327 = vunpack.c.l.b16 %v5513
        %v6328 = vunpack.c.h.b16 %v5513
        %v6329 = vunpack.c.l.b16 %v5514
        %v6330 = vunpack.c.h.b16 %v5514
        %v6331 = vunpack.c.l.b16 %v5515
        %v6332 = vunpack.c.h.b16 %v5515
        %v6333 = vunpack.c.l.b16 %v5516
        %v6334 = vunpack.c.h.b16 %v5516
        %v6335 = vunpack.c.l.b16 %v5517
        %v6336 = vunpack.c.h.b16 %v5517
        %v6337 = vunpack.c.l.b16 %v5518
        %v6338 = vunpack.c.h.b16 %v5518
        %v6339 = vunpack.c.l.b16 %v5519
        %v6340 = vunpack.c.h.b16 %v5519
        %v6341 = vunpack.c.l.b16 %v5520
        %v6342 = vunpack.c.h.b16 %v5520
        %v6343 = vunpack.c.l.b16 %v5521
        %v6344 = vunpack.c.h.b16 %v5521
        %v6345 = vunpack.c.l.b16 %v5522
        %v6346 = vunpack.c.h.b16 %v5522
        %v6347 = vunpack.c.l.b16 %v5523
        %v6348 = vunpack.c.h.b16 %v5523
        %v6349 = vunpack.c.l.b16 %v5524
        %v6350 = vunpack.c.h.b16 %v5524
        %v6351 = vunpack.c.l.b16 %v5525
        %v6352 = vunpack.c.h.b16 %v5525
        %v6353 = vunpack.c.l.b16 %v5526
        %v6354 = vunpack.c.h.b16 %v5526
        %v6355 = vunpack.c.l.b16 %v5527
        %v6356 = vunpack.c.h.b16 %v5527
        %v6357 = vunpack.c.l.b16 %v5528
        %v6358 = vunpack.c.h.b16 %v5528
        %v6359 = vunpack.c.l.b16 %v5529
        %v6360 = vunpack.c.h.b16 %v5529
        %v6361 = vunpack.c.l.b16 %v5530
        %v6362 = vunpack.c.h.b16 %v5530
        %v6363 = vunpack.c.l.b16 %v5531
        %v6364 = vunpack.c.h.b16 %v5531
        %v6365 = vunpack.c.l.b16 %v5532
        %v6366 = vunpack.c.h.b16 %v5532
        %v6367 = vunpack.c.l.b16 %v5533
        %v6368 = vunpack.c.h.b16 %v5533
        %v6369 = vunpack.c.l.b16 %v5534
        %v6370 = vunpack.c.h.b16 %v5534
        %v6371 = vunpack.c.l.b16 %v5535
        %v6372 = vunpack.c.h.b16 %v5535
        %v6373 = vunpack.c.l.b16 %v5536
        %v6374 = vunpack.c.h.b16 %v5536
        %v6375 = vunpack.c.l.b16 %v5537
        %v6376 = vunpack.c.h.b16 %v5537
        %v6377 = vunpack.c.l.b16 %v5538
        %v6378 = vunpack.c.h.b16 %v5538
        %v6379 = vunpack.c.l.b16 %v5539
        %v6380 = vunpack.c.h.b16 %v5539
        %v6381 = vunpack.c.l.b16 %v5540
        %v6382 = vunpack.c.h.b16 %v5540
        %v6383 = vunpack.c.l.b16 %v5541
        %v6384 = vunpack.c.h.b16 %v5541
        %v6385 = vunpack.c.l.b16 %v5542
        %v6386 = vunpack.c.h.b16 %v5542
        %v6387 = vunpack.c.l.b16 %v5543
        %v6388 = vunpack.c.h.b16 %v5543
        %v6389 = vunpack.c.l.b16 %v5544
        %v6390 = vunpack.c.h.b16 %v5544
        %v6391 = vunpack.c.l.b16 %v5545
        %v6392 = vunpack.c.h.b16 %v5545
        %v6393 = vunpack.c.l.b16 %v5546
        %v6394 = vunpack.c.h.b16 %v5546
        %v6395 = vunpack.c.l.b16 %v5547
        %v6396 = vunpack.c.h.b16 %v5547
        %v6397 = vunpack.c.l.b16 %v5548
        %v6398 = vunpack.c.h.b16 %v5548
        %v6399 = vunpack.c.l.b16 %v5549
        %v6400 = vunpack.c.h.b16 %v5549
        %v6401 = vunpack.c.l.b16 %v5550
        %v6402 = vunpack.c.h.b16 %v5550
        %v6403 = vunpack.c.l.b16 %v5551
        %v6404 = vunpack.c.h.b16 %v5551
        %v6405 = vunpack.c.l.b16 %v5552
        %v6406 = vunpack.c.h.b16 %v5552
        %v6407 = vunpack.c.l.b16 %v5553
        %v6408 = vunpack.c.h.b16 %v5553
        %v6409 = vunpack.c.l.b16 %v5554
        %v6410 = vunpack.c.h.b16 %v5554
        %v6411 = vunpack.c.l.b16 %v5555
        %v6412 = vunpack.c.h.b16 %v5555
        %v6413 = vunpack.c.l.b16 %v5556
        %v6414 = vunpack.c.h.b16 %v5556
        %v6415 = vunpack.c.l.b16 %v5557
        %v6416 = vunpack.c.h.b16 %v5557
        %v6417 = vunpack.c.l.b16 %v5558
        %v6418 = vunpack.c.h.b16 %v5558
        %v6419 = vunpack.c.l.b16 %v5559
        %v6420 = vunpack.c.h.b16 %v5559
        %v6421 = vunpack.c.l.b16 %v5560
        %v6422 = vunpack.c.h.b16 %v5560
        %v6423 = vunpack.c.l.b16 %v5561
        %v6424 = vunpack.c.h.b16 %v5561
        %v6425 = vunpack.c.l.b16 %v5562
        %v6426 = vunpack.c.h.b16 %v5562
        %v6427 = vunpack.c.l.b16 %v5563
        %v6428 = vunpack.c.h.b16 %v5563
        %v6429 = vunpack.c.l.b16 %v5564
        %v6430 = vunpack.c.h.b16 %v5564
        %v6431 = vunpack.c.l.b16 %v5565
        %v6432 = vunpack.c.h.b16 %v5565
        %v6433 = vunpack.c.l.b16 %v5566
        %v6434 = vunpack.c.h.b16 %v5566
        %v6435 = vunpack.c.l.b16 %v5567
        %v6436 = vunpack.c.h.b16 %v5567
        %v6437 = vunpack.c.l.b16 %v5568
        %v6438 = vunpack.c.h.b16 %v5568
        %v6439 = vunpack.c.l.b16 %v5569
        %v6440 = vunpack.c.h.b16 %v5569
        %v6441 = vunpack.c.l.b16 %v5570
        %v6442 = vunpack.c.h.b16 %v5570
        %v6443 = vunpack.c.l.b16 %v5571
        %v6444 = vunpack.c.h.b16 %v5571
        %v6445 = vunpack.c.l.b16 %v5572
        %v6446 = vunpack.c.h.b16 %v5572
        %v6447 = vunpack.c.l.b16 %v5573
        %v6448 = vunpack.c.h.b16 %v5573
        %v6449 = vunpack.c.l.b16 %v5574
        %v6450 = vunpack.c.h.b16 %v5574
        %v6451 = vunpack.c.l.b16 %v5575
        %v6452 = vunpack.c.h.b16 %v5575
        %v6453 = vunpack.c.l.b16 %v5576
        %v6454 = vunpack.c.h.b16 %v5576
        %v6455 = vunpack.c.l.b16 %v5577
        %v6456 = vunpack.c.h.b16 %v5577
        %v6457 = vunpack.c.l.b16 %v5578
        %v6458 = vunpack.c.h.b16 %v5578
        %v6459 = vunpack.c.l.b16 %v5579
        %v6460 = vunpack.c.h.b16 %v5579
        %v6461 = vunpack.c.l.b16 %v5580
        %v6462 = vunpack.c.h.b16 %v5580
        %v6463 = vunpack.c.l.b16 %v5581
        %v6464 = vunpack.c.h.b16 %v5581
        %v6465 = vunpack.c.l.b16 %v5582
        %v6466 = vunpack.c.h.b16 %v5582
        %v6467 = vunpack.c.l.b16 %v5583
        %v6468 = vunpack.c.h.b16 %v5583
        %v6469 = vunpack.c.l.b16 %v5584
        %v6470 = vunpack.c.h.b16 %v5584
        %v6471 = vunpack.c.l.b16 %v5585
        %v6472 = vunpack.c.h.b16 %v5585
        %v6473 = vunpack.c.l.b16 %v5586
        %v6474 = vunpack.c.h.b16 %v5586
        %v6475 = vunpack.c.l.b16 %v5587
        %v6476 = vunpack.c.h.b16 %v5587
        %v6477 = vunpack.c.l.b16 %v5588
        %v6478 = vunpack.c.h.b16 %v5588
        %v6479 = vunpack.c.l.b16 %v5589
        %v6480 = vunpack.c.h.b16 %v5589
        %v6481 = vunpack.c.l.b16 %v5590
        %v6482 = vunpack.c.h.b16 %v5590
        %v6483 = vunpack.c.l.b16 %v5591
        %v6484 = vunpack.c.h.b16 %v5591
        %v6485 = vunpack.c.l.b16 %v5592
        %v6486 = vunpack.c.h.b16 %v5592
        %v6487 = vunpack.c.l.b16 %v5593
        %v6488 = vunpack.c.h.b16 %v5593
        %v6489 = vunpack.c.l.b16 %v5594
        %v6490 = vunpack.c.h.b16 %v5594
        %v6491 = vunpack.c.l.b16 %v5595
        %v6492 = vunpack.c.h.b16 %v5595
        %v6493 = vunpack.c.l.b16 %v5596
        %v6494 = vunpack.c.h.b16 %v5596
        %v6495 = vunpack.c.l.b16 %v5597
        %v6496 = vunpack.c.h.b16 %v5597
        %v6497 = vunpack.c.l.b16 %v5598
        %v6498 = vunpack.c.h.b16 %v5598
        %v6499 = vunpack.c.l.b16 %v5599
        %v6500 = vunpack.c.h.b16 %v5599
        %v6501 = vunpack.c.l.b16 %v5600
        %v6502 = vunpack.c.h.b16 %v5600
        %v6503 = vunpack.c.l.b16 %v5601
        %v6504 = vunpack.c.h.b16 %v5601
        %v6505 = vunpack.c.l.b16 %v5602
        %v6506 = vunpack.c.h.b16 %v5602
        %v6507 = vunpack.c.l.b16 %v5603
        %v6508 = vunpack.c.h.b16 %v5603
        %v6509 = vunpack.c.l.b16 %v5604
        %v6510 = vunpack.c.h.b16 %v5604
        %v6511 = vunpack.c.l.b16 %v5605
        %v6512 = vunpack.c.h.b16 %v5605
        %v6513 = vunpack.c.l.b16 %v5606
        %v6514 = vunpack.c.h.b16 %v5606
        %v6515 = vunpack.c.l.b16 %v5607
        %v6516 = vunpack.c.h.b16 %v5607
        %v6517 = vunpack.c.l.b16 %v5608
        %v6518 = vunpack.c.h.b16 %v5608
        %v6519 = vunpack.c.l.b16 %v5609
        %v6520 = vunpack.c.h.b16 %v5609
        %v6521 = vunpack.c.l.b16 %v5610
        %v6522 = vunpack.c.h.b16 %v5610
        %v6523 = vunpack.c.l.b16 %v5611
        %v6524 = vunpack.c.h.b16 %v5611
        %v6525 = vunpack.c.l.b16 %v5612
        %v6526 = vunpack.c.h.b16 %v5612
        %v6527 = vunpack.c.l.b16 %v5613
        %v6528 = vunpack.c.h.b16 %v5613
        %v6529 = vunpack.c.l.b16 %v5614
        %v6530 = vunpack.c.h.b16 %v5614
        %v6531 = vunpack.c.l.b16 %v5615
        %v6532 = vunpack.c.h.b16 %v5615
        %v6533 = vunpack.c.l.b16 %v5616
        %v6534 = vunpack.c.h.b16 %v5616
        %v6535 = vunpack.c.l.b16 %v5617
        %v6536 = vunpack.c.h.b16 %v5617
        %v6537 = vunpack.c.l.b16 %v5618
        %v6538 = vunpack.c.h.b16 %v5618
        %v6539 = vunpack.c.l.b16 %v5619
        %v6540 = vunpack.c.h.b16 %v5619
        %v6541 = vunpack.c.l.b16 %v5620
        %v6542 = vunpack.c.h.b16 %v5620
        %v6543 = vunpack.c.l.b16 %v5621
        %v6544 = vunpack.c.h.b16 %v5621
        %v6545 = vunpack.c.l.b16 %v5622
        %v6546 = vunpack.c.h.b16 %v5622
        %v6547 = vunpack.c.l.b16 %v5623
        %v6548 = vunpack.c.h.b16 %v5623
        %v6549 = vunpack.c.l.b16 %v5624
        %v6550 = vunpack.c.h.b16 %v5624
        %v6551 = vunpack.c.l.b16 %v5625
        %v6552 = vunpack.c.h.b16 %v5625
        %v6553 = vunpack.c.l.b16 %v5626
        %v6554 = vunpack.c.h.b16 %v5626
        %v6555 = vunpack.c.l.b16 %v5627
        %v6556 = vunpack.c.h.b16 %v5627
        %v6557 = vunpack.c.l.b16 %v5628
        %v6558 = vunpack.c.h.b16 %v5628
        %v6559 = vunpack.c.l.b16 %v5629
        %v6560 = vunpack.c.h.b16 %v5629
        %v6561 = vunpack.c.l.b16 %v5630
        %v6562 = vunpack.c.h.b16 %v5630
        %v6563 = vunpack.c.l.b16 %v5631
        %v6564 = vunpack.c.h.b16 %v5631
        %v6565 = vunpack.c.l.b16 %v5632
        %v6566 = vunpack.c.h.b16 %v5632
        %v6567 = vunpack.c.l.b16 %v5633
        %v6568 = vunpack.c.h.b16 %v5633
        %v6569 = vunpack.c.l.b16 %v5634
        %v6570 = vunpack.c.h.b16 %v5634
        %v6571 = vunpack.c.l.b16 %v5635
        %v6572 = vunpack.c.h.b16 %v5635
        %v6573 = vunpack.c.l.b16 %v5636
        %v6574 = vunpack.c.h.b16 %v5636
        %v6575 = vunpack.c.l.b16 %v5637
        %v6576 = vunpack.c.h.b16 %v5637
        %v6577 = vunpack.c.l.b16 %v5638
        %v6578 = vunpack.c.h.b16 %v5638
        %v6579 = vunpack.c.l.b16 %v5639
        %v6580 = vunpack.c.h.b16 %v5639
        %v6581 = vunpack.c.l.b16 %v5640
        %v6582 = vunpack.c.h.b16 %v5640
        %v6583 = vunpack.c.l.b16 %v5641
        %v6584 = vunpack.c.h.b16 %v5641
        %v6585 = vunpack.c.l.b16 %v5642
        %v6586 = vunpack.c.h.b16 %v5642
        %v6587 = vunpack.c.l.b16 %v5643
        %v6588 = vunpack.c.h.b16 %v5643
        %v6589 = vunpack.c.l.b16 %v5644
        %v6590 = vunpack.c.h.b16 %v5644
        %v6591 = vunpack.c.l.b16 %v5645
        %v6592 = vunpack.c.h.b16 %v5645
        %v6593 = vunpack.c.l.b16 %v5646
        %v6594 = vunpack.c.h.b16 %v5646
        %v6595 = vunpack.c.l.b16 %v5647
        %v6596 = vunpack.c.h.b16 %v5647
        %v6597 = vunpack.c.l.b16 %v5648
        %v6598 = vunpack.c.h.b16 %v5648
        %v6599 = vunpack.c.l.b16 %v5649
        %v6600 = vunpack.c.h.b16 %v5649
        %v6601 = vunpack.c.l.b16 %v5650
        %v6602 = vunpack.c.h.b16 %v5650
        %v6603 = vunpack.c.l.b16 %v5651
        %v6604 = vunpack.c.h.b16 %v5651
        %v6605 = vunpack.c.l.b16 %v5652
        %v6606 = vunpack.c.h.b16 %v5652
        %v6607 = vunpack.c.l.b16 %v5653
        %v6608 = vunpack.c.h.b16 %v5653
        %v6609 = vunpack.c.l.b16 %v5654
        %v6610 = vunpack.c.h.b16 %v5654
        %v6611 = vunpack.c.l.b16 %v5655
        %v6612 = vunpack.c.h.b16 %v5655
        %v6613 = vunpack.c.l.b16 %v5656
        %v6614 = vunpack.c.h.b16 %v5656
        %v6615 = vunpack.c.l.b16 %v5657
        %v6616 = vunpack.c.h.b16 %v5657
        %v6617 = vunpack.c.l.b16 %v5658
        %v6618 = vunpack.c.h.b16 %v5658
        %v6619 = vunpack.c.l.b16 %v5659
        %v6620 = vunpack.c.h.b16 %v5659
        %v6621 = vunpack.c.l.b16 %v5660
        %v6622 = vunpack.c.h.b16 %v5660
        %v6623 = vunpack.c.l.b16 %v5661
        %v6624 = vunpack.c.h.b16 %v5661
        %v6625 = vunpack.c.l.b16 %v5662
        %v6626 = vunpack.c.h.b16 %v5662
        %v6627 = vunpack.c.l.b16 %v5663
        %v6628 = vunpack.c.h.b16 %v5663
        %v6629 = vunpack.c.l.b16 %v5664
        %v6630 = vunpack.c.h.b16 %v5664
        %v6631 = vunpack.c.l.b16 %v5665
        %v6632 = vunpack.c.h.b16 %v5665
        %v6633 = vunpack.c.l.b16 %v5666
        %v6634 = vunpack.c.h.b16 %v5666
        %v6635 = vunpack.c.l.b16 %v5667
        %v6636 = vunpack.c.h.b16 %v5667
        %v6637 = vunpack.c.l.b16 %v5668
        %v6638 = vunpack.c.h.b16 %v5668
        %v6639 = vunpack.c.l.b16 %v5669
        %v6640 = vunpack.c.h.b16 %v5669
        %v6641 = vunpack.c.l.b16 %v5670
        %v6642 = vunpack.c.h.b16 %v5670
        %v6643 = vunpack.c.l.b16 %v5671
        %v6644 = vunpack.c.h.b16 %v5671
        %v6645 = vunpack.c.l.b16 %v5672
        %v6646 = vunpack.c.h.b16 %v5672
        %v6647 = vunpack.c.l.b16 %v5673
        %v6648 = vunpack.c.h.b16 %v5673
        %v6649 = vunpack.c.l.b16 %v5674
        %v6650 = vunpack.c.h.b16 %v5674
        %v6651 = vunpack.c.l.b16 %v5675
        %v6652 = vunpack.c.h.b16 %v5675
        %v6653 = vunpack.c.l.b16 %v5676
        %v6654 = vunpack.c.h.b16 %v5676
        %v6655 = vunpack.c.l.b16 %v5677
        %v6656 = vunpack.c.h.b16 %v5677
        %v6657 = vunpack.c.l.b16 %v5678
        %v6658 = vunpack.c.h.b16 %v5678
        %v6659 = vunpack.c.l.b16 %v5679
        %v6660 = vunpack.c.h.b16 %v5679
        %v6661 = vunpack.c.l.b16 %v5680
        %v6662 = vunpack.c.h.b16 %v5680
        %v6663 = vpack.c.b16 %v6027, %v6023
        %v6664 = vpack.c.b16 %v6028, %v6024
        %v6665 = vpack.c.b16 %v6029, %v6025
        %v6666 = vpack.c.b16 %v6030, %v6026
        %v6667 = vpack.c.b16 %v6035, %v6031
        %v6668 = vpack.c.b16 %v6036, %v6032
        %v6669 = vpack.c.b16 %v6037, %v6033
        %v6670 = vpack.c.b16 %v6038, %v6034
        %v6671 = vpack.c.b16 %v6043, %v6039
        %v6672 = vpack.c.b16 %v6044, %v6040
        %v6673 = vpack.c.b16 %v6045, %v6041
        %v6674 = vpack.c.b16 %v6046, %v6042
        %v6675 = vpack.c.b16 %v6051, %v6047
        %v6676 = vpack.c.b16 %v6052, %v6048
        %v6677 = vpack.c.b16 %v6053, %v6049
        %v6678 = vpack.c.b16 %v6054, %v6050
        %v6679 = vpack.c.b16 %v6059, %v6055
        %v6680 = vpack.c.b16 %v6060, %v6056
        %v6681 = vpack.c.b16 %v6061, %v6057
        %v6682 = vpack.c.b16 %v6062, %v6058
        %v6683 = vpack.c.b16 %v6067, %v6063
        %v6684 = vpack.c.b16 %v6068, %v6064
        %v6685 = vpack.c.b16 %v6069, %v6065
        %v6686 = vpack.c.b16 %v6070, %v6066
        %v6687 = vpack.c.b16 %v6075, %v6071
        %v6688 = vpack.c.b16 %v6076, %v6072
        %v6689 = vpack.c.b16 %v6077, %v6073
        %v6690 = vpack.c.b16 %v6078, %v6074
        %v6691 = vpack.c.b16 %v6083, %v6079
        %v6692 = vpack.c.b16 %v6084, %v6080
        %v6693 = vpack.c.b16 %v6085, %v6081
        %v6694 = vpack.c.b16 %v6086, %v6082
        %v6695 = vpack.c.b16 %v6091, %v6087
        %v6696 = vpack.c.b16 %v6092, %v6088
        %v6697 = vpack.c.b16 %v6093, %v6089
        %v6698 = vpack.c.b16 %v6094, %v6090
        %v6699 = vpack.c.b16 %v6099, %v6095
        %v6700 = vpack.c.b16 %v6100, %v6096
        %v6701 = vpack.c.b16 %v6101, %v6097
        %v6702 = vpack.c.b16 %v6102, %v6098
        %v6703 = vpack.c.b16 %v6107, %v6103
        %v6704 = vpack.c.b16 %v6108, %v6104
        %v6705 = vpack.c.b16 %v6109, %v6105
        %v6706 = vpack.c.b16 %v6110, %v6106
        %v6707 = vpack.c.b16 %v6115, %v6111
        %v6708 = vpack.c.b16 %v6116, %v6112
        %v6709 = vpack.c.b16 %v6117, %v6113
        %v6710 = vpack.c.b16 %v6118, %v6114
        %v6711 = vpack.c.b16 %v6123, %v6119
        %v6712 = vpack.c.b16 %v6124, %v6120
        %v6713 = vpack.c.b16 %v6125, %v6121
        %v6714 = vpack.c.b16 %v6126, %v6122
        %v6715 = vpack.c.b16 %v6131, %v6127
        %v6716 = vpack.c.b16 %v6132, %v6128
        %v6717 = vpack.c.b16 %v6133, %v6129
        %v6718 = vpack.c.b16 %v6134, %v6130
        %v6719 = vpack.c.b16 %v6139, %v6135
        %v6720 = vpack.c.b16 %v6140, %v6136
        %v6721 = vpack.c.b16 %v6141, %v6137
        %v6722 = vpack.c.b16 %v6142, %v6138
        %v6723 = vpack.c.b16 %v6147, %v6143
        %v6724 = vpack.c.b16 %v6148, %v6144
        %v6725 = vpack.c.b16 %v6149, %v6145
        %v6726 = vpack.c.b16 %v6150, %v6146
        %v6727 = vpack.c.b16 %v6155, %v6151
        %v6728 = vpack.c.b16 %v6156, %v6152
        %v6729 = vpack.c.b16 %v6157, %v6153
        %v6730 = vpack.c.b16 %v6158, %v6154
        %v6731 = vpack.c.b16 %v6163, %v6159
        %v6732 = vpack.c.b16 %v6164, %v6160
        %v6733 = vpack.c.b16 %v6165, %v6161
        %v6734 = vpack.c.b16 %v6166, %v6162
        %v6735 = vpack.c.b16 %v6171, %v6167
        %v6736 = vpack.c.b16 %v6172, %v6168
        %v6737 = vpack.c.b16 %v6173, %v6169
        %v6738 = vpack.c.b16 %v6174, %v6170
        %v6739 = vpack.c.b16 %v6179, %v6175
        %v6740 = vpack.c.b16 %v6180, %v6176
        %v6741 = vpack.c.b16 %v6181, %v6177
        %v6742 = vpack.c.b16 %v6182, %v6178
        %v6743 = vpack.c.b16 %v6187, %v6183
        %v6744 = vpack.c.b16 %v6188, %v6184
        %v6745 = vpack.c.b16 %v6189, %v6185
        %v6746 = vpack.c.b16 %v6190, %v6186
        %v6747 = vpack.c.b16 %v6195, %v6191
        %v6748 = vpack.c.b16 %v6196, %v6192
        %v6749 = vpack.c.b16 %v6197, %v6193
        %v6750 = vpack.c.b16 %v6198, %v6194
        %v6751 = vpack.c.b16 %v6203, %v6199
        %v6752 = vpack.c.b16 %v6204, %v6200
        %v6753 = vpack.c.b16 %v6205, %v6201
        %v6754 = vpack.c.b16 %v6206, %v6202
        %v6755 = vpack.c.b16 %v6211, %v6207
        %v6756 = vpack.c.b16 %v6212, %v6208
        %v6757 = vpack.c.b16 %v6213, %v6209
        %v6758 = vpack.c.b16 %v6214, %v6210
        %v6759 = vpack.c.b16 %v6219, %v6215
        %v6760 = vpack.c.b16 %v6220, %v6216
        %v6761 = vpack.c.b16 %v6221, %v6217
        %v6762 = vpack.c.b16 %v6222, %v6218
        %v6763 = vpack.c.b16 %v6227, %v6223
        %v6764 = vpack.c.b16 %v6228, %v6224
        %v6765 = vpack.c.b16 %v6229, %v6225
        %v6766 = vpack.c.b16 %v6230, %v6226
        %v6767 = vpack.c.b16 %v6235, %v6231
        %v6768 = vpack.c.b16 %v6236, %v6232
        %v6769 = vpack.c.b16 %v6237, %v6233
        %v6770 = vpack.c.b16 %v6238, %v6234
        %v6771 = vpack.c.b16 %v6243, %v6239
        %v6772 = vpack.c.b16 %v6244, %v6240
        %v6773 = vpack.c.b16 %v6245, %v6241
        %v6774 = vpack.c.b16 %v6246, %v6242
        %v6775 = vpack.c.b16 %v6251, %v6247
        %v6776 = vpack.c.b16 %v6252, %v6248
        %v6777 = vpack.c.b16 %v6253, %v6249
        %v6778 = vpack.c.b16 %v6254, %v6250
        %v6779 = vpack.c.b16 %v6259, %v6255
        %v6780 = vpack.c.b16 %v6260, %v6256
        %v6781 = vpack.c.b16 %v6261, %v6257
        %v6782 = vpack.c.b16 %v6262, %v6258
        %v6783 = vpack.c.b16 %v6267, %v6263
        %v6784 = vpack.c.b16 %v6268, %v6264
        %v6785 = vpack.c.b16 %v6269, %v6265
        %v6786 = vpack.c.b16 %v6270, %v6266
        %v6787 = vpack.c.b16 %v6275, %v6271
        %v6788 = vpack.c.b16 %v6276, %v6272
        %v6789 = vpack.c.b16 %v6277, %v6273
        %v6790 = vpack.c.b16 %v6278, %v6274
        %v6791 = vpack.c.b16 %v6283, %v6279
        %v6792 = vpack.c.b16 %v6284, %v6280
        %v6793 = vpack.c.b16 %v6285, %v6281
        %v6794 = vpack.c.b16 %v6286, %v6282
        %v6795 = vpack.c.b16 %v6291, %v6287
        %v6796 = vpack.c.b16 %v6292, %v6288
        %v6797 = vpack.c.b16 %v6293, %v6289
        %v6798 = vpack.c.b16 %v6294, %v6290
        %v6799 = vpack.c.b16 %v6299, %v6295
        %v6800 = vpack.c.b16 %v6300, %v6296
        %v6801 = vpack.c.b16 %v6301, %v6297
        %v6802 = vpack.c.b16 %v6302, %v6298
        %v6803 = vpack.c.b16 %v6307, %v6303
        %v6804 = vpack.c.b16 %v6308, %v6304
        %v6805 = vpack.c.b16 %v6309, %v6305
        %v6806 = vpack.c.b16 %v6310, %v6306
        %v6807 = vpack.c.b16 %v6315, %v6311
        %v6808 = vpack.c.b16 %v6316, %v6312
        %v6809 = vpack.c.b16 %v6317, %v6313
        %v6810 = vpack.c.b16 %v6318, %v6314
        %v6811 = vpack.c.b16 %v6323, %v6319
        %v6812 = vpack.c.b16 %v6324, %v6320
        %v6813 = vpack.c.b16 %v6325, %v6321
        %v6814 = vpack.c.b16 %v6326, %v6322
        %v6815 = vpack.c.b16 %v6331, %v6327
        %v6816 = vpack.c.b16 %v6332, %v6328
        %v6817 = vpack.c.b16 %v6333, %v6329
        %v6818 = vpack.c.b16 %v6334, %v6330
        %v6819 = vpack.c.b16 %v6339, %v6335
        %v6820 = vpack.c.b16 %v6340, %v6336
        %v6821 = vpack.c.b16 %v6341, %v6337
        %v6822 = vpack.c.b16 %v6342, %v6338
        %v6823 = vpack.c.b16 %v6347, %v6343
        %v6824 = vpack.c.b16 %v6348, %v6344
        %v6825 = vpack.c.b16 %v6349, %v6345
        %v6826 = vpack.c.b16 %v6350, %v6346
        %v6827 = vpack.c.b16 %v6355, %v6351
        %v6828 = vpack.c.b16 %v6356, %v6352
        %v6829 = vpack.c.b16 %v6357, %v6353
        %v6830 = vpack.c.b16 %v6358, %v6354
        %v6831 = vpack.c.b16 %v6363, %v6359
        %v6832 = vpack.c.b16 %v6364, %v6360
        %v6833 = vpack.c.b16 %v6365, %v6361
        %v6834 = vpack.c.b16 %v6366, %v6362
        %v6835 = vpack.c.b16 %v6371, %v6367
        %v6836 = vpack.c.b16 %v6372, %v6368
        %v6837 = vpack.c.b16 %v6373, %v6369
        %v6838 = vpack.c.b16 %v6374, %v6370
        %v6839 = vpack.c.b16 %v6379, %v6375
        %v6840 = vpack.c.b16 %v6380, %v6376
        %v6841 = vpack.c.b16 %v6381, %v6377
        %v6842 = vpack.c.b16 %v6382, %v6378
        %v6843 = vpack.c.b16 %v6387, %v6383
        %v6844 = vpack.c.b16 %v6388, %v6384
        %v6845 = vpack.c.b16 %v6389, %v6385
        %v6846 = vpack.c.b16 %v6390, %v6386
        %v6847 = vpack.c.b16 %v6395, %v6391
        %v6848 = vpack.c.b16 %v6396, %v6392
        %v6849 = vpack.c.b16 %v6397, %v6393
        %v6850 = vpack.c.b16 %v6398, %v6394
        %v6851 = vpack.c.b16 %v6403, %v6399
        %v6852 = vpack.c.b16 %v6404, %v6400
        %v6853 = vpack.c.b16 %v6405, %v6401
        %v6854 = vpack.c.b16 %v6406, %v6402
        %v6855 = vpack.c.b16 %v6411, %v6407
        %v6856 = vpack.c.b16 %v6412, %v6408
        %v6857 = vpack.c.b16 %v6413, %v6409
        %v6858 = vpack.c.b16 %v6414, %v6410
        %v6859 = vpack.c.b16 %v6419, %v6415
        %v6860 = vpack.c.b16 %v6420, %v6416
        %v6861 = vpack.c.b16 %v6421, %v6417
        %v6862 = vpack.c.b16 %v6422, %v6418
        %v6863 = vpack.c.b16 %v6427, %v6423
        %v6864 = vpack.c.b16 %v6428, %v6424
        %v6865 = vpack.c.b16 %v6429, %v6425
        %v6866 = vpack.c.b16 %v6430, %v6426
        %v6867 = vpack.c.b16 %v6435, %v6431
        %v6868 = vpack.c.b16 %v6436, %v6432
        %v6869 = vpack.c.b16 %v6437, %v6433
        %v6870 = vpack.c.b16 %v6438, %v6434
        %v6871 = vpack.c.b16 %v6443, %v6439
        %v6872 = vpack.c.b16 %v6444, %v6440
        %v6873 = vpack.c.b16 %v6445, %v6441
        %v6874 = vpack.c.b16 %v6446, %v6442
        %v6875 = vpack.c.b16 %v6451, %v6447
        %v6876 = vpack.c.b16 %v6452, %v6448
        %v6877 = vpack.c.b16 %v6453, %v6449
        %v6878 = vpack.c.b16 %v6454, %v6450
        %v6879 = vpack.c.b16 %v6459, %v6455
        %v6880 = vpack.c.b16 %v6460, %v6456
        %v6881 = vpack.c.b16 %v6461, %v6457
        %v6882 = vpack.c.b16 %v6462, %v6458
        %v6883 = vpack.c.b16 %v6467, %v6463
        %v6884 = vpack.c.b16 %v6468, %v6464
        %v6885 = vpack.c.b16 %v6469, %v6465
        %v6886 = vpack.c.b16 %v6470, %v6466
        %v6887 = vpack.c.b16 %v6475, %v6471
        %v6888 = vpack.c.b16 %v6476, %v6472
        %v6889 = vpack.c.b16 %v6477, %v6473
        %v6890 = vpack.c.b16 %v6478, %v6474
        %v6891 = vpack.c.b16 %v6483, %v6479
        %v6892 = vpack.c.b16 %v6484, %v6480
        %v6893 = vpack.c.b16 %v6485, %v6481
        %v6894 = vpack.c.b16 %v6486, %v6482
        %v6895 = vpack.c.b16 %v6491, %v6487
        %v6896 = vpack.c.b16 %v6492, %v6488
        %v6897 = vpack.c.b16 %v6493, %v6489
        %v6898 = vpack.c.b16 %v6494, %v6490
        %v6899 = vpack.c.b16 %v6499, %v6495
        %v6900 = vpack.c.b16 %v6500, %v6496
        %v6901 = vpack.c.b16 %v6501, %v6497
        %v6902 = vpack.c.b16 %v6502, %v6498
        %v6903 = vpack.c.b16 %v6507, %v6503
        %v6904 = vpack.c.b16 %v6508, %v6504
        %v6905 = vpack.c.b16 %v6509, %v6505
        %v6906 = vpack.c.b16 %v6510, %v6506
        %v6907 = vpack.c.b16 %v6515, %v6511
        %v6908 = vpack.c.b16 %v6516, %v6512
        %v6909 = vpack.c.b16 %v6517, %v6513
        %v6910 = vpack.c.b16 %v6518, %v6514
        %v6911 = vpack.c.b16 %v6523, %v6519
        %v6912 = vpack.c.b16 %v6524, %v6520
        %v6913 = vpack.c.b16 %v6525, %v6521
        %v6914 = vpack.c.b16 %v6526, %v6522
        %v6915 = vpack.c.b16 %v6531, %v6527
        %v6916 = vpack.c.b16 %v6532, %v6528
        %v6917 = vpack.c.b16 %v6533, %v6529
        %v6918 = vpack.c.b16 %v6534, %v6530
        %v6919 = vpack.c.b16 %v6539, %v6535
        %v6920 = vpack.c.b16 %v6540, %v6536
        %v6921 = vpack.c.b16 %v6541, %v6537
        %v6922 = vpack.c.b16 %v6542, %v6538
        %v6923 = vpack.c.b16 %v6547, %v6543
        %v6924 = vpack.c.b16 %v6548, %v6544
        %v6925 = vpack.c.b16 %v6549, %v6545
        %v6926 = vpack.c.b16 %v6550, %v6546
        %v6927 = vpack.c.b16 %v6555, %v6551
        %v6928 = vpack.c.b16 %v6556, %v6552
        %v6929 = vpack.c.b16 %v6557, %v6553
        %v6930 = vpack.c.b16 %v6558, %v6554
        %v6931 = vpack.c.b16 %v6563, %v6559
        %v6932 = vpack.c.b16 %v6564, %v6560
        %v6933 = vpack.c.b16 %v6565, %v6561
        %v6934 = vpack.c.b16 %v6566, %v6562
        %v6935 = vpack.c.b16 %v6571, %v6567
        %v6936 = vpack.c.b16 %v6572, %v6568
        %v6937 = vpack.c.b16 %v6573, %v6569
        %v6938 = vpack.c.b16 %v6574, %v6570
        %v6939 = vpack.c.b16 %v6579, %v6575
        %v6940 = vpack.c.b16 %v6580, %v6576
        %v6941 = vpack.c.b16 %v6581, %v6577
        %v6942 = vpack.c.b16 %v6582, %v6578
        %v6943 = vpack.c.b16 %v6587, %v6583
        %v6944 = vpack.c.b16 %v6588, %v6584
        %v6945 = vpack.c.b16 %v6589, %v6585
        %v6946 = vpack.c.b16 %v6590, %v6586
        %v6947 = vpack.c.b16 %v6595, %v6591
        %v6948 = vpack.c.b16 %v6596, %v6592
        %v6949 = vpack.c.b16 %v6597, %v6593
        %v6950 = vpack.c.b16 %v6598, %v6594
        %v6951 = vpack.c.b16 %v6603, %v6599
        %v6952 = vpack.c.b16 %v6604, %v6600
        %v6953 = vpack.c.b16 %v6605, %v6601
        %v6954 = vpack.c.b16 %v6606, %v6602
        %v6955 = vpack.c.b16 %v6611, %v6607
        %v6956 = vpack.c.b16 %v6612, %v6608
        %v6957 = vpack.c.b16 %v6613, %v6609
        %v6958 = vpack.c.b16 %v6614, %v6610
        %v6959 = vpack.c.b16 %v6619, %v6615
        %v6960 = vpack.c.b16 %v6620, %v6616
        %v6961 = vpack.c.b16 %v6621, %v6617
        %v6962 = vpack.c.b16 %v6622, %v6618
        %v6963 = vpack.c.b16 %v6627, %v6623
        %v6964 = vpack.c.b16 %v6628, %v6624
        %v6965 = vpack.c.b16 %v6629, %v6625
        %v6966 = vpack.c.b16 %v6630, %v6626
        %v6967 = vpack.c.b16 %v6635, %v6631
        %v6968 = vpack.c.b16 %v6636, %v6632
        %v6969 = vpack.c.b16 %v6637, %v6633
        %v6970 = vpack.c.b16 %v6638, %v6634
        %v6971 = vpack.c.b16 %v6643, %v6639
        %v6972 = vpack.c.b16 %v6644, %v6640
        %v6973 = vpack.c.b16 %v6645, %v6641
        %v6974 = vpack.c.b16 %v6646, %v6642
        %v6975 = vpack.c.b16 %v6651, %v6647
        %v6976 = vpack.c.b16 %v6652, %v6648
        %v6977 = vpack.c.b16 %v6653, %v6649
        %v6978 = vpack.c.b16 %v6654, %v6650
        %v6979 = vpack.c.b16 %v6659, %v6655
        %v6980 = vpack.c.b16 %v6660, %v6656
        %v6981 = vpack.c.b16 %v6661, %v6657
        %v6982 = vpack.c.b16 %v6662, %v6658
        %7303 = vmatprep.subr.bf16.mxu0 %v6664
        %7304 = vmatpush1.bf16.msra.mxu0 %v6663
        %7305 = vmatprep.subr.bf16.mxu0 %v6668
        %7306 = vmatpush1.bf16.msra.mxu0 %v6667
        %7307 = vmatprep.subr.bf16.mxu0 %v6672
        %7308 = vmatpush1.bf16.msra.mxu0 %v6671
        %7309 = vmatprep.subr.bf16.mxu0 %v6676
        %7310 = vmatpush1.bf16.msra.mxu0 %v6675
        %7311 = vmatprep.subr.bf16.mxu0 %v6680
        %7312 = vmatpush1.bf16.msra.mxu0 %v6679
        %7313 = vmatprep.subr.bf16.mxu0 %v6684
        %7314 = vmatpush1.bf16.msra.mxu0 %v6683
        %7315 = vmatprep.subr.bf16.mxu0 %v6688
        %7316 = vmatpush1.bf16.msra.mxu0 %v6687
        %7317 = vmatprep.subr.bf16.mxu0 %v6692
        %7318 = vmatpush1.bf16.msra.mxu0 %v6691
        %7319 = vmatprep.subr.bf16.mxu0 %v6696
        %7320 = vmatpush1.bf16.msra.mxu0 %v6695
        %7321 = vmatprep.subr.bf16.mxu0 %v6700
        %7322 = vmatpush1.bf16.msra.mxu0 %v6699
        %7323 = vmatprep.subr.bf16.mxu0 %v6704
        %7324 = vmatpush1.bf16.msra.mxu0 %v6703
        %7325 = vmatprep.subr.bf16.mxu0 %v6708
        %7326 = vmatpush1.bf16.msra.mxu0 %v6707
        %7327 = vmatprep.subr.bf16.mxu0 %v6712
        %7328 = vmatpush1.bf16.msra.mxu0 %v6711
        %7329 = vmatprep.subr.bf16.mxu0 %v6716
        %7330 = vmatpush1.bf16.msra.mxu0 %v6715
        %7331 = vmatprep.subr.bf16.mxu0 %v6720
        %7332 = vmatpush1.bf16.msra.mxu0 %v6719
        %7333 = vmatprep.subr.bf16.mxu0 %v6724
        %7334 = vmatpush1.bf16.msra.mxu0 %v6723
        %7335 = vmatprep.mubr.bf16.mxu0 %v5352
        %7336 = vmatmul.mubr.bf16.gmra.mrb[0].mxu0 %v5351
        %v7337 = vpop.f32.mrb[0].mxu0
        %v7338 = vadd.f32 %v5686, %v7337
        %v7339 = vpop.f32.mrb[0].mxu0
        %v7340 = vadd.f32 %v5690, %v7339
        %v7341 = vpop.f32.mrb[0].mxu0
        %v7342 = vadd.f32 %v5686, %v7341
        %v7343 = vpop.f32.mrb[0].mxu0
        %v7344 = vadd.f32 %v5690, %v7343
        %7345 = vdwg.mxu0
        %7346 = vmatprep.subr.bf16.mxu0 %v6728
        %7347 = vmatpush1.bf16.msra.mxu0 %v6727
        %7348 = vmatprep.subr.bf16.mxu0 %v6732
        %7349 = vmatpush1.bf16.msra.mxu0 %v6731
        %7350 = vmatprep.subr.bf16.mxu0 %v6736
        %7351 = vmatpush1.bf16.msra.mxu0 %v6735
        %7352 = vmatprep.subr.bf16.mxu0 %v6740
        %7353 = vmatpush1.bf16.msra.mxu0 %v6739
        %7354 = vmatprep.subr.bf16.mxu0 %v6744
        %7355 = vmatpush1.bf16.msra.mxu0 %v6743
        %7356 = vmatprep.subr.bf16.mxu0 %v6748
        %7357 = vmatpush1.bf16.msra.mxu0 %v6747
        %7358 = vmatprep.subr.bf16.mxu0 %v6752
        %7359 = vmatpush1.bf16.msra.mxu0 %v6751
        %7360 = vmatprep.subr.bf16.mxu0 %v6756
        %7361 = vmatpush1.bf16.msra.mxu0 %v6755
        %7362 = vmatprep.subr.bf16.mxu0 %v6760
        %7363 = vmatpush1.bf16.msra.mxu0 %v6759
        %7364 = vmatprep.subr.bf16.mxu0 %v6764
        %7365 = vmatpush1.bf16.msra.mxu0 %v6763
        %7366 = vmatprep.subr.bf16.mxu0 %v6768
        %7367 = vmatpush1.bf16.msra.mxu0 %v6767
        %7368 = vmatprep.subr.bf16.mxu0 %v6772
        %7369 = vmatpush1.bf16.msra.mxu0 %v6771
        %7370 = vmatprep.subr.bf16.mxu0 %v6776
        %7371 = vmatpush1.bf16.msra.mxu0 %v6775
        %7372 = vmatprep.subr.bf16.mxu0 %v6780
        %7373 = vmatpush1.bf16.msra.mxu0 %v6779
        %7374 = vmatprep.subr.bf16.mxu0 %v6784
        %7375 = vmatpush1.bf16.msra.mxu0 %v6783
        %7376 = vmatprep.subr.bf16.mxu0 %v6788
        %7377 = vmatpush1.bf16.msra.mxu0 %v6787
        %7378 = vmatprep.mubr.bf16.mxu0 %v5354
        %7379 = vmatmul.mubr.bf16.gmra.mrb[0].mxu0 %v5353
        %v7380 = vpop.f32.mrb[0].mxu0
        %v7381 = vadd.f32 %v7338, %v7380
        %v7382 = vpop.f32.mrb[0].mxu0
        %v7383 = vadd.f32 %v7340, %v7382
        %v7384 = vpop.f32.mrb[0].mxu0
        %v7385 = vadd.f32 %v7342, %v7384
        %v7386 = vpop.f32.mrb[0].mxu0
        %v7387 = vadd.f32 %v7344, %v7386
        %7388 = vdwg.mxu0
        %7389 = vmatprep.subr.bf16.mxu0 %v6792
        %7390 = vmatpush1.bf16.msra.mxu0 %v6791
        %7391 = vmatprep.subr.bf16.mxu0 %v6796
        %7392 = vmatpush1.bf16.msra.mxu0 %v6795
        %7393 = vmatprep.subr.bf16.mxu0 %v6800
        %7394 = vmatpush1.bf16.msra.mxu0 %v6799
        %7395 = vmatprep.subr.bf16.mxu0 %v6804
        %7396 = vmatpush1.bf16.msra.mxu0 %v6803
        %7397 = vmatprep.subr.bf16.mxu0 %v6808
        %7398 = vmatpush1.bf16.msra.mxu0 %v6807
        %7399 = vmatprep.subr.bf16.mxu0 %v6812
        %7400 = vmatpush1.bf16.msra.mxu0 %v6811
        %7401 = vmatprep.subr.bf16.mxu0 %v6816
        %7402 = vmatpush1.bf16.msra.mxu0 %v6815
        %7403 = vmatprep.subr.bf16.mxu0 %v6820
        %7404 = vmatpush1.bf16.msra.mxu0 %v6819
        %7405 = vmatprep.subr.bf16.mxu0 %v6824
        %7406 = vmatpush1.bf16.msra.mxu0 %v6823
        %7407 = vmatprep.subr.bf16.mxu0 %v6828
        %7408 = vmatpush1.bf16.msra.mxu0 %v6827
        %7409 = vmatprep.subr.bf16.mxu0 %v6832
        %7410 = vmatpush1.bf16.msra.mxu0 %v6831
        %7411 = vmatprep.subr.bf16.mxu0 %v6836
        %7412 = vmatpush1.bf16.msra.mxu0 %v6835
        %7413 = vmatprep.subr.bf16.mxu0 %v6840
        %7414 = vmatpush1.bf16.msra.mxu0 %v6839
        %7415 = vmatprep.subr.bf16.mxu0 %v6844
        %7416 = vmatpush1.bf16.msra.mxu0 %v6843
        %7417 = vmatprep.subr.bf16.mxu0 %v6848
        %7418 = vmatpush1.bf16.msra.mxu0 %v6847
        %7419 = vmatprep.subr.bf16.mxu0 %v6852
        %7420 = vmatpush1.bf16.msra.mxu0 %v6851
        %7421 = vmatprep.mubr.bf16.mxu0 %v5356
        %7422 = vmatmul.mubr.bf16.gmra.mrb[0].mxu0 %v5355
        %v7423 = vpop.f32.mrb[0].mxu0
        %v7424 = vadd.f32 %v7381, %v7423
        %v7425 = vpop.f32.mrb[0].mxu0
        %v7426 = vadd.f32 %v7383, %v7425
        %v7427 = vpop.f32.mrb[0].mxu0
        %v7428 = vadd.f32 %v7385, %v7427
        %v7429 = vpop.f32.mrb[0].mxu0
        %v7430 = vadd.f32 %v7387, %v7429
        %7431 = vdwg.mxu0
        %7432 = vmatprep.subr.bf16.mxu0 %v6856
        %7433 = vmatpush1.bf16.msra.mxu0 %v6855
        %7434 = vmatprep.subr.bf16.mxu0 %v6860
        %7435 = vmatpush1.bf16.msra.mxu0 %v6859
        %7436 = vmatprep.subr.bf16.mxu0 %v6864
        %7437 = vmatpush1.bf16.msra.mxu0 %v6863
        %7438 = vmatprep.subr.bf16.mxu0 %v6868
        %7439 = vmatpush1.bf16.msra.mxu0 %v6867
        %7440 = vmatprep.subr.bf16.mxu0 %v6872
        %7441 = vmatpush1.bf16.msra.mxu0 %v6871
        %7442 = vmatprep.subr.bf16.mxu0 %v6876
        %7443 = vmatpush1.bf16.msra.mxu0 %v6875
        %7444 = vmatprep.subr.bf16.mxu0 %v6880
        %7445 = vmatpush1.bf16.msra.mxu0 %v6879
        %7446 = vmatprep.subr.bf16.mxu0 %v6884
        %7447 = vmatpush1.bf16.msra.mxu0 %v6883
        %7448 = vmatprep.subr.bf16.mxu0 %v6888
        %7449 = vmatpush1.bf16.msra.mxu0 %v6887
        %7450 = vmatprep.subr.bf16.mxu0 %v6892
        %7451 = vmatpush1.bf16.msra.mxu0 %v6891
        %7452 = vmatprep.subr.bf16.mxu0 %v6896
        %7453 = vmatpush1.bf16.msra.mxu0 %v6895
        %7454 = vmatprep.subr.bf16.mxu0 %v6900
        %7455 = vmatpush1.bf16.msra.mxu0 %v6899
        %7456 = vmatprep.subr.bf16.mxu0 %v6904
        %7457 = vmatpush1.bf16.msra.mxu0 %v6903
        %7458 = vmatprep.subr.bf16.mxu0 %v6908
        %7459 = vmatpush1.bf16.msra.mxu0 %v6907
        %7460 = vmatprep.subr.bf16.mxu0 %v6912
        %7461 = vmatpush1.bf16.msra.mxu0 %v6911
        %7462 = vmatprep.subr.bf16.mxu0 %v6916
        %7463 = vmatpush1.bf16.msra.mxu0 %v6915
        %7464 = vmatprep.mubr.bf16.mxu0 %v5358
        %7465 = vmatmul.mubr.bf16.gmra.mrb[0].mxu0 %v5357
        %v7466 = vpop.f32.mrb[0].mxu0
        %v7467 = vadd.f32 %v7424, %v7466
        %v7468 = vpop.f32.mrb[0].mxu0
        %v7469 = vadd.f32 %v7426, %v7468
        %v7470 = vpop.f32.mrb[0].mxu0
        %v7471 = vadd.f32 %v7428, %v7470
        %v7472 = vpop.f32.mrb[0].mxu0
        %v7473 = vadd.f32 %v7430, %v7472
        %7474 = vdwg.mxu0
        %7475 = vmatprep.subr.bf16.mxu0 %v6920
        %7476 = vmatpush1.bf16.msra.mxu0 %v6919
        %7477 = vmatprep.subr.bf16.mxu0 %v6924
        %7478 = vmatpush1.bf16.msra.mxu0 %v6923
        %7479 = vmatprep.subr.bf16.mxu0 %v6928
        %7480 = vmatpush1.bf16.msra.mxu0 %v6927
        %7481 = vmatprep.subr.bf16.mxu0 %v6932
        %7482 = vmatpush1.bf16.msra.mxu0 %v6931
        %7483 = vmatprep.subr.bf16.mxu0 %v6936
        %7484 = vmatpush1.bf16.msra.mxu0 %v6935
        %7485 = vmatprep.subr.bf16.mxu0 %v6940
        %7486 = vmatpush1.bf16.msra.mxu0 %v6939
        %7487 = vmatprep.subr.bf16.mxu0 %v6944
        %7488 = vmatpush1.bf16.msra.mxu0 %v6943
        %7489 = vmatprep.subr.bf16.mxu0 %v6948
        %7490 = vmatpush1.bf16.msra.mxu0 %v6947
        %7491 = vmatprep.subr.bf16.mxu0 %v6952
        %7492 = vmatpush1.bf16.msra.mxu0 %v6951
        %7493 = vmatprep.subr.bf16.mxu0 %v6956
        %7494 = vmatpush1.bf16.msra.mxu0 %v6955
        %7495 = vmatprep.subr.bf16.mxu0 %v6960
        %7496 = vmatpush1.bf16.msra.mxu0 %v6959
        %7497 = vmatprep.subr.bf16.mxu0 %v6964
        %7498 = vmatpush1.bf16.msra.mxu0 %v6963
        %7499 = vmatprep.subr.bf16.mxu0 %v6968
        %7500 = vmatpush1.bf16.msra.mxu0 %v6967
        %7501 = vmatprep.subr.bf16.mxu0 %v6972
        %7502 = vmatpush1.bf16.msra.mxu0 %v6971
        %7503 = vmatprep.subr.bf16.mxu0 %v6976
        %7504 = vmatpush1.bf16.msra.mxu0 %v6975
        %7505 = vmatprep.subr.bf16.mxu0 %v6980
        %7506 = vmatpush1.bf16.msra.mxu0 %v6979
        %7507 = vmatprep.mubr.bf16.mxu0 %v5360
        %7508 = vmatmul.mubr.bf16.gmra.mrb[0].mxu0 %v5359
        %v7509 = vpop.f32.mrb[0].mxu0
        %v7510 = vadd.f32 %v7467, %v7509
        %v7511 = vpop.f32.mrb[0].mxu0
        %v7512 = vadd.f32 %v7469, %v7511
        %v7513 = vpop.f32.mrb[0].mxu0
        %v7514 = vadd.f32 %v7471, %v7513
        %v7515 = vpop.f32.mrb[0].mxu0
        %v7516 = vadd.f32 %v7473, %v7515
        %7517 = vdwg.mxu0
        %7518 = vmatprep.subr.bf16.mxu0 %v6666
        %7519 = vmatpush1.bf16.msra.mxu0 %v6665
        %7520 = vmatprep.subr.bf16.mxu0 %v6670
        %7521 = vmatpush1.bf16.msra.mxu0 %v6669
        %7522 = vmatprep.subr.bf16.mxu0 %v6674
        %7523 = vmatpush1.bf16.msra.mxu0 %v6673
        %7524 = vmatprep.subr.bf16.mxu0 %v6678
        %7525 = vmatpush1.bf16.msra.mxu0 %v6677
        %7526 = vmatprep.subr.bf16.mxu0 %v6682
        %7527 = vmatpush1.bf16.msra.mxu0 %v6681
        %7528 = vmatprep.subr.bf16.mxu0 %v6686
        %7529 = vmatpush1.bf16.msra.mxu0 %v6685
        %7530 = vmatprep.subr.bf16.mxu0 %v6690
        %7531 = vmatpush1.bf16.msra.mxu0 %v6689
        %7532 = vmatprep.subr.bf16.mxu0 %v6694
        %7533 = vmatpush1.bf16.msra.mxu0 %v6693
        %7534 = vmatprep.subr.bf16.mxu0 %v6698
        %7535 = vmatpush1.bf16.msra.mxu0 %v6697
        %7536 = vmatprep.subr.bf16.mxu0 %v6702
        %7537 = vmatpush1.bf16.msra.mxu0 %v6701
        %7538 = vmatprep.subr.bf16.mxu0 %v6706
        %7539 = vmatpush1.bf16.msra.mxu0 %v6705
        %7540 = vmatprep.subr.bf16.mxu0 %v6710
        %7541 = vmatpush1.bf16.msra.mxu0 %v6709
        %7542 = vmatprep.subr.bf16.mxu0 %v6714
        %7543 = vmatpush1.bf16.msra.mxu0 %v6713
        %7544 = vmatprep.subr.bf16.mxu0 %v6718
        %7545 = vmatpush1.bf16.msra.mxu0 %v6717
        %7546 = vmatprep.subr.bf16.mxu0 %v6722
        %7547 = vmatpush1.bf16.msra.mxu0 %v6721
        %7548 = vmatprep.subr.bf16.mxu0 %v6726
        %7549 = vmatpush1.bf16.msra.mxu0 %v6725
        %7550 = vmatprep.mubr.bf16.mxu0 %v5352
        %7551 = vmatmul.mubr.bf16.gmra.mrb[0].mxu0 %v5351
        %v7552 = vpop.f32.mrb[0].mxu0
        %v7553 = vadd.f32 %v5694, %v7552
        %v7554 = vpop.f32.mrb[0].mxu0
        %v7555 = vadd.f32 %v5698, %v7554
        %v7556 = vpop.f32.mrb[0].mxu0
        %v7557 = vadd.f32 %v5694, %v7556
        %v7558 = vpop.f32.mrb[0].mxu0
        %v7559 = vadd.f32 %v5698, %v7558
        %7560 = vdwg.mxu0
        %7561 = vmatprep.subr.bf16.mxu0 %v6730
        %7562 = vmatpush1.bf16.msra.mxu0 %v6729
        %7563 = vmatprep.subr.bf16.mxu0 %v6734
        %7564 = vmatpush1.bf16.msra.mxu0 %v6733
        %7565 = vmatprep.subr.bf16.mxu0 %v6738
        %7566 = vmatpush1.bf16.msra.mxu0 %v6737
        %7567 = vmatprep.subr.bf16.mxu0 %v6742
        %7568 = vmatpush1.bf16.msra.mxu0 %v6741
        %7569 = vmatprep.subr.bf16.mxu0 %v6746
        %7570 = vmatpush1.bf16.msra.mxu0 %v6745
        %7571 = vmatprep.subr.bf16.mxu0 %v6750
        %7572 = vmatpush1.bf16.msra.mxu0 %v6749
        %7573 = vmatprep.subr.bf16.mxu0 %v6754
        %7574 = vmatpush1.bf16.msra.mxu0 %v6753
        %7575 = vmatprep.subr.bf16.mxu0 %v6758
        %7576 = vmatpush1.bf16.msra.mxu0 %v6757
        %7577 = vmatprep.subr.bf16.mxu0 %v6762
        %7578 = vmatpush1.bf16.msra.mxu0 %v6761
        %7579 = vmatprep.subr.bf16.mxu0 %v6766
        %7580 = vmatpush1.bf16.msra.mxu0 %v6765
        %7581 = vmatprep.subr.bf16.mxu0 %v6770
        %7582 = vmatpush1.bf16.msra.mxu0 %v6769
        %7583 = vmatprep.subr.bf16.mxu0 %v6774
        %7584 = vmatpush1.bf16.msra.mxu0 %v6773
        %7585 = vmatprep.subr.bf16.mxu0 %v6778
        %7586 = vmatpush1.bf16.msra.mxu0 %v6777
        %7587 = vmatprep.subr.bf16.mxu0 %v6782
        %7588 = vmatpush1.bf16.msra.mxu0 %v6781
        %7589 = vmatprep.subr.bf16.mxu0 %v6786
        %7590 = vmatpush1.bf16.msra.mxu0 %v6785
        %7591 = vmatprep.subr.bf16.mxu0 %v6790
        %7592 = vmatpush1.bf16.msra.mxu0 %v6789
        %7593 = vmatprep.mubr.bf16.mxu0 %v5354
        %7594 = vmatmul.mubr.bf16.gmra.mrb[0].mxu0 %v5353
        %v7595 = vpop.f32.mrb[0].mxu0
        %v7596 = vadd.f32 %v7553, %v7595
        %v7597 = vpop.f32.mrb[0].mxu0
        %v7598 = vadd.f32 %v7555, %v7597
        %v7599 = vpop.f32.mrb[0].mxu0
        %v7600 = vadd.f32 %v7557, %v7599
        %v7601 = vpop.f32.mrb[0].mxu0
        %v7602 = vadd.f32 %v7559, %v7601
        %7603 = vdwg.mxu0
        %7604 = vmatprep.subr.bf16.mxu0 %v6794
        %7605 = vmatpush1.bf16.msra.mxu0 %v6793
        %7606 = vmatprep.subr.bf16.mxu0 %v6798
        %7607 = vmatpush1.bf16.msra.mxu0 %v6797
        %7608 = vmatprep.subr.bf16.mxu0 %v6802
        %7609 = vmatpush1.bf16.msra.mxu0 %v6801
        %7610 = vmatprep.subr.bf16.mxu0 %v6806
        %7611 = vmatpush1.bf16.msra.mxu0 %v6805
        %7612 = vmatprep.subr.bf16.mxu0 %v6810
        %7613 = vmatpush1.bf16.msra.mxu0 %v6809
        %7614 = vmatprep.subr.bf16.mxu0 %v6814
        %7615 = vmatpush1.bf16.msra.mxu0 %v6813
        %7616 = vmatprep.subr.bf16.mxu0 %v6818
        %7617 = vmatpush1.bf16.msra.mxu0 %v6817
        %7618 = vmatprep.subr.bf16.mxu0 %v6822
        %7619 = vmatpush1.bf16.msra.mxu0 %v6821
        %7620 = vmatprep.subr.bf16.mxu0 %v6826
        %7621 = vmatpush1.bf16.msra.mxu0 %v6825
        %7622 = vmatprep.subr.bf16.mxu0 %v6830
        %7623 = vmatpush1.bf16.msra.mxu0 %v6829
        %7624 = vmatprep.subr.bf16.mxu0 %v6834
        %7625 = vmatpush1.bf16.msra.mxu0 %v6833
        %7626 = vmatprep.subr.bf16.mxu0 %v6838
        %7627 = vmatpush1.bf16.msra.mxu0 %v6837
        %7628 = vmatprep.subr.bf16.mxu0 %v6842
        %7629 = vmatpush1.bf16.msra.mxu0 %v6841
        %7630 = vmatprep.subr.bf16.mxu0 %v6846
        %7631 = vmatpush1.bf16.msra.mxu0 %v6845
        %7632 = vmatprep.subr.bf16.mxu0 %v6850
        %7633 = vmatpush1.bf16.msra.mxu0 %v6849
        %7634 = vmatprep.subr.bf16.mxu0 %v6854
        %7635 = vmatpush1.bf16.msra.mxu0 %v6853
        %7636 = vmatprep.mubr.bf16.mxu0 %v5356
        %7637 = vmatmul.mubr.bf16.gmra.mrb[0].mxu0 %v5355
        %v7638 = vpop.f32.mrb[0].mxu0
        %v7639 = vadd.f32 %v7596, %v7638
        %v7640 = vpop.f32.mrb[0].mxu0
        %v7641 = vadd.f32 %v7598, %v7640
        %v7642 = vpop.f32.mrb[0].mxu0
        %v7643 = vadd.f32 %v7600, %v7642
        %v7644 = vpop.f32.mrb[0].mxu0
        %v7645 = vadd.f32 %v7602, %v7644
        %7646 = vdwg.mxu0
        %7647 = vmatprep.subr.bf16.mxu0 %v6858
        %7648 = vmatpush1.bf16.msra.mxu0 %v6857
        %7649 = vmatprep.subr.bf16.mxu0 %v6862
        %7650 = vmatpush1.bf16.msra.mxu0 %v6861
        %7651 = vmatprep.subr.bf16.mxu0 %v6866
        %7652 = vmatpush1.bf16.msra.mxu0 %v6865
        %7653 = vmatprep.subr.bf16.mxu0 %v6870
        %7654 = vmatpush1.bf16.msra.mxu0 %v6869
        %7655 = vmatprep.subr.bf16.mxu0 %v6874
        %7656 = vmatpush1.bf16.msra.mxu0 %v6873
        %7657 = vmatprep.subr.bf16.mxu0 %v6878
        %7658 = vmatpush1.bf16.msra.mxu0 %v6877
        %7659 = vmatprep.subr.bf16.mxu0 %v6882
        %7660 = vmatpush1.bf16.msra.mxu0 %v6881
        %7661 = vmatprep.subr.bf16.mxu0 %v6886
        %7662 = vmatpush1.bf16.msra.mxu0 %v6885
        %7663 = vmatprep.subr.bf16.mxu0 %v6890
        %7664 = vmatpush1.bf16.msra.mxu0 %v6889
        %7665 = vmatprep.subr.bf16.mxu0 %v6894
        %7666 = vmatpush1.bf16.msra.mxu0 %v6893
        %7667 = vmatprep.subr.bf16.mxu0 %v6898
        %7668 = vmatpush1.bf16.msra.mxu0 %v6897
        %7669 = vmatprep.subr.bf16.mxu0 %v6902
        %7670 = vmatpush1.bf16.msra.mxu0 %v6901
        %7671 = vmatprep.subr.bf16.mxu0 %v6906
        %7672 = vmatpush1.bf16.msra.mxu0 %v6905
        %7673 = vmatprep.subr.bf16.mxu0 %v6910
        %7674 = vmatpush1.bf16.msra.mxu0 %v6909
        %7675 = vmatprep.subr.bf16.mxu0 %v6914
        %7676 = vmatpush1.bf16.msra.mxu0 %v6913
        %7677 = vmatprep.subr.bf16.mxu0 %v6918
        %7678 = vmatpush1.bf16.msra.mxu0 %v6917
        %7679 = vmatprep.mubr.bf16.mxu0 %v5358
        %7680 = vmatmul.mubr.bf16.gmra.mrb[0].mxu0 %v5357
        %v7681 = vpop.f32.mrb[0].mxu0
        %v7682 = vadd.f32 %v7639, %v7681
        %v7683 = vpop.f32.mrb[0].mxu0
        %v7684 = vadd.f32 %v7641, %v7683
        %v7685 = vpop.f32.mrb[0].mxu0
        %v7686 = vadd.f32 %v7643, %v7685
        %v7687 = vpop.f32.mrb[0].mxu0
        %v7688 = vadd.f32 %v7645, %v7687
        %7689 = vdwg.mxu0
        %7690 = vmatprep.subr.bf16.mxu0 %v6922
        %7691 = vmatpush1.bf16.msra.mxu0 %v6921
        %7692 = vmatprep.subr.bf16.mxu0 %v6926
        %7693 = vmatpush1.bf16.msra.mxu0 %v6925
        %7694 = vmatprep.subr.bf16.mxu0 %v6930
        %7695 = vmatpush1.bf16.msra.mxu0 %v6929
        %7696 = vmatprep.subr.bf16.mxu0 %v6934
        %7697 = vmatpush1.bf16.msra.mxu0 %v6933
        %7698 = vmatprep.subr.bf16.mxu0 %v6938
        %7699 = vmatpush1.bf16.msra.mxu0 %v6937
        %7700 = vmatprep.subr.bf16.mxu0 %v6942
        %7701 = vmatpush1.bf16.msra.mxu0 %v6941
        %7702 = vmatprep.subr.bf16.mxu0 %v6946
        %7703 = vmatpush1.bf16.msra.mxu0 %v6945
        %7704 = vmatprep.subr.bf16.mxu0 %v6950
        %7705 = vmatpush1.bf16.msra.mxu0 %v6949
        %7706 = vmatprep.subr.bf16.mxu0 %v6954
        %7707 = vmatpush1.bf16.msra.mxu0 %v6953
        %7708 = vmatprep.subr.bf16.mxu0 %v6958
        %7709 = vmatpush1.bf16.msra.mxu0 %v6957
        %7710 = vmatprep.subr.bf16.mxu0 %v6962
        %7711 = vmatpush1.bf16.msra.mxu0 %v6961
        %7712 = vmatprep.subr.bf16.mxu0 %v6966
        %7713 = vmatpush1.bf16.msra.mxu0 %v6965
        %7714 = vmatprep.subr.bf16.mxu0 %v6970
        %7715 = vmatpush1.bf16.msra.mxu0 %v6969
        %7716 = vmatprep.subr.bf16.mxu0 %v6974
        %7717 = vmatpush1.bf16.msra.mxu0 %v6973
        %7718 = vmatprep.subr.bf16.mxu0 %v6978
        %7719 = vmatpush1.bf16.msra.mxu0 %v6977
        %7720 = vmatprep.subr.bf16.mxu0 %v6982
        %7721 = vmatpush1.bf16.msra.mxu0 %v6981
        %7722 = vmatprep.mubr.bf16.mxu0 %v5360
        %7723 = vmatmul.mubr.bf16.gmra.mrb[0].mxu0 %v5359
        %v7724 = vpop.f32.mrb[0].mxu0
        %v7725 = vadd.f32 %v7682, %v7724
        %v7726 = vpop.f32.mrb[0].mxu0
        %v7727 = vadd.f32 %v7684, %v7726
        %v7728 = vpop.f32.mrb[0].mxu0
        %v7729 = vadd.f32 %v7686, %v7728
        %v7730 = vpop.f32.mrb[0].mxu0
        %v7731 = vadd.f32 %v7688, %v7730
        %7732 = vdwg.mxu0
        %v7733 = vsub.f32 0.0, %v7510
        %v7734 = vsub.f32 0.0, %v7512
        %v7735 = vsub.f32 0.0, %v7725
        %v7736 = vsub.f32 0.0, %v7727
        %v7737 = vsub.f32 0.0, %v7514
        %v7738 = vsub.f32 0.0, %v7516
        %v7739 = vsub.f32 0.0, %v7729
        %v7740 = vsub.f32 0.0, %v7731
        %v7741 = vmul.f32 %v7733, 1.442695
        %v7742 = vpow.pop %v7741
        %v7743 = vmul.f32 %v7734, 1.442695
        %v7744 = vpow.pop %v7743
        %v7745 = vmul.f32 %v7735, 1.442695
        %v7746 = vpow.pop %v7745
        %v7747 = vmul.f32 %v7736, 1.442695
        %v7748 = vpow.pop %v7747
        %v7749 = vmul.f32 %v7737, 1.442695
        %v7750 = vpow.pop %v7749
        %v7751 = vmul.f32 %v7738, 1.442695
        %v7752 = vpow.pop %v7751
        %v7753 = vmul.f32 %v7739, 1.442695
        %v7754 = vpow.pop %v7753
        %v7755 = vmul.f32 %v7740, 1.442695
        %v7756 = vpow.pop %v7755
        %v7757 = vadd.f32 %v7742, 1.0
        %v7758 = vadd.f32 %v7744, 1.0
        %v7759 = vadd.f32 %v7746, 1.0
        %v7760 = vadd.f32 %v7748, 1.0
        %v7761 = vadd.f32 %v7750, 1.0
        %v7762 = vadd.f32 %v7752, 1.0
        %v7763 = vadd.f32 %v7754, 1.0
        %v7764 = vadd.f32 %v7756, 1.0
        %v7765 = vrcp.pop %v7757
        %v7766 = vrcp.pop %v7758
        %v7767 = vrcp.pop %v7759
        %v7768 = vrcp.pop %v7760
        %v7769 = vrcp.pop %v7761
        %v7770 = vrcp.pop %v7762
        %v7771 = vrcp.pop %v7763
        %v7772 = vrcp.pop %v7764
        %v7773 = vpack.c.bf16 %v7769, %v7765
        %v7774 = vpack.c.bf16 %v7770, %v7766
        %v7775 = vpack.c.bf16 %v7771, %v7767
        %v7776 = vpack.c.bf16 %v7772, %v7768
        %v7777 = vld [vmem:[#allocation9] sm:$0xf]
        %v7778 = vld [vmem:[#allocation9 + $0x4] sm:$0xf]
        %v7779 = vld [vmem:[#allocation9 + $0x8] sm:$0xf]
        %v7780 = vld [vmem:[#allocation9 + $0xc] sm:$0xf]
        %v7781 = vld [vmem:[#allocation9 + $0x10] sm:$0xf]
        %v7782 = vld [vmem:[#allocation9 + $0x14] sm:$0xf]
        %v7783 = vld [vmem:[#allocation9 + $0x18] sm:$0xf]
        %v7784 = vld [vmem:[#allocation9 + $0x1c] sm:$0xf]
        %v7785 = vld [vmem:[#allocation9 + $0x20] sm:$0xf]
        %v7786 = vld [vmem:[#allocation9 + $0x24] sm:$0xf]
        %v7787 = vld [vmem:[#allocation9 + $0x28] sm:$0xf]
        %v7788 = vld [vmem:[#allocation9 + $0x2c] sm:$0xf]
        %v7789 = vld [vmem:[#allocation9 + $0x30] sm:$0xf]
        %v7790 = vld [vmem:[#allocation9 + $0x34] sm:$0xf]
        %v7791 = vld [vmem:[#allocation9 + $0x38] sm:$0xf]
        %v7792 = vld [vmem:[#allocation9 + $0x3c] sm:$0xf]
        %v7793 = vld [vmem:[#allocation9 + $0x40] sm:$0xf]
        %v7794 = vld [vmem:[#allocation9 + $0x44] sm:$0xf]
        %v7795 = vld [vmem:[#allocation9 + $0x48] sm:$0xf]
        %v7796 = vld [vmem:[#allocation9 + $0x4c] sm:$0xf]
        %v7797 = vld [vmem:[#allocation9 + $0x50] sm:$0xf]
        %v7798 = vld [vmem:[#allocation9 + $0x54] sm:$0xf]
        %v7799 = vld [vmem:[#allocation9 + $0x58] sm:$0xf]
        %v7800 = vld [vmem:[#allocation9 + $0x5c] sm:$0xf]
        %v7801 = vld [vmem:[#allocation9 + $0x60] sm:$0xf]
        %v7802 = vld [vmem:[#allocation9 + $0x64] sm:$0xf]
        %v7803 = vld [vmem:[#allocation9 + $0x68] sm:$0xf]
        %v7804 = vld [vmem:[#allocation9 + $0x6c] sm:$0xf]
        %v7805 = vld [vmem:[#allocation9 + $0x70] sm:$0xf]
        %v7806 = vld [vmem:[#allocation9 + $0x74] sm:$0xf]
        %v7807 = vld [vmem:[#allocation9 + $0x78] sm:$0xf]
        %v7808 = vld [vmem:[#allocation9 + $0x7c] sm:$0xf]
        %v7809 = vld [vmem:[#allocation9 + $0x80] sm:$0xf]
        %v7810 = vld [vmem:[#allocation9 + $0x84] sm:$0xf]
        %v7811 = vld [vmem:[#allocation9 + $0x88] sm:$0xf]
        %v7812 = vld [vmem:[#allocation9 + $0x8c] sm:$0xf]
        %v7813 = vld [vmem:[#allocation9 + $0x90] sm:$0xf]
        %v7814 = vld [vmem:[#allocation9 + $0x94] sm:$0xf]
        %v7815 = vld [vmem:[#allocation9 + $0x98] sm:$0xf]
        %v7816 = vld [vmem:[#allocation9 + $0x9c] sm:$0xf]
        %v7817 = vld [vmem:[#allocation9 + $0xa0] sm:$0xf]
        %v7818 = vld [vmem:[#allocation9 + $0xa4] sm:$0xf]
        %v7819 = vld [vmem:[#allocation9 + $0xa8] sm:$0xf]
        %v7820 = vld [vmem:[#allocation9 + $0xac] sm:$0xf]
        %v7821 = vld [vmem:[#allocation9 + $0xb0] sm:$0xf]
        %v7822 = vld [vmem:[#allocation9 + $0xb4] sm:$0xf]
        %v7823 = vld [vmem:[#allocation9 + $0xb8] sm:$0xf]
        %v7824 = vld [vmem:[#allocation9 + $0xbc] sm:$0xf]
        %v7825 = vld [vmem:[#allocation9 + $0xc0] sm:$0xf]
        %v7826 = vld [vmem:[#allocation9 + $0xc4] sm:$0xf]
        %v7827 = vld [vmem:[#allocation9 + $0xc8] sm:$0xf]
        %v7828 = vld [vmem:[#allocation9 + $0xcc] sm:$0xf]
        %v7829 = vld [vmem:[#allocation9 + $0xd0] sm:$0xf]
        %v7830 = vld [vmem:[#allocation9 + $0xd4] sm:$0xf]
        %v7831 = vld [vmem:[#allocation9 + $0xd8] sm:$0xf]
        %v7832 = vld [vmem:[#allocation9 + $0xdc] sm:$0xf]
        %v7833 = vld [vmem:[#allocation9 + $0xe0] sm:$0xf]
        %v7834 = vld [vmem:[#allocation9 + $0xe4] sm:$0xf]
        %v7835 = vld [vmem:[#allocation9 + $0xe8] sm:$0xf]
        %v7836 = vld [vmem:[#allocation9 + $0xec] sm:$0xf]
        %v7837 = vld [vmem:[#allocation9 + $0xf0] sm:$0xf]
        %v7838 = vld [vmem:[#allocation9 + $0xf4] sm:$0xf]
        %v7839 = vld [vmem:[#allocation9 + $0xf8] sm:$0xf]
        %v7840 = vld [vmem:[#allocation9 + $0xfc] sm:$0xf]
        %v7841 = vld [vmem:[#allocation10] sm:$0x1]
        %v7843 = vlaneseq
        %v7844 = vshrl.u32 %v7843, 7
        %v7845 = vsub.s32 0, %v7844
        %v7846 = vrot.slane %v7841, %v7845
        %v7912 = vunpack.c.l.b16 %v7777
        %v7913 = vunpack.c.l.b16 %v7778
        %v7914 = vunpack.c.l.b16 %v7779
        %v7915 = vunpack.c.l.b16 %v7780
        %v7916 = vunpack.c.l.b16 %v7781
        %v7917 = vunpack.c.l.b16 %v7782
        %v7918 = vunpack.c.l.b16 %v7783
        %v7919 = vunpack.c.l.b16 %v7784
        %v7920 = vunpack.c.l.b16 %v7785
        %v7921 = vunpack.c.l.b16 %v7786
        %v7922 = vunpack.c.l.b16 %v7787
        %v7923 = vunpack.c.l.b16 %v7788
        %v7924 = vunpack.c.l.b16 %v7789
        %v7925 = vunpack.c.l.b16 %v7790
        %v7926 = vunpack.c.l.b16 %v7791
        %v7927 = vunpack.c.l.b16 %v7792
        %v7928 = vunpack.c.l.b16 %v7793
        %v7929 = vunpack.c.l.b16 %v7794
        %v7930 = vunpack.c.l.b16 %v7795
        %v7931 = vunpack.c.l.b16 %v7796
        %v7932 = vunpack.c.l.b16 %v7797
        %v7933 = vunpack.c.l.b16 %v7798
        %v7934 = vunpack.c.l.b16 %v7799
        %v7935 = vunpack.c.l.b16 %v7800
        %v7936 = vunpack.c.l.b16 %v7801
        %v7937 = vunpack.c.l.b16 %v7802
        %v7938 = vunpack.c.l.b16 %v7803
        %v7939 = vunpack.c.l.b16 %v7804
        %v7940 = vunpack.c.l.b16 %v7805
        %v7941 = vunpack.c.l.b16 %v7806
        %v7942 = vunpack.c.l.b16 %v7807
        %v7943 = vunpack.c.l.b16 %v7808
        %v7944 = vunpack.c.l.b16 %v7809
        %v7945 = vunpack.c.l.b16 %v7810
        %v7946 = vunpack.c.l.b16 %v7811
        %v7947 = vunpack.c.l.b16 %v7812
        %v7948 = vunpack.c.l.b16 %v7813
        %v7949 = vunpack.c.l.b16 %v7814
        %v7950 = vunpack.c.l.b16 %v7815
        %v7951 = vunpack.c.l.b16 %v7816
        %v7952 = vunpack.c.l.b16 %v7817
        %v7953 = vunpack.c.l.b16 %v7818
        %v7954 = vunpack.c.l.b16 %v7819
        %v7955 = vunpack.c.l.b16 %v7820
        %v7956 = vunpack.c.l.b16 %v7821
        %v7957 = vunpack.c.l.b16 %v7822
        %v7958 = vunpack.c.l.b16 %v7823
        %v7959 = vunpack.c.l.b16 %v7824
        %v7960 = vunpack.c.l.b16 %v7825
        %v7961 = vunpack.c.l.b16 %v7826
        %v7962 = vunpack.c.l.b16 %v7827
        %v7963 = vunpack.c.l.b16 %v7828
        %v7964 = vunpack.c.l.b16 %v7829
        %v7965 = vunpack.c.l.b16 %v7830
        %v7966 = vunpack.c.l.b16 %v7831
        %v7967 = vunpack.c.l.b16 %v7832
        %v7968 = vunpack.c.l.b16 %v7833
        %v7969 = vunpack.c.l.b16 %v7834
        %v7970 = vunpack.c.l.b16 %v7835
        %v7971 = vunpack.c.l.b16 %v7836
        %v7972 = vunpack.c.l.b16 %v7837
        %v7973 = vunpack.c.l.b16 %v7838
        %v7974 = vunpack.c.l.b16 %v7839
        %v7975 = vunpack.c.l.b16 %v7840
        %v7976 = vpack.c.b16 %v7913, %v7912
        %v7977 = vpack.c.b16 %v7915, %v7914
        %v7978 = vpack.c.b16 %v7917, %v7916
        %v7979 = vpack.c.b16 %v7919, %v7918
        %v7980 = vpack.c.b16 %v7921, %v7920
        %v7981 = vpack.c.b16 %v7923, %v7922
        %v7982 = vpack.c.b16 %v7925, %v7924
        %v7983 = vpack.c.b16 %v7927, %v7926
        %v7984 = vpack.c.b16 %v7929, %v7928
        %v7985 = vpack.c.b16 %v7931, %v7930
        %v7986 = vpack.c.b16 %v7933, %v7932
        %v7987 = vpack.c.b16 %v7935, %v7934
        %v7988 = vpack.c.b16 %v7937, %v7936
        %v7989 = vpack.c.b16 %v7939, %v7938
        %v7990 = vpack.c.b16 %v7941, %v7940
        %v7991 = vpack.c.b16 %v7943, %v7942
        %v7992 = vpack.c.b16 %v7945, %v7944
        %v7993 = vpack.c.b16 %v7947, %v7946
        %v7994 = vpack.c.b16 %v7949, %v7948
        %v7995 = vpack.c.b16 %v7951, %v7950
        %v7996 = vpack.c.b16 %v7953, %v7952
        %v7997 = vpack.c.b16 %v7955, %v7954
        %v7998 = vpack.c.b16 %v7957, %v7956
        %v7999 = vpack.c.b16 %v7959, %v7958
        %v8000 = vpack.c.b16 %v7961, %v7960
        %v8001 = vpack.c.b16 %v7963, %v7962
        %v8002 = vpack.c.b16 %v7965, %v7964
        %v8003 = vpack.c.b16 %v7967, %v7966
        %v8004 = vpack.c.b16 %v7969, %v7968
        %v8005 = vpack.c.b16 %v7971, %v7970
        %v8006 = vpack.c.b16 %v7973, %v7972
        %v8007 = vpack.c.b16 %v7975, %v7974
        %8040 = vmatprep.subr.bf16.mxu0 0
        %8041 = vmatpush1.bf16.msra.mxu0 %v7976
        %8042 = vmatprep.subr.bf16.mxu0 0
        %8043 = vmatpush1.bf16.msra.mxu0 %v7977
        %8044 = vmatprep.subr.bf16.mxu0 0
        %8045 = vmatpush1.bf16.msra.mxu0 %v7978
        %8046 = vmatprep.subr.bf16.mxu0 0
        %8047 = vmatpush1.bf16.msra.mxu0 %v7979
        %8048 = vmatprep.subr.bf16.mxu0 0
        %8049 = vmatpush1.bf16.msra.mxu0 %v7980
        %8050 = vmatprep.subr.bf16.mxu0 0
        %8051 = vmatpush1.bf16.msra.mxu0 %v7981
        %8052 = vmatprep.subr.bf16.mxu0 0
        %8053 = vmatpush1.bf16.msra.mxu0 %v7982
        %8054 = vmatprep.subr.bf16.mxu0 0
        %8055 = vmatpush1.bf16.msra.mxu0 %v7983
        %8056 = vmatprep.subr.bf16.mxu0 0
        %8057 = vmatpush1.bf16.msra.mxu0 %v7984
        %8058 = vmatprep.subr.bf16.mxu0 0
        %8059 = vmatpush1.bf16.msra.mxu0 %v7985
        %8060 = vmatprep.subr.bf16.mxu0 0
        %8061 = vmatpush1.bf16.msra.mxu0 %v7986
        %8062 = vmatprep.subr.bf16.mxu0 0
        %8063 = vmatpush1.bf16.msra.mxu0 %v7987
        %8064 = vmatprep.subr.bf16.mxu0 0
        %8065 = vmatpush1.bf16.msra.mxu0 %v7988
        %8066 = vmatprep.subr.bf16.mxu0 0
        %8067 = vmatpush1.bf16.msra.mxu0 %v7989
        %8068 = vmatprep.subr.bf16.mxu0 0
        %8069 = vmatpush1.bf16.msra.mxu0 %v7990
        %8070 = vmatprep.subr.bf16.mxu0 0
        %8071 = vmatpush1.bf16.msra.mxu0 %v7991
        %8072 = vmatprep.mubr.bf16.mxu0 %v7774
        %8073 = vmatmul.mubr.bf16.gmra.mrb[0].mxu0 %v7773
        %v8074 = vpop.f32.mrb[0].mxu0
        %v8075 = vadd.f32 %v7846, %v8074
        %v8076 = vpop.f32.mrb[0].mxu0
        %v8077 = vpop.f32.mrb[0].mxu0
        %v8078 = vadd.f32 %v7846, %v8077
        %v8079 = vpop.f32.mrb[0].mxu0
        %8080 = vdwg.mxu0
        %8081 = vmatprep.subr.bf16.mxu0 0
        %8082 = vmatpush1.bf16.msra.mxu0 %v7992
        %8083 = vmatprep.subr.bf16.mxu0 0
        %8084 = vmatpush1.bf16.msra.mxu0 %v7993
        %8085 = vmatprep.subr.bf16.mxu0 0
        %8086 = vmatpush1.bf16.msra.mxu0 %v7994
        %8087 = vmatprep.subr.bf16.mxu0 0
        %8088 = vmatpush1.bf16.msra.mxu0 %v7995
        %8089 = vmatprep.subr.bf16.mxu0 0
        %8090 = vmatpush1.bf16.msra.mxu0 %v7996
        %8091 = vmatprep.subr.bf16.mxu0 0
        %8092 = vmatpush1.bf16.msra.mxu0 %v7997
        %8093 = vmatprep.subr.bf16.mxu0 0
        %8094 = vmatpush1.bf16.msra.mxu0 %v7998
        %8095 = vmatprep.subr.bf16.mxu0 0
        %8096 = vmatpush1.bf16.msra.mxu0 %v7999
        %8097 = vmatprep.subr.bf16.mxu0 0
        %8098 = vmatpush1.bf16.msra.mxu0 %v8000
        %8099 = vmatprep.subr.bf16.mxu0 0
        %8100 = vmatpush1.bf16.msra.mxu0 %v8001
        %8101 = vmatprep.subr.bf16.mxu0 0
        %8102 = vmatpush1.bf16.msra.mxu0 %v8002
        %8103 = vmatprep.subr.bf16.mxu0 0
        %8104 = vmatpush1.bf16.msra.mxu0 %v8003
        %8105 = vmatprep.subr.bf16.mxu0 0
        %8106 = vmatpush1.bf16.msra.mxu0 %v8004
        %8107 = vmatprep.subr.bf16.mxu0 0
        %8108 = vmatpush1.bf16.msra.mxu0 %v8005
        %8109 = vmatprep.subr.bf16.mxu0 0
        %8110 = vmatpush1.bf16.msra.mxu0 %v8006
        %8111 = vmatprep.subr.bf16.mxu0 0
        %8112 = vmatpush1.bf16.msra.mxu0 %v8007
        %8113 = vmatprep.mubr.bf16.mxu0 %v7776
        %8114 = vmatmul.mubr.bf16.gmra.mrb[0].mxu0 %v7775
        %v8115 = vpop.f32.mrb[0].mxu0
        %v8116 = vadd.f32 %v8075, %v8115
        %v8117 = vpop.f32.mrb[0].mxu0
        %v8118 = vpop.f32.mrb[0].mxu0
        %v8119 = vadd.f32 %v8078, %v8118
        %v8120 = vpop.f32.mrb[0].mxu0
        %8121 = vdwg.mxu0
        %v8122 = vsub.f32 0.0, %v8116
        %v8123 = vsub.f32 0.0, %v8119
        %v8124 = vmul.f32 %v8122, 1.442695
        %v8125 = vpow.pop %v8124
        %v8126 = vmul.f32 %v8123, 1.442695
        %v8127 = vpow.pop %v8126
        %v8128 = vadd.f32 %v8125, 1.0
        %v8129 = vadd.f32 %v8127, 1.0
        %v8130 = vrcp.pop %v8128
        %v8131 = vrcp.pop %v8129
        %v8132 = vpack.c.bf16 %v8131, %v8130
        %v8133 = vld [vmem:[#allocation12] sm:$0xf]
        %v8134 = vld [vmem:[#allocation12 + $0x4] sm:$0xf]
        %v8135 = vld [vmem:[#allocation12 + $0x8] sm:$0xf]
        %v8136 = vld [vmem:[#allocation12 + $0xc] sm:$0xf]
        %v8137 = vld [vmem:[#allocation12 + $0x10] sm:$0xf]
        %v8138 = vld [vmem:[#allocation12 + $0x14] sm:$0xf]
        %v8139 = vld [vmem:[#allocation12 + $0x18] sm:$0xf]
        %v8140 = vld [vmem:[#allocation12 + $0x1c] sm:$0xf]
        %v8141 = vld [vmem:[#allocation12 + $0x20] sm:$0xf]
        %v8142 = vld [vmem:[#allocation12 + $0x24] sm:$0xf]
        %v8143 = vld [vmem:[#allocation12 + $0x28] sm:$0xf]
        %v8144 = vld [vmem:[#allocation12 + $0x2c] sm:$0xf]
        %v8145 = vld [vmem:[#allocation12 + $0x30] sm:$0xf]
        %v8146 = vld [vmem:[#allocation12 + $0x34] sm:$0xf]
        %v8147 = vld [vmem:[#allocation12 + $0x38] sm:$0xf]
        %v8148 = vld [vmem:[#allocation12 + $0x3c] sm:$0xf]
        %v8149 = vld [vmem:[#allocation13] sm:$0x1]
        %v8151 = vlaneseq
        %v8152 = vshrl.u32 %v8151, 7
        %v8153 = vsub.s32 0, %v8152
        %v8154 = vrot.slane %v8149, %v8153
        %v8172 = vunpack.c.l.b16 %v8133
        %v8173 = vunpack.c.l.b16 %v8134
        %v8174 = vunpack.c.l.b16 %v8135
        %v8175 = vunpack.c.l.b16 %v8136
        %v8176 = vunpack.c.l.b16 %v8137
        %v8177 = vunpack.c.l.b16 %v8138
        %v8178 = vunpack.c.l.b16 %v8139
        %v8179 = vunpack.c.l.b16 %v8140
        %v8180 = vunpack.c.l.b16 %v8141
        %v8181 = vunpack.c.l.b16 %v8142
        %v8182 = vunpack.c.l.b16 %v8143
        %v8183 = vunpack.c.l.b16 %v8144
        %v8184 = vunpack.c.l.b16 %v8145
        %v8185 = vunpack.c.l.b16 %v8146
        %v8186 = vunpack.c.l.b16 %v8147
        %v8187 = vunpack.c.l.b16 %v8148
        %v8188 = vpack.c.b16 %v8173, %v8172
        %v8189 = vpack.c.b16 %v8175, %v8174
        %v8190 = vpack.c.b16 %v8177, %v8176
        %v8191 = vpack.c.b16 %v8179, %v8178
        %v8192 = vpack.c.b16 %v8181, %v8180
        %v8193 = vpack.c.b16 %v8183, %v8182
        %v8194 = vpack.c.b16 %v8185, %v8184
        %v8195 = vpack.c.b16 %v8187, %v8186
        %8204 = vmatprep.subr.bf16.mxu0 0
        %8205 = vmatpush1.bf16.msra.mxu0 %v8188
        %8206 = vmatprep.subr.bf16.mxu0 0
        %8207 = vmatpush1.bf16.msra.mxu0 %v8189
        %8208 = vmatprep.subr.bf16.mxu0 0
        %8209 = vmatpush1.bf16.msra.mxu0 %v8190
        %8210 = vmatprep.subr.bf16.mxu0 0
        %8211 = vmatpush1.bf16.msra.mxu0 %v8191
        %8212 = vmatprep.subr.bf16.mxu0 0
        %8213 = vmatpush1.bf16.msra.mxu0 %v8192
        %8214 = vmatprep.subr.bf16.mxu0 0
        %8215 = vmatpush1.bf16.msra.mxu0 %v8193
        %8216 = vmatprep.subr.bf16.mxu0 0
        %8217 = vmatpush1.bf16.msra.mxu0 %v8194
        %8218 = vmatprep.subr.bf16.mxu0 0
        %8219 = vmatpush1.bf16.msra.mxu0 %v8195
        %8220 = vmatprep.subr.bf16.mxu0 0
        %8221 = vmatpush1.bf16.msra.mxu0 0
        %8222 = vmatprep.subr.bf16.mxu0 0
        %8223 = vmatpush1.bf16.msra.mxu0 0
        %8224 = vmatprep.subr.bf16.mxu0 0
        %8225 = vmatpush1.bf16.msra.mxu0 0
        %8226 = vmatprep.subr.bf16.mxu0 0
        %8227 = vmatpush1.bf16.msra.mxu0 0
        %8228 = vmatprep.subr.bf16.mxu0 0
        %8229 = vmatpush1.bf16.msra.mxu0 0
        %8230 = vmatprep.subr.bf16.mxu0 0
        %8231 = vmatpush1.bf16.msra.mxu0 0
        %8232 = vmatprep.subr.bf16.mxu0 0
        %8233 = vmatpush1.bf16.msra.mxu0 0
        %8234 = vmatprep.subr.bf16.mxu0 0
        %8235 = vmatpush1.bf16.msra.mxu0 0
        %8236 = vmatprep.mubr.bf16.mxu0 0
        %8237 = vmatmul.mubr.bf16.gmra.mrb[0].mxu0 %v8132
        %v8238 = vpop.f32.mrb[0].mxu0
        %v8239 = vadd.f32 %v8154, %v8238
        %v8240 = vpop.f32.mrb[0].mxu0
        %v8241 = vpop.f32.mrb[0].mxu0
        %v8242 = vadd.f32 %v8154, %v8241
        %v8243 = vpop.f32.mrb[0].mxu0
        %8244 = vdwg.mxu0
        %8245 = vmax.xlane.f32.xlu0 %v8239
        %v8246 = vpop.xlane.xlu0 %8245
        %8247 = vmax.xlane.f32.xlu0 %v8242
        %v8248 = vpop.xlane.xlu0 %8247
        %v8249 = vsub.f32 %v8239, %v8246
        %v8250 = vsub.f32 %v8242, %v8248
        %v8251 = vmul.f32 %v8249, 1.442695
        %v8252 = vpow.pop %v8251
        %v8253 = vmul.f32 %v8250, 1.442695
        %v8254 = vpow.pop %v8253
        %8255 = vadd.xlane.f32.xlu0 %v8252
        %v8256 = vpop.xlane.xlu0 %8255
        %8257 = vadd.xlane.f32.xlu0 %v8254
        %v8258 = vpop.xlane.xlu0 %8257
        %v8259 = vlog2.pop %v8256
        %v8260 = vmul.f32 %v8259, 0.6931472
        %v8261 = vlog2.pop %v8258
        %v8262 = vmul.f32 %v8261, 0.6931472
        %v8263 = vadd.f32 %v8246, %v8260
        %v8264 = vadd.f32 %v8248, %v8262
        %v8265 = vsub.f32 %v8239, %v8263
        %v8266 = vsub.f32 %v8242, %v8264
        %8267 = vst [vmem:[%s446] sm:$0xff] %v8265
        %8268 = vst [vmem:[%s446 + $0x8] sm:$0xff] %v8266
        %s8269 = smul.u32 2, %s25
        %p8270 = scmp.lt.s32.totalorder %s8269, 3
        %s8271 = scalar_select %p8270, %s8269, 3
        %s8272 = smul.addr %s8271, 8
        %s8273 = scalar_lea.vmem %s9, %s8272
        // Predicated region
        $region89: #{lenet5_forward.1} parent=55 // pred_check
          %p8274 = pneg %p237
        $region90: #{lenet5_forward.1} parent=55 // pred_check_branch
          %8276 = sbr.rel (%p8274) target = $region92
        $region91: #{lenet5_forward.1} parent=55 // pred_region
          %s8277 = smul.u32 2, %s25
        $region92: #{lenet5_forward.1} parent=55 // pred_fallthru
          _
      $region56: #{lenet5_forward.1} parent=5 // pred_fallthru
        _
      %p8278 = scmp.le.s32.totalorder 2, %s20
      // Predicated region
      $region93: #{lenet5_forward.1} parent=5 // pred_check
        %p8279 = pneg %p8278
      $region94: #{lenet5_forward.1} parent=5 // pred_check_branch
        %8281 = sbr.rel (%p8279) target = $region96
      $region95: #{lenet5_forward.1} parent=5 // pred_region
        %s8282 = ssub.s32 %s20, 2
        // Predicated region
        $region97: #{lenet5_forward.1} parent=95 // pred_check
          %p8283 = pneg %p243
        $region98: #{lenet5_forward.1} parent=95 // pred_check_branch
          %8285 = sbr.rel (%p8283) target = $region100
        $region99: #{lenet5_forward.1} parent=95 // pred_region
          %s8286 = smul.u32 2, %s26
          %p8287 = scmp.lt.s32.totalorder %s8286, 3
          %s8288 = scalar_select %p8287, %s8286, 3
          %s8289 = smul.addr %s8288, 8
          %s8290 = scalar_lea.vmem %s9, %s8289
        $region100: #{lenet5_forward.1} parent=95 // pred_fallthru
          _
      $region96: #{lenet5_forward.1} parent=5 // pred_fallthru
        _
    $region6: #{lenet5_forward.1} parent=1 // loop_footer
      %s24 = sadd.s32 1, %s20
    $region7: #{lenet5_forward.1} parent=1 // loop_footer_branch
      %19 = sbr.rel target = $region3
    $region8: #{lenet5_forward.1} parent=1 // loop_exit
      _
    %8291 = vsyncpa [#allocation3], 1
    %s8292 = scalar_lea.sflag [#allocation3], 1
    %8293 = vsyncpa %s8292, 1
    %8294 = vsyncpa [#allocation5], 1
    %8295 = vsyncpa [#allocation8], 1
    %8296 = vsyncpa [#allocation11], 1
    %8297 = vsyncpa [#allocation14], 1

</llo_original>
